<compile_context>
chip_gen: v6e
topology: v6e:2x2x1
jax: 0.10.0
libtpu: 0.0.40
codegen_flags: <defaults>
</compile_context>

<pallas_src>
import jax
import jax.numpy as jnp
from jax import lax
from jax.experimental import pallas as pl
from jax.experimental.pallas import tpu as pltpu

# ----------------------------- module constants ------------------------------
VOXEL_SIZE = (0.2, 0.2, 4.0)
PC_RANGE = (0.0, -40.0, -3.0, 70.4, 40.0, 1.0)
BN_EPS = 1e-3
IN_CHANNELS = 4
FEAT_CHANNELS = [16, 32]          # feat_channels list from __init__ (len > 0)

LANE = 128                        # TPU lane width
TM = 128                          # voxel rows per scatter chunk (sublane-aligned)
CG = 8                            # channel group for the scatter-max inner loop


def _round_up(x, m):
    return ((x + m - 1) // m) * m


def _vmem_cap_bytes():
    try:
        info = pltpu.get_tpu_info()
        cap = getattr(info, "vmem_capacity_bytes", None)
        if cap:
            return int(cap)
    except Exception:
        pass
    return 64 << 20               # conservative (v7x physical)


# --------------- kernel 1: BN batch-stats pass (per VFE layer) ---------------
def _make_stats_kernel(two_inputs: bool, inv_n: float, eps: float, sentinel: int):
    def kernel(*refs):
        it = iter(refs)
        vid_ref = next(it)
        x1_ref = next(it)
        x2_ref = next(it) if two_inputs else None
        w1_ref = next(it)
        w2_ref = next(it) if two_inputs else None
        gamma_ref = next(it)
        beta_ref = next(it)
        scale_ref = next(it)
        shift_ref = next(it)
        sum_acc = next(it)        # VMEM scratch [Cout, TN]
        sq_acc = next(it)         # VMEM scratch [Cout, TN]

        ni = pl.program_id(0)

        @pl.when(ni == 0)
        def _init():
            sum_acc[...] = jnp.zeros_like(sum_acc)
            sq_acc[...] = jnp.zeros_like(sq_acc)
            scale_ref[...] = jnp.zeros_like(scale_ref)
            shift_ref[...] = jnp.zeros_like(shift_ref)

        # [Cout, Cin] @ [Cin, TN] -> [Cout, TN]   (points on the 128-lane axis)
        y = jnp.dot(w1_ref[...], x1_ref[...], preferred_element_type=jnp.float32)
        if two_inputs:
            # second input is point-major [TN, C2]; contract minor dims (A @ B^T).
            y = y + lax.dot_general(
                w2_ref[...], x2_ref[...],
                dimension_numbers=(((1,), (1,)), ((), ())),
                preferred_element_type=jnp.float32)

        valid = (vid_ref[...] < sentinel).astype(jnp.float32)        # [1, TN]
        yv = y * valid
        # Lane-dense VPU accumulation only; no per-step cross-lane reduce / narrow store.
        sum_acc[...] += yv
        sq_acc[...] += yv * y

        @pl.when(ni == pl.num_programs(0) - 1)
        def _finalize():
            s1 = jnp.sum(sum_acc[...], axis=-1, keepdims=True)        # [Cout, 1]
            s2 = jnp.sum(sq_acc[...], axis=-1, keepdims=True)
            mu = s1 * inv_n
            var = jnp.maximum(s2 * inv_n - mu * mu, 0.0)              # clamp cancellation
            sc = gamma_ref[...] * lax.rsqrt(var + eps)                # EUP slot
            scale_ref[...] = sc
            shift_ref[...] = beta_ref[...] - mu * sc

    return kernel


def vfe_bn_stats(vid_row, x1_t, x2_pm, weight, gamma, beta, *, n_real, tn, sentinel):
    """Per-channel BN scale/shift for y = W1 @ x1 (+ W2 @ x2^T), training batch stats."""
    c1, n_pad = x1_t.shape
    cout = weight.shape[0]
    n_tiles = n_pad // tn
    two = x2_pm is not None

    args, in_specs = [], []
    args.append(vid_row)
    in_specs.append(pl.BlockSpec((1, tn), lambda i: (0, i)))
    args.append(x1_t)
    in_specs.append(pl.BlockSpec((c1, tn), lambda i: (0, i)))
    if two:
        c2 = x2_pm.shape[1]
        args.append(x2_pm)
        in_specs.append(pl.BlockSpec((tn, c2), lambda i: (i, 0)))
        args.append(weight[:, :c1])
        in_specs.append(pl.BlockSpec((cout, c1), lambda i: (0, 0)))
        args.append(weight[:, c1:])
        in_specs.append(pl.BlockSpec((cout, c2), lambda i: (0, 0)))
    else:
        args.append(weight)
        in_specs.append(pl.BlockSpec((cout, c1), lambda i: (0, 0)))
    args.append(gamma.reshape(cout, 1))
    in_specs.append(pl.BlockSpec((cout, 1), lambda i: (0, 0)))
    args.append(beta.reshape(cout, 1))
    in_specs.append(pl.BlockSpec((cout, 1), lambda i: (0, 0)))

    kernel = _make_stats_kernel(two, 1.0 / float(n_real), BN_EPS, sentinel)
    return pl.pallas_call(
        kernel,
        out_shape=(jax.ShapeDtypeStruct((cout, 1), jnp.float32),
                   jax.ShapeDtypeStruct((cout, 1), jnp.float32)),
        grid=(n_tiles,),
        in_specs=in_specs,
        out_specs=(pl.BlockSpec((cout, 1), lambda i: (0, 0)),
                   pl.BlockSpec((cout, 1), lambda i: (0, 0))),
        scratch_shapes=[pltpu.VMEM((cout, tn), jnp.float32),
                        pltpu.VMEM((cout, tn), jnp.float32)],
        compiler_params=pltpu.CompilerParams(
            dimension_semantics=("arbitrary",)),        # reduction over point tiles
    )(*args)


# ---- kernel 2: fused Linear(no bias) + BN(apply) + ReLU + DynamicScatter(max) ----
def _make_apply_scatter_kernel(two_inputs: bool, want_point_feats: bool,
                               tm: int, tn: int, cout: int, cg: int):
    n_groups = cout // cg

    def kernel(*refs):
        it = iter(refs)
        lo_ref = next(it)         # SMEM scalar-prefetch: first voxel chunk per tile
        hi_ref = next(it)         # SMEM scalar-prefetch: last voxel chunk per tile
        vid_ref = next(it)
        x1_ref = next(it)
        x2_ref = next(it) if two_inputs else None
        w1_ref = next(it)
        w2_ref = next(it) if two_inputs else None
        scale_ref = next(it)
        shift_ref = next(it)
        p_ref = next(it) if want_point_feats else None
        v_ref = next(it)          # resident voxel accumulator [m_pad, Cout]
        cscr = next(it)           # VMEM scratch [TM, Cout] (per-chunk contribution)

        ni = pl.program_id(0)

        @pl.when(ni == 0)
        def _init():
            # Post-ReLU point feats are >= 0, so a 0-initialized running max is exact
            # for every voxel that owns >= 1 point; empty voxel slots stay 0.
            v_ref[...] = jnp.zeros_like(v_ref)

        y = jnp.dot(w1_ref[...], x1_ref[...], preferred_element_type=jnp.float32)
        if two_inputs:
            y = y + lax.dot_general(
                w2_ref[...], x2_ref[...],
                dimension_numbers=(((1,), (1,)), ((), ())),
                preferred_element_type=jnp.float32)
        p = jnp.maximum(y * scale_ref[...] + shift_ref[...], 0.0)     # [Cout, TN]
        if want_point_feats:
            p_ref[...] = p                                            # lane-dense store

        vid = vid_ref[...]                                            # [1, TN] int32
        lo = lo_ref[ni]
        hi = hi_ref[ni]

        # Points are sorted by voxel id, so this tile only touches chunks [lo, hi].
        def chunk_body(mc, carry):
            off = pl.multiple_of(mc * tm, tm)
            m_ids = lax.broadcasted_iota(jnp.int32, (tm, tn), 0) + off
            mask = m_ids == vid                                       # [TM, TN]
            for g in range(n_groups):                                 # static, 2-4 iters
                pg = p[g * cg:(g + 1) * cg]                           # [CG, TN]
                sel = jnp.where(mask[:, None, :], pg[None, :, :], 0.0)  # [TM, CG, TN]
                cscr[:, g * cg:(g + 1) * cg] = jnp.max(sel, axis=-1)    # [TM, CG]
            cur = v_ref[pl.ds(off, tm), :]
            v_ref[pl.ds(off, tm), :] = jnp.maximum(cur, cscr[...])
            return carry

        lax.fori_loop(lo, hi + 1, chunk_body, 0)

    return kernel


def vfe_apply_scatter(chunk_lo, chunk_hi, vid_row, x1_t, x2_pm, weight, scale, shift,
                      *, m_pad, tn, want_point_feats=True):
    c1, n_pad = x1_t.shape
    cout = weight.shape[0]
    n_tiles = n_pad // tn
    two = x2_pm is not None
    cg = CG if cout % CG == 0 else cout

    args, in_specs = [], []
    args.append(vid_row)
    in_specs.append(pl.BlockSpec((1, tn), lambda i, lo, hi: (0, i)))
    args.append(x1_t)
    in_specs.append(pl.BlockSpec((c1, tn), lambda i, lo, hi: (0, i)))
    c2 = 0
    if two:
        c2 = x2_pm.shape[1]
        args.append(x2_pm)
        in_specs.append(pl.BlockSpec((tn, c2), lambda i, lo, hi: (i, 0)))
        args.append(weight[:, :c1])
        in_specs.append(pl.BlockSpec((cout, c1), lambda i, lo, hi: (0, 0)))
        args.append(weight[:, c1:])
        in_specs.append(pl.BlockSpec((cout, c2), lambda i, lo, hi: (0, 0)))
    else:
        args.append(weight)
        in_specs.append(pl.BlockSpec((cout, c1), lambda i, lo, hi: (0, 0)))
    args.append(scale)
    in_specs.append(pl.BlockSpec((cout, 1), lambda i, lo, hi: (0, 0)))
    args.append(shift)
    in_specs.append(pl.BlockSpec((cout, 1), lambda i, lo, hi: (0, 0)))

    out_shape, out_specs = [], []
    if want_point_feats:
        out_shape.append(jax.ShapeDtypeStruct((cout, n_pad), jnp.float32))
        out_specs.append(pl.BlockSpec((cout, tn), lambda i, lo, hi: (0, i)))
    out_shape.append(jax.ShapeDtypeStruct((m_pad, cout), jnp.float32))
    out_specs.append(pl.BlockSpec((m_pad, cout), lambda i, lo, hi: (0, 0)))  # resident acc

    # Explicit scoped-VMEM budget: resident voxel accumulator + double-buffered
    # streaming tiles + the bounded [TM, CG, TN] scatter intermediate + headroom.
    # (v5e default scoped limit is 16 MiB; v7x physical VMEM is only 64 MiB.)
    acc_bytes = m_pad * cout * 4
    stream_bytes = 2 * 4 * tn * (1 + c1 + c2 + (cout if want_point_feats else 0))
    interm_bytes = 2 * TM * cg * tn * 4
    budget = acc_bytes + stream_bytes + interm_bytes + (8 << 20)
    vmem_limit = int(min(max(budget, 32 << 20), int(0.8 * _vmem_cap_bytes())))

    kernel = _make_apply_scatter_kernel(two, want_point_feats, TM, tn, cout, cg)
    outs = pl.pallas_call(
        kernel,
        out_shape=tuple(out_shape),
        grid_spec=pltpu.PrefetchScalarGridSpec(
            num_scalar_prefetch=2,
            grid=(n_tiles,),
            in_specs=in_specs,
            out_specs=tuple(out_specs),
            scratch_shapes=[pltpu.VMEM((TM, cout), jnp.float32)]),
        compiler_params=pltpu.CompilerParams(
            dimension_semantics=("arbitrary",),       # voxel max accumulates over tiles
            vmem_limit_bytes=vmem_limit),
    )(chunk_lo, chunk_hi, *args)

    point_feats = outs[0] if want_point_feats else None
    voxel_feats = outs[-1]
    return point_feats, voxel_feats


# --------------------------------- params ------------------------------------
def init_params(key):
    feat_channels = [IN_CHANNELS] + list(FEAT_CHANNELS)
    n_layers = len(feat_channels) - 1
    ks = jax.random.split(key, 3 * n_layers)
    weights, gammas, betas = [], [], []
    for i in range(n_layers):
        cin = feat_channels[i] * (2 if i > 0 else 1)
        cout = feat_channels[i + 1]
        weights.append(0.1 * jax.random.normal(ks[3 * i], (cout, cin), jnp.float32))
        gammas.append(1.0 + 0.1 * jax.random.normal(ks[3 * i + 1], (cout,), jnp.float32))
        betas.append(0.1 * jax.random.normal(ks[3 * i + 2], (cout,), jnp.float32))
    return {"weights": weights, "gammas": gammas, "betas": betas}


# --------------------------------- forward -----------------------------------
def self_adaptive_voxelization_forward(features, coors, params, *, max_voxels):
    """features: [N, 4] f32, coors: [N, 4] int32 (batch, z, y, x).
    `max_voxels` must upper-bound the number of unique voxels (static grid capacity).
    Returns (voxel_feats [max_voxels, Cout] padded, voxel_coors [max_voxels, 4] padded
    with -1, num_voxels int32).  Slice with num_voxels outside jit."""
    n = features.shape[0]
    tn = 256 if n >= 256 else LANE
    n_pad = _round_up(n, tn)
    m_pad = _round_up(max_voxels, TM)
    n_chunks = m_pad // TM
    n_tiles = n_pad // tn
    sentinel = m_pad              # padded points never match any voxel chunk row

    # torch.unique(coors, dim=0, return_inverse, return_counts): sorted, end-padded.
    uniq, inv, counts = jnp.unique(coors, axis=0, size=max_voxels, return_inverse=True,
                                   return_counts=True, fill_value=-1)
    inv = inv.reshape(-1).astype(jnp.int32)
    num_voxels = jnp.sum(counts > 0).astype(jnp.int32)

    # NOTE: calculate_adaptive_voxel_size only re-assigns DynamicScatter.voxel_size in
    # the reference; the scatter groups by the given integer `coors`, so the module's
    # returned values are unaffected -> the dead computation is intentionally dropped.

    # Sort points by voxel id: every (sorted) point tile then overlaps only a narrow,
    # contiguous range of voxel chunks.  BN batch stats and per-voxel max are
    # permutation-invariant, so outputs are unchanged.
    order = jnp.argsort(inv)
    vid_sorted = jnp.take(inv, order)
    feats_sorted = jnp.take(features.astype(jnp.float32), order, axis=0)

    pad = n_pad - n
    vid_pad = jnp.concatenate([vid_sorted, jnp.full((pad,), sentinel, jnp.int32)])
    vid_row = vid_pad.reshape(1, n_pad)
    gather_idx = jnp.clip(vid_pad, 0, m_pad - 1)        # voxel->point map-back rows

    # Per point-tile [first, last] voxel-chunk range, scalar-prefetched into SMEM.
    vt = vid_pad.reshape(n_tiles, tn)
    chunk_lo = jnp.clip(vt[:, 0] // TM, 0, n_chunks - 1).astype(jnp.int32)
    chunk_hi = jnp.clip(vt[:, -1] // TM, 0, n_chunks - 1).astype(jnp.int32)

    x1_t = jnp.pad(feats_sorted, ((0, pad), (0, 0))).T  # [Cin, N_pad], lane-dense
    x2_pm = None                                        # per-point voxel feats [N_pad, C]

    num_layers = len(params["weights"])
    voxel_feats = None
    for i in range(num_layers):
        w = params["weights"][i]
        scale, shift = vfe_bn_stats(vid_row, x1_t, x2_pm, w, params["gammas"][i],
                                    params["betas"][i], n_real=n, tn=tn,
                                    sentinel=sentinel)
        last = i == num_layers - 1
        p_t, voxel_feats = vfe_apply_scatter(chunk_lo, chunk_hi, vid_row, x1_t, x2_pm,
                                             w, scale, shift, m_pad=m_pad, tn=tn,
                                             want_point_feats=not last)
        if not last:
            # map_voxel_center_to_point == per-point *row* gather of its voxel feature
            # from the [m_pad, C] voxel table (no lane-axis gather).  No torch.cat:
            # the next layer's kernels take p_t and x2_pm as two inputs with W split.
            x2_pm = jnp.take(voxel_feats, gather_idx, axis=0)   # [N_pad, C]
            x1_t = p_t                                          # [C, N_pad]

    return voxel_feats[:max_voxels], uniq, num_voxels


# ----------------------------------- main -------------------------------------
if __name__ == "__main__":
    key = jax.random.PRNGKey(0)
    k_par, k_xyz, k_int, k_b, k_y, k_x = jax.random.split(key, 6)

    N = 64
    params = init_params(k_par)

    # Point features: xyz within the point-cloud range + one extra feature.
    lo = jnp.asarray(PC_RANGE[:3], jnp.float32)
    hi = jnp.asarray(PC_RANGE[3:], jnp.float32)
    xyz = lo + (hi - lo) * jax.random.uniform(k_xyz, (N, 3), jnp.float32)
    intensity = jax.random.uniform(k_int, (N, 1), jnp.float32)
    features = jnp.concatenate([xyz, intensity], axis=1)             # [N, 4]

    # Voxel coordinates (batch, z, y, x); small ranges to force collisions.
    batch = jax.random.randint(k_b, (N, 1), 0, 2, jnp.int32)
    z = jnp.zeros((N, 1), jnp.int32)
    y = jax.random.randint(k_y, (N, 1), 0, 4, jnp.int32)
    x = jax.random.randint(k_x, (N, 1), 0, 4, jnp.int32)
    coors = jnp.concatenate([batch, z, y, x], axis=1)                # [N, 4]

    max_voxels = 2 * 1 * 4 * 4      # static voxel-grid capacity of this toy setup

    fwd = jax.jit(self_adaptive_voxelization_forward, static_argnames=("max_voxels",))
    feats_pad, coors_pad, nvox = fwd(features, coors, params, max_voxels=max_voxels)
    jax.block_until_ready((feats_pad, coors_pad, nvox))

    nv = int(nvox)                  # single host readback, outside the jitted forward
    voxel_feats = feats_pad[:nv]
    voxel_coors = coors_pad[:nv]

    assert voxel_feats.shape == (nv, FEAT_CHANNELS[-1])
    assert voxel_coors.shape == (nv, 4)
    assert bool(jnp.all(jnp.isfinite(voxel_feats)))
    assert bool(jnp.all(voxel_coors >= 0))
    print("KERNEL_OK")
</pallas_src>

<mosaic_0001>
module attributes {stable_mosaic.version = 11 : i64} {
  func.func private @main(%arg0: i32) attributes {dimension_semantics = [#tpu.dimension_semantics<core_parallel>], iteration_bounds = array<i64: 2>, tpu.core_type = #tpu.core_type<sc_scalar_subcore>, window_params = []} {
    return
  }
}

module attributes {stable_mosaic.version = 11 : i64} {
  func.func private @main(%arg0: i32) attributes {dimension_semantics = [#tpu.dimension_semantics<core_parallel>], iteration_bounds = array<i64: 2>, tpu.core_type = #tpu.core_type<sc_scalar_subcore>, window_params = []} {
    return
  }
}

module attributes {stable_mosaic.version = 11 : i64} {
  func.func @kernel(%arg0: i32, %arg1: memref<1x128xi32, #tpu.memory_space<vmem>>, %arg2: memref<16x128xf32, #tpu.memory_space<vmem>>, %arg3: memref<128x16xf32, #tpu.memory_space<vmem>>, %arg4: memref<32x16xf32, #tpu.memory_space<vmem>>, %arg5: memref<32x16xf32, #tpu.memory_space<vmem>>, %arg6: memref<32x1xf32, #tpu.memory_space<vmem>>, %arg7: memref<32x1xf32, #tpu.memory_space<vmem>>, %arg8: memref<32x1xf32, #tpu.memory_space<vmem>>, %arg9: memref<32x1xf32, #tpu.memory_space<vmem>>, %arg10: memref<32x128xf32, #tpu.memory_space<vmem>>, %arg11: memref<32x128xf32, #tpu.memory_space<vmem>>) attributes {dimension_semantics = [#tpu.dimension_semantics<arbitrary>], iteration_bounds = array<i64: 1>, scalar_prefetch = 0 : i64, scratch_operands = 2 : i64, tpu.core_type = #tpu.core_type<tc>, window_params = [{transform_indices = @transform_0, window_bounds = array<i64: 1, 128>}, {transform_indices = @transform_1, window_bounds = array<i64: 16, 128>}, {transform_indices = @transform_2, window_bounds = array<i64: 128, 16>}, {pipeline_mode = #tpu.pipeline_mode<synchronous>, transform_indices = @transform_3, window_bounds = array<i64: 32, 16>}, {pipeline_mode = #tpu.pipeline_mode<synchronous>, transform_indices = @transform_4, window_bounds = array<i64: 32, 16>}, {pipeline_mode = #tpu.pipeline_mode<synchronous>, transform_indices = @transform_5, window_bounds = array<i64: 32, 1>}, {pipeline_mode = #tpu.pipeline_mode<synchronous>, transform_indices = @transform_6, window_bounds = array<i64: 32, 1>}, {pipeline_mode = #tpu.pipeline_mode<synchronous>, transform_indices = @transform_7, window_bounds = array<i64: 32, 1>}, {pipeline_mode = #tpu.pipeline_mode<synchronous>, transform_indices = @transform_8, window_bounds = array<i64: 32, 1>}]} {
    %c0_i32 = arith.constant 0 : i32
    %0 = arith.cmpi eq, %arg0, %c0_i32 : i32
    %1 = arith.extui %0 : i1 to i32
    %c0_i32_0 = arith.constant 0 : i32
    %2 = arith.cmpi ne, %1, %c0_i32_0 : i32
    scf.if %2 {
      %cst_21 = arith.constant 0.000000e+00 : f32
      %27 = vector.broadcast %cst_21 : f32 to vector<32x128xf32>
      %c0_22 = arith.constant 0 : index
      %c0_23 = arith.constant 0 : index
      %28 = vector.load %arg10[%c0_22, %c0_23] : memref<32x128xf32, #tpu.memory_space<vmem>>, vector<32x128xf32>
      tpu.vector_store %arg10[%c0_22, %c0_23], %27 {strides = array<i32>} : memref<32x128xf32, #tpu.memory_space<vmem>>, vector<32x128xf32>,
      %cst_24 = arith.constant 0.000000e+00 : f32
      %29 = vector.broadcast %cst_24 : f32 to vector<32x128xf32>
      %c0_25 = arith.constant 0 : index
      %c0_26 = arith.constant 0 : index
      %30 = vector.load %arg11[%c0_25, %c0_26] : memref<32x128xf32, #tpu.memory_space<vmem>>, vector<32x128xf32>
      tpu.vector_store %arg11[%c0_25, %c0_26], %29 {strides = array<i32>} : memref<32x128xf32, #tpu.memory_space<vmem>>, vector<32x128xf32>,
      %cst_27 = arith.constant 0.000000e+00 : f32
      %31 = vector.broadcast %cst_27 : f32 to vector<32x1xf32>
      %c0_28 = arith.constant 0 : index
      %c0_29 = arith.constant 0 : index
      %32 = vector.load %arg8[%c0_28, %c0_29] : memref<32x1xf32, #tpu.memory_space<vmem>>, vector<32x1xf32>
      tpu.vector_store %arg8[%c0_28, %c0_29], %31 {strides = array<i32>} : memref<32x1xf32, #tpu.memory_space<vmem>>, vector<32x1xf32>,
      %cst_30 = arith.constant 0.000000e+00 : f32
      %33 = vector.broadcast %cst_30 : f32 to vector<32x1xf32>
      %c0_31 = arith.constant 0 : index
      %c0_32 = arith.constant 0 : index
      %34 = vector.load %arg9[%c0_31, %c0_32] : memref<32x1xf32, #tpu.memory_space<vmem>>, vector<32x1xf32>
      tpu.vector_store %arg9[%c0_31, %c0_32], %33 {strides = array<i32>} : memref<32x1xf32, #tpu.memory_space<vmem>>, vector<32x1xf32>,
    } else {
    }
    %c0 = arith.constant 0 : index
    %c0_1 = arith.constant 0 : index
    %3 = vector.load %arg4[%c0, %c0_1] : memref<32x16xf32, #tpu.memory_space<vmem>>, vector<32x16xf32>
    %c0_2 = arith.constant 0 : index
    %c0_3 = arith.constant 0 : index
    %4 = vector.load %arg2[%c0_2, %c0_3] : memref<16x128xf32, #tpu.memory_space<vmem>>, vector<16x128xf32>
    %cst = arith.constant dense<0.000000e+00> : vector<32x128xf32>
    %5 = tpu.matmul %3, %4, %cst {dimension_numbers = #tpu.dot_dimension_numbers<[1], [0], [0], [1], [0, 0, 1, 1], [], []>} : vector<32x16xf32>, vector<16x128xf32>, vector<32x128xf32> -> vector<32x128xf32>
    %c0_4 = arith.constant 0 : index
    %c0_5 = arith.constant 0 : index
    %6 = vector.load %arg5[%c0_4, %c0_5] : memref<32x16xf32, #tpu.memory_space<vmem>>, vector<32x16xf32>
    %c0_6 = arith.constant 0 : index
    %c0_7 = arith.constant 0 : index
    %7 = vector.load %arg3[%c0_6, %c0_7] : memref<128x16xf32, #tpu.memory_space<vmem>>, vector<128x16xf32>
    %cst_8 = arith.constant dense<0.000000e+00> : vector<32x128xf32>
    %8 = tpu.matmul %6, %7, %cst_8 {dimension_numbers = #tpu.dot_dimension_numbers<[1], [1], [0], [0], [0, 0, 1, 0], [], []>} : vector<32x16xf32>, vector<128x16xf32>, vector<32x128xf32> -> vector<32x128xf32>
    %9 = arith.addf %5, %8 : vector<32x128xf32>
    %c0_9 = arith.constant 0 : index
    %c0_10 = arith.constant 0 : index
    %10 = vector.load %arg1[%c0_9, %c0_10] : memref<1x128xi32, #tpu.memory_space<vmem>>, vector<1x128xi32>
    %c128_i32 = arith.constant 128 : i32
    %11 = vector.broadcast %c128_i32 : i32 to vector<1x128xi32>
    %12 = arith.cmpi slt, %10, %11 : vector<1x128xi32>
    %13 = arith.extui %12 : vector<1x128xi1> to vector<1x128xi32>
    %14 = arith.sitofp %13 : vector<1x128xi32> to vector<1x128xf32>
    %15 = vector.broadcast %14 : vector<1x128xf32> to vector<32x128xf32>
    %16 = arith.mulf %9, %15 : vector<32x128xf32>
    %c0_11 = arith.constant 0 : index
    %c0_12 = arith.constant 0 : index
    %17 = vector.load %arg10[%c0_11, %c0_12] : memref<32x128xf32, #tpu.memory_space<vmem>>, vector<32x128xf32>
    %18 = arith.addf %17, %16 : vector<32x128xf32>
    %c0_13 = arith.constant 0 : index
    %c0_14 = arith.constant 0 : index
    %19 = vector.load %arg10[%c0_13, %c0_14] : memref<32x128xf32, #tpu.memory_space<vmem>>, vector<32x128xf32>
    tpu.vector_store %arg10[%c0_13, %c0_14], %18 {strides = array<i32>} : memref<32x128xf32, #tpu.memory_space<vmem>>, vector<32x128xf32>,
    %c0_15 = arith.constant 0 : index
    %c0_16 = arith.constant 0 : index
    %20 = vector.load %arg11[%c0_15, %c0_16] : memref<32x128xf32, #tpu.memory_space<vmem>>, vector<32x128xf32>
    %21 = arith.mulf %16, %9 : vector<32x128xf32>
    %22 = arith.addf %20, %21 : vector<32x128xf32>
    %c0_17 = arith.constant 0 : index
    %c0_18 = arith.constant 0 : index
    %23 = vector.load %arg11[%c0_17, %c0_18] : memref<32x128xf32, #tpu.memory_space<vmem>>, vector<32x128xf32>
    tpu.vector_store %arg11[%c0_17, %c0_18], %22 {strides = array<i32>} : memref<32x128xf32, #tpu.memory_space<vmem>>, vector<32x128xf32>,
    %c0_i32_19 = arith.constant 0 : i32
    %24 = arith.cmpi eq, %arg0, %c0_i32_19 : i32
    %25 = arith.extui %24 : i1 to i32
    %c0_i32_20 = arith.constant 0 : i32
    %26 = arith.cmpi ne, %25, %c0_i32_20 : i32
    scf.if %26 {
      %c0_21 = arith.constant 0 : index
      %c0_22 = arith.constant 0 : index
      %27 = vector.load %arg10[%c0_21, %c0_22] : memref<32x128xf32, #tpu.memory_space<vmem>>, vector<32x128xf32>
      %cst_23 = arith.constant dense<0.000000e+00> : vector<32xf32>
      %28 = vector.multi_reduction <add>, %27, %cst_23 [1] : vector<32x128xf32> to vector<32xf32>
      %29 = vector.shape_cast %28 : vector<32xf32> to vector<32x1xf32>
      %c0_24 = arith.constant 0 : index
      %c0_25 = arith.constant 0 : index
      %30 = vector.load %arg11[%c0_24, %c0_25] : memref<32x128xf32, #tpu.memory_space<vmem>>, vector<32x128xf32>
      %cst_26 = arith.constant dense<0.000000e+00> : vector<32xf32>
      %31 = vector.multi_reduction <add>, %30, %cst_26 [1] : vector<32x128xf32> to vector<32xf32>
      %32 = vector.shape_cast %31 : vector<32xf32> to vector<32x1xf32>
      %cst_27 = arith.constant 1.562500e-02 : f32
      %33 = vector.broadcast %cst_27 : f32 to vector<32x1xf32>
      %34 = arith.mulf %29, %33 : vector<32x1xf32>
      %cst_28 = arith.constant 1.562500e-02 : f32
      %35 = vector.broadcast %cst_28 : f32 to vector<32x1xf32>
      %36 = arith.mulf %32, %35 : vector<32x1xf32>
      %37 = arith.mulf %34, %34 : vector<32x1xf32>
      %38 = arith.subf %36, %37 : vector<32x1xf32>
      %cst_29 = arith.constant 0.000000e+00 : f32
      %39 = vector.broadcast %cst_29 : f32 to vector<32x1xf32>
      %40 = arith.maximumf %38, %39 : vector<32x1xf32>
      %c0_30 = arith.constant 0 : index
      %c0_31 = arith.constant 0 : index
      %41 = vector.load %arg6[%c0_30, %c0_31] : memref<32x1xf32, #tpu.memory_space<vmem>>, vector<32x1xf32>
      %cst_32 = arith.constant 1.000000e-03 : f32
      %42 = vector.broadcast %cst_32 : f32 to vector<32x1xf32>
      %43 = arith.addf %40, %42 : vector<32x1xf32>
      %44 = math.rsqrt %43 : vector<32x1xf32>
      %45 = arith.mulf %41, %44 : vector<32x1xf32>
      %c0_33 = arith.constant 0 : index
      %c0_34 = arith.constant 0 : index
      %46 = vector.load %arg8[%c0_33, %c0_34] : memref<32x1xf32, #tpu.memory_space<vmem>>, vector<32x1xf32>
      tpu.vector_store %arg8[%c0_33, %c0_34], %45 {strides = array<i32>} : memref<32x1xf32, #tpu.memory_space<vmem>>, vector<32x1xf32>,
      %c0_35 = arith.constant 0 : index
      %c0_36 = arith.constant 0 : index
      %47 = vector.load %arg7[%c0_35, %c0_36] : memref<32x1xf32, #tpu.memory_space<vmem>>, vector<32x1xf32>
      %48 = arith.mulf %34, %45 : vector<32x1xf32>
      %49 = arith.subf %47, %48 : vector<32x1xf32>
      %c0_37 = arith.constant 0 : index
      %c0_38 = arith.constant 0 : index
      %50 = vector.load %arg9[%c0_37, %c0_38] : memref<32x1xf32, #tpu.memory_space<vmem>>, vector<32x1xf32>
      tpu.vector_store %arg9[%c0_37, %c0_38], %49 {strides = array<i32>} : memref<32x1xf32, #tpu.memory_space<vmem>>, vector<32x1xf32>,
    } else {
    }
    return
  }
  func.func @transform_0(%arg0: i32) -> (i32, i32) {
    %c0_i32 = arith.constant 0 : i32
    %c0_i32_0 = arith.constant 0 : i32
    return %c0_i32, %arg0 : i32, i32
  }
  func.func @transform_1(%arg0: i32) -> (i32, i32) {
    %c0_i32 = arith.constant 0 : i32
    %c0_i32_0 = arith.constant 0 : i32
    return %c0_i32, %arg0 : i32, i32
  }
  func.func @transform_2(%arg0: i32) -> (i32, i32) {
    %c0_i32 = arith.constant 0 : i32
    %c0_i32_0 = arith.constant 0 : i32
    return %arg0, %c0_i32 : i32, i32
  }
  func.func @transform_3(%arg0: i32) -> (i32, i32) {
    %c0_i32 = arith.constant 0 : i32
    %c0_i32_0 = arith.constant 0 : i32
    %c0_i32_1 = arith.constant 0 : i32
    return %c0_i32, %c0_i32_0 : i32, i32
  }
  func.func @transform_4(%arg0: i32) -> (i32, i32) {
    %c0_i32 = arith.constant 0 : i32
    %c0_i32_0 = arith.constant 0 : i32
    %c0_i32_1 = arith.constant 0 : i32
    return %c0_i32, %c0_i32_0 : i32, i32
  }
  func.func @transform_5(%arg0: i32) -> (i32, i32) {
    %c0_i32 = arith.constant 0 : i32
    %c0_i32_0 = arith.constant 0 : i32
    %c0_i32_1 = arith.constant 0 : i32
    return %c0_i32, %c0_i32_0 : i32, i32
  }
  func.func @transform_6(%arg0: i32) -> (i32, i32) {
    %c0_i32 = arith.constant 0 : i32
    %c0_i32_0 = arith.constant 0 : i32
    %c0_i32_1 = arith.constant 0 : i32
    return %c0_i32, %c0_i32_0 : i32, i32
  }
  func.func @transform_7(%arg0: i32) -> (i32, i32) {
    %c0_i32 = arith.constant 0 : i32
    %c0_i32_0 = arith.constant 0 : i32
    %c0_i32_1 = arith.constant 0 : i32
    return %c0_i32, %c0_i32_0 : i32, i32
  }
  func.func @transform_8(%arg0: i32) -> (i32, i32) {
    %c0_i32 = arith.constant 0 : i32
    %c0_i32_0 = arith.constant 0 : i32
    %c0_i32_1 = arith.constant 0 : i32
    return %c0_i32, %c0_i32_0 : i32, i32
  }
}

module attributes {stable_mosaic.version = 11 : i64} {
  func.func @kernel(%arg0: i32, %arg1: memref<1xi32, #tpu.memory_space<smem>>, %arg2: memref<1xi32, #tpu.memory_space<smem>>, %arg3: memref<1x128xi32, #tpu.memory_space<vmem>>, %arg4: memref<4x128xf32, #tpu.memory_space<vmem>>, %arg5: memref<16x4xf32, #tpu.memory_space<vmem>>, %arg6: memref<16x1xf32, #tpu.memory_space<vmem>>, %arg7: memref<16x1xf32, #tpu.memory_space<vmem>>, %arg8: memref<16x128xf32, #tpu.memory_space<vmem>>, %arg9: memref<128x16xf32, #tpu.memory_space<vmem>>, %arg10: memref<128x16xf32, #tpu.memory_space<vmem>>) attributes {dimension_semantics = [#tpu.dimension_semantics<arbitrary>], iteration_bounds = array<i64: 1>, scalar_prefetch = 2 : i64, scratch_operands = 1 : i64, tpu.core_type = #tpu.core_type<tc>, window_params = [{transform_indices = @transform_0, window_bounds = array<i64: 1, 128>}, {transform_indices = @transform_1, window_bounds = array<i64: 4, 128>}, {pipeline_mode = #tpu.pipeline_mode<synchronous>, transform_indices = @transform_2, window_bounds = array<i64: 16, 4>}, {pipeline_mode = #tpu.pipeline_mode<synchronous>, transform_indices = @transform_3, window_bounds = array<i64: 16, 1>}, {pipeline_mode = #tpu.pipeline_mode<synchronous>, transform_indices = @transform_4, window_bounds = array<i64: 16, 1>}, {transform_indices = @transform_5, window_bounds = array<i64: 16, 128>}, {pipeline_mode = #tpu.pipeline_mode<synchronous>, transform_indices = @transform_6, window_bounds = array<i64: 128, 16>}]} {
    %c0_i32 = arith.constant 0 : i32
    %0 = arith.cmpi eq, %arg0, %c0_i32 : i32
    %1 = arith.extui %0 : i1 to i32
    %c0_i32_0 = arith.constant 0 : i32
    %2 = arith.cmpi ne, %1, %c0_i32_0 : i32
    scf.if %2 {
      %cst_15 = arith.constant 0.000000e+00 : f32
      %23 = vector.broadcast %cst_15 : f32 to vector<128x16xf32>
      %c0_16 = arith.constant 0 : index
      %c0_17 = arith.constant 0 : index
      %24 = vector.load %arg9[%c0_16, %c0_17] : memref<128x16xf32, #tpu.memory_space<vmem>>, vector<128x16xf32>
      tpu.vector_store %arg9[%c0_16, %c0_17], %23 {strides = array<i32>} : memref<128x16xf32, #tpu.memory_space<vmem>>, vector<128x16xf32>,
    } else {
    }
    %c0 = arith.constant 0 : index
    %c0_1 = arith.constant 0 : index
    %3 = vector.load %arg5[%c0, %c0_1] : memref<16x4xf32, #tpu.memory_space<vmem>>, vector<16x4xf32>
    %c0_2 = arith.constant 0 : index
    %c0_3 = arith.constant 0 : index
    %4 = vector.load %arg4[%c0_2, %c0_3] : memref<4x128xf32, #tpu.memory_space<vmem>>, vector<4x128xf32>
    %cst = arith.constant dense<0.000000e+00> : vector<16x128xf32>
    %5 = tpu.matmul %3, %4, %cst {dimension_numbers = #tpu.dot_dimension_numbers<[1], [0], [0], [1], [0, 0, 1, 1], [], []>} : vector<16x4xf32>, vector<4x128xf32>, vector<16x128xf32> -> vector<16x128xf32>
    %c0_4 = arith.constant 0 : index
    %c0_5 = arith.constant 0 : index
    %6 = vector.load %arg6[%c0_4, %c0_5] : memref<16x1xf32, #tpu.memory_space<vmem>>, vector<16x1xf32>
    %7 = vector.broadcast %6 : vector<16x1xf32> to vector<16x128xf32>
    %8 = arith.mulf %5, %7 : vector<16x128xf32>
    %c0_6 = arith.constant 0 : index
    %c0_7 = arith.constant 0 : index
    %9 = vector.load %arg7[%c0_6, %c0_7] : memref<16x1xf32, #tpu.memory_space<vmem>>, vector<16x1xf32>
    %10 = vector.broadcast %9 : vector<16x1xf32> to vector<16x128xf32>
    %11 = arith.addf %8, %10 : vector<16x128xf32>
    %cst_8 = arith.constant 0.000000e+00 : f32
    %12 = vector.broadcast %cst_8 : f32 to vector<16x128xf32>
    %13 = arith.maximumf %11, %12 : vector<16x128xf32>
    %c0_9 = arith.constant 0 : index
    %c0_10 = arith.constant 0 : index
    %14 = vector.load %arg8[%c0_9, %c0_10] : memref<16x128xf32, #tpu.memory_space<vmem>>, vector<16x128xf32>
    tpu.vector_store %arg8[%c0_9, %c0_10], %13 {strides = array<i32>} : memref<16x128xf32, #tpu.memory_space<vmem>>, vector<16x128xf32>,
    %c0_11 = arith.constant 0 : index
    %c0_12 = arith.constant 0 : index
    %15 = vector.load %arg3[%c0_11, %c0_12] : memref<1x128xi32, #tpu.memory_space<vmem>>, vector<1x128xi32>
    %16 = arith.index_cast %arg0 : i32 to index
    %17 = memref.load %arg1[%16] : memref<1xi32, #tpu.memory_space<smem>>
    %18 = arith.index_cast %arg0 : i32 to index
    %19 = memref.load %arg2[%18] : memref<1xi32, #tpu.memory_space<smem>>
    %c1_i32 = arith.constant 1 : i32
    %20 = arith.addi %19, %c1_i32 : i32
    %c0_i32_13 = arith.constant 0 : i32
    %21 = arith.subi %20, %17 : i32
    %22 = arith.addi %17, %21 : i32
    %c1_i32_14 = arith.constant 1 : i32
    scf.for %arg11 = %17 to %22 step %c1_i32_14  : i32 {
      %c128_i32 = arith.constant 128 : i32
      %23 = arith.muli %arg11, %c128_i32 : i32
      %24 = tpu.assume_multiple %23, 128 : i32
      %25 = tpu.iota {dimensions = array<i32: 0>} : vector<128x128xi32>
      %26 = vector.broadcast %24 : i32 to vector<128x128xi32>
      %27 = arith.addi %25, %26 : vector<128x128xi32>
      %28 = vector.broadcast %15 : vector<1x128xi32> to vector<128x128xi32>
      %29 = arith.cmpi eq, %27, %28 : vector<128x128xi32>
      %30 = vector.extract_strided_slice %13 {offsets = [0, 0], sizes = [8, 128], strides = [1, 1]} : vector<16x128xf32> to vector<8x128xf32>
      %31 = vector.shape_cast %29 : vector<128x128xi1> to vector<128x1x128xi1>
      %32 = vector.shape_cast %30 : vector<8x128xf32> to vector<1x8x128xf32>
      %cst_15 = arith.constant 0.000000e+00 : f32
      %33 = vector.shape_cast %31 : vector<128x1x128xi1> to vector<128x1x128xi1>
      %34 = vector.broadcast %33 : vector<128x1x128xi1> to vector<128x8x128xi1>
      %35 = vector.shape_cast %32 : vector<1x8x128xf32> to vector<1x8x128xf32>
      %36 = vector.broadcast %35 : vector<1x8x128xf32> to vector<128x8x128xf32>
      %37 = vector.broadcast %cst_15 : f32 to vector<128x8x128xf32>
      %38 = arith.select %34, %36, %37 : vector<128x8x128xi1>, vector<128x8x128xf32>
      %cst_16 = arith.constant dense<0xFF800000> : vector<128x8xf32>
      %39 = vector.multi_reduction <maximumf>, %38, %cst_16 [2] : vector<128x8x128xf32> to vector<128x8xf32>
      %c0_17 = arith.constant 0 : index
      %c0_18 = arith.constant 0 : index
      %40 = vector.load %arg10[%c0_17, %c0_18] : memref<128x16xf32, #tpu.memory_space<vmem>>, vector<128x8xf32>
      tpu.vector_store %arg10[%c0_17, %c0_18], %39 {strides = array<i32>} : memref<128x16xf32, #tpu.memory_space<vmem>>, vector<128x8xf32>,
      %41 = vector.extract_strided_slice %13 {offsets = [8, 0], sizes = [8, 128], strides = [1, 1]} : vector<16x128xf32> to vector<8x128xf32>
      %42 = vector.shape_cast %29 : vector<128x128xi1> to vector<128x1x128xi1>
      %43 = vector.shape_cast %41 : vector<8x128xf32> to vector<1x8x128xf32>
      %cst_19 = arith.constant 0.000000e+00 : f32
      %44 = vector.shape_cast %42 : vector<128x1x128xi1> to vector<128x1x128xi1>
      %45 = vector.broadcast %44 : vector<128x1x128xi1> to vector<128x8x128xi1>
      %46 = vector.shape_cast %43 : vector<1x8x128xf32> to vector<1x8x128xf32>
      %47 = vector.broadcast %46 : vector<1x8x128xf32> to vector<128x8x128xf32>
      %48 = vector.broadcast %cst_19 : f32 to vector<128x8x128xf32>
      %49 = arith.select %45, %47, %48 : vector<128x8x128xi1>, vector<128x8x128xf32>
      %cst_20 = arith.constant dense<0xFF800000> : vector<128x8xf32>
      %50 = vector.multi_reduction <maximumf>, %49, %cst_20 [2] : vector<128x8x128xf32> to vector<128x8xf32>
      %c0_21 = arith.constant 0 : index
      %c8 = arith.constant 8 : index
      %51 = vector.load %arg10[%c0_21, %c8] : memref<128x16xf32, #tpu.memory_space<vmem>>, vector<128x8xf32>
      tpu.vector_store %arg10[%c0_21, %c8], %50 {strides = array<i32>} : memref<128x16xf32, #tpu.memory_space<vmem>>, vector<128x8xf32>,
      %52 = arith.index_cast %24 : i32 to index
      %c0_22 = arith.constant 0 : index
      %53 = vector.load %arg9[%52, %c0_22] : memref<128x16xf32, #tpu.memory_space<vmem>>, vector<128x16xf32>
      %c0_23 = arith.constant 0 : index
      %c0_24 = arith.constant 0 : index
      %54 = vector.load %arg10[%c0_23, %c0_24] : memref<128x16xf32, #tpu.memory_space<vmem>>, vector<128x16xf32>
      %55 = arith.maximumf %53, %54 : vector<128x16xf32>
      %56 = arith.index_cast %24 : i32 to index
      %c0_25 = arith.constant 0 : index
      %57 = vector.load %arg9[%56, %c0_25] : memref<128x16xf32, #tpu.memory_space<vmem>>, vector<128x16xf32>
      tpu.vector_store %arg9[%56, %c0_25], %55 {strides = array<i32>} : memref<128x16xf32, #tpu.memory_space<vmem>>, vector<128x16xf32>,
    }
    return
  }
  func.func @transform_0(%arg0: i32, %arg1: memref<1xi32, #tpu.memory_space<smem>>, %arg2: memref<1xi32, #tpu.memory_space<smem>>) -> (i32, i32) {
    %c0_i32 = arith.constant 0 : i32
    %c0_i32_0 = arith.constant 0 : i32
    return %c0_i32, %arg0 : i32, i32
  }
  func.func @transform_1(%arg0: i32, %arg1: memref<1xi32, #tpu.memory_space<smem>>, %arg2: memref<1xi32, #tpu.memory_space<smem>>) -> (i32, i32) {
    %c0_i32 = arith.constant 0 : i32
    %c0_i32_0 = arith.constant 0 : i32
    return %c0_i32, %arg0 : i32, i32
  }
  func.func @transform_2(%arg0: i32, %arg1: memref<1xi32, #tpu.memory_space<smem>>, %arg2: memref<1xi32, #tpu.memory_space<smem>>) -> (i32, i32) {
    %c0_i32 = arith.constant 0 : i32
    %c0_i32_0 = arith.constant 0 : i32
    %c0_i32_1 = arith.constant 0 : i32
    return %c0_i32, %c0_i32_0 : i32, i32
  }
  func.func @transform_3(%arg0: i32, %arg1: memref<1xi32, #tpu.memory_space<smem>>, %arg2: memref<1xi32, #tpu.memory_space<smem>>) -> (i32, i32) {
    %c0_i32 = arith.constant 0 : i32
    %c0_i32_0 = arith.constant 0 : i32
    %c0_i32_1 = arith.constant 0 : i32
    return %c0_i32, %c0_i32_0 : i32, i32
  }
  func.func @transform_4(%arg0: i32, %arg1: memref<1xi32, #tpu.memory_space<smem>>, %arg2: memref<1xi32, #tpu.memory_space<smem>>) -> (i32, i32) {
    %c0_i32 = arith.constant 0 : i32
    %c0_i32_0 = arith.constant 0 : i32
    %c0_i32_1 = arith.constant 0 : i32
    return %c0_i32, %c0_i32_0 : i32, i32
  }
  func.func @transform_5(%arg0: i32, %arg1: memref<1xi32, #tpu.memory_space<smem>>, %arg2: memref<1xi32, #tpu.memory_space<smem>>) -> (i32, i32) {
    %c0_i32 = arith.constant 0 : i32
    %c0_i32_0 = arith.constant 0 : i32
    return %c0_i32, %arg0 : i32, i32
  }
  func.func @transform_6(%arg0: i32, %arg1: memref<1xi32, #tpu.memory_space<smem>>, %arg2: memref<1xi32, #tpu.memory_space<smem>>) -> (i32, i32) {
    %c0_i32 = arith.constant 0 : i32
    %c0_i32_0 = arith.constant 0 : i32
    %c0_i32_1 = arith.constant 0 : i32
    return %c0_i32, %c0_i32_0 : i32, i32
  }
}

module attributes {stable_mosaic.version = 11 : i64} {
  func.func @kernel(%arg0: i32, %arg1: memref<1x128xi32, #tpu.memory_space<vmem>>, %arg2: memref<4x128xf32, #tpu.memory_space<vmem>>, %arg3: memref<16x4xf32, #tpu.memory_space<vmem>>, %arg4: memref<16x1xf32, #tpu.memory_space<vmem>>, %arg5: memref<16x1xf32, #tpu.memory_space<vmem>>, %arg6: memref<16x1xf32, #tpu.memory_space<vmem>>, %arg7: memref<16x1xf32, #tpu.memory_space<vmem>>, %arg8: memref<16x128xf32, #tpu.memory_space<vmem>>, %arg9: memref<16x128xf32, #tpu.memory_space<vmem>>) attributes {dimension_semantics = [#tpu.dimension_semantics<arbitrary>], iteration_bounds = array<i64: 1>, scalar_prefetch = 0 : i64, scratch_operands = 2 : i64, tpu.core_type = #tpu.core_type<tc>, window_params = [{transform_indices = @transform_0, window_bounds = array<i64: 1, 128>}, {transform_indices = @transform_1, window_bounds = array<i64: 4, 128>}, {pipeline_mode = #tpu.pipeline_mode<synchronous>, transform_indices = @transform_2, window_bounds = array<i64: 16, 4>}, {pipeline_mode = #tpu.pipeline_mode<synchronous>, transform_indices = @transform_3, window_bounds = array<i64: 16, 1>}, {pipeline_mode = #tpu.pipeline_mode<synchronous>, transform_indices = @transform_4, window_bounds = array<i64: 16, 1>}, {pipeline_mode = #tpu.pipeline_mode<synchronous>, transform_indices = @transform_5, window_bounds = array<i64: 16, 1>}, {pipeline_mode = #tpu.pipeline_mode<synchronous>, transform_indices = @transform_6, window_bounds = array<i64: 16, 1>}]} {
    %c0_i32 = arith.constant 0 : i32
    %0 = arith.cmpi eq, %arg0, %c0_i32 : i32
    %1 = arith.extui %0 : i1 to i32
    %c0_i32_0 = arith.constant 0 : i32
    %2 = arith.cmpi ne, %1, %c0_i32_0 : i32
    scf.if %2 {
      %cst_16 = arith.constant 0.000000e+00 : f32
      %23 = vector.broadcast %cst_16 : f32 to vector<16x128xf32>
      %c0_17 = arith.constant 0 : index
      %c0_18 = arith.constant 0 : index
      %24 = vector.load %arg8[%c0_17, %c0_18] : memref<16x128xf32, #tpu.memory_space<vmem>>, vector<16x128xf32>
      tpu.vector_store %arg8[%c0_17, %c0_18], %23 {strides = array<i32>} : memref<16x128xf32, #tpu.memory_space<vmem>>, vector<16x128xf32>,
      %cst_19 = arith.constant 0.000000e+00 : f32
      %25 = vector.broadcast %cst_19 : f32 to vector<16x128xf32>
      %c0_20 = arith.constant 0 : index
      %c0_21 = arith.constant 0 : index
      %26 = vector.load %arg9[%c0_20, %c0_21] : memref<16x128xf32, #tpu.memory_space<vmem>>, vector<16x128xf32>
      tpu.vector_store %arg9[%c0_20, %c0_21], %25 {strides = array<i32>} : memref<16x128xf32, #tpu.memory_space<vmem>>, vector<16x128xf32>,
      %cst_22 = arith.constant 0.000000e+00 : f32
      %27 = vector.broadcast %cst_22 : f32 to vector<16x1xf32>
      %c0_23 = arith.constant 0 : index
      %c0_24 = arith.constant 0 : index
      %28 = vector.load %arg6[%c0_23, %c0_24] : memref<16x1xf32, #tpu.memory_space<vmem>>, vector<16x1xf32>
      tpu.vector_store %arg6[%c0_23, %c0_24], %27 {strides = array<i32>} : memref<16x1xf32, #tpu.memory_space<vmem>>, vector<16x1xf32>,
      %cst_25 = arith.constant 0.000000e+00 : f32
      %29 = vector.broadcast %cst_25 : f32 to vector<16x1xf32>
      %c0_26 = arith.constant 0 : index
      %c0_27 = arith.constant 0 : index
      %30 = vector.load %arg7[%c0_26, %c0_27] : memref<16x1xf32, #tpu.memory_space<vmem>>, vector<16x1xf32>
      tpu.vector_store %arg7[%c0_26, %c0_27], %29 {strides = array<i32>} : memref<16x1xf32, #tpu.memory_space<vmem>>, vector<16x1xf32>,
    } else {
    }
    %c0 = arith.constant 0 : index
    %c0_1 = arith.constant 0 : index
    %3 = vector.load %arg3[%c0, %c0_1] : memref<16x4xf32, #tpu.memory_space<vmem>>, vector<16x4xf32>
    %c0_2 = arith.constant 0 : index
    %c0_3 = arith.constant 0 : index
    %4 = vector.load %arg2[%c0_2, %c0_3] : memref<4x128xf32, #tpu.memory_space<vmem>>, vector<4x128xf32>
    %cst = arith.constant dense<0.000000e+00> : vector<16x128xf32>
    %5 = tpu.matmul %3, %4, %cst {dimension_numbers = #tpu.dot_dimension_numbers<[1], [0], [0], [1], [0, 0, 1, 1], [], []>} : vector<16x4xf32>, vector<4x128xf32>, vector<16x128xf32> -> vector<16x128xf32>
    %c0_4 = arith.constant 0 : index
    %c0_5 = arith.constant 0 : index
    %6 = vector.load %arg1[%c0_4, %c0_5] : memref<1x128xi32, #tpu.memory_space<vmem>>, vector<1x128xi32>
    %c128_i32 = arith.constant 128 : i32
    %7 = vector.broadcast %c128_i32 : i32 to vector<1x128xi32>
    %8 = arith.cmpi slt, %6, %7 : vector<1x128xi32>
    %9 = arith.extui %8 : vector<1x128xi1> to vector<1x128xi32>
    %10 = arith.sitofp %9 : vector<1x128xi32> to vector<1x128xf32>
    %11 = vector.broadcast %10 : vector<1x128xf32> to vector<16x128xf32>
    %12 = arith.mulf %5, %11 : vector<16x128xf32>
    %c0_6 = arith.constant 0 : index
    %c0_7 = arith.constant 0 : index
    %13 = vector.load %arg8[%c0_6, %c0_7] : memref<16x128xf32, #tpu.memory_space<vmem>>, vector<16x128xf32>
    %14 = arith.addf %13, %12 : vector<16x128xf32>
    %c0_8 = arith.constant 0 : index
    %c0_9 = arith.constant 0 : index
    %15 = vector.load %arg8[%c0_8, %c0_9] : memref<16x128xf32, #tpu.memory_space<vmem>>, vector<16x128xf32>
    tpu.vector_store %arg8[%c0_8, %c0_9], %14 {strides = array<i32>} : memref<16x128xf32, #tpu.memory_space<vmem>>, vector<16x128xf32>,
    %c0_10 = arith.constant 0 : index
    %c0_11 = arith.constant 0 : index
    %16 = vector.load %arg9[%c0_10, %c0_11] : memref<16x128xf32, #tpu.memory_space<vmem>>, vector<16x128xf32>
    %17 = arith.mulf %12, %5 : vector<16x128xf32>
    %18 = arith.addf %16, %17 : vector<16x128xf32>
    %c0_12 = arith.constant 0 : index
    %c0_13 = arith.constant 0 : index
    %19 = vector.load %arg9[%c0_12, %c0_13] : memref<16x128xf32, #tpu.memory_space<vmem>>, vector<16x128xf32>
    tpu.vector_store %arg9[%c0_12, %c0_13], %18 {strides = array<i32>} : memref<16x128xf32, #tpu.memory_space<vmem>>, vector<16x128xf32>,
    %c0_i32_14 = arith.constant 0 : i32
    %20 = arith.cmpi eq, %arg0, %c0_i32_14 : i32
    %21 = arith.extui %20 : i1 to i32
    %c0_i32_15 = arith.constant 0 : i32
    %22 = arith.cmpi ne, %21, %c0_i32_15 : i32
    scf.if %22 {
      %c0_16 = arith.constant 0 : index
      %c0_17 = arith.constant 0 : index
      %23 = vector.load %arg8[%c0_16, %c0_17] : memref<16x128xf32, #tpu.memory_space<vmem>>, vector<16x128xf32>
      %cst_18 = arith.constant dense<0.000000e+00> : vector<16xf32>
      %24 = vector.multi_reduction <add>, %23, %cst_18 [1] : vector<16x128xf32> to vector<16xf32>
      %25 = vector.shape_cast %24 : vector<16xf32> to vector<16x1xf32>
      %c0_19 = arith.constant 0 : index
      %c0_20 = arith.constant 0 : index
      %26 = vector.load %arg9[%c0_19, %c0_20] : memref<16x128xf32, #tpu.memory_space<vmem>>, vector<16x128xf32>
      %cst_21 = arith.constant dense<0.000000e+00> : vector<16xf32>
      %27 = vector.multi_reduction <add>, %26, %cst_21 [1] : vector<16x128xf32> to vector<16xf32>
      %28 = vector.shape_cast %27 : vector<16xf32> to vector<16x1xf32>
      %cst_22 = arith.constant 1.562500e-02 : f32
      %29 = vector.broadcast %cst_22 : f32 to vector<16x1xf32>
      %30 = arith.mulf %25, %29 : vector<16x1xf32>
      %cst_23 = arith.constant 1.562500e-02 : f32
      %31 = vector.broadcast %cst_23 : f32 to vector<16x1xf32>
      %32 = arith.mulf %28, %31 : vector<16x1xf32>
      %33 = arith.mulf %30, %30 : vector<16x1xf32>
      %34 = arith.subf %32, %33 : vector<16x1xf32>
      %cst_24 = arith.constant 0.000000e+00 : f32
      %35 = vector.broadcast %cst_24 : f32 to vector<16x1xf32>
      %36 = arith.maximumf %34, %35 : vector<16x1xf32>
      %c0_25 = arith.constant 0 : index
      %c0_26 = arith.constant 0 : index
      %37 = vector.load %arg4[%c0_25, %c0_26] : memref<16x1xf32, #tpu.memory_space<vmem>>, vector<16x1xf32>
      %cst_27 = arith.constant 1.000000e-03 : f32
      %38 = vector.broadcast %cst_27 : f32 to vector<16x1xf32>
      %39 = arith.addf %36, %38 : vector<16x1xf32>
      %40 = math.rsqrt %39 : vector<16x1xf32>
      %41 = arith.mulf %37, %40 : vector<16x1xf32>
      %c0_28 = arith.constant 0 : index
      %c0_29 = arith.constant 0 : index
      %42 = vector.load %arg6[%c0_28, %c0_29] : memref<16x1xf32, #tpu.memory_space<vmem>>, vector<16x1xf32>
      tpu.vector_store %arg6[%c0_28, %c0_29], %41 {strides = array<i32>} : memref<16x1xf32, #tpu.memory_space<vmem>>, vector<16x1xf32>,
      %c0_30 = arith.constant 0 : index
      %c0_31 = arith.constant 0 : index
      %43 = vector.load %arg5[%c0_30, %c0_31] : memref<16x1xf32, #tpu.memory_space<vmem>>, vector<16x1xf32>
      %44 = arith.mulf %30, %41 : vector<16x1xf32>
      %45 = arith.subf %43, %44 : vector<16x1xf32>
      %c0_32 = arith.constant 0 : index
      %c0_33 = arith.constant 0 : index
      %46 = vector.load %arg7[%c0_32, %c0_33] : memref<16x1xf32, #tpu.memory_space<vmem>>, vector<16x1xf32>
      tpu.vector_store %arg7[%c0_32, %c0_33], %45 {strides = array<i32>} : memref<16x1xf32, #tpu.memory_space<vmem>>, vector<16x1xf32>,
    } else {
    }
    return
  }
  func.func @transform_0(%arg0: i32) -> (i32, i32) {
    %c0_i32 = arith.constant 0 : i32
    %c0_i32_0 = arith.constant 0 : i32
    return %c0_i32, %arg0 : i32, i32
  }
  func.func @transform_1(%arg0: i32) -> (i32, i32) {
    %c0_i32 = arith.constant 0 : i32
    %c0_i32_0 = arith.constant 0 : i32
    return %c0_i32, %arg0 : i32, i32
  }
  func.func @transform_2(%arg0: i32) -> (i32, i32) {
    %c0_i32 = arith.constant 0 : i32
    %c0_i32_0 = arith.constant 0 : i32
    %c0_i32_1 = arith.constant 0 : i32
    return %c0_i32, %c0_i32_0 : i32, i32
  }
  func.func @transform_3(%arg0: i32) -> (i32, i32) {
    %c0_i32 = arith.constant 0 : i32
    %c0_i32_0 = arith.constant 0 : i32
    %c0_i32_1 = arith.constant 0 : i32
    return %c0_i32, %c0_i32_0 : i32, i32
  }
  func.func @transform_4(%arg0: i32) -> (i32, i32) {
    %c0_i32 = arith.constant 0 : i32
    %c0_i32_0 = arith.constant 0 : i32
    %c0_i32_1 = arith.constant 0 : i32
    return %c0_i32, %c0_i32_0 : i32, i32
  }
  func.func @transform_5(%arg0: i32) -> (i32, i32) {
    %c0_i32 = arith.constant 0 : i32
    %c0_i32_0 = arith.constant 0 : i32
    %c0_i32_1 = arith.constant 0 : i32
    return %c0_i32, %c0_i32_0 : i32, i32
  }
  func.func @transform_6(%arg0: i32) -> (i32, i32) {
    %c0_i32 = arith.constant 0 : i32
    %c0_i32_0 = arith.constant 0 : i32
    %c0_i32_1 = arith.constant 0 : i32
    return %c0_i32, %c0_i32_0 : i32, i32
  }
}

module attributes {stable_mosaic.version = 11 : i64} {
  func.func @kernel(%arg0: i32, %arg1: memref<1xi32, #tpu.memory_space<smem>>, %arg2: memref<1xi32, #tpu.memory_space<smem>>, %arg3: memref<1x128xi32, #tpu.memory_space<vmem>>, %arg4: memref<16x128xf32, #tpu.memory_space<vmem>>, %arg5: memref<128x16xf32, #tpu.memory_space<vmem>>, %arg6: memref<32x16xf32, #tpu.memory_space<vmem>>, %arg7: memref<32x16xf32, #tpu.memory_space<vmem>>, %arg8: memref<32x1xf32, #tpu.memory_space<vmem>>, %arg9: memref<32x1xf32, #tpu.memory_space<vmem>>, %arg10: memref<128x32xf32, #tpu.memory_space<vmem>>, %arg11: memref<128x32xf32, #tpu.memory_space<vmem>>) attributes {dimension_semantics = [#tpu.dimension_semantics<arbitrary>], iteration_bounds = array<i64: 1>, scalar_prefetch = 2 : i64, scratch_operands = 1 : i64, tpu.core_type = #tpu.core_type<tc>, window_params = [{transform_indices = @transform_0, window_bounds = array<i64: 1, 128>}, {transform_indices = @transform_1, window_bounds = array<i64: 16, 128>}, {transform_indices = @transform_2, window_bounds = array<i64: 128, 16>}, {pipeline_mode = #tpu.pipeline_mode<synchronous>, transform_indices = @transform_3, window_bounds = array<i64: 32, 16>}, {pipeline_mode = #tpu.pipeline_mode<synchronous>, transform_indices = @transform_4, window_bounds = array<i64: 32, 16>}, {pipeline_mode = #tpu.pipeline_mode<synchronous>, transform_indices = @transform_5, window_bounds = array<i64: 32, 1>}, {pipeline_mode = #tpu.pipeline_mode<synchronous>, transform_indices = @transform_6, window_bounds = array<i64: 32, 1>}, {pipeline_mode = #tpu.pipeline_mode<synchronous>, transform_indices = @transform_7, window_bounds = array<i64: 128, 32>}]} {
    %c0_i32 = arith.constant 0 : i32
    %0 = arith.cmpi eq, %arg0, %c0_i32 : i32
    %1 = arith.extui %0 : i1 to i32
    %c0_i32_0 = arith.constant 0 : i32
    %2 = arith.cmpi ne, %1, %c0_i32_0 : i32
    scf.if %2 {
      %cst_18 = arith.constant 0.000000e+00 : f32
      %26 = vector.broadcast %cst_18 : f32 to vector<128x32xf32>
      %c0_19 = arith.constant 0 : index
      %c0_20 = arith.constant 0 : index
      %27 = vector.load %arg10[%c0_19, %c0_20] : memref<128x32xf32, #tpu.memory_space<vmem>>, vector<128x32xf32>
      tpu.vector_store %arg10[%c0_19, %c0_20], %26 {strides = array<i32>} : memref<128x32xf32, #tpu.memory_space<vmem>>, vector<128x32xf32>,
    } else {
    }
    %c0 = arith.constant 0 : index
    %c0_1 = arith.constant 0 : index
    %3 = vector.load %arg6[%c0, %c0_1] : memref<32x16xf32, #tpu.memory_space<vmem>>, vector<32x16xf32>
    %c0_2 = arith.constant 0 : index
    %c0_3 = arith.constant 0 : index
    %4 = vector.load %arg4[%c0_2, %c0_3] : memref<16x128xf32, #tpu.memory_space<vmem>>, vector<16x128xf32>
    %cst = arith.constant dense<0.000000e+00> : vector<32x128xf32>
    %5 = tpu.matmul %3, %4, %cst {dimension_numbers = #tpu.dot_dimension_numbers<[1], [0], [0], [1], [0, 0, 1, 1], [], []>} : vector<32x16xf32>, vector<16x128xf32>, vector<32x128xf32> -> vector<32x128xf32>
    %c0_4 = arith.constant 0 : index
    %c0_5 = arith.constant 0 : index
    %6 = vector.load %arg7[%c0_4, %c0_5] : memref<32x16xf32, #tpu.memory_space<vmem>>, vector<32x16xf32>
    %c0_6 = arith.constant 0 : index
    %c0_7 = arith.constant 0 : index
    %7 = vector.load %arg5[%c0_6, %c0_7] : memref<128x16xf32, #tpu.memory_space<vmem>>, vector<128x16xf32>
    %cst_8 = arith.constant dense<0.000000e+00> : vector<32x128xf32>
    %8 = tpu.matmul %6, %7, %cst_8 {dimension_numbers = #tpu.dot_dimension_numbers<[1], [1], [0], [0], [0, 0, 1, 0], [], []>} : vector<32x16xf32>, vector<128x16xf32>, vector<32x128xf32> -> vector<32x128xf32>
    %9 = arith.addf %5, %8 : vector<32x128xf32>
    %c0_9 = arith.constant 0 : index
    %c0_10 = arith.constant 0 : index
    %10 = vector.load %arg8[%c0_9, %c0_10] : memref<32x1xf32, #tpu.memory_space<vmem>>, vector<32x1xf32>
    %11 = vector.broadcast %10 : vector<32x1xf32> to vector<32x128xf32>
    %12 = arith.mulf %9, %11 : vector<32x128xf32>
    %c0_11 = arith.constant 0 : index
    %c0_12 = arith.constant 0 : index
    %13 = vector.load %arg9[%c0_11, %c0_12] : memref<32x1xf32, #tpu.memory_space<vmem>>, vector<32x1xf32>
    %14 = vector.broadcast %13 : vector<32x1xf32> to vector<32x128xf32>
    %15 = arith.addf %12, %14 : vector<32x128xf32>
    %cst_13 = arith.constant 0.000000e+00 : f32
    %16 = vector.broadcast %cst_13 : f32 to vector<32x128xf32>
    %17 = arith.maximumf %15, %16 : vector<32x128xf32>
    %c0_14 = arith.constant 0 : index
    %c0_15 = arith.constant 0 : index
    %18 = vector.load %arg3[%c0_14, %c0_15] : memref<1x128xi32, #tpu.memory_space<vmem>>, vector<1x128xi32>
    %19 = arith.index_cast %arg0 : i32 to index
    %20 = memref.load %arg1[%19] : memref<1xi32, #tpu.memory_space<smem>>
    %21 = arith.index_cast %arg0 : i32 to index
    %22 = memref.load %arg2[%21] : memref<1xi32, #tpu.memory_space<smem>>
    %c1_i32 = arith.constant 1 : i32
    %23 = arith.addi %22, %c1_i32 : i32
    %c0_i32_16 = arith.constant 0 : i32
    %24 = arith.subi %23, %20 : i32
    %25 = arith.addi %20, %24 : i32
    %c1_i32_17 = arith.constant 1 : i32
    scf.for %arg12 = %20 to %25 step %c1_i32_17  : i32 {
      %c128_i32 = arith.constant 128 : i32
      %26 = arith.muli %arg12, %c128_i32 : i32
      %27 = tpu.assume_multiple %26, 128 : i32
      %28 = tpu.iota {dimensions = array<i32: 0>} : vector<128x128xi32>
      %29 = vector.broadcast %27 : i32 to vector<128x128xi32>
      %30 = arith.addi %28, %29 : vector<128x128xi32>
      %31 = vector.broadcast %18 : vector<1x128xi32> to vector<128x128xi32>
      %32 = arith.cmpi eq, %30, %31 : vector<128x128xi32>
      %33 = vector.extract_strided_slice %17 {offsets = [0, 0], sizes = [8, 128], strides = [1, 1]} : vector<32x128xf32> to vector<8x128xf32>
      %34 = vector.shape_cast %32 : vector<128x128xi1> to vector<128x1x128xi1>
      %35 = vector.shape_cast %33 : vector<8x128xf32> to vector<1x8x128xf32>
      %cst_18 = arith.constant 0.000000e+00 : f32
      %36 = vector.shape_cast %34 : vector<128x1x128xi1> to vector<128x1x128xi1>
      %37 = vector.broadcast %36 : vector<128x1x128xi1> to vector<128x8x128xi1>
      %38 = vector.shape_cast %35 : vector<1x8x128xf32> to vector<1x8x128xf32>
      %39 = vector.broadcast %38 : vector<1x8x128xf32> to vector<128x8x128xf32>
      %40 = vector.broadcast %cst_18 : f32 to vector<128x8x128xf32>
      %41 = arith.select %37, %39, %40 : vector<128x8x128xi1>, vector<128x8x128xf32>
      %cst_19 = arith.constant dense<0xFF800000> : vector<128x8xf32>
      %42 = vector.multi_reduction <maximumf>, %41, %cst_19 [2] : vector<128x8x128xf32> to vector<128x8xf32>
      %c0_20 = arith.constant 0 : index
      %c0_21 = arith.constant 0 : index
      %43 = vector.load %arg11[%c0_20, %c0_21] : memref<128x32xf32, #tpu.memory_space<vmem>>, vector<128x8xf32>
      tpu.vector_store %arg11[%c0_20, %c0_21], %42 {strides = array<i32>} : memref<128x32xf32, #tpu.memory_space<vmem>>, vector<128x8xf32>,
      %44 = vector.extract_strided_slice %17 {offsets = [8, 0], sizes = [8, 128], strides = [1, 1]} : vector<32x128xf32> to vector<8x128xf32>
      %45 = vector.shape_cast %32 : vector<128x128xi1> to vector<128x1x128xi1>
      %46 = vector.shape_cast %44 : vector<8x128xf32> to vector<1x8x128xf32>
      %cst_22 = arith.constant 0.000000e+00 : f32
      %47 = vector.shape_cast %45 : vector<128x1x128xi1> to vector<128x1x128xi1>
      %48 = vector.broadcast %47 : vector<128x1x128xi1> to vector<128x8x128xi1>
      %49 = vector.shape_cast %46 : vector<1x8x128xf32> to vector<1x8x128xf32>
      %50 = vector.broadcast %49 : vector<1x8x128xf32> to vector<128x8x128xf32>
      %51 = vector.broadcast %cst_22 : f32 to vector<128x8x128xf32>
      %52 = arith.select %48, %50, %51 : vector<128x8x128xi1>, vector<128x8x128xf32>
      %cst_23 = arith.constant dense<0xFF800000> : vector<128x8xf32>
      %53 = vector.multi_reduction <maximumf>, %52, %cst_23 [2] : vector<128x8x128xf32> to vector<128x8xf32>
      %c0_24 = arith.constant 0 : index
      %c8 = arith.constant 8 : index
      %54 = vector.load %arg11[%c0_24, %c8] : memref<128x32xf32, #tpu.memory_space<vmem>>, vector<128x8xf32>
      tpu.vector_store %arg11[%c0_24, %c8], %53 {strides = array<i32>} : memref<128x32xf32, #tpu.memory_space<vmem>>, vector<128x8xf32>,
      %55 = vector.extract_strided_slice %17 {offsets = [16, 0], sizes = [8, 128], strides = [1, 1]} : vector<32x128xf32> to vector<8x128xf32>
      %56 = vector.shape_cast %32 : vector<128x128xi1> to vector<128x1x128xi1>
      %57 = vector.shape_cast %55 : vector<8x128xf32> to vector<1x8x128xf32>
      %cst_25 = arith.constant 0.000000e+00 : f32
      %58 = vector.shape_cast %56 : vector<128x1x128xi1> to vector<128x1x128xi1>
      %59 = vector.broadcast %58 : vector<128x1x128xi1> to vector<128x8x128xi1>
      %60 = vector.shape_cast %57 : vector<1x8x128xf32> to vector<1x8x128xf32>
      %61 = vector.broadcast %60 : vector<1x8x128xf32> to vector<128x8x128xf32>
      %62 = vector.broadcast %cst_25 : f32 to vector<128x8x128xf32>
      %63 = arith.select %59, %61, %62 : vector<128x8x128xi1>, vector<128x8x128xf32>
      %cst_26 = arith.constant dense<0xFF800000> : vector<128x8xf32>
      %64 = vector.multi_reduction <maximumf>, %63, %cst_26 [2] : vector<128x8x128xf32> to vector<128x8xf32>
      %c0_27 = arith.constant 0 : index
      %c16 = arith.constant 16 : index
      %65 = vector.load %arg11[%c0_27, %c16] : memref<128x32xf32, #tpu.memory_space<vmem>>, vector<128x8xf32>
      tpu.vector_store %arg11[%c0_27, %c16], %64 {strides = array<i32>} : memref<128x32xf32, #tpu.memory_space<vmem>>, vector<128x8xf32>,
      %66 = vector.extract_strided_slice %17 {offsets = [24, 0], sizes = [8, 128], strides = [1, 1]} : vector<32x128xf32> to vector<8x128xf32>
      %67 = vector.shape_cast %32 : vector<128x128xi1> to vector<128x1x128xi1>
      %68 = vector.shape_cast %66 : vector<8x128xf32> to vector<1x8x128xf32>
      %cst_28 = arith.constant 0.000000e+00 : f32
      %69 = vector.shape_cast %67 : vector<128x1x128xi1> to vector<128x1x128xi1>
      %70 = vector.broadcast %69 : vector<128x1x128xi1> to vector<128x8x128xi1>
      %71 = vector.shape_cast %68 : vector<1x8x128xf32> to vector<1x8x128xf32>
      %72 = vector.broadcast %71 : vector<1x8x128xf32> to vector<128x8x128xf32>
      %73 = vector.broadcast %cst_28 : f32 to vector<128x8x128xf32>
      %74 = arith.select %70, %72, %73 : vector<128x8x128xi1>, vector<128x8x128xf32>
      %cst_29 = arith.constant dense<0xFF800000> : vector<128x8xf32>
      %75 = vector.multi_reduction <maximumf>, %74, %cst_29 [2] : vector<128x8x128xf32> to vector<128x8xf32>
      %c0_30 = arith.constant 0 : index
      %c24 = arith.constant 24 : index
      %76 = vector.load %arg11[%c0_30, %c24] : memref<128x32xf32, #tpu.memory_space<vmem>>, vector<128x8xf32>
      tpu.vector_store %arg11[%c0_30, %c24], %75 {strides = array<i32>} : memref<128x32xf32, #tpu.memory_space<vmem>>, vector<128x8xf32>,
      %77 = arith.index_cast %27 : i32 to index
      %c0_31 = arith.constant 0 : index
      %78 = vector.load %arg10[%77, %c0_31] : memref<128x32xf32, #tpu.memory_space<vmem>>, vector<128x32xf32>
      %c0_32 = arith.constant 0 : index
      %c0_33 = arith.constant 0 : index
      %79 = vector.load %arg11[%c0_32, %c0_33] : memref<128x32xf32, #tpu.memory_space<vmem>>, vector<128x32xf32>
      %80 = arith.maximumf %78, %79 : vector<128x32xf32>
      %81 = arith.index_cast %27 : i32 to index
      %c0_34 = arith.constant 0 : index
      %82 = vector.load %arg10[%81, %c0_34] : memref<128x32xf32, #tpu.memory_space<vmem>>, vector<128x32xf32>
      tpu.vector_store %arg10[%81, %c0_34], %80 {strides = array<i32>} : memref<128x32xf32, #tpu.memory_space<vmem>>, vector<128x32xf32>,
    }
    return
  }
  func.func @transform_0(%arg0: i32, %arg1: memref<1xi32, #tpu.memory_space<smem>>, %arg2: memref<1xi32, #tpu.memory_space<smem>>) -> (i32, i32) {
    %c0_i32 = arith.constant 0 : i32
    %c0_i32_0 = arith.constant 0 : i32
    return %c0_i32, %arg0 : i32, i32
  }
  func.func @transform_1(%arg0: i32, %arg1: memref<1xi32, #tpu.memory_space<smem>>, %arg2: memref<1xi32, #tpu.memory_space<smem>>) -> (i32, i32) {
    %c0_i32 = arith.constant 0 : i32
    %c0_i32_0 = arith.constant 0 : i32
    return %c0_i32, %arg0 : i32, i32
  }
  func.func @transform_2(%arg0: i32, %arg1: memref<1xi32, #tpu.memory_space<smem>>, %arg2: memref<1xi32, #tpu.memory_space<smem>>) -> (i32, i32) {
    %c0_i32 = arith.constant 0 : i32
    %c0_i32_0 = arith.constant 0 : i32
    return %arg0, %c0_i32 : i32, i32
  }
  func.func @transform_3(%arg0: i32, %arg1: memref<1xi32, #tpu.memory_space<smem>>, %arg2: memref<1xi32, #tpu.memory_space<smem>>) -> (i32, i32) {
    %c0_i32 = arith.constant 0 : i32
    %c0_i32_0 = arith.constant 0 : i32
    %c0_i32_1 = arith.constant 0 : i32
    return %c0_i32, %c0_i32_0 : i32, i32
  }
  func.func @transform_4(%arg0: i32, %arg1: memref<1xi32, #tpu.memory_space<smem>>, %arg2: memref<1xi32, #tpu.memory_space<smem>>) -> (i32, i32) {
    %c0_i32 = arith.constant 0 : i32
    %c0_i32_0 = arith.constant 0 : i32
    %c0_i32_1 = arith.constant 0 : i32
    return %c0_i32, %c0_i32_0 : i32, i32
  }
  func.func @transform_5(%arg0: i32, %arg1: memref<1xi32, #tpu.memory_space<smem>>, %arg2: memref<1xi32, #tpu.memory_space<smem>>) -> (i32, i32) {
    %c0_i32 = arith.constant 0 : i32
    %c0_i32_0 = arith.constant 0 : i32
    %c0_i32_1 = arith.constant 0 : i32
    return %c0_i32, %c0_i32_0 : i32, i32
  }
  func.func @transform_6(%arg0: i32, %arg1: memref<1xi32, #tpu.memory_space<smem>>, %arg2: memref<1xi32, #tpu.memory_space<smem>>) -> (i32, i32) {
    %c0_i32 = arith.constant 0 : i32
    %c0_i32_0 = arith.constant 0 : i32
    %c0_i32_1 = arith.constant 0 : i32
    return %c0_i32, %c0_i32_0 : i32, i32
  }
  func.func @transform_7(%arg0: i32, %arg1: memref<1xi32, #tpu.memory_space<smem>>, %arg2: memref<1xi32, #tpu.memory_space<smem>>) -> (i32, i32) {
    %c0_i32 = arith.constant 0 : i32
    %c0_i32_0 = arith.constant 0 : i32
    %c0_i32_1 = arith.constant 0 : i32
    return %c0_i32, %c0_i32_0 : i32, i32
  }
}

</mosaic_0001>

<llo_original>
// kernel: self_adaptive_voxelization_forward.4
$region0: #{self_adaptive_voxelization_forward.4}
  #allocation0 [shape = 'u32[]', space=smem, size = 0x4, offset = 0x4, fixed_abs, tag = 'smem constant byte address 0x4 - core index']
  #allocation1 [shape = 'u32[144,128]{1,0:T(1,128)}', space=vmem, size = 0x12000, scoped, tag = 'internal scratch']
  #allocation2 [shape = 'f32[16,128]{1,0:T(8,128)}', space=vmem, size = 0x2000, scoped, tag = 'scratch operand']
  #allocation3 [shape = 'f32[16,128]{1,0:T(8,128)}', space=vmem, size = 0x2000, scoped, tag = 'scratch operand']
  %s0 = inlined_call_operand.vmem [shape: s32[1,128], index: 0, kind: input, shape index: {}]
  %s1 = inlined_call_operand.vmem [shape: f32[4,128], index: 1, kind: input, shape index: {}]
  %s2 = inlined_call_operand.vmem [shape: f32[16,4], index: 2, kind: input, shape index: {}]
  %s3 = inlined_call_operand.vmem [shape: f32[16,1], index: 3, kind: input, shape index: {}]
  %s4 = inlined_call_operand.vmem [shape: f32[16,1], index: 4, kind: input, shape index: {}]
  %s5 = inlined_call_operand.vmem [shape: f32[16,1], index: 5, kind: output, shape index: {0}]
  %s6 = inlined_call_operand.vmem [shape: f32[16,1], index: 6, kind: output, shape index: {1}]
  %7 = xla_tuple %s5, %s6
  %s8 = sld [smem:[#allocation0]]
  $region46: #{self_adaptive_voxelization_forward.4} parent=0
    _
  %s10 = ssub.s32 1, %s8
  %s11 = scalar_select 0, %s10, %s8
  // Predicated region
  $region2: #{self_adaptive_voxelization_forward.4} parent=0 // pred_check
    _
  $region3: #{self_adaptive_voxelization_forward.4} parent=0 // pred_check_branch
    %13 = sbr.rel (0) target = $region5
  $region4: #{self_adaptive_voxelization_forward.4} parent=0 // pred_region
    _
  $region5: #{self_adaptive_voxelization_forward.4} parent=0 // pred_fallthru
    _
  // Predicated region
  $region6: #{self_adaptive_voxelization_forward.4} parent=0 // pred_check
    _
  $region7: #{self_adaptive_voxelization_forward.4} parent=0 // pred_check_branch
    %15 = sbr.rel (0) target = $region9
  $region8: #{self_adaptive_voxelization_forward.4} parent=0 // pred_region
    _
  $region9: #{self_adaptive_voxelization_forward.4} parent=0 // pred_fallthru
    _
  // Predicated region
  $region10: #{self_adaptive_voxelization_forward.4} parent=0 // pred_check
    _
  $region11: #{self_adaptive_voxelization_forward.4} parent=0 // pred_check_branch
    %17 = sbr.rel (0) target = $region13
  $region12: #{self_adaptive_voxelization_forward.4} parent=0 // pred_region
    _
  $region13: #{self_adaptive_voxelization_forward.4} parent=0 // pred_fallthru
    _
  // Predicated region
  $region14: #{self_adaptive_voxelization_forward.4} parent=0 // pred_check
    _
  $region15: #{self_adaptive_voxelization_forward.4} parent=0 // pred_check_branch
    %19 = sbr.rel (0) target = $region17
  $region16: #{self_adaptive_voxelization_forward.4} parent=0 // pred_region
    _
  $region17: #{self_adaptive_voxelization_forward.4} parent=0 // pred_fallthru
    _
  // Predicated region
  $region18: #{self_adaptive_voxelization_forward.4} parent=0 // pred_check
    _
  $region19: #{self_adaptive_voxelization_forward.4} parent=0 // pred_check_branch
    %21 = sbr.rel (0) target = $region21
  $region20: #{self_adaptive_voxelization_forward.4} parent=0 // pred_region
    _
  $region21: #{self_adaptive_voxelization_forward.4} parent=0 // pred_fallthru
    _
  %p22 = scmp.eq.s32.totalorder 0, 0
  // Predicated region
  $region22: #{self_adaptive_voxelization_forward.4} parent=0 // pred_check
    %p23 = pneg %p22
  $region23: #{self_adaptive_voxelization_forward.4} parent=0 // pred_check_branch
    %25 = sbr.rel (%p23) target = $region25
  $region24: #{self_adaptive_voxelization_forward.4} parent=0 // pred_region
    %26 = vst [vmem:[#allocation2] sm:$0xff] 0.0
    %27 = vst [vmem:[#allocation2 + $0x8] sm:$0xff] 0.0
    %28 = vst [vmem:[#allocation3] sm:$0xff] 0.0
    %29 = vst [vmem:[#allocation3 + $0x8] sm:$0xff] 0.0
    %vm30 = vcmask 7168
    %31 = vst.msk [vmem:[%s5] sm:$0xff] %vm30, 0.0
    %32 = vst.msk [vmem:[%s5 + $0x8] sm:$0xff] %vm30, 0.0
    %33 = vst.msk [vmem:[%s6] sm:$0xff] %vm30, 0.0
    %34 = vst.msk [vmem:[%s6 + $0x8] sm:$0xff] %vm30, 0.0
  $region25: #{self_adaptive_voxelization_forward.4} parent=0 // pred_fallthru
    _
  %v35 = vld [vmem:[%s2] sm:$0xff]
  %v36 = vld [vmem:[%s2 + $0x8] sm:$0xff]
  %v37 = vld [vmem:[%s1] sm:$0xf]
  %vm38 = vcmask 31744
  %v40 = vsel %vm38, %v35, 0
  %v43 = vsel %vm38, %v36, 0
  %vm45 = vcmask 1043456
  %v47 = vsel %vm45, %v37, 0
  %49 = vmatprep.subr.mxu0 0.0
  %50 = vmatpush1.msra.mxu0 0.0
  %51 = vmatprep.subr.mxu0 0.0
  %52 = vmatpush1.msra.mxu0 0.0
  %53 = vmatprep.subr.mxu0 0.0
  %54 = vmatpush1.msra.mxu0 0.0
  %55 = vmatprep.subr.mxu0 0.0
  %56 = vmatpush1.msra.mxu0 0.0
  %57 = vmatprep.subr.mxu0 0.0
  %58 = vmatpush1.msra.mxu0 0.0
  %59 = vmatprep.subr.mxu0 0.0
  %60 = vmatpush1.msra.mxu0 0.0
  %61 = vmatprep.subr.mxu0 0.0
  %62 = vmatpush1.msra.mxu0 0.0
  %63 = vmatprep.subr.mxu0 0.0
  %64 = vmatpush1.msra.mxu0 0.0
  %65 = vmatprep.subr.mxu0 0.0
  %66 = vmatpush1.msra.mxu0 0.0
  %67 = vmatprep.subr.mxu0 0.0
  %68 = vmatpush1.msra.mxu0 0.0
  %69 = vmatprep.subr.mxu0 0.0
  %70 = vmatpush1.msra.mxu0 0.0
  %71 = vmatprep.subr.mxu0 0.0
  %72 = vmatpush1.msra.mxu0 0.0
  %73 = vmatprep.subr.mxu0 0.0
  %74 = vmatpush1.msra.mxu0 0.0
  %75 = vmatprep.subr.mxu0 0.0
  %76 = vmatpush1.msra.mxu0 0.0
  %77 = vmatprep.subr.mxu0 0.0
  %78 = vmatpush1.msra.mxu0 0.0
  %79 = vmatprep.subr.mxu0 0.0
  %80 = vmatpush1.msra.mxu0 %v47
  %81 = vmatprep.subr.mxu0 0.0
  %82 = vmatpush2.msra.mxu0 0.0
  %83 = vmatprep.subr.mxu0 0.0
  %84 = vmatpush2.msra.mxu0 0.0
  %85 = vmatprep.subr.mxu0 0.0
  %86 = vmatpush2.msra.mxu0 0.0
  %87 = vmatprep.subr.mxu0 0.0
  %88 = vmatpush2.msra.mxu0 0.0
  %89 = vmatprep.subr.mxu0 0.0
  %90 = vmatpush2.msra.mxu0 0.0
  %91 = vmatprep.subr.mxu0 0.0
  %92 = vmatpush2.msra.mxu0 0.0
  %93 = vmatprep.subr.mxu0 0.0
  %94 = vmatpush2.msra.mxu0 0.0
  %95 = vmatprep.subr.mxu0 0.0
  %96 = vmatpush2.msra.mxu0 0.0
  %97 = vmatprep.subr.mxu0 0.0
  %98 = vmatpush2.msra.mxu0 0.0
  %99 = vmatprep.subr.mxu0 0.0
  %100 = vmatpush2.msra.mxu0 0.0
  %101 = vmatprep.subr.mxu0 0.0
  %102 = vmatpush2.msra.mxu0 0.0
  %103 = vmatprep.subr.mxu0 0.0
  %104 = vmatpush2.msra.mxu0 0.0
  %105 = vmatprep.subr.mxu0 0.0
  %106 = vmatpush2.msra.mxu0 0.0
  %107 = vmatprep.subr.mxu0 0.0
  %108 = vmatpush2.msra.mxu0 0.0
  %109 = vmatprep.subr.mxu0 0.0
  %110 = vmatpush2.msra.mxu0 0.0
  %111 = vmatprep.subr.mxu0 0.0
  %112 = vmatpush2.msra.mxu0 0.0
  %113 = vmatprep.mubr.f32.mxu0 0.0
  %114 = vmatmul.mubr.f32.gmra.mxu0 %v40
  %v115 = vpop.f32.mrf.mxu0
  %v116 = vadd.f32 0.0, %v115
  %v117 = vpop.f32.mrf.mxu0
  %118 = vmatprep.mubr.f32.mxu0 0.0
  %119 = vmatmul.mubr.f32.gmra.mxu0 %v43
  %v120 = vpop.f32.mrf.mxu0
  %v121 = vadd.f32 0.0, %v120
  %v122 = vpop.f32.mrf.mxu0
  %123 = vdwg.mxu0
  %v124 = vld [vmem:[%s0] sm:$0x1]
  %vm125 = vcmp.lt.s32.totalorder %v124, 128
  %v126 = vsel %vm125, 1, 0
  %v127 = vcvt.s32.f32 %v126
  %v129 = vlaneseq
  %v130 = vshrl.u32 %v129, 7
  %v131 = vsub.s32 0, %v130
  %v132 = vrot.slane %v127, %v131
  %v134 = vmul.f32 %v116, %v132
  %v135 = vmul.f32 %v121, %v132
  %v136 = vld [vmem:[#allocation2] sm:$0xff]
  %v137 = vld [vmem:[#allocation2 + $0x8] sm:$0xff]
  %v138 = vadd.f32 %v136, %v134
  %v139 = vadd.f32 %v137, %v135
  %140 = vst [vmem:[#allocation2] sm:$0xff] %v138
  %141 = vst [vmem:[#allocation2 + $0x8] sm:$0xff] %v139
  %v142 = vld [vmem:[#allocation3] sm:$0xff]
  %v143 = vld [vmem:[#allocation3 + $0x8] sm:$0xff]
  %v144 = vmul.f32 %v134, %v116
  %v145 = vmul.f32 %v135, %v121
  %v146 = vadd.f32 %v142, %v144
  %v147 = vadd.f32 %v143, %v145
  %148 = vst [vmem:[#allocation3] sm:$0xff] %v146
  %149 = vst [vmem:[#allocation3 + $0x8] sm:$0xff] %v147
  // Predicated region
  $region26: #{self_adaptive_voxelization_forward.4} parent=0 // pred_check
    %p150 = pneg %p22
  $region27: #{self_adaptive_voxelization_forward.4} parent=0 // pred_check_branch
    %152 = sbr.rel (%p150) target = $region29
  $region28: #{self_adaptive_voxelization_forward.4} parent=0 // pred_region
    %v153 = vld [vmem:[#allocation2] sm:$0xff]
    %v154 = vld [vmem:[#allocation2 + $0x8] sm:$0xff]
    %155 = vadd.xlane.f32.xlu0 %v153
    %v156 = vpop.xlane.xlu0 %155
    %157 = vadd.xlane.f32.xlu0 %v154
    %v158 = vpop.xlane.xlu0 %157
    %v159 = vld [vmem:[#allocation3] sm:$0xff]
    %v160 = vld [vmem:[#allocation3 + $0x8] sm:$0xff]
    %161 = vadd.xlane.f32.xlu0 %v159
    %v162 = vpop.xlane.xlu0 %161
    %163 = vadd.xlane.f32.xlu0 %v160
    %v164 = vpop.xlane.xlu0 %163
    %v165 = vmul.f32 %v156, 0.015625
    %v166 = vmul.f32 %v158, 0.015625
    %v167 = vmul.f32 %v162, 0.015625
    %v168 = vmul.f32 %v164, 0.015625
    %v169 = vmul.f32 %v165, %v165
    %v170 = vmul.f32 %v166, %v166
    %v171 = vsub.f32 %v167, %v169
    %v172 = vsub.f32 %v168, %v170
    %v173 = vmax.f32 %v171, 0.0
    %v174 = vmax.f32 %v172, 0.0
    %v175 = vld [vmem:[%s3] sm:$0xff]
    %v176 = vld [vmem:[%s3 + $0x8] sm:$0xff]
    %v177 = vadd.f32 %v173, 0.001
    %v178 = vadd.f32 %v174, 0.001
    %v179 = vrsqrt.pop %v177
    %v180 = vrsqrt.pop %v178
    %v181 = vmul.f32 %v175, %v179
    %v182 = vmul.f32 %v176, %v180
    %vm183 = vcmask 7168
    %184 = vst.msk [vmem:[%s5] sm:$0xff] %vm183, %v181
    %185 = vst.msk [vmem:[%s5 + $0x8] sm:$0xff] %vm183, %v182
    %v186 = vld [vmem:[%s4] sm:$0xff]
    %v187 = vld [vmem:[%s4 + $0x8] sm:$0xff]
    %v188 = vmul.f32 %v165, %v181
    %v189 = vmul.f32 %v166, %v182
    %v190 = vsub.f32 %v186, %v188
    %v191 = vsub.f32 %v187, %v189
    %192 = vst.msk [vmem:[%s6] sm:$0xff] %vm183, %v190
    %193 = vst.msk [vmem:[%s6 + $0x8] sm:$0xff] %vm183, %v191
  $region29: #{self_adaptive_voxelization_forward.4} parent=0 // pred_fallthru
    _
  // Predicated region
  $region30: #{self_adaptive_voxelization_forward.4} parent=0 // pred_check
    _
  $region31: #{self_adaptive_voxelization_forward.4} parent=0 // pred_check_branch
    %195 = sbr.rel (0) target = $region33
  $region32: #{self_adaptive_voxelization_forward.4} parent=0 // pred_region
    _
  $region33: #{self_adaptive_voxelization_forward.4} parent=0 // pred_fallthru
    _
  // Predicated region
  $region34: #{self_adaptive_voxelization_forward.4} parent=0 // pred_check
    _
  $region35: #{self_adaptive_voxelization_forward.4} parent=0 // pred_check_branch
    %197 = sbr.rel (0) target = $region37
  $region36: #{self_adaptive_voxelization_forward.4} parent=0 // pred_region
    _
  $region37: #{self_adaptive_voxelization_forward.4} parent=0 // pred_fallthru
    _
  // Predicated region
  $region38: #{self_adaptive_voxelization_forward.4} parent=0 // pred_check
    _
  $region39: #{self_adaptive_voxelization_forward.4} parent=0 // pred_check_branch
    %199 = sbr.rel (0) target = $region41
  $region40: #{self_adaptive_voxelization_forward.4} parent=0 // pred_region
    _
  $region41: #{self_adaptive_voxelization_forward.4} parent=0 // pred_fallthru
    _
  // Predicated region
  $region42: #{self_adaptive_voxelization_forward.4} parent=0 // pred_check
    _
  $region43: #{self_adaptive_voxelization_forward.4} parent=0 // pred_check_branch
    %201 = sbr.rel (0) target = $region45
  $region44: #{self_adaptive_voxelization_forward.4} parent=0 // pred_region
    _
  $region45: #{self_adaptive_voxelization_forward.4} parent=0 // pred_fallthru
    _

// kernel: self_adaptive_voxelization_forward.6
$region0: #{self_adaptive_voxelization_forward.6}
  #allocation0 [shape = 'u32[]', space=smem, size = 0x4, offset = 0x4, fixed_abs, tag = 'smem constant byte address 0x4 - core index']
  #allocation1 [shape = 'u32[144,128]{1,0:T(1,128)}', space=vmem, size = 0x12000, scoped, tag = 'internal scratch']
  #allocation2 [shape = 'f32[32,128]{1,0:T(8,128)}', space=vmem, size = 0x4000, scoped, tag = 'scratch operand']
  #allocation3 [shape = 'f32[32,128]{1,0:T(8,128)}', space=vmem, size = 0x4000, scoped, tag = 'scratch operand']
  %s0 = inlined_call_operand.vmem [shape: s32[1,128], index: 0, kind: input, shape index: {}]
  %s1 = inlined_call_operand.vmem [shape: f32[16,128], index: 1, kind: input, shape index: {}]
  %s2 = inlined_call_operand.vmem [shape: f32[128,16], index: 2, kind: input, shape index: {}]
  %s3 = inlined_call_operand.vmem [shape: f32[32,16], index: 3, kind: input, shape index: {}]
  %s4 = inlined_call_operand.vmem [shape: f32[32,16], index: 4, kind: input, shape index: {}]
  %s5 = inlined_call_operand.vmem [shape: f32[32,1], index: 5, kind: input, shape index: {}]
  %s6 = inlined_call_operand.vmem [shape: f32[32,1], index: 6, kind: input, shape index: {}]
  %s7 = inlined_call_operand.vmem [shape: f32[32,1], index: 7, kind: output, shape index: {0}]
  %s8 = inlined_call_operand.vmem [shape: f32[32,1], index: 8, kind: output, shape index: {1}]
  %9 = xla_tuple %s7, %s8
  %s10 = sld [smem:[#allocation0]]
  $region54: #{self_adaptive_voxelization_forward.6} parent=0
    _
  %s12 = ssub.s32 1, %s10
  %s13 = scalar_select 0, %s12, %s10
  // Predicated region
  $region2: #{self_adaptive_voxelization_forward.6} parent=0 // pred_check
    _
  $region3: #{self_adaptive_voxelization_forward.6} parent=0 // pred_check_branch
    %15 = sbr.rel (0) target = $region5
  $region4: #{self_adaptive_voxelization_forward.6} parent=0 // pred_region
    _
  $region5: #{self_adaptive_voxelization_forward.6} parent=0 // pred_fallthru
    _
  // Predicated region
  $region6: #{self_adaptive_voxelization_forward.6} parent=0 // pred_check
    _
  $region7: #{self_adaptive_voxelization_forward.6} parent=0 // pred_check_branch
    %17 = sbr.rel (0) target = $region9
  $region8: #{self_adaptive_voxelization_forward.6} parent=0 // pred_region
    _
  $region9: #{self_adaptive_voxelization_forward.6} parent=0 // pred_fallthru
    _
  // Predicated region
  $region10: #{self_adaptive_voxelization_forward.6} parent=0 // pred_check
    _
  $region11: #{self_adaptive_voxelization_forward.6} parent=0 // pred_check_branch
    %19 = sbr.rel (0) target = $region13
  $region12: #{self_adaptive_voxelization_forward.6} parent=0 // pred_region
    _
  $region13: #{self_adaptive_voxelization_forward.6} parent=0 // pred_fallthru
    _
  // Predicated region
  $region14: #{self_adaptive_voxelization_forward.6} parent=0 // pred_check
    _
  $region15: #{self_adaptive_voxelization_forward.6} parent=0 // pred_check_branch
    %21 = sbr.rel (0) target = $region17
  $region16: #{self_adaptive_voxelization_forward.6} parent=0 // pred_region
    _
  $region17: #{self_adaptive_voxelization_forward.6} parent=0 // pred_fallthru
    _
  // Predicated region
  $region18: #{self_adaptive_voxelization_forward.6} parent=0 // pred_check
    _
  $region19: #{self_adaptive_voxelization_forward.6} parent=0 // pred_check_branch
    %23 = sbr.rel (0) target = $region21
  $region20: #{self_adaptive_voxelization_forward.6} parent=0 // pred_region
    _
  $region21: #{self_adaptive_voxelization_forward.6} parent=0 // pred_fallthru
    _
  // Predicated region
  $region22: #{self_adaptive_voxelization_forward.6} parent=0 // pred_check
    _
  $region23: #{self_adaptive_voxelization_forward.6} parent=0 // pred_check_branch
    %25 = sbr.rel (0) target = $region25
  $region24: #{self_adaptive_voxelization_forward.6} parent=0 // pred_region
    _
  $region25: #{self_adaptive_voxelization_forward.6} parent=0 // pred_fallthru
    _
  // Predicated region
  $region26: #{self_adaptive_voxelization_forward.6} parent=0 // pred_check
    _
  $region27: #{self_adaptive_voxelization_forward.6} parent=0 // pred_check_branch
    %27 = sbr.rel (0) target = $region29
  $region28: #{self_adaptive_voxelization_forward.6} parent=0 // pred_region
    _
  $region29: #{self_adaptive_voxelization_forward.6} parent=0 // pred_fallthru
    _
  %p28 = scmp.eq.s32.totalorder 0, 0
  // Predicated region
  $region30: #{self_adaptive_voxelization_forward.6} parent=0 // pred_check
    %p29 = pneg %p28
  $region31: #{self_adaptive_voxelization_forward.6} parent=0 // pred_check_branch
    %31 = sbr.rel (%p29) target = $region33
  $region32: #{self_adaptive_voxelization_forward.6} parent=0 // pred_region
    %32 = vst [vmem:[#allocation2] sm:$0xff] 0.0
    %33 = vst [vmem:[#allocation2 + $0x8] sm:$0xff] 0.0
    %34 = vst [vmem:[#allocation2 + $0x10] sm:$0xff] 0.0
    %35 = vst [vmem:[#allocation2 + $0x18] sm:$0xff] 0.0
    %36 = vst [vmem:[#allocation3] sm:$0xff] 0.0
    %37 = vst [vmem:[#allocation3 + $0x8] sm:$0xff] 0.0
    %38 = vst [vmem:[#allocation3 + $0x10] sm:$0xff] 0.0
    %39 = vst [vmem:[#allocation3 + $0x18] sm:$0xff] 0.0
    %vm40 = vcmask 7168
    %41 = vst.msk [vmem:[%s7] sm:$0xff] %vm40, 0.0
    %42 = vst.msk [vmem:[%s7 + $0x8] sm:$0xff] %vm40, 0.0
    %43 = vst.msk [vmem:[%s7 + $0x10] sm:$0xff] %vm40, 0.0
    %44 = vst.msk [vmem:[%s7 + $0x18] sm:$0xff] %vm40, 0.0
    %45 = vst.msk [vmem:[%s8] sm:$0xff] %vm40, 0.0
    %46 = vst.msk [vmem:[%s8 + $0x8] sm:$0xff] %vm40, 0.0
    %47 = vst.msk [vmem:[%s8 + $0x10] sm:$0xff] %vm40, 0.0
    %48 = vst.msk [vmem:[%s8 + $0x18] sm:$0xff] %vm40, 0.0
  $region33: #{self_adaptive_voxelization_forward.6} parent=0 // pred_fallthru
    _
  %v49 = vld [vmem:[%s3] sm:$0xff]
  %v50 = vld [vmem:[%s3 + $0x8] sm:$0xff]
  %v51 = vld [vmem:[%s3 + $0x10] sm:$0xff]
  %v52 = vld [vmem:[%s3 + $0x18] sm:$0xff]
  %v53 = vld [vmem:[%s1] sm:$0xff]
  %v54 = vld [vmem:[%s1 + $0x8] sm:$0xff]
  %v55 = vld [vmem:[%s4] sm:$0xff]
  %v56 = vld [vmem:[%s4 + $0x8] sm:$0xff]
  %v57 = vld [vmem:[%s4 + $0x10] sm:$0xff]
  %v58 = vld [vmem:[%s4 + $0x18] sm:$0xff]
  %v59 = vld [vmem:[%s2] sm:$0xff]
  %v60 = vld [vmem:[%s2 + $0x8] sm:$0xff]
  %v61 = vld [vmem:[%s2 + $0x10] sm:$0xff]
  %v62 = vld [vmem:[%s2 + $0x18] sm:$0xff]
  %v63 = vld [vmem:[%s2 + $0x20] sm:$0xff]
  %v64 = vld [vmem:[%s2 + $0x28] sm:$0xff]
  %v65 = vld [vmem:[%s2 + $0x30] sm:$0xff]
  %v66 = vld [vmem:[%s2 + $0x38] sm:$0xff]
  %v67 = vld [vmem:[%s2 + $0x40] sm:$0xff]
  %v68 = vld [vmem:[%s2 + $0x48] sm:$0xff]
  %v69 = vld [vmem:[%s2 + $0x50] sm:$0xff]
  %v70 = vld [vmem:[%s2 + $0x58] sm:$0xff]
  %v71 = vld [vmem:[%s2 + $0x60] sm:$0xff]
  %v72 = vld [vmem:[%s2 + $0x68] sm:$0xff]
  %v73 = vld [vmem:[%s2 + $0x70] sm:$0xff]
  %v74 = vld [vmem:[%s2 + $0x78] sm:$0xff]
  %vm75 = vcmask 130048
  %v77 = vsel %vm75, %v55, 0
  %v80 = vsel %vm75, %v56, 0
  %v83 = vsel %vm75, %v57, 0
  %v86 = vsel %vm75, %v58, 0
  %v89 = vsel %vm75, %v59, 0
  %v92 = vsel %vm75, %v60, 0
  %v95 = vsel %vm75, %v61, 0
  %v98 = vsel %vm75, %v62, 0
  %v101 = vsel %vm75, %v63, 0
  %v104 = vsel %vm75, %v64, 0
  %v107 = vsel %vm75, %v65, 0
  %v110 = vsel %vm75, %v66, 0
  %v113 = vsel %vm75, %v67, 0
  %v116 = vsel %vm75, %v68, 0
  %v119 = vsel %vm75, %v69, 0
  %v122 = vsel %vm75, %v70, 0
  %v125 = vsel %vm75, %v71, 0
  %v128 = vsel %vm75, %v72, 0
  %v131 = vsel %vm75, %v73, 0
  %v134 = vsel %vm75, %v74, 0
  %136 = vmatprep.subr.mxu0 0.0
  %137 = vmatpush1.xpose.msra.mxu0 %v134
  %138 = vmatprep.subr.mxu0 0.0
  %139 = vmatpush1.xpose.msra.mxu0 %v131
  %140 = vmatprep.subr.mxu0 0.0
  %141 = vmatpush1.xpose.msra.mxu0 %v128
  %142 = vmatprep.subr.mxu0 0.0
  %143 = vmatpush1.xpose.msra.mxu0 %v125
  %144 = vmatprep.subr.mxu0 0.0
  %145 = vmatpush1.xpose.msra.mxu0 %v122
  %146 = vmatprep.subr.mxu0 0.0
  %147 = vmatpush1.xpose.msra.mxu0 %v119
  %148 = vmatprep.subr.mxu0 0.0
  %149 = vmatpush1.xpose.msra.mxu0 %v116
  %150 = vmatprep.subr.mxu0 0.0
  %151 = vmatpush1.xpose.msra.mxu0 %v113
  %152 = vmatprep.subr.mxu0 0.0
  %153 = vmatpush1.xpose.msra.mxu0 %v110
  %154 = vmatprep.subr.mxu0 0.0
  %155 = vmatpush1.xpose.msra.mxu0 %v107
  %156 = vmatprep.subr.mxu0 0.0
  %157 = vmatpush1.xpose.msra.mxu0 %v104
  %158 = vmatprep.subr.mxu0 0.0
  %159 = vmatpush1.xpose.msra.mxu0 %v101
  %160 = vmatprep.subr.mxu0 0.0
  %161 = vmatpush1.xpose.msra.mxu0 %v98
  %162 = vmatprep.subr.mxu0 0.0
  %163 = vmatpush1.xpose.msra.mxu0 %v95
  %164 = vmatprep.subr.mxu0 0.0
  %165 = vmatpush1.xpose.msra.mxu0 %v92
  %166 = vmatprep.subr.mxu0 0.0
  %167 = vmatpush1.xpose.msra.mxu0 %v89
  %168 = vmatprep.subr.mxu0 0.0
  %169 = vmatpush2.xpose.msra.mxu0 0.0
  %170 = vmatprep.subr.mxu0 0.0
  %171 = vmatpush2.xpose.msra.mxu0 0.0
  %172 = vmatprep.subr.mxu0 0.0
  %173 = vmatpush2.xpose.msra.mxu0 0.0
  %174 = vmatprep.subr.mxu0 0.0
  %175 = vmatpush2.xpose.msra.mxu0 0.0
  %176 = vmatprep.subr.mxu0 0.0
  %177 = vmatpush2.xpose.msra.mxu0 0.0
  %178 = vmatprep.subr.mxu0 0.0
  %179 = vmatpush2.xpose.msra.mxu0 0.0
  %180 = vmatprep.subr.mxu0 0.0
  %181 = vmatpush2.xpose.msra.mxu0 0.0
  %182 = vmatprep.subr.mxu0 0.0
  %183 = vmatpush2.xpose.msra.mxu0 0.0
  %184 = vmatprep.subr.mxu0 0.0
  %185 = vmatpush2.xpose.msra.mxu0 0.0
  %186 = vmatprep.subr.mxu0 0.0
  %187 = vmatpush2.xpose.msra.mxu0 0.0
  %188 = vmatprep.subr.mxu0 0.0
  %189 = vmatpush2.xpose.msra.mxu0 0.0
  %190 = vmatprep.subr.mxu0 0.0
  %191 = vmatpush2.xpose.msra.mxu0 0.0
  %192 = vmatprep.subr.mxu0 0.0
  %193 = vmatpush2.xpose.msra.mxu0 0.0
  %194 = vmatprep.subr.mxu0 0.0
  %195 = vmatpush2.xpose.msra.mxu0 0.0
  %196 = vmatprep.subr.mxu0 0.0
  %197 = vmatpush2.xpose.msra.mxu0 0.0
  %198 = vmatprep.subr.mxu0 0.0
  %199 = vmatpush2.xpose.msra.mxu0 0.0
  %200 = vmatprep.mubr.f32.mxu0 0.0
  %201 = vmatmul.mubr.f32.gmra.mxu0 %v77
  %v202 = vpop.f32.mrf.mxu0
  %v203 = vadd.f32 0.0, %v202
  %v204 = vpop.f32.mrf.mxu0
  %205 = vmatprep.mubr.f32.mxu0 0.0
  %206 = vmatmul.mubr.f32.gmra.mxu0 %v80
  %v207 = vpop.f32.mrf.mxu0
  %v208 = vadd.f32 0.0, %v207
  %v209 = vpop.f32.mrf.mxu0
  %210 = vmatprep.mubr.f32.mxu0 0.0
  %211 = vmatmul.mubr.f32.gmra.mxu0 %v83
  %v212 = vpop.f32.mrf.mxu0
  %v213 = vadd.f32 0.0, %v212
  %v214 = vpop.f32.mrf.mxu0
  %215 = vmatprep.mubr.f32.mxu0 0.0
  %216 = vmatmul.mubr.f32.gmra.mxu0 %v86
  %v217 = vpop.f32.mrf.mxu0
  %v218 = vadd.f32 0.0, %v217
  %v219 = vpop.f32.mrf.mxu0
  %220 = vdwg.mxu0
  %v222 = vsel %vm75, %v49, 0
  %v225 = vsel %vm75, %v50, 0
  %v228 = vsel %vm75, %v51, 0
  %v231 = vsel %vm75, %v52, 0
  %233 = vmatprep.subr.mxu0 0.0
  %234 = vmatpush1.msra.mxu0 0.0
  %235 = vmatprep.subr.mxu0 0.0
  %236 = vmatpush1.msra.mxu0 0.0
  %237 = vmatprep.subr.mxu0 0.0
  %238 = vmatpush1.msra.mxu0 0.0
  %239 = vmatprep.subr.mxu0 0.0
  %240 = vmatpush1.msra.mxu0 0.0
  %241 = vmatprep.subr.mxu0 0.0
  %242 = vmatpush1.msra.mxu0 0.0
  %243 = vmatprep.subr.mxu0 0.0
  %244 = vmatpush1.msra.mxu0 0.0
  %245 = vmatprep.subr.mxu0 0.0
  %246 = vmatpush1.msra.mxu0 0.0
  %247 = vmatprep.subr.mxu0 0.0
  %248 = vmatpush1.msra.mxu0 0.0
  %249 = vmatprep.subr.mxu0 0.0
  %250 = vmatpush1.msra.mxu0 0.0
  %251 = vmatprep.subr.mxu0 0.0
  %252 = vmatpush1.msra.mxu0 0.0
  %253 = vmatprep.subr.mxu0 0.0
  %254 = vmatpush1.msra.mxu0 0.0
  %255 = vmatprep.subr.mxu0 0.0
  %256 = vmatpush1.msra.mxu0 0.0
  %257 = vmatprep.subr.mxu0 0.0
  %258 = vmatpush1.msra.mxu0 0.0
  %259 = vmatprep.subr.mxu0 0.0
  %260 = vmatpush1.msra.mxu0 0.0
  %261 = vmatprep.subr.mxu0 0.0
  %262 = vmatpush1.msra.mxu0 %v54
  %263 = vmatprep.subr.mxu0 0.0
  %264 = vmatpush1.msra.mxu0 %v53
  %265 = vmatprep.subr.mxu0 0.0
  %266 = vmatpush2.msra.mxu0 0.0
  %267 = vmatprep.subr.mxu0 0.0
  %268 = vmatpush2.msra.mxu0 0.0
  %269 = vmatprep.subr.mxu0 0.0
  %270 = vmatpush2.msra.mxu0 0.0
  %271 = vmatprep.subr.mxu0 0.0
  %272 = vmatpush2.msra.mxu0 0.0
  %273 = vmatprep.subr.mxu0 0.0
  %274 = vmatpush2.msra.mxu0 0.0
  %275 = vmatprep.subr.mxu0 0.0
  %276 = vmatpush2.msra.mxu0 0.0
  %277 = vmatprep.subr.mxu0 0.0
  %278 = vmatpush2.msra.mxu0 0.0
  %279 = vmatprep.subr.mxu0 0.0
  %280 = vmatpush2.msra.mxu0 0.0
  %281 = vmatprep.subr.mxu0 0.0
  %282 = vmatpush2.msra.mxu0 0.0
  %283 = vmatprep.subr.mxu0 0.0
  %284 = vmatpush2.msra.mxu0 0.0
  %285 = vmatprep.subr.mxu0 0.0
  %286 = vmatpush2.msra.mxu0 0.0
  %287 = vmatprep.subr.mxu0 0.0
  %288 = vmatpush2.msra.mxu0 0.0
  %289 = vmatprep.subr.mxu0 0.0
  %290 = vmatpush2.msra.mxu0 0.0
  %291 = vmatprep.subr.mxu0 0.0
  %292 = vmatpush2.msra.mxu0 0.0
  %293 = vmatprep.subr.mxu0 0.0
  %294 = vmatpush2.msra.mxu0 0.0
  %295 = vmatprep.subr.mxu0 0.0
  %296 = vmatpush2.msra.mxu0 0.0
  %297 = vmatprep.mubr.f32.mxu0 0.0
  %298 = vmatmul.mubr.f32.gmra.mxu0 %v222
  %v299 = vpop.f32.mrf.mxu0
  %v300 = vadd.f32 %v203, %v299
  %v301 = vpop.f32.mrf.mxu0
  %302 = vmatprep.mubr.f32.mxu0 0.0
  %303 = vmatmul.mubr.f32.gmra.mxu0 %v225
  %v304 = vpop.f32.mrf.mxu0
  %v305 = vadd.f32 %v208, %v304
  %v306 = vpop.f32.mrf.mxu0
  %307 = vmatprep.mubr.f32.mxu0 0.0
  %308 = vmatmul.mubr.f32.gmra.mxu0 %v228
  %v309 = vpop.f32.mrf.mxu0
  %v310 = vadd.f32 %v213, %v309
  %v311 = vpop.f32.mrf.mxu0
  %312 = vmatprep.mubr.f32.mxu0 0.0
  %313 = vmatmul.mubr.f32.gmra.mxu0 %v231
  %v314 = vpop.f32.mrf.mxu0
  %v315 = vadd.f32 %v218, %v314
  %v316 = vpop.f32.mrf.mxu0
  %317 = vdwg.mxu0
  %v318 = vld [vmem:[%s0] sm:$0x1]
  %vm319 = vcmp.lt.s32.totalorder %v318, 128
  %v320 = vsel %vm319, 1, 0
  %v321 = vcvt.s32.f32 %v320
  %v323 = vlaneseq
  %v324 = vshrl.u32 %v323, 7
  %v325 = vsub.s32 0, %v324
  %v326 = vrot.slane %v321, %v325
  %v328 = vmul.f32 %v300, %v326
  %v329 = vmul.f32 %v305, %v326
  %v330 = vmul.f32 %v310, %v326
  %v331 = vmul.f32 %v315, %v326
  %v332 = vld [vmem:[#allocation2] sm:$0xff]
  %v333 = vld [vmem:[#allocation2 + $0x8] sm:$0xff]
  %v334 = vld [vmem:[#allocation2 + $0x10] sm:$0xff]
  %v335 = vld [vmem:[#allocation2 + $0x18] sm:$0xff]
  %v336 = vadd.f32 %v332, %v328
  %v337 = vadd.f32 %v333, %v329
  %v338 = vadd.f32 %v334, %v330
  %v339 = vadd.f32 %v335, %v331
  %340 = vst [vmem:[#allocation2] sm:$0xff] %v336
  %341 = vst [vmem:[#allocation2 + $0x8] sm:$0xff] %v337
  %342 = vst [vmem:[#allocation2 + $0x10] sm:$0xff] %v338
  %343 = vst [vmem:[#allocation2 + $0x18] sm:$0xff] %v339
  %v344 = vld [vmem:[#allocation3] sm:$0xff]
  %v345 = vld [vmem:[#allocation3 + $0x8] sm:$0xff]
  %v346 = vld [vmem:[#allocation3 + $0x10] sm:$0xff]
  %v347 = vld [vmem:[#allocation3 + $0x18] sm:$0xff]
  %v348 = vmul.f32 %v328, %v300
  %v349 = vmul.f32 %v329, %v305
  %v350 = vmul.f32 %v330, %v310
  %v351 = vmul.f32 %v331, %v315
  %v352 = vadd.f32 %v344, %v348
  %v353 = vadd.f32 %v345, %v349
  %v354 = vadd.f32 %v346, %v350
  %v355 = vadd.f32 %v347, %v351
  %356 = vst [vmem:[#allocation3] sm:$0xff] %v352
  %357 = vst [vmem:[#allocation3 + $0x8] sm:$0xff] %v353
  %358 = vst [vmem:[#allocation3 + $0x10] sm:$0xff] %v354
  %359 = vst [vmem:[#allocation3 + $0x18] sm:$0xff] %v355
  // Predicated region
  $region34: #{self_adaptive_voxelization_forward.6} parent=0 // pred_check
    %p360 = pneg %p28
  $region35: #{self_adaptive_voxelization_forward.6} parent=0 // pred_check_branch
    %362 = sbr.rel (%p360) target = $region37
  $region36: #{self_adaptive_voxelization_forward.6} parent=0 // pred_region
    %v363 = vld [vmem:[#allocation2] sm:$0xff]
    %v364 = vld [vmem:[#allocation2 + $0x8] sm:$0xff]
    %v365 = vld [vmem:[#allocation2 + $0x10] sm:$0xff]
    %v366 = vld [vmem:[#allocation2 + $0x18] sm:$0xff]
    %367 = vadd.xlane.f32.xlu0 %v363
    %v368 = vpop.xlane.xlu0 %367
    %369 = vadd.xlane.f32.xlu0 %v364
    %v370 = vpop.xlane.xlu0 %369
    %371 = vadd.xlane.f32.xlu0 %v365
    %v372 = vpop.xlane.xlu0 %371
    %373 = vadd.xlane.f32.xlu0 %v366
    %v374 = vpop.xlane.xlu0 %373
    %v375 = vld [vmem:[#allocation3] sm:$0xff]
    %v376 = vld [vmem:[#allocation3 + $0x8] sm:$0xff]
    %v377 = vld [vmem:[#allocation3 + $0x10] sm:$0xff]
    %v378 = vld [vmem:[#allocation3 + $0x18] sm:$0xff]
    %379 = vadd.xlane.f32.xlu0 %v375
    %v380 = vpop.xlane.xlu0 %379
    %381 = vadd.xlane.f32.xlu0 %v376
    %v382 = vpop.xlane.xlu0 %381
    %383 = vadd.xlane.f32.xlu0 %v377
    %v384 = vpop.xlane.xlu0 %383
    %385 = vadd.xlane.f32.xlu0 %v378
    %v386 = vpop.xlane.xlu0 %385
    %v387 = vmul.f32 %v368, 0.015625
    %v388 = vmul.f32 %v370, 0.015625
    %v389 = vmul.f32 %v372, 0.015625
    %v390 = vmul.f32 %v374, 0.015625
    %v391 = vmul.f32 %v380, 0.015625
    %v392 = vmul.f32 %v382, 0.015625
    %v393 = vmul.f32 %v384, 0.015625
    %v394 = vmul.f32 %v386, 0.015625
    %v395 = vmul.f32 %v387, %v387
    %v396 = vmul.f32 %v388, %v388
    %v397 = vmul.f32 %v389, %v389
    %v398 = vmul.f32 %v390, %v390
    %v399 = vsub.f32 %v391, %v395
    %v400 = vsub.f32 %v392, %v396
    %v401 = vsub.f32 %v393, %v397
    %v402 = vsub.f32 %v394, %v398
    %v403 = vmax.f32 %v399, 0.0
    %v404 = vmax.f32 %v400, 0.0
    %v405 = vmax.f32 %v401, 0.0
    %v406 = vmax.f32 %v402, 0.0
    %v407 = vld [vmem:[%s5] sm:$0xff]
    %v408 = vld [vmem:[%s5 + $0x8] sm:$0xff]
    %v409 = vld [vmem:[%s5 + $0x10] sm:$0xff]
    %v410 = vld [vmem:[%s5 + $0x18] sm:$0xff]
    %v411 = vadd.f32 %v403, 0.001
    %v412 = vadd.f32 %v404, 0.001
    %v413 = vadd.f32 %v405, 0.001
    %v414 = vadd.f32 %v406, 0.001
    %v415 = vrsqrt.pop %v411
    %v416 = vrsqrt.pop %v412
    %v417 = vrsqrt.pop %v413
    %v418 = vrsqrt.pop %v414
    %v419 = vmul.f32 %v407, %v415
    %v420 = vmul.f32 %v408, %v416
    %v421 = vmul.f32 %v409, %v417
    %v422 = vmul.f32 %v410, %v418
    %vm423 = vcmask 7168
    %424 = vst.msk [vmem:[%s7] sm:$0xff] %vm423, %v419
    %425 = vst.msk [vmem:[%s7 + $0x8] sm:$0xff] %vm423, %v420
    %426 = vst.msk [vmem:[%s7 + $0x10] sm:$0xff] %vm423, %v421
    %427 = vst.msk [vmem:[%s7 + $0x18] sm:$0xff] %vm423, %v422
    %v428 = vld [vmem:[%s6] sm:$0xff]
    %v429 = vld [vmem:[%s6 + $0x8] sm:$0xff]
    %v430 = vld [vmem:[%s6 + $0x10] sm:$0xff]
    %v431 = vld [vmem:[%s6 + $0x18] sm:$0xff]
    %v432 = vmul.f32 %v387, %v419
    %v433 = vmul.f32 %v388, %v420
    %v434 = vmul.f32 %v389, %v421
    %v435 = vmul.f32 %v390, %v422
    %v436 = vsub.f32 %v428, %v432
    %v437 = vsub.f32 %v429, %v433
    %v438 = vsub.f32 %v430, %v434
    %v439 = vsub.f32 %v431, %v435
    %440 = vst.msk [vmem:[%s8] sm:$0xff] %vm423, %v436
    %441 = vst.msk [vmem:[%s8 + $0x8] sm:$0xff] %vm423, %v437
    %442 = vst.msk [vmem:[%s8 + $0x10] sm:$0xff] %vm423, %v438
    %443 = vst.msk [vmem:[%s8 + $0x18] sm:$0xff] %vm423, %v439
  $region37: #{self_adaptive_voxelization_forward.6} parent=0 // pred_fallthru
    _
  // Predicated region
  $region38: #{self_adaptive_voxelization_forward.6} parent=0 // pred_check
    _
  $region39: #{self_adaptive_voxelization_forward.6} parent=0 // pred_check_branch
    %445 = sbr.rel (0) target = $region41
  $region40: #{self_adaptive_voxelization_forward.6} parent=0 // pred_region
    _
  $region41: #{self_adaptive_voxelization_forward.6} parent=0 // pred_fallthru
    _
  // Predicated region
  $region42: #{self_adaptive_voxelization_forward.6} parent=0 // pred_check
    _
  $region43: #{self_adaptive_voxelization_forward.6} parent=0 // pred_check_branch
    %447 = sbr.rel (0) target = $region45
  $region44: #{self_adaptive_voxelization_forward.6} parent=0 // pred_region
    _
  $region45: #{self_adaptive_voxelization_forward.6} parent=0 // pred_fallthru
    _
  // Predicated region
  $region46: #{self_adaptive_voxelization_forward.6} parent=0 // pred_check
    _
  $region47: #{self_adaptive_voxelization_forward.6} parent=0 // pred_check_branch
    %449 = sbr.rel (0) target = $region49
  $region48: #{self_adaptive_voxelization_forward.6} parent=0 // pred_region
    _
  $region49: #{self_adaptive_voxelization_forward.6} parent=0 // pred_fallthru
    _
  // Predicated region
  $region50: #{self_adaptive_voxelization_forward.6} parent=0 // pred_check
    _
  $region51: #{self_adaptive_voxelization_forward.6} parent=0 // pred_check_branch
    %451 = sbr.rel (0) target = $region53
  $region52: #{self_adaptive_voxelization_forward.6} parent=0 // pred_region
    _
  $region53: #{self_adaptive_voxelization_forward.6} parent=0 // pred_fallthru
    _

// kernel: self_adaptive_voxelization_forward.5
$region0: #{self_adaptive_voxelization_forward.5}
  #allocation0 [shape = 'u32[]', space=smem, size = 0x4, offset = 0x4, fixed_abs, tag = 'smem constant byte address 0x4 - core index']
  #allocation1 [shape = 'u32[144,128]{1,0:T(1,128)}', space=vmem, size = 0x12000, scoped, tag = 'internal scratch']
  #allocation2 [shape = 'f32[128,16]{1,0:T(8,128)}', space=vmem, size = 0x10000, scoped, tag = 'scratch operand']
  #allocation3 [shape = 's32[1]{0}', space=sflag, size = 0x4, scoped, tag = 'scoped memory for self_adaptive_voxelization_forward.5']
  #allocation4 [shape = 's32[1]{0:T(128)S(6)}', space=smem, size = 0x200, scoped, tag = 'prefetched SMEM operand 0']
  #allocation5 [shape = 's32[1]{0:T(128)S(6)}', space=smem, size = 0x200, scoped, tag = 'prefetched SMEM operand 1']
  %s0 = inlined_call_operand.<no memory space> [shape: s32[1], index: 0, kind: input, shape index: {}]
  %s1 = inlined_call_operand.<no memory space> [shape: s32[1], index: 1, kind: input, shape index: {}]
  %s2 = inlined_call_operand.vmem [shape: s32[1,128], index: 2, kind: input, shape index: {}]
  %s3 = inlined_call_operand.vmem [shape: f32[4,128], index: 3, kind: input, shape index: {}]
  %s4 = inlined_call_operand.vmem [shape: f32[16,4], index: 4, kind: input, shape index: {}]
  %s5 = inlined_call_operand.vmem [shape: f32[16,1], index: 5, kind: input, shape index: {}]
  %s6 = inlined_call_operand.vmem [shape: f32[16,1], index: 6, kind: input, shape index: {}]
  %s7 = inlined_call_operand.vmem [shape: f32[16,128], index: 7, kind: output, shape index: {0}]
  %s8 = inlined_call_operand.vmem [shape: f32[128,16], index: 8, kind: output, shape index: {1}]
  %9 = xla_tuple %s7, %s8
  %s10 = sld [smem:[#allocation0]]
  $region49: #{self_adaptive_voxelization_forward.5} parent=0
    _
  %s12 = ssub.s32 1, %s10
  %s13 = scalar_select 0, %s12, %s10
  %14 = sst [smem:[#allocation4]] %s0
  %15 = sst [smem:[#allocation5]] %s1
  // Predicated region
  $region2: #{self_adaptive_voxelization_forward.5} parent=0 // pred_check
    _
  $region3: #{self_adaptive_voxelization_forward.5} parent=0 // pred_check_branch
    %17 = sbr.rel (0) target = $region5
  $region4: #{self_adaptive_voxelization_forward.5} parent=0 // pred_region
    _
  $region5: #{self_adaptive_voxelization_forward.5} parent=0 // pred_fallthru
    _
  // Predicated region
  $region6: #{self_adaptive_voxelization_forward.5} parent=0 // pred_check
    _
  $region7: #{self_adaptive_voxelization_forward.5} parent=0 // pred_check_branch
    %19 = sbr.rel (0) target = $region9
  $region8: #{self_adaptive_voxelization_forward.5} parent=0 // pred_region
    _
  $region9: #{self_adaptive_voxelization_forward.5} parent=0 // pred_fallthru
    _
  // Predicated region
  $region10: #{self_adaptive_voxelization_forward.5} parent=0 // pred_check
    _
  $region11: #{self_adaptive_voxelization_forward.5} parent=0 // pred_check_branch
    %21 = sbr.rel (0) target = $region13
  $region12: #{self_adaptive_voxelization_forward.5} parent=0 // pred_region
    _
  $region13: #{self_adaptive_voxelization_forward.5} parent=0 // pred_fallthru
    _
  // Predicated region
  $region14: #{self_adaptive_voxelization_forward.5} parent=0 // pred_check
    _
  $region15: #{self_adaptive_voxelization_forward.5} parent=0 // pred_check_branch
    %23 = sbr.rel (0) target = $region17
  $region16: #{self_adaptive_voxelization_forward.5} parent=0 // pred_region
    _
  $region17: #{self_adaptive_voxelization_forward.5} parent=0 // pred_fallthru
    _
  // Predicated region
  $region18: #{self_adaptive_voxelization_forward.5} parent=0 // pred_check
    _
  $region19: #{self_adaptive_voxelization_forward.5} parent=0 // pred_check_branch
    %25 = sbr.rel (0) target = $region21
  $region20: #{self_adaptive_voxelization_forward.5} parent=0 // pred_region
    _
  $region21: #{self_adaptive_voxelization_forward.5} parent=0 // pred_fallthru
    _
  %p26 = scmp.eq.s32.totalorder 0, 0
  // Predicated region
  $region22: #{self_adaptive_voxelization_forward.5} parent=0 // pred_check
    %p27 = pneg %p26
  $region23: #{self_adaptive_voxelization_forward.5} parent=0 // pred_check_branch
    %29 = sbr.rel (%p27) target = $region25
  $region24: #{self_adaptive_voxelization_forward.5} parent=0 // pred_region
    %vm30 = vcmask 130048
    %31 = vst.msk [vmem:[%s8] sm:$0xff] %vm30, 0.0
    %32 = vst.msk [vmem:[%s8 + $0x8] sm:$0xff] %vm30, 0.0
    %33 = vst.msk [vmem:[%s8 + $0x10] sm:$0xff] %vm30, 0.0
    %34 = vst.msk [vmem:[%s8 + $0x18] sm:$0xff] %vm30, 0.0
    %35 = vst.msk [vmem:[%s8 + $0x20] sm:$0xff] %vm30, 0.0
    %36 = vst.msk [vmem:[%s8 + $0x28] sm:$0xff] %vm30, 0.0
    %37 = vst.msk [vmem:[%s8 + $0x30] sm:$0xff] %vm30, 0.0
    %38 = vst.msk [vmem:[%s8 + $0x38] sm:$0xff] %vm30, 0.0
    %39 = vst.msk [vmem:[%s8 + $0x40] sm:$0xff] %vm30, 0.0
    %40 = vst.msk [vmem:[%s8 + $0x48] sm:$0xff] %vm30, 0.0
    %41 = vst.msk [vmem:[%s8 + $0x50] sm:$0xff] %vm30, 0.0
    %42 = vst.msk [vmem:[%s8 + $0x58] sm:$0xff] %vm30, 0.0
    %43 = vst.msk [vmem:[%s8 + $0x60] sm:$0xff] %vm30, 0.0
    %44 = vst.msk [vmem:[%s8 + $0x68] sm:$0xff] %vm30, 0.0
    %45 = vst.msk [vmem:[%s8 + $0x70] sm:$0xff] %vm30, 0.0
    %46 = vst.msk [vmem:[%s8 + $0x78] sm:$0xff] %vm30, 0.0
  $region25: #{self_adaptive_voxelization_forward.5} parent=0 // pred_fallthru
    _
  %v47 = vld [vmem:[%s4] sm:$0xff]
  %v48 = vld [vmem:[%s4 + $0x8] sm:$0xff]
  %v49 = vld [vmem:[%s3] sm:$0xf]
  %vm50 = vcmask 31744
  %v52 = vsel %vm50, %v47, 0
  %v55 = vsel %vm50, %v48, 0
  %vm57 = vcmask 1043456
  %v59 = vsel %vm57, %v49, 0
  %61 = vmatprep.subr.mxu0 0.0
  %62 = vmatpush1.msra.mxu0 0.0
  %63 = vmatprep.subr.mxu0 0.0
  %64 = vmatpush1.msra.mxu0 0.0
  %65 = vmatprep.subr.mxu0 0.0
  %66 = vmatpush1.msra.mxu0 0.0
  %67 = vmatprep.subr.mxu0 0.0
  %68 = vmatpush1.msra.mxu0 0.0
  %69 = vmatprep.subr.mxu0 0.0
  %70 = vmatpush1.msra.mxu0 0.0
  %71 = vmatprep.subr.mxu0 0.0
  %72 = vmatpush1.msra.mxu0 0.0
  %73 = vmatprep.subr.mxu0 0.0
  %74 = vmatpush1.msra.mxu0 0.0
  %75 = vmatprep.subr.mxu0 0.0
  %76 = vmatpush1.msra.mxu0 0.0
  %77 = vmatprep.subr.mxu0 0.0
  %78 = vmatpush1.msra.mxu0 0.0
  %79 = vmatprep.subr.mxu0 0.0
  %80 = vmatpush1.msra.mxu0 0.0
  %81 = vmatprep.subr.mxu0 0.0
  %82 = vmatpush1.msra.mxu0 0.0
  %83 = vmatprep.subr.mxu0 0.0
  %84 = vmatpush1.msra.mxu0 0.0
  %85 = vmatprep.subr.mxu0 0.0
  %86 = vmatpush1.msra.mxu0 0.0
  %87 = vmatprep.subr.mxu0 0.0
  %88 = vmatpush1.msra.mxu0 0.0
  %89 = vmatprep.subr.mxu0 0.0
  %90 = vmatpush1.msra.mxu0 0.0
  %91 = vmatprep.subr.mxu0 0.0
  %92 = vmatpush1.msra.mxu0 %v59
  %93 = vmatprep.subr.mxu0 0.0
  %94 = vmatpush2.msra.mxu0 0.0
  %95 = vmatprep.subr.mxu0 0.0
  %96 = vmatpush2.msra.mxu0 0.0
  %97 = vmatprep.subr.mxu0 0.0
  %98 = vmatpush2.msra.mxu0 0.0
  %99 = vmatprep.subr.mxu0 0.0
  %100 = vmatpush2.msra.mxu0 0.0
  %101 = vmatprep.subr.mxu0 0.0
  %102 = vmatpush2.msra.mxu0 0.0
  %103 = vmatprep.subr.mxu0 0.0
  %104 = vmatpush2.msra.mxu0 0.0
  %105 = vmatprep.subr.mxu0 0.0
  %106 = vmatpush2.msra.mxu0 0.0
  %107 = vmatprep.subr.mxu0 0.0
  %108 = vmatpush2.msra.mxu0 0.0
  %109 = vmatprep.subr.mxu0 0.0
  %110 = vmatpush2.msra.mxu0 0.0
  %111 = vmatprep.subr.mxu0 0.0
  %112 = vmatpush2.msra.mxu0 0.0
  %113 = vmatprep.subr.mxu0 0.0
  %114 = vmatpush2.msra.mxu0 0.0
  %115 = vmatprep.subr.mxu0 0.0
  %116 = vmatpush2.msra.mxu0 0.0
  %117 = vmatprep.subr.mxu0 0.0
  %118 = vmatpush2.msra.mxu0 0.0
  %119 = vmatprep.subr.mxu0 0.0
  %120 = vmatpush2.msra.mxu0 0.0
  %121 = vmatprep.subr.mxu0 0.0
  %122 = vmatpush2.msra.mxu0 0.0
  %123 = vmatprep.subr.mxu0 0.0
  %124 = vmatpush2.msra.mxu0 0.0
  %125 = vmatprep.mubr.f32.mxu0 0.0
  %126 = vmatmul.mubr.f32.gmra.mxu0 %v52
  %v127 = vpop.f32.mrf.mxu0
  %v128 = vadd.f32 0.0, %v127
  %v129 = vpop.f32.mrf.mxu0
  %130 = vmatprep.mubr.f32.mxu0 0.0
  %131 = vmatmul.mubr.f32.gmra.mxu0 %v55
  %v132 = vpop.f32.mrf.mxu0
  %v133 = vadd.f32 0.0, %v132
  %v134 = vpop.f32.mrf.mxu0
  %135 = vdwg.mxu0
  %v136 = vld [vmem:[%s5] sm:$0xff]
  %v137 = vld [vmem:[%s5 + $0x8] sm:$0xff]
  %139 = vset.pattern.permute.xlu0 0
  %140 = vperm.xlu0 %139, %v136
  %v141 = vpop.permute.xlu0 %140
  %144 = vset.pattern.permute.xlu0 0
  %145 = vperm.xlu0 %144, %v137
  %v146 = vpop.permute.xlu0 %145
  %v148 = vmul.f32 %v128, %v141
  %v149 = vmul.f32 %v133, %v146
  %v150 = vld [vmem:[%s6] sm:$0xff]
  %v151 = vld [vmem:[%s6 + $0x8] sm:$0xff]
  %153 = vset.pattern.permute.xlu0 0
  %154 = vperm.xlu0 %153, %v150
  %v155 = vpop.permute.xlu0 %154
  %158 = vset.pattern.permute.xlu0 0
  %159 = vperm.xlu0 %158, %v151
  %v160 = vpop.permute.xlu0 %159
  %v162 = vadd.f32 %v148, %v155
  %v163 = vadd.f32 %v149, %v160
  %v164 = vmax.f32 %v162, 0.0
  %v165 = vmax.f32 %v163, 0.0
  %166 = vst [vmem:[%s7] sm:$0xff] %v164
  %167 = vst [vmem:[%s7 + $0x8] sm:$0xff] %v165
  %v168 = vld [vmem:[%s2] sm:$0x1]
  %s169 = sld [smem:[#allocation4]]
  %s170 = sld [smem:[#allocation5]]
  %s171 = sadd.s32 %s170, 1
  // While loop
  $region26: #{self_adaptive_voxelization_forward.5} parent=0 // loop_pre_header
    _
  $region27: #{self_adaptive_voxelization_forward.5} parent=0 // loop_header
    %s173 = sphi %s169, %s175
    %p174 = scmp.ge.s32.totalorder %s173, %s171
  $region28: #{self_adaptive_voxelization_forward.5} parent=0 // loop_header_branch
    %177 = sbr.rel (%p174) target = $region32
  $region29: #{self_adaptive_voxelization_forward.5} parent=0 // loop_body
    %s178 = smul.u32 %s173, 128
    %v179 = vlaneseq
    %v180 = vshrl.u32 %v179, 7
    %v181 = vadd.s32 %v180, 8
    %v182 = vadd.s32 %v180, 16
    %v183 = vadd.s32 %v180, 24
    %v184 = vadd.s32 %v180, 32
    %v185 = vadd.s32 %v180, 40
    %v186 = vadd.s32 %v180, 48
    %v187 = vadd.s32 %v180, 56
    %v188 = vadd.s32 %v180, 64
    %v189 = vadd.s32 %v180, 72
    %v190 = vadd.s32 %v180, 80
    %v191 = vadd.s32 %v180, 88
    %v192 = vadd.s32 %v180, 96
    %v193 = vadd.s32 %v180, 104
    %v194 = vadd.s32 %v180, 112
    %v195 = vadd.s32 %v180, 120
    %v196 = vstv %s178
    %v197 = vadd.s32 %v180, %v196
    %v198 = vadd.s32 %v181, %v196
    %v199 = vadd.s32 %v182, %v196
    %v200 = vadd.s32 %v183, %v196
    %v201 = vadd.s32 %v184, %v196
    %v202 = vadd.s32 %v185, %v196
    %v203 = vadd.s32 %v186, %v196
    %v204 = vadd.s32 %v187, %v196
    %v205 = vadd.s32 %v188, %v196
    %v206 = vadd.s32 %v189, %v196
    %v207 = vadd.s32 %v190, %v196
    %v208 = vadd.s32 %v191, %v196
    %v209 = vadd.s32 %v192, %v196
    %v210 = vadd.s32 %v193, %v196
    %v211 = vadd.s32 %v194, %v196
    %v212 = vadd.s32 %v195, %v196
    %v213 = vlaneseq
    %v214 = vshrl.u32 %v213, 7
    %v215 = vsub.s32 0, %v214
    %v216 = vrot.slane %v168, %v215
    %vm217 = vcmp.eq.s32.totalorder %v197, %v216
    %vm218 = vcmp.eq.s32.totalorder %v198, %v216
    %vm219 = vcmp.eq.s32.totalorder %v199, %v216
    %vm220 = vcmp.eq.s32.totalorder %v200, %v216
    %vm221 = vcmp.eq.s32.totalorder %v201, %v216
    %vm222 = vcmp.eq.s32.totalorder %v202, %v216
    %vm223 = vcmp.eq.s32.totalorder %v203, %v216
    %vm224 = vcmp.eq.s32.totalorder %v204, %v216
    %vm225 = vcmp.eq.s32.totalorder %v205, %v216
    %vm226 = vcmp.eq.s32.totalorder %v206, %v216
    %vm227 = vcmp.eq.s32.totalorder %v207, %v216
    %vm228 = vcmp.eq.s32.totalorder %v208, %v216
    %vm229 = vcmp.eq.s32.totalorder %v209, %v216
    %vm230 = vcmp.eq.s32.totalorder %v210, %v216
    %vm231 = vcmp.eq.s32.totalorder %v211, %v216
    %vm232 = vcmp.eq.s32.totalorder %v212, %v216
    %v233 = vsel %vm217, 1, 0
    %v234 = vsel %vm218, 1, 0
    %v235 = vsel %vm219, 1, 0
    %v236 = vsel %vm220, 1, 0
    %v237 = vsel %vm221, 1, 0
    %v238 = vsel %vm222, 1, 0
    %v239 = vsel %vm223, 1, 0
    %v240 = vsel %vm224, 1, 0
    %v241 = vsel %vm225, 1, 0
    %v242 = vsel %vm226, 1, 0
    %v243 = vsel %vm227, 1, 0
    %v244 = vsel %vm228, 1, 0
    %v245 = vsel %vm229, 1, 0
    %v246 = vsel %vm230, 1, 0
    %v247 = vsel %vm231, 1, 0
    %v248 = vsel %vm232, 1, 0
    %v249 = vcombine.high %v233, %v233
    %v251 = vunpack.c.l.s4 1966171168
    %v252 = vunpack.c.0.s8 %v251
    %v253 = vlaneseq
    %v254 = vshrl.u32 %v253, 7
    %v255 = vsub.s32 %v252, %v254
    %v256 = vrot.slane %v233, %v255
    %v258 = vunpack.c.l.s4 1966171168
    %v259 = vunpack.c.0.s8 %v258
    %v260 = vlaneseq
    %v261 = vshrl.u32 %v260, 7
    %v262 = vsub.s32 %v259, %v261
    %v263 = vrot.slane %v249, %v262
    %v264 = vcombine.high %v256, %v256
    %v265 = vcombine.high %v263, %v263
    %v267 = vunpack.c.l.s4 1966171168
    %v268 = vunpack.c.0.s8 %v267
    %v269 = vlaneseq
    %v270 = vshrl.u32 %v269, 7
    %v271 = vsub.s32 %v268, %v270
    %v272 = vrot.slane %v256, %v271
    %v274 = vunpack.c.l.s4 1966171168
    %v275 = vunpack.c.0.s8 %v274
    %v276 = vlaneseq
    %v277 = vshrl.u32 %v276, 7
    %v278 = vsub.s32 %v275, %v277
    %v279 = vrot.slane %v263, %v278
    %v281 = vunpack.c.l.s4 1966171168
    %v282 = vunpack.c.0.s8 %v281
    %v283 = vlaneseq
    %v284 = vshrl.u32 %v283, 7
    %v285 = vsub.s32 %v282, %v284
    %v286 = vrot.slane %v264, %v285
    %v288 = vunpack.c.l.s4 1966171168
    %v289 = vunpack.c.0.s8 %v288
    %v290 = vlaneseq
    %v291 = vshrl.u32 %v290, 7
    %v292 = vsub.s32 %v289, %v291
    %v293 = vrot.slane %v265, %v292
    %v294 = vcombine.high %v272, %v272
    %v295 = vcombine.high %v279, %v279
    %v296 = vcombine.high %v286, %v286
    %v297 = vcombine.high %v293, %v293
    %v298 = vcombine.high %v234, %v234
    %v300 = vunpack.c.l.s4 1966171168
    %v301 = vunpack.c.0.s8 %v300
    %v302 = vlaneseq
    %v303 = vshrl.u32 %v302, 7
    %v304 = vsub.s32 %v301, %v303
    %v305 = vrot.slane %v234, %v304
    %v307 = vunpack.c.l.s4 1966171168
    %v308 = vunpack.c.0.s8 %v307
    %v309 = vlaneseq
    %v310 = vshrl.u32 %v309, 7
    %v311 = vsub.s32 %v308, %v310
    %v312 = vrot.slane %v298, %v311
    %v313 = vcombine.high %v305, %v305
    %v314 = vcombine.high %v312, %v312
    %v316 = vunpack.c.l.s4 1966171168
    %v317 = vunpack.c.0.s8 %v316
    %v318 = vlaneseq
    %v319 = vshrl.u32 %v318, 7
    %v320 = vsub.s32 %v317, %v319
    %v321 = vrot.slane %v305, %v320
    %v323 = vunpack.c.l.s4 1966171168
    %v324 = vunpack.c.0.s8 %v323
    %v325 = vlaneseq
    %v326 = vshrl.u32 %v325, 7
    %v327 = vsub.s32 %v324, %v326
    %v328 = vrot.slane %v312, %v327
    %v330 = vunpack.c.l.s4 1966171168
    %v331 = vunpack.c.0.s8 %v330
    %v332 = vlaneseq
    %v333 = vshrl.u32 %v332, 7
    %v334 = vsub.s32 %v331, %v333
    %v335 = vrot.slane %v313, %v334
    %v337 = vunpack.c.l.s4 1966171168
    %v338 = vunpack.c.0.s8 %v337
    %v339 = vlaneseq
    %v340 = vshrl.u32 %v339, 7
    %v341 = vsub.s32 %v338, %v340
    %v342 = vrot.slane %v314, %v341
    %v343 = vcombine.high %v321, %v321
    %v344 = vcombine.high %v328, %v328
    %v345 = vcombine.high %v335, %v335
    %v346 = vcombine.high %v342, %v342
    %v347 = vcombine.high %v235, %v235
    %v349 = vunpack.c.l.s4 1966171168
    %v350 = vunpack.c.0.s8 %v349
    %v351 = vlaneseq
    %v352 = vshrl.u32 %v351, 7
    %v353 = vsub.s32 %v350, %v352
    %v354 = vrot.slane %v235, %v353
    %v356 = vunpack.c.l.s4 1966171168
    %v357 = vunpack.c.0.s8 %v356
    %v358 = vlaneseq
    %v359 = vshrl.u32 %v358, 7
    %v360 = vsub.s32 %v357, %v359
    %v361 = vrot.slane %v347, %v360
    %v362 = vcombine.high %v354, %v354
    %v363 = vcombine.high %v361, %v361
    %v365 = vunpack.c.l.s4 1966171168
    %v366 = vunpack.c.0.s8 %v365
    %v367 = vlaneseq
    %v368 = vshrl.u32 %v367, 7
    %v369 = vsub.s32 %v366, %v368
    %v370 = vrot.slane %v354, %v369
    %v372 = vunpack.c.l.s4 1966171168
    %v373 = vunpack.c.0.s8 %v372
    %v374 = vlaneseq
    %v375 = vshrl.u32 %v374, 7
    %v376 = vsub.s32 %v373, %v375
    %v377 = vrot.slane %v361, %v376
    %v379 = vunpack.c.l.s4 1966171168
    %v380 = vunpack.c.0.s8 %v379
    %v381 = vlaneseq
    %v382 = vshrl.u32 %v381, 7
    %v383 = vsub.s32 %v380, %v382
    %v384 = vrot.slane %v362, %v383
    %v386 = vunpack.c.l.s4 1966171168
    %v387 = vunpack.c.0.s8 %v386
    %v388 = vlaneseq
    %v389 = vshrl.u32 %v388, 7
    %v390 = vsub.s32 %v387, %v389
    %v391 = vrot.slane %v363, %v390
    %v392 = vcombine.high %v370, %v370
    %v393 = vcombine.high %v377, %v377
    %v394 = vcombine.high %v384, %v384
    %v395 = vcombine.high %v391, %v391
    %v396 = vcombine.high %v236, %v236
    %v398 = vunpack.c.l.s4 1966171168
    %v399 = vunpack.c.0.s8 %v398
    %v400 = vlaneseq
    %v401 = vshrl.u32 %v400, 7
    %v402 = vsub.s32 %v399, %v401
    %v403 = vrot.slane %v236, %v402
    %v405 = vunpack.c.l.s4 1966171168
    %v406 = vunpack.c.0.s8 %v405
    %v407 = vlaneseq
    %v408 = vshrl.u32 %v407, 7
    %v409 = vsub.s32 %v406, %v408
    %v410 = vrot.slane %v396, %v409
    %v411 = vcombine.high %v403, %v403
    %v412 = vcombine.high %v410, %v410
    %v414 = vunpack.c.l.s4 1966171168
    %v415 = vunpack.c.0.s8 %v414
    %v416 = vlaneseq
    %v417 = vshrl.u32 %v416, 7
    %v418 = vsub.s32 %v415, %v417
    %v419 = vrot.slane %v403, %v418
    %v421 = vunpack.c.l.s4 1966171168
    %v422 = vunpack.c.0.s8 %v421
    %v423 = vlaneseq
    %v424 = vshrl.u32 %v423, 7
    %v425 = vsub.s32 %v422, %v424
    %v426 = vrot.slane %v410, %v425
    %v428 = vunpack.c.l.s4 1966171168
    %v429 = vunpack.c.0.s8 %v428
    %v430 = vlaneseq
    %v431 = vshrl.u32 %v430, 7
    %v432 = vsub.s32 %v429, %v431
    %v433 = vrot.slane %v411, %v432
    %v435 = vunpack.c.l.s4 1966171168
    %v436 = vunpack.c.0.s8 %v435
    %v437 = vlaneseq
    %v438 = vshrl.u32 %v437, 7
    %v439 = vsub.s32 %v436, %v438
    %v440 = vrot.slane %v412, %v439
    %v441 = vcombine.high %v419, %v419
    %v442 = vcombine.high %v426, %v426
    %v443 = vcombine.high %v433, %v433
    %v444 = vcombine.high %v440, %v440
    %v445 = vcombine.high %v237, %v237
    %v447 = vunpack.c.l.s4 1966171168
    %v448 = vunpack.c.0.s8 %v447
    %v449 = vlaneseq
    %v450 = vshrl.u32 %v449, 7
    %v451 = vsub.s32 %v448, %v450
    %v452 = vrot.slane %v237, %v451
    %v454 = vunpack.c.l.s4 1966171168
    %v455 = vunpack.c.0.s8 %v454
    %v456 = vlaneseq
    %v457 = vshrl.u32 %v456, 7
    %v458 = vsub.s32 %v455, %v457
    %v459 = vrot.slane %v445, %v458
    %v460 = vcombine.high %v452, %v452
    %v461 = vcombine.high %v459, %v459
    %v463 = vunpack.c.l.s4 1966171168
    %v464 = vunpack.c.0.s8 %v463
    %v465 = vlaneseq
    %v466 = vshrl.u32 %v465, 7
    %v467 = vsub.s32 %v464, %v466
    %v468 = vrot.slane %v452, %v467
    %v470 = vunpack.c.l.s4 1966171168
    %v471 = vunpack.c.0.s8 %v470
    %v472 = vlaneseq
    %v473 = vshrl.u32 %v472, 7
    %v474 = vsub.s32 %v471, %v473
    %v475 = vrot.slane %v459, %v474
    %v477 = vunpack.c.l.s4 1966171168
    %v478 = vunpack.c.0.s8 %v477
    %v479 = vlaneseq
    %v480 = vshrl.u32 %v479, 7
    %v481 = vsub.s32 %v478, %v480
    %v482 = vrot.slane %v460, %v481
    %v484 = vunpack.c.l.s4 1966171168
    %v485 = vunpack.c.0.s8 %v484
    %v486 = vlaneseq
    %v487 = vshrl.u32 %v486, 7
    %v488 = vsub.s32 %v485, %v487
    %v489 = vrot.slane %v461, %v488
    %v490 = vcombine.high %v468, %v468
    %v491 = vcombine.high %v475, %v475
    %v492 = vcombine.high %v482, %v482
    %v493 = vcombine.high %v489, %v489
    %v494 = vcombine.high %v238, %v238
    %v496 = vunpack.c.l.s4 1966171168
    %v497 = vunpack.c.0.s8 %v496
    %v498 = vlaneseq
    %v499 = vshrl.u32 %v498, 7
    %v500 = vsub.s32 %v497, %v499
    %v501 = vrot.slane %v238, %v500
    %v503 = vunpack.c.l.s4 1966171168
    %v504 = vunpack.c.0.s8 %v503
    %v505 = vlaneseq
    %v506 = vshrl.u32 %v505, 7
    %v507 = vsub.s32 %v504, %v506
    %v508 = vrot.slane %v494, %v507
    %v509 = vcombine.high %v501, %v501
    %v510 = vcombine.high %v508, %v508
    %v512 = vunpack.c.l.s4 1966171168
    %v513 = vunpack.c.0.s8 %v512
    %v514 = vlaneseq
    %v515 = vshrl.u32 %v514, 7
    %v516 = vsub.s32 %v513, %v515
    %v517 = vrot.slane %v501, %v516
    %v519 = vunpack.c.l.s4 1966171168
    %v520 = vunpack.c.0.s8 %v519
    %v521 = vlaneseq
    %v522 = vshrl.u32 %v521, 7
    %v523 = vsub.s32 %v520, %v522
    %v524 = vrot.slane %v508, %v523
    %v526 = vunpack.c.l.s4 1966171168
    %v527 = vunpack.c.0.s8 %v526
    %v528 = vlaneseq
    %v529 = vshrl.u32 %v528, 7
    %v530 = vsub.s32 %v527, %v529
    %v531 = vrot.slane %v509, %v530
    %v533 = vunpack.c.l.s4 1966171168
    %v534 = vunpack.c.0.s8 %v533
    %v535 = vlaneseq
    %v536 = vshrl.u32 %v535, 7
    %v537 = vsub.s32 %v534, %v536
    %v538 = vrot.slane %v510, %v537
    %v539 = vcombine.high %v517, %v517
    %v540 = vcombine.high %v524, %v524
    %v541 = vcombine.high %v531, %v531
    %v542 = vcombine.high %v538, %v538
    %v543 = vcombine.high %v239, %v239
    %v545 = vunpack.c.l.s4 1966171168
    %v546 = vunpack.c.0.s8 %v545
    %v547 = vlaneseq
    %v548 = vshrl.u32 %v547, 7
    %v549 = vsub.s32 %v546, %v548
    %v550 = vrot.slane %v239, %v549
    %v552 = vunpack.c.l.s4 1966171168
    %v553 = vunpack.c.0.s8 %v552
    %v554 = vlaneseq
    %v555 = vshrl.u32 %v554, 7
    %v556 = vsub.s32 %v553, %v555
    %v557 = vrot.slane %v543, %v556
    %v558 = vcombine.high %v550, %v550
    %v559 = vcombine.high %v557, %v557
    %v561 = vunpack.c.l.s4 1966171168
    %v562 = vunpack.c.0.s8 %v561
    %v563 = vlaneseq
    %v564 = vshrl.u32 %v563, 7
    %v565 = vsub.s32 %v562, %v564
    %v566 = vrot.slane %v550, %v565
    %v568 = vunpack.c.l.s4 1966171168
    %v569 = vunpack.c.0.s8 %v568
    %v570 = vlaneseq
    %v571 = vshrl.u32 %v570, 7
    %v572 = vsub.s32 %v569, %v571
    %v573 = vrot.slane %v557, %v572
    %v575 = vunpack.c.l.s4 1966171168
    %v576 = vunpack.c.0.s8 %v575
    %v577 = vlaneseq
    %v578 = vshrl.u32 %v577, 7
    %v579 = vsub.s32 %v576, %v578
    %v580 = vrot.slane %v558, %v579
    %v582 = vunpack.c.l.s4 1966171168
    %v583 = vunpack.c.0.s8 %v582
    %v584 = vlaneseq
    %v585 = vshrl.u32 %v584, 7
    %v586 = vsub.s32 %v583, %v585
    %v587 = vrot.slane %v559, %v586
    %v588 = vcombine.high %v566, %v566
    %v589 = vcombine.high %v573, %v573
    %v590 = vcombine.high %v580, %v580
    %v591 = vcombine.high %v587, %v587
    %v592 = vcombine.high %v240, %v240
    %v594 = vunpack.c.l.s4 1966171168
    %v595 = vunpack.c.0.s8 %v594
    %v596 = vlaneseq
    %v597 = vshrl.u32 %v596, 7
    %v598 = vsub.s32 %v595, %v597
    %v599 = vrot.slane %v240, %v598
    %v601 = vunpack.c.l.s4 1966171168
    %v602 = vunpack.c.0.s8 %v601
    %v603 = vlaneseq
    %v604 = vshrl.u32 %v603, 7
    %v605 = vsub.s32 %v602, %v604
    %v606 = vrot.slane %v592, %v605
    %v607 = vcombine.high %v599, %v599
    %v608 = vcombine.high %v606, %v606
    %v610 = vunpack.c.l.s4 1966171168
    %v611 = vunpack.c.0.s8 %v610
    %v612 = vlaneseq
    %v613 = vshrl.u32 %v612, 7
    %v614 = vsub.s32 %v611, %v613
    %v615 = vrot.slane %v599, %v614
    %v617 = vunpack.c.l.s4 1966171168
    %v618 = vunpack.c.0.s8 %v617
    %v619 = vlaneseq
    %v620 = vshrl.u32 %v619, 7
    %v621 = vsub.s32 %v618, %v620
    %v622 = vrot.slane %v606, %v621
    %v624 = vunpack.c.l.s4 1966171168
    %v625 = vunpack.c.0.s8 %v624
    %v626 = vlaneseq
    %v627 = vshrl.u32 %v626, 7
    %v628 = vsub.s32 %v625, %v627
    %v629 = vrot.slane %v607, %v628
    %v631 = vunpack.c.l.s4 1966171168
    %v632 = vunpack.c.0.s8 %v631
    %v633 = vlaneseq
    %v634 = vshrl.u32 %v633, 7
    %v635 = vsub.s32 %v632, %v634
    %v636 = vrot.slane %v608, %v635
    %v637 = vcombine.high %v615, %v615
    %v638 = vcombine.high %v622, %v622
    %v639 = vcombine.high %v629, %v629
    %v640 = vcombine.high %v636, %v636
    %v641 = vcombine.high %v241, %v241
    %v643 = vunpack.c.l.s4 1966171168
    %v644 = vunpack.c.0.s8 %v643
    %v645 = vlaneseq
    %v646 = vshrl.u32 %v645, 7
    %v647 = vsub.s32 %v644, %v646
    %v648 = vrot.slane %v241, %v647
    %v650 = vunpack.c.l.s4 1966171168
    %v651 = vunpack.c.0.s8 %v650
    %v652 = vlaneseq
    %v653 = vshrl.u32 %v652, 7
    %v654 = vsub.s32 %v651, %v653
    %v655 = vrot.slane %v641, %v654
    %v656 = vcombine.high %v648, %v648
    %v657 = vcombine.high %v655, %v655
    %v659 = vunpack.c.l.s4 1966171168
    %v660 = vunpack.c.0.s8 %v659
    %v661 = vlaneseq
    %v662 = vshrl.u32 %v661, 7
    %v663 = vsub.s32 %v660, %v662
    %v664 = vrot.slane %v648, %v663
    %v666 = vunpack.c.l.s4 1966171168
    %v667 = vunpack.c.0.s8 %v666
    %v668 = vlaneseq
    %v669 = vshrl.u32 %v668, 7
    %v670 = vsub.s32 %v667, %v669
    %v671 = vrot.slane %v655, %v670
    %v673 = vunpack.c.l.s4 1966171168
    %v674 = vunpack.c.0.s8 %v673
    %v675 = vlaneseq
    %v676 = vshrl.u32 %v675, 7
    %v677 = vsub.s32 %v674, %v676
    %v678 = vrot.slane %v656, %v677
    %v680 = vunpack.c.l.s4 1966171168
    %v681 = vunpack.c.0.s8 %v680
    %v682 = vlaneseq
    %v683 = vshrl.u32 %v682, 7
    %v684 = vsub.s32 %v681, %v683
    %v685 = vrot.slane %v657, %v684
    %v686 = vcombine.high %v664, %v664
    %v687 = vcombine.high %v671, %v671
    %v688 = vcombine.high %v678, %v678
    %v689 = vcombine.high %v685, %v685
    %v690 = vcombine.high %v242, %v242
    %v692 = vunpack.c.l.s4 1966171168
    %v693 = vunpack.c.0.s8 %v692
    %v694 = vlaneseq
    %v695 = vshrl.u32 %v694, 7
    %v696 = vsub.s32 %v693, %v695
    %v697 = vrot.slane %v242, %v696
    %v699 = vunpack.c.l.s4 1966171168
    %v700 = vunpack.c.0.s8 %v699
    %v701 = vlaneseq
    %v702 = vshrl.u32 %v701, 7
    %v703 = vsub.s32 %v700, %v702
    %v704 = vrot.slane %v690, %v703
    %v705 = vcombine.high %v697, %v697
    %v706 = vcombine.high %v704, %v704
    %v708 = vunpack.c.l.s4 1966171168
    %v709 = vunpack.c.0.s8 %v708
    %v710 = vlaneseq
    %v711 = vshrl.u32 %v710, 7
    %v712 = vsub.s32 %v709, %v711
    %v713 = vrot.slane %v697, %v712
    %v715 = vunpack.c.l.s4 1966171168
    %v716 = vunpack.c.0.s8 %v715
    %v717 = vlaneseq
    %v718 = vshrl.u32 %v717, 7
    %v719 = vsub.s32 %v716, %v718
    %v720 = vrot.slane %v704, %v719
    %v722 = vunpack.c.l.s4 1966171168
    %v723 = vunpack.c.0.s8 %v722
    %v724 = vlaneseq
    %v725 = vshrl.u32 %v724, 7
    %v726 = vsub.s32 %v723, %v725
    %v727 = vrot.slane %v705, %v726
    %v729 = vunpack.c.l.s4 1966171168
    %v730 = vunpack.c.0.s8 %v729
    %v731 = vlaneseq
    %v732 = vshrl.u32 %v731, 7
    %v733 = vsub.s32 %v730, %v732
    %v734 = vrot.slane %v706, %v733
    %v735 = vcombine.high %v713, %v713
    %v736 = vcombine.high %v720, %v720
    %v737 = vcombine.high %v727, %v727
    %v738 = vcombine.high %v734, %v734
    %v739 = vcombine.high %v243, %v243
    %v741 = vunpack.c.l.s4 1966171168
    %v742 = vunpack.c.0.s8 %v741
    %v743 = vlaneseq
    %v744 = vshrl.u32 %v743, 7
    %v745 = vsub.s32 %v742, %v744
    %v746 = vrot.slane %v243, %v745
    %v748 = vunpack.c.l.s4 1966171168
    %v749 = vunpack.c.0.s8 %v748
    %v750 = vlaneseq
    %v751 = vshrl.u32 %v750, 7
    %v752 = vsub.s32 %v749, %v751
    %v753 = vrot.slane %v739, %v752
    %v754 = vcombine.high %v746, %v746
    %v755 = vcombine.high %v753, %v753
    %v757 = vunpack.c.l.s4 1966171168
    %v758 = vunpack.c.0.s8 %v757
    %v759 = vlaneseq
    %v760 = vshrl.u32 %v759, 7
    %v761 = vsub.s32 %v758, %v760
    %v762 = vrot.slane %v746, %v761
    %v764 = vunpack.c.l.s4 1966171168
    %v765 = vunpack.c.0.s8 %v764
    %v766 = vlaneseq
    %v767 = vshrl.u32 %v766, 7
    %v768 = vsub.s32 %v765, %v767
    %v769 = vrot.slane %v753, %v768
    %v771 = vunpack.c.l.s4 1966171168
    %v772 = vunpack.c.0.s8 %v771
    %v773 = vlaneseq
    %v774 = vshrl.u32 %v773, 7
    %v775 = vsub.s32 %v772, %v774
    %v776 = vrot.slane %v754, %v775
    %v778 = vunpack.c.l.s4 1966171168
    %v779 = vunpack.c.0.s8 %v778
    %v780 = vlaneseq
    %v781 = vshrl.u32 %v780, 7
    %v782 = vsub.s32 %v779, %v781
    %v783 = vrot.slane %v755, %v782
    %v784 = vcombine.high %v762, %v762
    %v785 = vcombine.high %v769, %v769
    %v786 = vcombine.high %v776, %v776
    %v787 = vcombine.high %v783, %v783
    %v788 = vcombine.high %v244, %v244
    %v790 = vunpack.c.l.s4 1966171168
    %v791 = vunpack.c.0.s8 %v790
    %v792 = vlaneseq
    %v793 = vshrl.u32 %v792, 7
    %v794 = vsub.s32 %v791, %v793
    %v795 = vrot.slane %v244, %v794
    %v797 = vunpack.c.l.s4 1966171168
    %v798 = vunpack.c.0.s8 %v797
    %v799 = vlaneseq
    %v800 = vshrl.u32 %v799, 7
    %v801 = vsub.s32 %v798, %v800
    %v802 = vrot.slane %v788, %v801
    %v803 = vcombine.high %v795, %v795
    %v804 = vcombine.high %v802, %v802
    %v806 = vunpack.c.l.s4 1966171168
    %v807 = vunpack.c.0.s8 %v806
    %v808 = vlaneseq
    %v809 = vshrl.u32 %v808, 7
    %v810 = vsub.s32 %v807, %v809
    %v811 = vrot.slane %v795, %v810
    %v813 = vunpack.c.l.s4 1966171168
    %v814 = vunpack.c.0.s8 %v813
    %v815 = vlaneseq
    %v816 = vshrl.u32 %v815, 7
    %v817 = vsub.s32 %v814, %v816
    %v818 = vrot.slane %v802, %v817
    %v820 = vunpack.c.l.s4 1966171168
    %v821 = vunpack.c.0.s8 %v820
    %v822 = vlaneseq
    %v823 = vshrl.u32 %v822, 7
    %v824 = vsub.s32 %v821, %v823
    %v825 = vrot.slane %v803, %v824
    %v827 = vunpack.c.l.s4 1966171168
    %v828 = vunpack.c.0.s8 %v827
    %v829 = vlaneseq
    %v830 = vshrl.u32 %v829, 7
    %v831 = vsub.s32 %v828, %v830
    %v832 = vrot.slane %v804, %v831
    %v833 = vcombine.high %v811, %v811
    %v834 = vcombine.high %v818, %v818
    %v835 = vcombine.high %v825, %v825
    %v836 = vcombine.high %v832, %v832
    %v837 = vcombine.high %v245, %v245
    %v839 = vunpack.c.l.s4 1966171168
    %v840 = vunpack.c.0.s8 %v839
    %v841 = vlaneseq
    %v842 = vshrl.u32 %v841, 7
    %v843 = vsub.s32 %v840, %v842
    %v844 = vrot.slane %v245, %v843
    %v846 = vunpack.c.l.s4 1966171168
    %v847 = vunpack.c.0.s8 %v846
    %v848 = vlaneseq
    %v849 = vshrl.u32 %v848, 7
    %v850 = vsub.s32 %v847, %v849
    %v851 = vrot.slane %v837, %v850
    %v852 = vcombine.high %v844, %v844
    %v853 = vcombine.high %v851, %v851
    %v855 = vunpack.c.l.s4 1966171168
    %v856 = vunpack.c.0.s8 %v855
    %v857 = vlaneseq
    %v858 = vshrl.u32 %v857, 7
    %v859 = vsub.s32 %v856, %v858
    %v860 = vrot.slane %v844, %v859
    %v862 = vunpack.c.l.s4 1966171168
    %v863 = vunpack.c.0.s8 %v862
    %v864 = vlaneseq
    %v865 = vshrl.u32 %v864, 7
    %v866 = vsub.s32 %v863, %v865
    %v867 = vrot.slane %v851, %v866
    %v869 = vunpack.c.l.s4 1966171168
    %v870 = vunpack.c.0.s8 %v869
    %v871 = vlaneseq
    %v872 = vshrl.u32 %v871, 7
    %v873 = vsub.s32 %v870, %v872
    %v874 = vrot.slane %v852, %v873
    %v876 = vunpack.c.l.s4 1966171168
    %v877 = vunpack.c.0.s8 %v876
    %v878 = vlaneseq
    %v879 = vshrl.u32 %v878, 7
    %v880 = vsub.s32 %v877, %v879
    %v881 = vrot.slane %v853, %v880
    %v882 = vcombine.high %v860, %v860
    %v883 = vcombine.high %v867, %v867
    %v884 = vcombine.high %v874, %v874
    %v885 = vcombine.high %v881, %v881
    %v886 = vcombine.high %v246, %v246
    %v888 = vunpack.c.l.s4 1966171168
    %v889 = vunpack.c.0.s8 %v888
    %v890 = vlaneseq
    %v891 = vshrl.u32 %v890, 7
    %v892 = vsub.s32 %v889, %v891
    %v893 = vrot.slane %v246, %v892
    %v895 = vunpack.c.l.s4 1966171168
    %v896 = vunpack.c.0.s8 %v895
    %v897 = vlaneseq
    %v898 = vshrl.u32 %v897, 7
    %v899 = vsub.s32 %v896, %v898
    %v900 = vrot.slane %v886, %v899
    %v901 = vcombine.high %v893, %v893
    %v902 = vcombine.high %v900, %v900
    %v904 = vunpack.c.l.s4 1966171168
    %v905 = vunpack.c.0.s8 %v904
    %v906 = vlaneseq
    %v907 = vshrl.u32 %v906, 7
    %v908 = vsub.s32 %v905, %v907
    %v909 = vrot.slane %v893, %v908
    %v911 = vunpack.c.l.s4 1966171168
    %v912 = vunpack.c.0.s8 %v911
    %v913 = vlaneseq
    %v914 = vshrl.u32 %v913, 7
    %v915 = vsub.s32 %v912, %v914
    %v916 = vrot.slane %v900, %v915
    %v918 = vunpack.c.l.s4 1966171168
    %v919 = vunpack.c.0.s8 %v918
    %v920 = vlaneseq
    %v921 = vshrl.u32 %v920, 7
    %v922 = vsub.s32 %v919, %v921
    %v923 = vrot.slane %v901, %v922
    %v925 = vunpack.c.l.s4 1966171168
    %v926 = vunpack.c.0.s8 %v925
    %v927 = vlaneseq
    %v928 = vshrl.u32 %v927, 7
    %v929 = vsub.s32 %v926, %v928
    %v930 = vrot.slane %v902, %v929
    %v931 = vcombine.high %v909, %v909
    %v932 = vcombine.high %v916, %v916
    %v933 = vcombine.high %v923, %v923
    %v934 = vcombine.high %v930, %v930
    %v935 = vcombine.high %v247, %v247
    %v937 = vunpack.c.l.s4 1966171168
    %v938 = vunpack.c.0.s8 %v937
    %v939 = vlaneseq
    %v940 = vshrl.u32 %v939, 7
    %v941 = vsub.s32 %v938, %v940
    %v942 = vrot.slane %v247, %v941
    %v944 = vunpack.c.l.s4 1966171168
    %v945 = vunpack.c.0.s8 %v944
    %v946 = vlaneseq
    %v947 = vshrl.u32 %v946, 7
    %v948 = vsub.s32 %v945, %v947
    %v949 = vrot.slane %v935, %v948
    %v950 = vcombine.high %v942, %v942
    %v951 = vcombine.high %v949, %v949
    %v953 = vunpack.c.l.s4 1966171168
    %v954 = vunpack.c.0.s8 %v953
    %v955 = vlaneseq
    %v956 = vshrl.u32 %v955, 7
    %v957 = vsub.s32 %v954, %v956
    %v958 = vrot.slane %v942, %v957
    %v960 = vunpack.c.l.s4 1966171168
    %v961 = vunpack.c.0.s8 %v960
    %v962 = vlaneseq
    %v963 = vshrl.u32 %v962, 7
    %v964 = vsub.s32 %v961, %v963
    %v965 = vrot.slane %v949, %v964
    %v967 = vunpack.c.l.s4 1966171168
    %v968 = vunpack.c.0.s8 %v967
    %v969 = vlaneseq
    %v970 = vshrl.u32 %v969, 7
    %v971 = vsub.s32 %v968, %v970
    %v972 = vrot.slane %v950, %v971
    %v974 = vunpack.c.l.s4 1966171168
    %v975 = vunpack.c.0.s8 %v974
    %v976 = vlaneseq
    %v977 = vshrl.u32 %v976, 7
    %v978 = vsub.s32 %v975, %v977
    %v979 = vrot.slane %v951, %v978
    %v980 = vcombine.high %v958, %v958
    %v981 = vcombine.high %v965, %v965
    %v982 = vcombine.high %v972, %v972
    %v983 = vcombine.high %v979, %v979
    %v984 = vcombine.high %v248, %v248
    %v986 = vunpack.c.l.s4 1966171168
    %v987 = vunpack.c.0.s8 %v986
    %v988 = vlaneseq
    %v989 = vshrl.u32 %v988, 7
    %v990 = vsub.s32 %v987, %v989
    %v991 = vrot.slane %v248, %v990
    %v993 = vunpack.c.l.s4 1966171168
    %v994 = vunpack.c.0.s8 %v993
    %v995 = vlaneseq
    %v996 = vshrl.u32 %v995, 7
    %v997 = vsub.s32 %v994, %v996
    %v998 = vrot.slane %v984, %v997
    %v999 = vcombine.high %v991, %v991
    %v1000 = vcombine.high %v998, %v998
    %v1002 = vunpack.c.l.s4 1966171168
    %v1003 = vunpack.c.0.s8 %v1002
    %v1004 = vlaneseq
    %v1005 = vshrl.u32 %v1004, 7
    %v1006 = vsub.s32 %v1003, %v1005
    %v1007 = vrot.slane %v991, %v1006
    %v1009 = vunpack.c.l.s4 1966171168
    %v1010 = vunpack.c.0.s8 %v1009
    %v1011 = vlaneseq
    %v1012 = vshrl.u32 %v1011, 7
    %v1013 = vsub.s32 %v1010, %v1012
    %v1014 = vrot.slane %v998, %v1013
    %v1016 = vunpack.c.l.s4 1966171168
    %v1017 = vunpack.c.0.s8 %v1016
    %v1018 = vlaneseq
    %v1019 = vshrl.u32 %v1018, 7
    %v1020 = vsub.s32 %v1017, %v1019
    %v1021 = vrot.slane %v999, %v1020
    %v1023 = vunpack.c.l.s4 1966171168
    %v1024 = vunpack.c.0.s8 %v1023
    %v1025 = vlaneseq
    %v1026 = vshrl.u32 %v1025, 7
    %v1027 = vsub.s32 %v1024, %v1026
    %v1028 = vrot.slane %v1000, %v1027
    %v1029 = vcombine.high %v1007, %v1007
    %v1030 = vcombine.high %v1014, %v1014
    %v1031 = vcombine.high %v1021, %v1021
    %v1032 = vcombine.high %v1028, %v1028
    %vm1033 = vcmp.ne.s32.totalorder %v272, 0
    %vm1034 = vcmp.ne.s32.totalorder %v286, 0
    %vm1035 = vcmp.ne.s32.totalorder %v294, 0
    %vm1036 = vcmp.ne.s32.totalorder %v296, 0
    %vm1037 = vcmp.ne.s32.totalorder %v279, 0
    %vm1038 = vcmp.ne.s32.totalorder %v293, 0
    %vm1039 = vcmp.ne.s32.totalorder %v295, 0
    %vm1040 = vcmp.ne.s32.totalorder %v297, 0
    %vm1041 = vcmp.ne.s32.totalorder %v321, 0
    %vm1042 = vcmp.ne.s32.totalorder %v335, 0
    %vm1043 = vcmp.ne.s32.totalorder %v343, 0
    %vm1044 = vcmp.ne.s32.totalorder %v345, 0
    %vm1045 = vcmp.ne.s32.totalorder %v328, 0
    %vm1046 = vcmp.ne.s32.totalorder %v342, 0
    %vm1047 = vcmp.ne.s32.totalorder %v344, 0
    %vm1048 = vcmp.ne.s32.totalorder %v346, 0
    %vm1049 = vcmp.ne.s32.totalorder %v370, 0
    %vm1050 = vcmp.ne.s32.totalorder %v384, 0
    %vm1051 = vcmp.ne.s32.totalorder %v392, 0
    %vm1052 = vcmp.ne.s32.totalorder %v394, 0
    %vm1053 = vcmp.ne.s32.totalorder %v377, 0
    %vm1054 = vcmp.ne.s32.totalorder %v391, 0
    %vm1055 = vcmp.ne.s32.totalorder %v393, 0
    %vm1056 = vcmp.ne.s32.totalorder %v395, 0
    %vm1057 = vcmp.ne.s32.totalorder %v419, 0
    %vm1058 = vcmp.ne.s32.totalorder %v433, 0
    %vm1059 = vcmp.ne.s32.totalorder %v441, 0
    %vm1060 = vcmp.ne.s32.totalorder %v443, 0
    %vm1061 = vcmp.ne.s32.totalorder %v426, 0
    %vm1062 = vcmp.ne.s32.totalorder %v440, 0
    %vm1063 = vcmp.ne.s32.totalorder %v442, 0
    %vm1064 = vcmp.ne.s32.totalorder %v444, 0
    %vm1065 = vcmp.ne.s32.totalorder %v468, 0
    %vm1066 = vcmp.ne.s32.totalorder %v482, 0
    %vm1067 = vcmp.ne.s32.totalorder %v490, 0
    %vm1068 = vcmp.ne.s32.totalorder %v492, 0
    %vm1069 = vcmp.ne.s32.totalorder %v475, 0
    %vm1070 = vcmp.ne.s32.totalorder %v489, 0
    %vm1071 = vcmp.ne.s32.totalorder %v491, 0
    %vm1072 = vcmp.ne.s32.totalorder %v493, 0
    %vm1073 = vcmp.ne.s32.totalorder %v517, 0
    %vm1074 = vcmp.ne.s32.totalorder %v531, 0
    %vm1075 = vcmp.ne.s32.totalorder %v539, 0
    %vm1076 = vcmp.ne.s32.totalorder %v541, 0
    %vm1077 = vcmp.ne.s32.totalorder %v524, 0
    %vm1078 = vcmp.ne.s32.totalorder %v538, 0
    %vm1079 = vcmp.ne.s32.totalorder %v540, 0
    %vm1080 = vcmp.ne.s32.totalorder %v542, 0
    %vm1081 = vcmp.ne.s32.totalorder %v566, 0
    %vm1082 = vcmp.ne.s32.totalorder %v580, 0
    %vm1083 = vcmp.ne.s32.totalorder %v588, 0
    %vm1084 = vcmp.ne.s32.totalorder %v590, 0
    %vm1085 = vcmp.ne.s32.totalorder %v573, 0
    %vm1086 = vcmp.ne.s32.totalorder %v587, 0
    %vm1087 = vcmp.ne.s32.totalorder %v589, 0
    %vm1088 = vcmp.ne.s32.totalorder %v591, 0
    %vm1089 = vcmp.ne.s32.totalorder %v615, 0
    %vm1090 = vcmp.ne.s32.totalorder %v629, 0
    %vm1091 = vcmp.ne.s32.totalorder %v637, 0
    %vm1092 = vcmp.ne.s32.totalorder %v639, 0
    %vm1093 = vcmp.ne.s32.totalorder %v622, 0
    %vm1094 = vcmp.ne.s32.totalorder %v636, 0
    %vm1095 = vcmp.ne.s32.totalorder %v638, 0
    %vm1096 = vcmp.ne.s32.totalorder %v640, 0
    %vm1097 = vcmp.ne.s32.totalorder %v664, 0
    %vm1098 = vcmp.ne.s32.totalorder %v678, 0
    %vm1099 = vcmp.ne.s32.totalorder %v686, 0
    %vm1100 = vcmp.ne.s32.totalorder %v688, 0
    %vm1101 = vcmp.ne.s32.totalorder %v671, 0
    %vm1102 = vcmp.ne.s32.totalorder %v685, 0
    %vm1103 = vcmp.ne.s32.totalorder %v687, 0
    %vm1104 = vcmp.ne.s32.totalorder %v689, 0
    %vm1105 = vcmp.ne.s32.totalorder %v713, 0
    %vm1106 = vcmp.ne.s32.totalorder %v727, 0
    %vm1107 = vcmp.ne.s32.totalorder %v735, 0
    %vm1108 = vcmp.ne.s32.totalorder %v737, 0
    %vm1109 = vcmp.ne.s32.totalorder %v720, 0
    %vm1110 = vcmp.ne.s32.totalorder %v734, 0
    %vm1111 = vcmp.ne.s32.totalorder %v736, 0
    %vm1112 = vcmp.ne.s32.totalorder %v738, 0
    %vm1113 = vcmp.ne.s32.totalorder %v762, 0
    %vm1114 = vcmp.ne.s32.totalorder %v776, 0
    %vm1115 = vcmp.ne.s32.totalorder %v784, 0
    %vm1116 = vcmp.ne.s32.totalorder %v786, 0
    %vm1117 = vcmp.ne.s32.totalorder %v769, 0
    %vm1118 = vcmp.ne.s32.totalorder %v783, 0
    %vm1119 = vcmp.ne.s32.totalorder %v785, 0
    %vm1120 = vcmp.ne.s32.totalorder %v787, 0
    %vm1121 = vcmp.ne.s32.totalorder %v811, 0
    %vm1122 = vcmp.ne.s32.totalorder %v825, 0
    %vm1123 = vcmp.ne.s32.totalorder %v833, 0
    %vm1124 = vcmp.ne.s32.totalorder %v835, 0
    %vm1125 = vcmp.ne.s32.totalorder %v818, 0
    %vm1126 = vcmp.ne.s32.totalorder %v832, 0
    %vm1127 = vcmp.ne.s32.totalorder %v834, 0
    %vm1128 = vcmp.ne.s32.totalorder %v836, 0
    %vm1129 = vcmp.ne.s32.totalorder %v860, 0
    %vm1130 = vcmp.ne.s32.totalorder %v874, 0
    %vm1131 = vcmp.ne.s32.totalorder %v882, 0
    %vm1132 = vcmp.ne.s32.totalorder %v884, 0
    %vm1133 = vcmp.ne.s32.totalorder %v867, 0
    %vm1134 = vcmp.ne.s32.totalorder %v881, 0
    %vm1135 = vcmp.ne.s32.totalorder %v883, 0
    %vm1136 = vcmp.ne.s32.totalorder %v885, 0
    %vm1137 = vcmp.ne.s32.totalorder %v909, 0
    %vm1138 = vcmp.ne.s32.totalorder %v923, 0
    %vm1139 = vcmp.ne.s32.totalorder %v931, 0
    %vm1140 = vcmp.ne.s32.totalorder %v933, 0
    %vm1141 = vcmp.ne.s32.totalorder %v916, 0
    %vm1142 = vcmp.ne.s32.totalorder %v930, 0
    %vm1143 = vcmp.ne.s32.totalorder %v932, 0
    %vm1144 = vcmp.ne.s32.totalorder %v934, 0
    %vm1145 = vcmp.ne.s32.totalorder %v958, 0
    %vm1146 = vcmp.ne.s32.totalorder %v972, 0
    %vm1147 = vcmp.ne.s32.totalorder %v980, 0
    %vm1148 = vcmp.ne.s32.totalorder %v982, 0
    %vm1149 = vcmp.ne.s32.totalorder %v965, 0
    %vm1150 = vcmp.ne.s32.totalorder %v979, 0
    %vm1151 = vcmp.ne.s32.totalorder %v981, 0
    %vm1152 = vcmp.ne.s32.totalorder %v983, 0
    %vm1153 = vcmp.ne.s32.totalorder %v1007, 0
    %vm1154 = vcmp.ne.s32.totalorder %v1021, 0
    %vm1155 = vcmp.ne.s32.totalorder %v1029, 0
    %vm1156 = vcmp.ne.s32.totalorder %v1031, 0
    %vm1157 = vcmp.ne.s32.totalorder %v1014, 0
    %vm1158 = vcmp.ne.s32.totalorder %v1028, 0
    %vm1159 = vcmp.ne.s32.totalorder %v1030, 0
    %vm1160 = vcmp.ne.s32.totalorder %v1032, 0
    %v1161 = vsel %vm1033, 1, 0
    %v1162 = vsel %vm1034, 1, 0
    %v1163 = vsel %vm1035, 1, 0
    %v1164 = vsel %vm1036, 1, 0
    %v1165 = vsel %vm1037, 1, 0
    %v1166 = vsel %vm1038, 1, 0
    %v1167 = vsel %vm1039, 1, 0
    %v1168 = vsel %vm1040, 1, 0
    %v1169 = vsel %vm1041, 1, 0
    %v1170 = vsel %vm1042, 1, 0
    %v1171 = vsel %vm1043, 1, 0
    %v1172 = vsel %vm1044, 1, 0
    %v1173 = vsel %vm1045, 1, 0
    %v1174 = vsel %vm1046, 1, 0
    %v1175 = vsel %vm1047, 1, 0
    %v1176 = vsel %vm1048, 1, 0
    %v1177 = vsel %vm1049, 1, 0
    %v1178 = vsel %vm1050, 1, 0
    %v1179 = vsel %vm1051, 1, 0
    %v1180 = vsel %vm1052, 1, 0
    %v1181 = vsel %vm1053, 1, 0
    %v1182 = vsel %vm1054, 1, 0
    %v1183 = vsel %vm1055, 1, 0
    %v1184 = vsel %vm1056, 1, 0
    %v1185 = vsel %vm1057, 1, 0
    %v1186 = vsel %vm1058, 1, 0
    %v1187 = vsel %vm1059, 1, 0
    %v1188 = vsel %vm1060, 1, 0
    %v1189 = vsel %vm1061, 1, 0
    %v1190 = vsel %vm1062, 1, 0
    %v1191 = vsel %vm1063, 1, 0
    %v1192 = vsel %vm1064, 1, 0
    %v1193 = vsel %vm1065, 1, 0
    %v1194 = vsel %vm1066, 1, 0
    %v1195 = vsel %vm1067, 1, 0
    %v1196 = vsel %vm1068, 1, 0
    %v1197 = vsel %vm1069, 1, 0
    %v1198 = vsel %vm1070, 1, 0
    %v1199 = vsel %vm1071, 1, 0
    %v1200 = vsel %vm1072, 1, 0
    %v1201 = vsel %vm1073, 1, 0
    %v1202 = vsel %vm1074, 1, 0
    %v1203 = vsel %vm1075, 1, 0
    %v1204 = vsel %vm1076, 1, 0
    %v1205 = vsel %vm1077, 1, 0
    %v1206 = vsel %vm1078, 1, 0
    %v1207 = vsel %vm1079, 1, 0
    %v1208 = vsel %vm1080, 1, 0
    %v1209 = vsel %vm1081, 1, 0
    %v1210 = vsel %vm1082, 1, 0
    %v1211 = vsel %vm1083, 1, 0
    %v1212 = vsel %vm1084, 1, 0
    %v1213 = vsel %vm1085, 1, 0
    %v1214 = vsel %vm1086, 1, 0
    %v1215 = vsel %vm1087, 1, 0
    %v1216 = vsel %vm1088, 1, 0
    %v1217 = vsel %vm1089, 1, 0
    %v1218 = vsel %vm1090, 1, 0
    %v1219 = vsel %vm1091, 1, 0
    %v1220 = vsel %vm1092, 1, 0
    %v1221 = vsel %vm1093, 1, 0
    %v1222 = vsel %vm1094, 1, 0
    %v1223 = vsel %vm1095, 1, 0
    %v1224 = vsel %vm1096, 1, 0
    %v1225 = vsel %vm1097, 1, 0
    %v1226 = vsel %vm1098, 1, 0
    %v1227 = vsel %vm1099, 1, 0
    %v1228 = vsel %vm1100, 1, 0
    %v1229 = vsel %vm1101, 1, 0
    %v1230 = vsel %vm1102, 1, 0
    %v1231 = vsel %vm1103, 1, 0
    %v1232 = vsel %vm1104, 1, 0
    %v1233 = vsel %vm1105, 1, 0
    %v1234 = vsel %vm1106, 1, 0
    %v1235 = vsel %vm1107, 1, 0
    %v1236 = vsel %vm1108, 1, 0
    %v1237 = vsel %vm1109, 1, 0
    %v1238 = vsel %vm1110, 1, 0
    %v1239 = vsel %vm1111, 1, 0
    %v1240 = vsel %vm1112, 1, 0
    %v1241 = vsel %vm1113, 1, 0
    %v1242 = vsel %vm1114, 1, 0
    %v1243 = vsel %vm1115, 1, 0
    %v1244 = vsel %vm1116, 1, 0
    %v1245 = vsel %vm1117, 1, 0
    %v1246 = vsel %vm1118, 1, 0
    %v1247 = vsel %vm1119, 1, 0
    %v1248 = vsel %vm1120, 1, 0
    %v1249 = vsel %vm1121, 1, 0
    %v1250 = vsel %vm1122, 1, 0
    %v1251 = vsel %vm1123, 1, 0
    %v1252 = vsel %vm1124, 1, 0
    %v1253 = vsel %vm1125, 1, 0
    %v1254 = vsel %vm1126, 1, 0
    %v1255 = vsel %vm1127, 1, 0
    %v1256 = vsel %vm1128, 1, 0
    %v1257 = vsel %vm1129, 1, 0
    %v1258 = vsel %vm1130, 1, 0
    %v1259 = vsel %vm1131, 1, 0
    %v1260 = vsel %vm1132, 1, 0
    %v1261 = vsel %vm1133, 1, 0
    %v1262 = vsel %vm1134, 1, 0
    %v1263 = vsel %vm1135, 1, 0
    %v1264 = vsel %vm1136, 1, 0
    %v1265 = vsel %vm1137, 1, 0
    %v1266 = vsel %vm1138, 1, 0
    %v1267 = vsel %vm1139, 1, 0
    %v1268 = vsel %vm1140, 1, 0
    %v1269 = vsel %vm1141, 1, 0
    %v1270 = vsel %vm1142, 1, 0
    %v1271 = vsel %vm1143, 1, 0
    %v1272 = vsel %vm1144, 1, 0
    %v1273 = vsel %vm1145, 1, 0
    %v1274 = vsel %vm1146, 1, 0
    %v1275 = vsel %vm1147, 1, 0
    %v1276 = vsel %vm1148, 1, 0
    %v1277 = vsel %vm1149, 1, 0
    %v1278 = vsel %vm1150, 1, 0
    %v1279 = vsel %vm1151, 1, 0
    %v1280 = vsel %vm1152, 1, 0
    %v1281 = vsel %vm1153, 1, 0
    %v1282 = vsel %vm1154, 1, 0
    %v1283 = vsel %vm1155, 1, 0
    %v1284 = vsel %vm1156, 1, 0
    %v1285 = vsel %vm1157, 1, 0
    %v1286 = vsel %vm1158, 1, 0
    %v1287 = vsel %vm1159, 1, 0
    %v1288 = vsel %vm1160, 1, 0
    %v1289 = vlaneseq
    %v1290 = vshrl.u32 %v1289, 7
    %v1291 = vsub.s32 0, %v1290
    %v1292 = vrot.slane %v1161, %v1291
    %v1293 = vlaneseq
    %v1294 = vshrl.u32 %v1293, 7
    %v1295 = vsub.s32 0, %v1294
    %v1296 = vrot.slane %v1162, %v1295
    %v1297 = vlaneseq
    %v1298 = vshrl.u32 %v1297, 7
    %v1299 = vsub.s32 0, %v1298
    %v1300 = vrot.slane %v1163, %v1299
    %v1301 = vlaneseq
    %v1302 = vshrl.u32 %v1301, 7
    %v1303 = vsub.s32 0, %v1302
    %v1304 = vrot.slane %v1164, %v1303
    %v1305 = vlaneseq
    %v1306 = vshrl.u32 %v1305, 7
    %v1307 = vsub.s32 0, %v1306
    %v1308 = vrot.slane %v1165, %v1307
    %v1309 = vlaneseq
    %v1310 = vshrl.u32 %v1309, 7
    %v1311 = vsub.s32 0, %v1310
    %v1312 = vrot.slane %v1166, %v1311
    %v1313 = vlaneseq
    %v1314 = vshrl.u32 %v1313, 7
    %v1315 = vsub.s32 0, %v1314
    %v1316 = vrot.slane %v1167, %v1315
    %v1317 = vlaneseq
    %v1318 = vshrl.u32 %v1317, 7
    %v1319 = vsub.s32 0, %v1318
    %v1320 = vrot.slane %v1168, %v1319
    %v1321 = vlaneseq
    %v1322 = vshrl.u32 %v1321, 7
    %v1323 = vsub.s32 0, %v1322
    %v1324 = vrot.slane %v1169, %v1323
    %v1325 = vlaneseq
    %v1326 = vshrl.u32 %v1325, 7
    %v1327 = vsub.s32 0, %v1326
    %v1328 = vrot.slane %v1170, %v1327
    %v1329 = vlaneseq
    %v1330 = vshrl.u32 %v1329, 7
    %v1331 = vsub.s32 0, %v1330
    %v1332 = vrot.slane %v1171, %v1331
    %v1333 = vlaneseq
    %v1334 = vshrl.u32 %v1333, 7
    %v1335 = vsub.s32 0, %v1334
    %v1336 = vrot.slane %v1172, %v1335
    %v1337 = vlaneseq
    %v1338 = vshrl.u32 %v1337, 7
    %v1339 = vsub.s32 0, %v1338
    %v1340 = vrot.slane %v1173, %v1339
    %v1341 = vlaneseq
    %v1342 = vshrl.u32 %v1341, 7
    %v1343 = vsub.s32 0, %v1342
    %v1344 = vrot.slane %v1174, %v1343
    %v1345 = vlaneseq
    %v1346 = vshrl.u32 %v1345, 7
    %v1347 = vsub.s32 0, %v1346
    %v1348 = vrot.slane %v1175, %v1347
    %v1349 = vlaneseq
    %v1350 = vshrl.u32 %v1349, 7
    %v1351 = vsub.s32 0, %v1350
    %v1352 = vrot.slane %v1176, %v1351
    %v1353 = vlaneseq
    %v1354 = vshrl.u32 %v1353, 7
    %v1355 = vsub.s32 0, %v1354
    %v1356 = vrot.slane %v1177, %v1355
    %v1357 = vlaneseq
    %v1358 = vshrl.u32 %v1357, 7
    %v1359 = vsub.s32 0, %v1358
    %v1360 = vrot.slane %v1178, %v1359
    %v1361 = vlaneseq
    %v1362 = vshrl.u32 %v1361, 7
    %v1363 = vsub.s32 0, %v1362
    %v1364 = vrot.slane %v1179, %v1363
    %v1365 = vlaneseq
    %v1366 = vshrl.u32 %v1365, 7
    %v1367 = vsub.s32 0, %v1366
    %v1368 = vrot.slane %v1180, %v1367
    %v1369 = vlaneseq
    %v1370 = vshrl.u32 %v1369, 7
    %v1371 = vsub.s32 0, %v1370
    %v1372 = vrot.slane %v1181, %v1371
    %v1373 = vlaneseq
    %v1374 = vshrl.u32 %v1373, 7
    %v1375 = vsub.s32 0, %v1374
    %v1376 = vrot.slane %v1182, %v1375
    %v1377 = vlaneseq
    %v1378 = vshrl.u32 %v1377, 7
    %v1379 = vsub.s32 0, %v1378
    %v1380 = vrot.slane %v1183, %v1379
    %v1381 = vlaneseq
    %v1382 = vshrl.u32 %v1381, 7
    %v1383 = vsub.s32 0, %v1382
    %v1384 = vrot.slane %v1184, %v1383
    %v1385 = vlaneseq
    %v1386 = vshrl.u32 %v1385, 7
    %v1387 = vsub.s32 0, %v1386
    %v1388 = vrot.slane %v1185, %v1387
    %v1389 = vlaneseq
    %v1390 = vshrl.u32 %v1389, 7
    %v1391 = vsub.s32 0, %v1390
    %v1392 = vrot.slane %v1186, %v1391
    %v1393 = vlaneseq
    %v1394 = vshrl.u32 %v1393, 7
    %v1395 = vsub.s32 0, %v1394
    %v1396 = vrot.slane %v1187, %v1395
    %v1397 = vlaneseq
    %v1398 = vshrl.u32 %v1397, 7
    %v1399 = vsub.s32 0, %v1398
    %v1400 = vrot.slane %v1188, %v1399
    %v1401 = vlaneseq
    %v1402 = vshrl.u32 %v1401, 7
    %v1403 = vsub.s32 0, %v1402
    %v1404 = vrot.slane %v1189, %v1403
    %v1405 = vlaneseq
    %v1406 = vshrl.u32 %v1405, 7
    %v1407 = vsub.s32 0, %v1406
    %v1408 = vrot.slane %v1190, %v1407
    %v1409 = vlaneseq
    %v1410 = vshrl.u32 %v1409, 7
    %v1411 = vsub.s32 0, %v1410
    %v1412 = vrot.slane %v1191, %v1411
    %v1413 = vlaneseq
    %v1414 = vshrl.u32 %v1413, 7
    %v1415 = vsub.s32 0, %v1414
    %v1416 = vrot.slane %v1192, %v1415
    %v1417 = vlaneseq
    %v1418 = vshrl.u32 %v1417, 7
    %v1419 = vsub.s32 0, %v1418
    %v1420 = vrot.slane %v1193, %v1419
    %v1421 = vlaneseq
    %v1422 = vshrl.u32 %v1421, 7
    %v1423 = vsub.s32 0, %v1422
    %v1424 = vrot.slane %v1194, %v1423
    %v1425 = vlaneseq
    %v1426 = vshrl.u32 %v1425, 7
    %v1427 = vsub.s32 0, %v1426
    %v1428 = vrot.slane %v1195, %v1427
    %v1429 = vlaneseq
    %v1430 = vshrl.u32 %v1429, 7
    %v1431 = vsub.s32 0, %v1430
    %v1432 = vrot.slane %v1196, %v1431
    %v1433 = vlaneseq
    %v1434 = vshrl.u32 %v1433, 7
    %v1435 = vsub.s32 0, %v1434
    %v1436 = vrot.slane %v1197, %v1435
    %v1437 = vlaneseq
    %v1438 = vshrl.u32 %v1437, 7
    %v1439 = vsub.s32 0, %v1438
    %v1440 = vrot.slane %v1198, %v1439
    %v1441 = vlaneseq
    %v1442 = vshrl.u32 %v1441, 7
    %v1443 = vsub.s32 0, %v1442
    %v1444 = vrot.slane %v1199, %v1443
    %v1445 = vlaneseq
    %v1446 = vshrl.u32 %v1445, 7
    %v1447 = vsub.s32 0, %v1446
    %v1448 = vrot.slane %v1200, %v1447
    %v1449 = vlaneseq
    %v1450 = vshrl.u32 %v1449, 7
    %v1451 = vsub.s32 0, %v1450
    %v1452 = vrot.slane %v1201, %v1451
    %v1453 = vlaneseq
    %v1454 = vshrl.u32 %v1453, 7
    %v1455 = vsub.s32 0, %v1454
    %v1456 = vrot.slane %v1202, %v1455
    %v1457 = vlaneseq
    %v1458 = vshrl.u32 %v1457, 7
    %v1459 = vsub.s32 0, %v1458
    %v1460 = vrot.slane %v1203, %v1459
    %v1461 = vlaneseq
    %v1462 = vshrl.u32 %v1461, 7
    %v1463 = vsub.s32 0, %v1462
    %v1464 = vrot.slane %v1204, %v1463
    %v1465 = vlaneseq
    %v1466 = vshrl.u32 %v1465, 7
    %v1467 = vsub.s32 0, %v1466
    %v1468 = vrot.slane %v1205, %v1467
    %v1469 = vlaneseq
    %v1470 = vshrl.u32 %v1469, 7
    %v1471 = vsub.s32 0, %v1470
    %v1472 = vrot.slane %v1206, %v1471
    %v1473 = vlaneseq
    %v1474 = vshrl.u32 %v1473, 7
    %v1475 = vsub.s32 0, %v1474
    %v1476 = vrot.slane %v1207, %v1475
    %v1477 = vlaneseq
    %v1478 = vshrl.u32 %v1477, 7
    %v1479 = vsub.s32 0, %v1478
    %v1480 = vrot.slane %v1208, %v1479
    %v1481 = vlaneseq
    %v1482 = vshrl.u32 %v1481, 7
    %v1483 = vsub.s32 0, %v1482
    %v1484 = vrot.slane %v1209, %v1483
    %v1485 = vlaneseq
    %v1486 = vshrl.u32 %v1485, 7
    %v1487 = vsub.s32 0, %v1486
    %v1488 = vrot.slane %v1210, %v1487
    %v1489 = vlaneseq
    %v1490 = vshrl.u32 %v1489, 7
    %v1491 = vsub.s32 0, %v1490
    %v1492 = vrot.slane %v1211, %v1491
    %v1493 = vlaneseq
    %v1494 = vshrl.u32 %v1493, 7
    %v1495 = vsub.s32 0, %v1494
    %v1496 = vrot.slane %v1212, %v1495
    %v1497 = vlaneseq
    %v1498 = vshrl.u32 %v1497, 7
    %v1499 = vsub.s32 0, %v1498
    %v1500 = vrot.slane %v1213, %v1499
    %v1501 = vlaneseq
    %v1502 = vshrl.u32 %v1501, 7
    %v1503 = vsub.s32 0, %v1502
    %v1504 = vrot.slane %v1214, %v1503
    %v1505 = vlaneseq
    %v1506 = vshrl.u32 %v1505, 7
    %v1507 = vsub.s32 0, %v1506
    %v1508 = vrot.slane %v1215, %v1507
    %v1509 = vlaneseq
    %v1510 = vshrl.u32 %v1509, 7
    %v1511 = vsub.s32 0, %v1510
    %v1512 = vrot.slane %v1216, %v1511
    %v1513 = vlaneseq
    %v1514 = vshrl.u32 %v1513, 7
    %v1515 = vsub.s32 0, %v1514
    %v1516 = vrot.slane %v1217, %v1515
    %v1517 = vlaneseq
    %v1518 = vshrl.u32 %v1517, 7
    %v1519 = vsub.s32 0, %v1518
    %v1520 = vrot.slane %v1218, %v1519
    %v1521 = vlaneseq
    %v1522 = vshrl.u32 %v1521, 7
    %v1523 = vsub.s32 0, %v1522
    %v1524 = vrot.slane %v1219, %v1523
    %v1525 = vlaneseq
    %v1526 = vshrl.u32 %v1525, 7
    %v1527 = vsub.s32 0, %v1526
    %v1528 = vrot.slane %v1220, %v1527
    %v1529 = vlaneseq
    %v1530 = vshrl.u32 %v1529, 7
    %v1531 = vsub.s32 0, %v1530
    %v1532 = vrot.slane %v1221, %v1531
    %v1533 = vlaneseq
    %v1534 = vshrl.u32 %v1533, 7
    %v1535 = vsub.s32 0, %v1534
    %v1536 = vrot.slane %v1222, %v1535
    %v1537 = vlaneseq
    %v1538 = vshrl.u32 %v1537, 7
    %v1539 = vsub.s32 0, %v1538
    %v1540 = vrot.slane %v1223, %v1539
    %v1541 = vlaneseq
    %v1542 = vshrl.u32 %v1541, 7
    %v1543 = vsub.s32 0, %v1542
    %v1544 = vrot.slane %v1224, %v1543
    %v1545 = vlaneseq
    %v1546 = vshrl.u32 %v1545, 7
    %v1547 = vsub.s32 0, %v1546
    %v1548 = vrot.slane %v1225, %v1547
    %v1549 = vlaneseq
    %v1550 = vshrl.u32 %v1549, 7
    %v1551 = vsub.s32 0, %v1550
    %v1552 = vrot.slane %v1226, %v1551
    %v1553 = vlaneseq
    %v1554 = vshrl.u32 %v1553, 7
    %v1555 = vsub.s32 0, %v1554
    %v1556 = vrot.slane %v1227, %v1555
    %v1557 = vlaneseq
    %v1558 = vshrl.u32 %v1557, 7
    %v1559 = vsub.s32 0, %v1558
    %v1560 = vrot.slane %v1228, %v1559
    %v1561 = vlaneseq
    %v1562 = vshrl.u32 %v1561, 7
    %v1563 = vsub.s32 0, %v1562
    %v1564 = vrot.slane %v1229, %v1563
    %v1565 = vlaneseq
    %v1566 = vshrl.u32 %v1565, 7
    %v1567 = vsub.s32 0, %v1566
    %v1568 = vrot.slane %v1230, %v1567
    %v1569 = vlaneseq
    %v1570 = vshrl.u32 %v1569, 7
    %v1571 = vsub.s32 0, %v1570
    %v1572 = vrot.slane %v1231, %v1571
    %v1573 = vlaneseq
    %v1574 = vshrl.u32 %v1573, 7
    %v1575 = vsub.s32 0, %v1574
    %v1576 = vrot.slane %v1232, %v1575
    %v1577 = vlaneseq
    %v1578 = vshrl.u32 %v1577, 7
    %v1579 = vsub.s32 0, %v1578
    %v1580 = vrot.slane %v1233, %v1579
    %v1581 = vlaneseq
    %v1582 = vshrl.u32 %v1581, 7
    %v1583 = vsub.s32 0, %v1582
    %v1584 = vrot.slane %v1234, %v1583
    %v1585 = vlaneseq
    %v1586 = vshrl.u32 %v1585, 7
    %v1587 = vsub.s32 0, %v1586
    %v1588 = vrot.slane %v1235, %v1587
    %v1589 = vlaneseq
    %v1590 = vshrl.u32 %v1589, 7
    %v1591 = vsub.s32 0, %v1590
    %v1592 = vrot.slane %v1236, %v1591
    %v1593 = vlaneseq
    %v1594 = vshrl.u32 %v1593, 7
    %v1595 = vsub.s32 0, %v1594
    %v1596 = vrot.slane %v1237, %v1595
    %v1597 = vlaneseq
    %v1598 = vshrl.u32 %v1597, 7
    %v1599 = vsub.s32 0, %v1598
    %v1600 = vrot.slane %v1238, %v1599
    %v1601 = vlaneseq
    %v1602 = vshrl.u32 %v1601, 7
    %v1603 = vsub.s32 0, %v1602
    %v1604 = vrot.slane %v1239, %v1603
    %v1605 = vlaneseq
    %v1606 = vshrl.u32 %v1605, 7
    %v1607 = vsub.s32 0, %v1606
    %v1608 = vrot.slane %v1240, %v1607
    %v1609 = vlaneseq
    %v1610 = vshrl.u32 %v1609, 7
    %v1611 = vsub.s32 0, %v1610
    %v1612 = vrot.slane %v1241, %v1611
    %v1613 = vlaneseq
    %v1614 = vshrl.u32 %v1613, 7
    %v1615 = vsub.s32 0, %v1614
    %v1616 = vrot.slane %v1242, %v1615
    %v1617 = vlaneseq
    %v1618 = vshrl.u32 %v1617, 7
    %v1619 = vsub.s32 0, %v1618
    %v1620 = vrot.slane %v1243, %v1619
    %v1621 = vlaneseq
    %v1622 = vshrl.u32 %v1621, 7
    %v1623 = vsub.s32 0, %v1622
    %v1624 = vrot.slane %v1244, %v1623
    %v1625 = vlaneseq
    %v1626 = vshrl.u32 %v1625, 7
    %v1627 = vsub.s32 0, %v1626
    %v1628 = vrot.slane %v1245, %v1627
    %v1629 = vlaneseq
    %v1630 = vshrl.u32 %v1629, 7
    %v1631 = vsub.s32 0, %v1630
    %v1632 = vrot.slane %v1246, %v1631
    %v1633 = vlaneseq
    %v1634 = vshrl.u32 %v1633, 7
    %v1635 = vsub.s32 0, %v1634
    %v1636 = vrot.slane %v1247, %v1635
    %v1637 = vlaneseq
    %v1638 = vshrl.u32 %v1637, 7
    %v1639 = vsub.s32 0, %v1638
    %v1640 = vrot.slane %v1248, %v1639
    %v1641 = vlaneseq
    %v1642 = vshrl.u32 %v1641, 7
    %v1643 = vsub.s32 0, %v1642
    %v1644 = vrot.slane %v1249, %v1643
    %v1645 = vlaneseq
    %v1646 = vshrl.u32 %v1645, 7
    %v1647 = vsub.s32 0, %v1646
    %v1648 = vrot.slane %v1250, %v1647
    %v1649 = vlaneseq
    %v1650 = vshrl.u32 %v1649, 7
    %v1651 = vsub.s32 0, %v1650
    %v1652 = vrot.slane %v1251, %v1651
    %v1653 = vlaneseq
    %v1654 = vshrl.u32 %v1653, 7
    %v1655 = vsub.s32 0, %v1654
    %v1656 = vrot.slane %v1252, %v1655
    %v1657 = vlaneseq
    %v1658 = vshrl.u32 %v1657, 7
    %v1659 = vsub.s32 0, %v1658
    %v1660 = vrot.slane %v1253, %v1659
    %v1661 = vlaneseq
    %v1662 = vshrl.u32 %v1661, 7
    %v1663 = vsub.s32 0, %v1662
    %v1664 = vrot.slane %v1254, %v1663
    %v1665 = vlaneseq
    %v1666 = vshrl.u32 %v1665, 7
    %v1667 = vsub.s32 0, %v1666
    %v1668 = vrot.slane %v1255, %v1667
    %v1669 = vlaneseq
    %v1670 = vshrl.u32 %v1669, 7
    %v1671 = vsub.s32 0, %v1670
    %v1672 = vrot.slane %v1256, %v1671
    %v1673 = vlaneseq
    %v1674 = vshrl.u32 %v1673, 7
    %v1675 = vsub.s32 0, %v1674
    %v1676 = vrot.slane %v1257, %v1675
    %v1677 = vlaneseq
    %v1678 = vshrl.u32 %v1677, 7
    %v1679 = vsub.s32 0, %v1678
    %v1680 = vrot.slane %v1258, %v1679
    %v1681 = vlaneseq
    %v1682 = vshrl.u32 %v1681, 7
    %v1683 = vsub.s32 0, %v1682
    %v1684 = vrot.slane %v1259, %v1683
    %v1685 = vlaneseq
    %v1686 = vshrl.u32 %v1685, 7
    %v1687 = vsub.s32 0, %v1686
    %v1688 = vrot.slane %v1260, %v1687
    %v1689 = vlaneseq
    %v1690 = vshrl.u32 %v1689, 7
    %v1691 = vsub.s32 0, %v1690
    %v1692 = vrot.slane %v1261, %v1691
    %v1693 = vlaneseq
    %v1694 = vshrl.u32 %v1693, 7
    %v1695 = vsub.s32 0, %v1694
    %v1696 = vrot.slane %v1262, %v1695
    %v1697 = vlaneseq
    %v1698 = vshrl.u32 %v1697, 7
    %v1699 = vsub.s32 0, %v1698
    %v1700 = vrot.slane %v1263, %v1699
    %v1701 = vlaneseq
    %v1702 = vshrl.u32 %v1701, 7
    %v1703 = vsub.s32 0, %v1702
    %v1704 = vrot.slane %v1264, %v1703
    %v1705 = vlaneseq
    %v1706 = vshrl.u32 %v1705, 7
    %v1707 = vsub.s32 0, %v1706
    %v1708 = vrot.slane %v1265, %v1707
    %v1709 = vlaneseq
    %v1710 = vshrl.u32 %v1709, 7
    %v1711 = vsub.s32 0, %v1710
    %v1712 = vrot.slane %v1266, %v1711
    %v1713 = vlaneseq
    %v1714 = vshrl.u32 %v1713, 7
    %v1715 = vsub.s32 0, %v1714
    %v1716 = vrot.slane %v1267, %v1715
    %v1717 = vlaneseq
    %v1718 = vshrl.u32 %v1717, 7
    %v1719 = vsub.s32 0, %v1718
    %v1720 = vrot.slane %v1268, %v1719
    %v1721 = vlaneseq
    %v1722 = vshrl.u32 %v1721, 7
    %v1723 = vsub.s32 0, %v1722
    %v1724 = vrot.slane %v1269, %v1723
    %v1725 = vlaneseq
    %v1726 = vshrl.u32 %v1725, 7
    %v1727 = vsub.s32 0, %v1726
    %v1728 = vrot.slane %v1270, %v1727
    %v1729 = vlaneseq
    %v1730 = vshrl.u32 %v1729, 7
    %v1731 = vsub.s32 0, %v1730
    %v1732 = vrot.slane %v1271, %v1731
    %v1733 = vlaneseq
    %v1734 = vshrl.u32 %v1733, 7
    %v1735 = vsub.s32 0, %v1734
    %v1736 = vrot.slane %v1272, %v1735
    %v1737 = vlaneseq
    %v1738 = vshrl.u32 %v1737, 7
    %v1739 = vsub.s32 0, %v1738
    %v1740 = vrot.slane %v1273, %v1739
    %v1741 = vlaneseq
    %v1742 = vshrl.u32 %v1741, 7
    %v1743 = vsub.s32 0, %v1742
    %v1744 = vrot.slane %v1274, %v1743
    %v1745 = vlaneseq
    %v1746 = vshrl.u32 %v1745, 7
    %v1747 = vsub.s32 0, %v1746
    %v1748 = vrot.slane %v1275, %v1747
    %v1749 = vlaneseq
    %v1750 = vshrl.u32 %v1749, 7
    %v1751 = vsub.s32 0, %v1750
    %v1752 = vrot.slane %v1276, %v1751
    %v1753 = vlaneseq
    %v1754 = vshrl.u32 %v1753, 7
    %v1755 = vsub.s32 0, %v1754
    %v1756 = vrot.slane %v1277, %v1755
    %v1757 = vlaneseq
    %v1758 = vshrl.u32 %v1757, 7
    %v1759 = vsub.s32 0, %v1758
    %v1760 = vrot.slane %v1278, %v1759
    %v1761 = vlaneseq
    %v1762 = vshrl.u32 %v1761, 7
    %v1763 = vsub.s32 0, %v1762
    %v1764 = vrot.slane %v1279, %v1763
    %v1765 = vlaneseq
    %v1766 = vshrl.u32 %v1765, 7
    %v1767 = vsub.s32 0, %v1766
    %v1768 = vrot.slane %v1280, %v1767
    %v1769 = vlaneseq
    %v1770 = vshrl.u32 %v1769, 7
    %v1771 = vsub.s32 0, %v1770
    %v1772 = vrot.slane %v1281, %v1771
    %v1773 = vlaneseq
    %v1774 = vshrl.u32 %v1773, 7
    %v1775 = vsub.s32 0, %v1774
    %v1776 = vrot.slane %v1282, %v1775
    %v1777 = vlaneseq
    %v1778 = vshrl.u32 %v1777, 7
    %v1779 = vsub.s32 0, %v1778
    %v1780 = vrot.slane %v1283, %v1779
    %v1781 = vlaneseq
    %v1782 = vshrl.u32 %v1781, 7
    %v1783 = vsub.s32 0, %v1782
    %v1784 = vrot.slane %v1284, %v1783
    %v1785 = vlaneseq
    %v1786 = vshrl.u32 %v1785, 7
    %v1787 = vsub.s32 0, %v1786
    %v1788 = vrot.slane %v1285, %v1787
    %v1789 = vlaneseq
    %v1790 = vshrl.u32 %v1789, 7
    %v1791 = vsub.s32 0, %v1790
    %v1792 = vrot.slane %v1286, %v1791
    %v1793 = vlaneseq
    %v1794 = vshrl.u32 %v1793, 7
    %v1795 = vsub.s32 0, %v1794
    %v1796 = vrot.slane %v1287, %v1795
    %v1797 = vlaneseq
    %v1798 = vshrl.u32 %v1797, 7
    %v1799 = vsub.s32 0, %v1798
    %v1800 = vrot.slane %v1288, %v1799
    %vm1801 = vcmp.eq.s32.totalorder %v1292, 1
    %vm1802 = vcmp.eq.s32.totalorder %v1296, 1
    %vm1803 = vcmp.eq.s32.totalorder %v1300, 1
    %vm1804 = vcmp.eq.s32.totalorder %v1304, 1
    %vm1805 = vcmp.eq.s32.totalorder %v1308, 1
    %vm1806 = vcmp.eq.s32.totalorder %v1312, 1
    %vm1807 = vcmp.eq.s32.totalorder %v1316, 1
    %vm1808 = vcmp.eq.s32.totalorder %v1320, 1
    %vm1809 = vcmp.eq.s32.totalorder %v1324, 1
    %vm1810 = vcmp.eq.s32.totalorder %v1328, 1
    %vm1811 = vcmp.eq.s32.totalorder %v1332, 1
    %vm1812 = vcmp.eq.s32.totalorder %v1336, 1
    %vm1813 = vcmp.eq.s32.totalorder %v1340, 1
    %vm1814 = vcmp.eq.s32.totalorder %v1344, 1
    %vm1815 = vcmp.eq.s32.totalorder %v1348, 1
    %vm1816 = vcmp.eq.s32.totalorder %v1352, 1
    %vm1817 = vcmp.eq.s32.totalorder %v1356, 1
    %vm1818 = vcmp.eq.s32.totalorder %v1360, 1
    %vm1819 = vcmp.eq.s32.totalorder %v1364, 1
    %vm1820 = vcmp.eq.s32.totalorder %v1368, 1
    %vm1821 = vcmp.eq.s32.totalorder %v1372, 1
    %vm1822 = vcmp.eq.s32.totalorder %v1376, 1
    %vm1823 = vcmp.eq.s32.totalorder %v1380, 1
    %vm1824 = vcmp.eq.s32.totalorder %v1384, 1
    %vm1825 = vcmp.eq.s32.totalorder %v1388, 1
    %vm1826 = vcmp.eq.s32.totalorder %v1392, 1
    %vm1827 = vcmp.eq.s32.totalorder %v1396, 1
    %vm1828 = vcmp.eq.s32.totalorder %v1400, 1
    %vm1829 = vcmp.eq.s32.totalorder %v1404, 1
    %vm1830 = vcmp.eq.s32.totalorder %v1408, 1
    %vm1831 = vcmp.eq.s32.totalorder %v1412, 1
    %vm1832 = vcmp.eq.s32.totalorder %v1416, 1
    %vm1833 = vcmp.eq.s32.totalorder %v1420, 1
    %vm1834 = vcmp.eq.s32.totalorder %v1424, 1
    %vm1835 = vcmp.eq.s32.totalorder %v1428, 1
    %vm1836 = vcmp.eq.s32.totalorder %v1432, 1
    %vm1837 = vcmp.eq.s32.totalorder %v1436, 1
    %vm1838 = vcmp.eq.s32.totalorder %v1440, 1
    %vm1839 = vcmp.eq.s32.totalorder %v1444, 1
    %vm1840 = vcmp.eq.s32.totalorder %v1448, 1
    %vm1841 = vcmp.eq.s32.totalorder %v1452, 1
    %vm1842 = vcmp.eq.s32.totalorder %v1456, 1
    %vm1843 = vcmp.eq.s32.totalorder %v1460, 1
    %vm1844 = vcmp.eq.s32.totalorder %v1464, 1
    %vm1845 = vcmp.eq.s32.totalorder %v1468, 1
    %vm1846 = vcmp.eq.s32.totalorder %v1472, 1
    %vm1847 = vcmp.eq.s32.totalorder %v1476, 1
    %vm1848 = vcmp.eq.s32.totalorder %v1480, 1
    %vm1849 = vcmp.eq.s32.totalorder %v1484, 1
    %vm1850 = vcmp.eq.s32.totalorder %v1488, 1
    %vm1851 = vcmp.eq.s32.totalorder %v1492, 1
    %vm1852 = vcmp.eq.s32.totalorder %v1496, 1
    %vm1853 = vcmp.eq.s32.totalorder %v1500, 1
    %vm1854 = vcmp.eq.s32.totalorder %v1504, 1
    %vm1855 = vcmp.eq.s32.totalorder %v1508, 1
    %vm1856 = vcmp.eq.s32.totalorder %v1512, 1
    %vm1857 = vcmp.eq.s32.totalorder %v1516, 1
    %vm1858 = vcmp.eq.s32.totalorder %v1520, 1
    %vm1859 = vcmp.eq.s32.totalorder %v1524, 1
    %vm1860 = vcmp.eq.s32.totalorder %v1528, 1
    %vm1861 = vcmp.eq.s32.totalorder %v1532, 1
    %vm1862 = vcmp.eq.s32.totalorder %v1536, 1
    %vm1863 = vcmp.eq.s32.totalorder %v1540, 1
    %vm1864 = vcmp.eq.s32.totalorder %v1544, 1
    %vm1865 = vcmp.eq.s32.totalorder %v1548, 1
    %vm1866 = vcmp.eq.s32.totalorder %v1552, 1
    %vm1867 = vcmp.eq.s32.totalorder %v1556, 1
    %vm1868 = vcmp.eq.s32.totalorder %v1560, 1
    %vm1869 = vcmp.eq.s32.totalorder %v1564, 1
    %vm1870 = vcmp.eq.s32.totalorder %v1568, 1
    %vm1871 = vcmp.eq.s32.totalorder %v1572, 1
    %vm1872 = vcmp.eq.s32.totalorder %v1576, 1
    %vm1873 = vcmp.eq.s32.totalorder %v1580, 1
    %vm1874 = vcmp.eq.s32.totalorder %v1584, 1
    %vm1875 = vcmp.eq.s32.totalorder %v1588, 1
    %vm1876 = vcmp.eq.s32.totalorder %v1592, 1
    %vm1877 = vcmp.eq.s32.totalorder %v1596, 1
    %vm1878 = vcmp.eq.s32.totalorder %v1600, 1
    %vm1879 = vcmp.eq.s32.totalorder %v1604, 1
    %vm1880 = vcmp.eq.s32.totalorder %v1608, 1
    %vm1881 = vcmp.eq.s32.totalorder %v1612, 1
    %vm1882 = vcmp.eq.s32.totalorder %v1616, 1
    %vm1883 = vcmp.eq.s32.totalorder %v1620, 1
    %vm1884 = vcmp.eq.s32.totalorder %v1624, 1
    %vm1885 = vcmp.eq.s32.totalorder %v1628, 1
    %vm1886 = vcmp.eq.s32.totalorder %v1632, 1
    %vm1887 = vcmp.eq.s32.totalorder %v1636, 1
    %vm1888 = vcmp.eq.s32.totalorder %v1640, 1
    %vm1889 = vcmp.eq.s32.totalorder %v1644, 1
    %vm1890 = vcmp.eq.s32.totalorder %v1648, 1
    %vm1891 = vcmp.eq.s32.totalorder %v1652, 1
    %vm1892 = vcmp.eq.s32.totalorder %v1656, 1
    %vm1893 = vcmp.eq.s32.totalorder %v1660, 1
    %vm1894 = vcmp.eq.s32.totalorder %v1664, 1
    %vm1895 = vcmp.eq.s32.totalorder %v1668, 1
    %vm1896 = vcmp.eq.s32.totalorder %v1672, 1
    %vm1897 = vcmp.eq.s32.totalorder %v1676, 1
    %vm1898 = vcmp.eq.s32.totalorder %v1680, 1
    %vm1899 = vcmp.eq.s32.totalorder %v1684, 1
    %vm1900 = vcmp.eq.s32.totalorder %v1688, 1
    %vm1901 = vcmp.eq.s32.totalorder %v1692, 1
    %vm1902 = vcmp.eq.s32.totalorder %v1696, 1
    %vm1903 = vcmp.eq.s32.totalorder %v1700, 1
    %vm1904 = vcmp.eq.s32.totalorder %v1704, 1
    %vm1905 = vcmp.eq.s32.totalorder %v1708, 1
    %vm1906 = vcmp.eq.s32.totalorder %v1712, 1
    %vm1907 = vcmp.eq.s32.totalorder %v1716, 1
    %vm1908 = vcmp.eq.s32.totalorder %v1720, 1
    %vm1909 = vcmp.eq.s32.totalorder %v1724, 1
    %vm1910 = vcmp.eq.s32.totalorder %v1728, 1
    %vm1911 = vcmp.eq.s32.totalorder %v1732, 1
    %vm1912 = vcmp.eq.s32.totalorder %v1736, 1
    %vm1913 = vcmp.eq.s32.totalorder %v1740, 1
    %vm1914 = vcmp.eq.s32.totalorder %v1744, 1
    %vm1915 = vcmp.eq.s32.totalorder %v1748, 1
    %vm1916 = vcmp.eq.s32.totalorder %v1752, 1
    %vm1917 = vcmp.eq.s32.totalorder %v1756, 1
    %vm1918 = vcmp.eq.s32.totalorder %v1760, 1
    %vm1919 = vcmp.eq.s32.totalorder %v1764, 1
    %vm1920 = vcmp.eq.s32.totalorder %v1768, 1
    %vm1921 = vcmp.eq.s32.totalorder %v1772, 1
    %vm1922 = vcmp.eq.s32.totalorder %v1776, 1
    %vm1923 = vcmp.eq.s32.totalorder %v1780, 1
    %vm1924 = vcmp.eq.s32.totalorder %v1784, 1
    %vm1925 = vcmp.eq.s32.totalorder %v1788, 1
    %vm1926 = vcmp.eq.s32.totalorder %v1792, 1
    %vm1927 = vcmp.eq.s32.totalorder %v1796, 1
    %vm1928 = vcmp.eq.s32.totalorder %v1800, 1
    %v1929 = vsel %vm1801, %v164, 0.0
    %v1930 = vsel %vm1802, %v164, 0.0
    %v1931 = vsel %vm1803, %v164, 0.0
    %v1932 = vsel %vm1804, %v164, 0.0
    %v1933 = vsel %vm1805, %v164, 0.0
    %v1934 = vsel %vm1806, %v164, 0.0
    %v1935 = vsel %vm1807, %v164, 0.0
    %v1936 = vsel %vm1808, %v164, 0.0
    %v1937 = vsel %vm1809, %v164, 0.0
    %v1938 = vsel %vm1810, %v164, 0.0
    %v1939 = vsel %vm1811, %v164, 0.0
    %v1940 = vsel %vm1812, %v164, 0.0
    %v1941 = vsel %vm1813, %v164, 0.0
    %v1942 = vsel %vm1814, %v164, 0.0
    %v1943 = vsel %vm1815, %v164, 0.0
    %v1944 = vsel %vm1816, %v164, 0.0
    %v1945 = vsel %vm1817, %v164, 0.0
    %v1946 = vsel %vm1818, %v164, 0.0
    %v1947 = vsel %vm1819, %v164, 0.0
    %v1948 = vsel %vm1820, %v164, 0.0
    %v1949 = vsel %vm1821, %v164, 0.0
    %v1950 = vsel %vm1822, %v164, 0.0
    %v1951 = vsel %vm1823, %v164, 0.0
    %v1952 = vsel %vm1824, %v164, 0.0
    %v1953 = vsel %vm1825, %v164, 0.0
    %v1954 = vsel %vm1826, %v164, 0.0
    %v1955 = vsel %vm1827, %v164, 0.0
    %v1956 = vsel %vm1828, %v164, 0.0
    %v1957 = vsel %vm1829, %v164, 0.0
    %v1958 = vsel %vm1830, %v164, 0.0
    %v1959 = vsel %vm1831, %v164, 0.0
    %v1960 = vsel %vm1832, %v164, 0.0
    %v1961 = vsel %vm1833, %v164, 0.0
    %v1962 = vsel %vm1834, %v164, 0.0
    %v1963 = vsel %vm1835, %v164, 0.0
    %v1964 = vsel %vm1836, %v164, 0.0
    %v1965 = vsel %vm1837, %v164, 0.0
    %v1966 = vsel %vm1838, %v164, 0.0
    %v1967 = vsel %vm1839, %v164, 0.0
    %v1968 = vsel %vm1840, %v164, 0.0
    %v1969 = vsel %vm1841, %v164, 0.0
    %v1970 = vsel %vm1842, %v164, 0.0
    %v1971 = vsel %vm1843, %v164, 0.0
    %v1972 = vsel %vm1844, %v164, 0.0
    %v1973 = vsel %vm1845, %v164, 0.0
    %v1974 = vsel %vm1846, %v164, 0.0
    %v1975 = vsel %vm1847, %v164, 0.0
    %v1976 = vsel %vm1848, %v164, 0.0
    %v1977 = vsel %vm1849, %v164, 0.0
    %v1978 = vsel %vm1850, %v164, 0.0
    %v1979 = vsel %vm1851, %v164, 0.0
    %v1980 = vsel %vm1852, %v164, 0.0
    %v1981 = vsel %vm1853, %v164, 0.0
    %v1982 = vsel %vm1854, %v164, 0.0
    %v1983 = vsel %vm1855, %v164, 0.0
    %v1984 = vsel %vm1856, %v164, 0.0
    %v1985 = vsel %vm1857, %v164, 0.0
    %v1986 = vsel %vm1858, %v164, 0.0
    %v1987 = vsel %vm1859, %v164, 0.0
    %v1988 = vsel %vm1860, %v164, 0.0
    %v1989 = vsel %vm1861, %v164, 0.0
    %v1990 = vsel %vm1862, %v164, 0.0
    %v1991 = vsel %vm1863, %v164, 0.0
    %v1992 = vsel %vm1864, %v164, 0.0
    %v1993 = vsel %vm1865, %v164, 0.0
    %v1994 = vsel %vm1866, %v164, 0.0
    %v1995 = vsel %vm1867, %v164, 0.0
    %v1996 = vsel %vm1868, %v164, 0.0
    %v1997 = vsel %vm1869, %v164, 0.0
    %v1998 = vsel %vm1870, %v164, 0.0
    %v1999 = vsel %vm1871, %v164, 0.0
    %v2000 = vsel %vm1872, %v164, 0.0
    %v2001 = vsel %vm1873, %v164, 0.0
    %v2002 = vsel %vm1874, %v164, 0.0
    %v2003 = vsel %vm1875, %v164, 0.0
    %v2004 = vsel %vm1876, %v164, 0.0
    %v2005 = vsel %vm1877, %v164, 0.0
    %v2006 = vsel %vm1878, %v164, 0.0
    %v2007 = vsel %vm1879, %v164, 0.0
    %v2008 = vsel %vm1880, %v164, 0.0
    %v2009 = vsel %vm1881, %v164, 0.0
    %v2010 = vsel %vm1882, %v164, 0.0
    %v2011 = vsel %vm1883, %v164, 0.0
    %v2012 = vsel %vm1884, %v164, 0.0
    %v2013 = vsel %vm1885, %v164, 0.0
    %v2014 = vsel %vm1886, %v164, 0.0
    %v2015 = vsel %vm1887, %v164, 0.0
    %v2016 = vsel %vm1888, %v164, 0.0
    %v2017 = vsel %vm1889, %v164, 0.0
    %v2018 = vsel %vm1890, %v164, 0.0
    %v2019 = vsel %vm1891, %v164, 0.0
    %v2020 = vsel %vm1892, %v164, 0.0
    %v2021 = vsel %vm1893, %v164, 0.0
    %v2022 = vsel %vm1894, %v164, 0.0
    %v2023 = vsel %vm1895, %v164, 0.0
    %v2024 = vsel %vm1896, %v164, 0.0
    %v2025 = vsel %vm1897, %v164, 0.0
    %v2026 = vsel %vm1898, %v164, 0.0
    %v2027 = vsel %vm1899, %v164, 0.0
    %v2028 = vsel %vm1900, %v164, 0.0
    %v2029 = vsel %vm1901, %v164, 0.0
    %v2030 = vsel %vm1902, %v164, 0.0
    %v2031 = vsel %vm1903, %v164, 0.0
    %v2032 = vsel %vm1904, %v164, 0.0
    %v2033 = vsel %vm1905, %v164, 0.0
    %v2034 = vsel %vm1906, %v164, 0.0
    %v2035 = vsel %vm1907, %v164, 0.0
    %v2036 = vsel %vm1908, %v164, 0.0
    %v2037 = vsel %vm1909, %v164, 0.0
    %v2038 = vsel %vm1910, %v164, 0.0
    %v2039 = vsel %vm1911, %v164, 0.0
    %v2040 = vsel %vm1912, %v164, 0.0
    %v2041 = vsel %vm1913, %v164, 0.0
    %v2042 = vsel %vm1914, %v164, 0.0
    %v2043 = vsel %vm1915, %v164, 0.0
    %v2044 = vsel %vm1916, %v164, 0.0
    %v2045 = vsel %vm1917, %v164, 0.0
    %v2046 = vsel %vm1918, %v164, 0.0
    %v2047 = vsel %vm1919, %v164, 0.0
    %v2048 = vsel %vm1920, %v164, 0.0
    %v2049 = vsel %vm1921, %v164, 0.0
    %v2050 = vsel %vm1922, %v164, 0.0
    %v2051 = vsel %vm1923, %v164, 0.0
    %v2052 = vsel %vm1924, %v164, 0.0
    %v2053 = vsel %vm1925, %v164, 0.0
    %v2054 = vsel %vm1926, %v164, 0.0
    %v2055 = vsel %vm1927, %v164, 0.0
    %v2056 = vsel %vm1928, %v164, 0.0
    %2057 = vmax.xlane.f32.xlu0 %v1929
    %v2058 = vpop.xlane.xlu0 %2057
    %2059 = vmax.xlane.f32.xlu0 %v1930
    %v2060 = vpop.xlane.xlu0 %2059
    %2061 = vmax.xlane.f32.xlu0 %v1931
    %v2062 = vpop.xlane.xlu0 %2061
    %2063 = vmax.xlane.f32.xlu0 %v1932
    %v2064 = vpop.xlane.xlu0 %2063
    %2065 = vmax.xlane.f32.xlu0 %v1933
    %v2066 = vpop.xlane.xlu0 %2065
    %2067 = vmax.xlane.f32.xlu0 %v1934
    %v2068 = vpop.xlane.xlu0 %2067
    %2069 = vmax.xlane.f32.xlu0 %v1935
    %v2070 = vpop.xlane.xlu0 %2069
    %2071 = vmax.xlane.f32.xlu0 %v1936
    %v2072 = vpop.xlane.xlu0 %2071
    %2073 = vmax.xlane.f32.xlu0 %v1937
    %v2074 = vpop.xlane.xlu0 %2073
    %2075 = vmax.xlane.f32.xlu0 %v1938
    %v2076 = vpop.xlane.xlu0 %2075
    %2077 = vmax.xlane.f32.xlu0 %v1939
    %v2078 = vpop.xlane.xlu0 %2077
    %2079 = vmax.xlane.f32.xlu0 %v1940
    %v2080 = vpop.xlane.xlu0 %2079
    %2081 = vmax.xlane.f32.xlu0 %v1941
    %v2082 = vpop.xlane.xlu0 %2081
    %2083 = vmax.xlane.f32.xlu0 %v1942
    %v2084 = vpop.xlane.xlu0 %2083
    %2085 = vmax.xlane.f32.xlu0 %v1943
    %v2086 = vpop.xlane.xlu0 %2085
    %2087 = vmax.xlane.f32.xlu0 %v1944
    %v2088 = vpop.xlane.xlu0 %2087
    %2089 = vmax.xlane.f32.xlu0 %v1945
    %v2090 = vpop.xlane.xlu0 %2089
    %2091 = vmax.xlane.f32.xlu0 %v1946
    %v2092 = vpop.xlane.xlu0 %2091
    %2093 = vmax.xlane.f32.xlu0 %v1947
    %v2094 = vpop.xlane.xlu0 %2093
    %2095 = vmax.xlane.f32.xlu0 %v1948
    %v2096 = vpop.xlane.xlu0 %2095
    %2097 = vmax.xlane.f32.xlu0 %v1949
    %v2098 = vpop.xlane.xlu0 %2097
    %2099 = vmax.xlane.f32.xlu0 %v1950
    %v2100 = vpop.xlane.xlu0 %2099
    %2101 = vmax.xlane.f32.xlu0 %v1951
    %v2102 = vpop.xlane.xlu0 %2101
    %2103 = vmax.xlane.f32.xlu0 %v1952
    %v2104 = vpop.xlane.xlu0 %2103
    %2105 = vmax.xlane.f32.xlu0 %v1953
    %v2106 = vpop.xlane.xlu0 %2105
    %2107 = vmax.xlane.f32.xlu0 %v1954
    %v2108 = vpop.xlane.xlu0 %2107
    %2109 = vmax.xlane.f32.xlu0 %v1955
    %v2110 = vpop.xlane.xlu0 %2109
    %2111 = vmax.xlane.f32.xlu0 %v1956
    %v2112 = vpop.xlane.xlu0 %2111
    %2113 = vmax.xlane.f32.xlu0 %v1957
    %v2114 = vpop.xlane.xlu0 %2113
    %2115 = vmax.xlane.f32.xlu0 %v1958
    %v2116 = vpop.xlane.xlu0 %2115
    %2117 = vmax.xlane.f32.xlu0 %v1959
    %v2118 = vpop.xlane.xlu0 %2117
    %2119 = vmax.xlane.f32.xlu0 %v1960
    %v2120 = vpop.xlane.xlu0 %2119
    %2121 = vmax.xlane.f32.xlu0 %v1961
    %v2122 = vpop.xlane.xlu0 %2121
    %2123 = vmax.xlane.f32.xlu0 %v1962
    %v2124 = vpop.xlane.xlu0 %2123
    %2125 = vmax.xlane.f32.xlu0 %v1963
    %v2126 = vpop.xlane.xlu0 %2125
    %2127 = vmax.xlane.f32.xlu0 %v1964
    %v2128 = vpop.xlane.xlu0 %2127
    %2129 = vmax.xlane.f32.xlu0 %v1965
    %v2130 = vpop.xlane.xlu0 %2129
    %2131 = vmax.xlane.f32.xlu0 %v1966
    %v2132 = vpop.xlane.xlu0 %2131
    %2133 = vmax.xlane.f32.xlu0 %v1967
    %v2134 = vpop.xlane.xlu0 %2133
    %2135 = vmax.xlane.f32.xlu0 %v1968
    %v2136 = vpop.xlane.xlu0 %2135
    %2137 = vmax.xlane.f32.xlu0 %v1969
    %v2138 = vpop.xlane.xlu0 %2137
    %2139 = vmax.xlane.f32.xlu0 %v1970
    %v2140 = vpop.xlane.xlu0 %2139
    %2141 = vmax.xlane.f32.xlu0 %v1971
    %v2142 = vpop.xlane.xlu0 %2141
    %2143 = vmax.xlane.f32.xlu0 %v1972
    %v2144 = vpop.xlane.xlu0 %2143
    %2145 = vmax.xlane.f32.xlu0 %v1973
    %v2146 = vpop.xlane.xlu0 %2145
    %2147 = vmax.xlane.f32.xlu0 %v1974
    %v2148 = vpop.xlane.xlu0 %2147
    %2149 = vmax.xlane.f32.xlu0 %v1975
    %v2150 = vpop.xlane.xlu0 %2149
    %2151 = vmax.xlane.f32.xlu0 %v1976
    %v2152 = vpop.xlane.xlu0 %2151
    %2153 = vmax.xlane.f32.xlu0 %v1977
    %v2154 = vpop.xlane.xlu0 %2153
    %2155 = vmax.xlane.f32.xlu0 %v1978
    %v2156 = vpop.xlane.xlu0 %2155
    %2157 = vmax.xlane.f32.xlu0 %v1979
    %v2158 = vpop.xlane.xlu0 %2157
    %2159 = vmax.xlane.f32.xlu0 %v1980
    %v2160 = vpop.xlane.xlu0 %2159
    %2161 = vmax.xlane.f32.xlu0 %v1981
    %v2162 = vpop.xlane.xlu0 %2161
    %2163 = vmax.xlane.f32.xlu0 %v1982
    %v2164 = vpop.xlane.xlu0 %2163
    %2165 = vmax.xlane.f32.xlu0 %v1983
    %v2166 = vpop.xlane.xlu0 %2165
    %2167 = vmax.xlane.f32.xlu0 %v1984
    %v2168 = vpop.xlane.xlu0 %2167
    %2169 = vmax.xlane.f32.xlu0 %v1985
    %v2170 = vpop.xlane.xlu0 %2169
    %2171 = vmax.xlane.f32.xlu0 %v1986
    %v2172 = vpop.xlane.xlu0 %2171
    %2173 = vmax.xlane.f32.xlu0 %v1987
    %v2174 = vpop.xlane.xlu0 %2173
    %2175 = vmax.xlane.f32.xlu0 %v1988
    %v2176 = vpop.xlane.xlu0 %2175
    %2177 = vmax.xlane.f32.xlu0 %v1989
    %v2178 = vpop.xlane.xlu0 %2177
    %2179 = vmax.xlane.f32.xlu0 %v1990
    %v2180 = vpop.xlane.xlu0 %2179
    %2181 = vmax.xlane.f32.xlu0 %v1991
    %v2182 = vpop.xlane.xlu0 %2181
    %2183 = vmax.xlane.f32.xlu0 %v1992
    %v2184 = vpop.xlane.xlu0 %2183
    %2185 = vmax.xlane.f32.xlu0 %v1993
    %v2186 = vpop.xlane.xlu0 %2185
    %2187 = vmax.xlane.f32.xlu0 %v1994
    %v2188 = vpop.xlane.xlu0 %2187
    %2189 = vmax.xlane.f32.xlu0 %v1995
    %v2190 = vpop.xlane.xlu0 %2189
    %2191 = vmax.xlane.f32.xlu0 %v1996
    %v2192 = vpop.xlane.xlu0 %2191
    %2193 = vmax.xlane.f32.xlu0 %v1997
    %v2194 = vpop.xlane.xlu0 %2193
    %2195 = vmax.xlane.f32.xlu0 %v1998
    %v2196 = vpop.xlane.xlu0 %2195
    %2197 = vmax.xlane.f32.xlu0 %v1999
    %v2198 = vpop.xlane.xlu0 %2197
    %2199 = vmax.xlane.f32.xlu0 %v2000
    %v2200 = vpop.xlane.xlu0 %2199
    %2201 = vmax.xlane.f32.xlu0 %v2001
    %v2202 = vpop.xlane.xlu0 %2201
    %2203 = vmax.xlane.f32.xlu0 %v2002
    %v2204 = vpop.xlane.xlu0 %2203
    %2205 = vmax.xlane.f32.xlu0 %v2003
    %v2206 = vpop.xlane.xlu0 %2205
    %2207 = vmax.xlane.f32.xlu0 %v2004
    %v2208 = vpop.xlane.xlu0 %2207
    %2209 = vmax.xlane.f32.xlu0 %v2005
    %v2210 = vpop.xlane.xlu0 %2209
    %2211 = vmax.xlane.f32.xlu0 %v2006
    %v2212 = vpop.xlane.xlu0 %2211
    %2213 = vmax.xlane.f32.xlu0 %v2007
    %v2214 = vpop.xlane.xlu0 %2213
    %2215 = vmax.xlane.f32.xlu0 %v2008
    %v2216 = vpop.xlane.xlu0 %2215
    %2217 = vmax.xlane.f32.xlu0 %v2009
    %v2218 = vpop.xlane.xlu0 %2217
    %2219 = vmax.xlane.f32.xlu0 %v2010
    %v2220 = vpop.xlane.xlu0 %2219
    %2221 = vmax.xlane.f32.xlu0 %v2011
    %v2222 = vpop.xlane.xlu0 %2221
    %2223 = vmax.xlane.f32.xlu0 %v2012
    %v2224 = vpop.xlane.xlu0 %2223
    %2225 = vmax.xlane.f32.xlu0 %v2013
    %v2226 = vpop.xlane.xlu0 %2225
    %2227 = vmax.xlane.f32.xlu0 %v2014
    %v2228 = vpop.xlane.xlu0 %2227
    %2229 = vmax.xlane.f32.xlu0 %v2015
    %v2230 = vpop.xlane.xlu0 %2229
    %2231 = vmax.xlane.f32.xlu0 %v2016
    %v2232 = vpop.xlane.xlu0 %2231
    %2233 = vmax.xlane.f32.xlu0 %v2017
    %v2234 = vpop.xlane.xlu0 %2233
    %2235 = vmax.xlane.f32.xlu0 %v2018
    %v2236 = vpop.xlane.xlu0 %2235
    %2237 = vmax.xlane.f32.xlu0 %v2019
    %v2238 = vpop.xlane.xlu0 %2237
    %2239 = vmax.xlane.f32.xlu0 %v2020
    %v2240 = vpop.xlane.xlu0 %2239
    %2241 = vmax.xlane.f32.xlu0 %v2021
    %v2242 = vpop.xlane.xlu0 %2241
    %2243 = vmax.xlane.f32.xlu0 %v2022
    %v2244 = vpop.xlane.xlu0 %2243
    %2245 = vmax.xlane.f32.xlu0 %v2023
    %v2246 = vpop.xlane.xlu0 %2245
    %2247 = vmax.xlane.f32.xlu0 %v2024
    %v2248 = vpop.xlane.xlu0 %2247
    %2249 = vmax.xlane.f32.xlu0 %v2025
    %v2250 = vpop.xlane.xlu0 %2249
    %2251 = vmax.xlane.f32.xlu0 %v2026
    %v2252 = vpop.xlane.xlu0 %2251
    %2253 = vmax.xlane.f32.xlu0 %v2027
    %v2254 = vpop.xlane.xlu0 %2253
    %2255 = vmax.xlane.f32.xlu0 %v2028
    %v2256 = vpop.xlane.xlu0 %2255
    %2257 = vmax.xlane.f32.xlu0 %v2029
    %v2258 = vpop.xlane.xlu0 %2257
    %2259 = vmax.xlane.f32.xlu0 %v2030
    %v2260 = vpop.xlane.xlu0 %2259
    %2261 = vmax.xlane.f32.xlu0 %v2031
    %v2262 = vpop.xlane.xlu0 %2261
    %2263 = vmax.xlane.f32.xlu0 %v2032
    %v2264 = vpop.xlane.xlu0 %2263
    %2265 = vmax.xlane.f32.xlu0 %v2033
    %v2266 = vpop.xlane.xlu0 %2265
    %2267 = vmax.xlane.f32.xlu0 %v2034
    %v2268 = vpop.xlane.xlu0 %2267
    %2269 = vmax.xlane.f32.xlu0 %v2035
    %v2270 = vpop.xlane.xlu0 %2269
    %2271 = vmax.xlane.f32.xlu0 %v2036
    %v2272 = vpop.xlane.xlu0 %2271
    %2273 = vmax.xlane.f32.xlu0 %v2037
    %v2274 = vpop.xlane.xlu0 %2273
    %2275 = vmax.xlane.f32.xlu0 %v2038
    %v2276 = vpop.xlane.xlu0 %2275
    %2277 = vmax.xlane.f32.xlu0 %v2039
    %v2278 = vpop.xlane.xlu0 %2277
    %2279 = vmax.xlane.f32.xlu0 %v2040
    %v2280 = vpop.xlane.xlu0 %2279
    %2281 = vmax.xlane.f32.xlu0 %v2041
    %v2282 = vpop.xlane.xlu0 %2281
    %2283 = vmax.xlane.f32.xlu0 %v2042
    %v2284 = vpop.xlane.xlu0 %2283
    %2285 = vmax.xlane.f32.xlu0 %v2043
    %v2286 = vpop.xlane.xlu0 %2285
    %2287 = vmax.xlane.f32.xlu0 %v2044
    %v2288 = vpop.xlane.xlu0 %2287
    %2289 = vmax.xlane.f32.xlu0 %v2045
    %v2290 = vpop.xlane.xlu0 %2289
    %2291 = vmax.xlane.f32.xlu0 %v2046
    %v2292 = vpop.xlane.xlu0 %2291
    %2293 = vmax.xlane.f32.xlu0 %v2047
    %v2294 = vpop.xlane.xlu0 %2293
    %2295 = vmax.xlane.f32.xlu0 %v2048
    %v2296 = vpop.xlane.xlu0 %2295
    %2297 = vmax.xlane.f32.xlu0 %v2049
    %v2298 = vpop.xlane.xlu0 %2297
    %2299 = vmax.xlane.f32.xlu0 %v2050
    %v2300 = vpop.xlane.xlu0 %2299
    %2301 = vmax.xlane.f32.xlu0 %v2051
    %v2302 = vpop.xlane.xlu0 %2301
    %2303 = vmax.xlane.f32.xlu0 %v2052
    %v2304 = vpop.xlane.xlu0 %2303
    %2305 = vmax.xlane.f32.xlu0 %v2053
    %v2306 = vpop.xlane.xlu0 %2305
    %2307 = vmax.xlane.f32.xlu0 %v2054
    %v2308 = vpop.xlane.xlu0 %2307
    %2309 = vmax.xlane.f32.xlu0 %v2055
    %v2310 = vpop.xlane.xlu0 %2309
    %2311 = vmax.xlane.f32.xlu0 %v2056
    %v2312 = vpop.xlane.xlu0 %2311
    %v2441 = vlaneseq
    %v2442 = vand.u32 %v2441, 127
    %v2443 = vlaneseq
    %v2444 = vshrl.u32 %v2443, 7
    %v2445 = vsub.s32 %v2442, %v2444
    %v2446 = vrot.slane %v2058, %v2445
    %v2447 = vlaneseq
    %v2448 = vshrl.u32 %v2447, 7
    %v2449 = vsub.s32 %v2442, %v2448
    %v2450 = vrot.slane %v2060, %v2449
    %v2451 = vlaneseq
    %v2452 = vshrl.u32 %v2451, 7
    %v2453 = vsub.s32 %v2442, %v2452
    %v2454 = vrot.slane %v2062, %v2453
    %v2455 = vlaneseq
    %v2456 = vshrl.u32 %v2455, 7
    %v2457 = vsub.s32 %v2442, %v2456
    %v2458 = vrot.slane %v2064, %v2457
    %v2459 = vlaneseq
    %v2460 = vshrl.u32 %v2459, 7
    %v2461 = vsub.s32 %v2442, %v2460
    %v2462 = vrot.slane %v2066, %v2461
    %v2463 = vlaneseq
    %v2464 = vshrl.u32 %v2463, 7
    %v2465 = vsub.s32 %v2442, %v2464
    %v2466 = vrot.slane %v2068, %v2465
    %v2467 = vlaneseq
    %v2468 = vshrl.u32 %v2467, 7
    %v2469 = vsub.s32 %v2442, %v2468
    %v2470 = vrot.slane %v2070, %v2469
    %v2471 = vlaneseq
    %v2472 = vshrl.u32 %v2471, 7
    %v2473 = vsub.s32 %v2442, %v2472
    %v2474 = vrot.slane %v2072, %v2473
    %v2475 = vlaneseq
    %v2476 = vshrl.u32 %v2475, 7
    %v2477 = vsub.s32 %v2442, %v2476
    %v2478 = vrot.slane %v2074, %v2477
    %v2479 = vlaneseq
    %v2480 = vshrl.u32 %v2479, 7
    %v2481 = vsub.s32 %v2442, %v2480
    %v2482 = vrot.slane %v2076, %v2481
    %v2483 = vlaneseq
    %v2484 = vshrl.u32 %v2483, 7
    %v2485 = vsub.s32 %v2442, %v2484
    %v2486 = vrot.slane %v2078, %v2485
    %v2487 = vlaneseq
    %v2488 = vshrl.u32 %v2487, 7
    %v2489 = vsub.s32 %v2442, %v2488
    %v2490 = vrot.slane %v2080, %v2489
    %v2491 = vlaneseq
    %v2492 = vshrl.u32 %v2491, 7
    %v2493 = vsub.s32 %v2442, %v2492
    %v2494 = vrot.slane %v2082, %v2493
    %v2495 = vlaneseq
    %v2496 = vshrl.u32 %v2495, 7
    %v2497 = vsub.s32 %v2442, %v2496
    %v2498 = vrot.slane %v2084, %v2497
    %v2499 = vlaneseq
    %v2500 = vshrl.u32 %v2499, 7
    %v2501 = vsub.s32 %v2442, %v2500
    %v2502 = vrot.slane %v2086, %v2501
    %v2503 = vlaneseq
    %v2504 = vshrl.u32 %v2503, 7
    %v2505 = vsub.s32 %v2442, %v2504
    %v2506 = vrot.slane %v2088, %v2505
    %v2507 = vlaneseq
    %v2508 = vshrl.u32 %v2507, 7
    %v2509 = vsub.s32 %v2442, %v2508
    %v2510 = vrot.slane %v2090, %v2509
    %v2511 = vlaneseq
    %v2512 = vshrl.u32 %v2511, 7
    %v2513 = vsub.s32 %v2442, %v2512
    %v2514 = vrot.slane %v2092, %v2513
    %v2515 = vlaneseq
    %v2516 = vshrl.u32 %v2515, 7
    %v2517 = vsub.s32 %v2442, %v2516
    %v2518 = vrot.slane %v2094, %v2517
    %v2519 = vlaneseq
    %v2520 = vshrl.u32 %v2519, 7
    %v2521 = vsub.s32 %v2442, %v2520
    %v2522 = vrot.slane %v2096, %v2521
    %v2523 = vlaneseq
    %v2524 = vshrl.u32 %v2523, 7
    %v2525 = vsub.s32 %v2442, %v2524
    %v2526 = vrot.slane %v2098, %v2525
    %v2527 = vlaneseq
    %v2528 = vshrl.u32 %v2527, 7
    %v2529 = vsub.s32 %v2442, %v2528
    %v2530 = vrot.slane %v2100, %v2529
    %v2531 = vlaneseq
    %v2532 = vshrl.u32 %v2531, 7
    %v2533 = vsub.s32 %v2442, %v2532
    %v2534 = vrot.slane %v2102, %v2533
    %v2535 = vlaneseq
    %v2536 = vshrl.u32 %v2535, 7
    %v2537 = vsub.s32 %v2442, %v2536
    %v2538 = vrot.slane %v2104, %v2537
    %v2539 = vlaneseq
    %v2540 = vshrl.u32 %v2539, 7
    %v2541 = vsub.s32 %v2442, %v2540
    %v2542 = vrot.slane %v2106, %v2541
    %v2543 = vlaneseq
    %v2544 = vshrl.u32 %v2543, 7
    %v2545 = vsub.s32 %v2442, %v2544
    %v2546 = vrot.slane %v2108, %v2545
    %v2547 = vlaneseq
    %v2548 = vshrl.u32 %v2547, 7
    %v2549 = vsub.s32 %v2442, %v2548
    %v2550 = vrot.slane %v2110, %v2549
    %v2551 = vlaneseq
    %v2552 = vshrl.u32 %v2551, 7
    %v2553 = vsub.s32 %v2442, %v2552
    %v2554 = vrot.slane %v2112, %v2553
    %v2555 = vlaneseq
    %v2556 = vshrl.u32 %v2555, 7
    %v2557 = vsub.s32 %v2442, %v2556
    %v2558 = vrot.slane %v2114, %v2557
    %v2559 = vlaneseq
    %v2560 = vshrl.u32 %v2559, 7
    %v2561 = vsub.s32 %v2442, %v2560
    %v2562 = vrot.slane %v2116, %v2561
    %v2563 = vlaneseq
    %v2564 = vshrl.u32 %v2563, 7
    %v2565 = vsub.s32 %v2442, %v2564
    %v2566 = vrot.slane %v2118, %v2565
    %v2567 = vlaneseq
    %v2568 = vshrl.u32 %v2567, 7
    %v2569 = vsub.s32 %v2442, %v2568
    %v2570 = vrot.slane %v2120, %v2569
    %v2571 = vlaneseq
    %v2572 = vshrl.u32 %v2571, 7
    %v2573 = vsub.s32 %v2442, %v2572
    %v2574 = vrot.slane %v2122, %v2573
    %v2575 = vlaneseq
    %v2576 = vshrl.u32 %v2575, 7
    %v2577 = vsub.s32 %v2442, %v2576
    %v2578 = vrot.slane %v2124, %v2577
    %v2579 = vlaneseq
    %v2580 = vshrl.u32 %v2579, 7
    %v2581 = vsub.s32 %v2442, %v2580
    %v2582 = vrot.slane %v2126, %v2581
    %v2583 = vlaneseq
    %v2584 = vshrl.u32 %v2583, 7
    %v2585 = vsub.s32 %v2442, %v2584
    %v2586 = vrot.slane %v2128, %v2585
    %v2587 = vlaneseq
    %v2588 = vshrl.u32 %v2587, 7
    %v2589 = vsub.s32 %v2442, %v2588
    %v2590 = vrot.slane %v2130, %v2589
    %v2591 = vlaneseq
    %v2592 = vshrl.u32 %v2591, 7
    %v2593 = vsub.s32 %v2442, %v2592
    %v2594 = vrot.slane %v2132, %v2593
    %v2595 = vlaneseq
    %v2596 = vshrl.u32 %v2595, 7
    %v2597 = vsub.s32 %v2442, %v2596
    %v2598 = vrot.slane %v2134, %v2597
    %v2599 = vlaneseq
    %v2600 = vshrl.u32 %v2599, 7
    %v2601 = vsub.s32 %v2442, %v2600
    %v2602 = vrot.slane %v2136, %v2601
    %v2603 = vlaneseq
    %v2604 = vshrl.u32 %v2603, 7
    %v2605 = vsub.s32 %v2442, %v2604
    %v2606 = vrot.slane %v2138, %v2605
    %v2607 = vlaneseq
    %v2608 = vshrl.u32 %v2607, 7
    %v2609 = vsub.s32 %v2442, %v2608
    %v2610 = vrot.slane %v2140, %v2609
    %v2611 = vlaneseq
    %v2612 = vshrl.u32 %v2611, 7
    %v2613 = vsub.s32 %v2442, %v2612
    %v2614 = vrot.slane %v2142, %v2613
    %v2615 = vlaneseq
    %v2616 = vshrl.u32 %v2615, 7
    %v2617 = vsub.s32 %v2442, %v2616
    %v2618 = vrot.slane %v2144, %v2617
    %v2619 = vlaneseq
    %v2620 = vshrl.u32 %v2619, 7
    %v2621 = vsub.s32 %v2442, %v2620
    %v2622 = vrot.slane %v2146, %v2621
    %v2623 = vlaneseq
    %v2624 = vshrl.u32 %v2623, 7
    %v2625 = vsub.s32 %v2442, %v2624
    %v2626 = vrot.slane %v2148, %v2625
    %v2627 = vlaneseq
    %v2628 = vshrl.u32 %v2627, 7
    %v2629 = vsub.s32 %v2442, %v2628
    %v2630 = vrot.slane %v2150, %v2629
    %v2631 = vlaneseq
    %v2632 = vshrl.u32 %v2631, 7
    %v2633 = vsub.s32 %v2442, %v2632
    %v2634 = vrot.slane %v2152, %v2633
    %v2635 = vlaneseq
    %v2636 = vshrl.u32 %v2635, 7
    %v2637 = vsub.s32 %v2442, %v2636
    %v2638 = vrot.slane %v2154, %v2637
    %v2639 = vlaneseq
    %v2640 = vshrl.u32 %v2639, 7
    %v2641 = vsub.s32 %v2442, %v2640
    %v2642 = vrot.slane %v2156, %v2641
    %v2643 = vlaneseq
    %v2644 = vshrl.u32 %v2643, 7
    %v2645 = vsub.s32 %v2442, %v2644
    %v2646 = vrot.slane %v2158, %v2645
    %v2647 = vlaneseq
    %v2648 = vshrl.u32 %v2647, 7
    %v2649 = vsub.s32 %v2442, %v2648
    %v2650 = vrot.slane %v2160, %v2649
    %v2651 = vlaneseq
    %v2652 = vshrl.u32 %v2651, 7
    %v2653 = vsub.s32 %v2442, %v2652
    %v2654 = vrot.slane %v2162, %v2653
    %v2655 = vlaneseq
    %v2656 = vshrl.u32 %v2655, 7
    %v2657 = vsub.s32 %v2442, %v2656
    %v2658 = vrot.slane %v2164, %v2657
    %v2659 = vlaneseq
    %v2660 = vshrl.u32 %v2659, 7
    %v2661 = vsub.s32 %v2442, %v2660
    %v2662 = vrot.slane %v2166, %v2661
    %v2663 = vlaneseq
    %v2664 = vshrl.u32 %v2663, 7
    %v2665 = vsub.s32 %v2442, %v2664
    %v2666 = vrot.slane %v2168, %v2665
    %v2667 = vlaneseq
    %v2668 = vshrl.u32 %v2667, 7
    %v2669 = vsub.s32 %v2442, %v2668
    %v2670 = vrot.slane %v2170, %v2669
    %v2671 = vlaneseq
    %v2672 = vshrl.u32 %v2671, 7
    %v2673 = vsub.s32 %v2442, %v2672
    %v2674 = vrot.slane %v2172, %v2673
    %v2675 = vlaneseq
    %v2676 = vshrl.u32 %v2675, 7
    %v2677 = vsub.s32 %v2442, %v2676
    %v2678 = vrot.slane %v2174, %v2677
    %v2679 = vlaneseq
    %v2680 = vshrl.u32 %v2679, 7
    %v2681 = vsub.s32 %v2442, %v2680
    %v2682 = vrot.slane %v2176, %v2681
    %v2683 = vlaneseq
    %v2684 = vshrl.u32 %v2683, 7
    %v2685 = vsub.s32 %v2442, %v2684
    %v2686 = vrot.slane %v2178, %v2685
    %v2687 = vlaneseq
    %v2688 = vshrl.u32 %v2687, 7
    %v2689 = vsub.s32 %v2442, %v2688
    %v2690 = vrot.slane %v2180, %v2689
    %v2691 = vlaneseq
    %v2692 = vshrl.u32 %v2691, 7
    %v2693 = vsub.s32 %v2442, %v2692
    %v2694 = vrot.slane %v2182, %v2693
    %v2695 = vlaneseq
    %v2696 = vshrl.u32 %v2695, 7
    %v2697 = vsub.s32 %v2442, %v2696
    %v2698 = vrot.slane %v2184, %v2697
    %v2699 = vlaneseq
    %v2700 = vshrl.u32 %v2699, 7
    %v2701 = vsub.s32 %v2442, %v2700
    %v2702 = vrot.slane %v2186, %v2701
    %v2703 = vlaneseq
    %v2704 = vshrl.u32 %v2703, 7
    %v2705 = vsub.s32 %v2442, %v2704
    %v2706 = vrot.slane %v2188, %v2705
    %v2707 = vlaneseq
    %v2708 = vshrl.u32 %v2707, 7
    %v2709 = vsub.s32 %v2442, %v2708
    %v2710 = vrot.slane %v2190, %v2709
    %v2711 = vlaneseq
    %v2712 = vshrl.u32 %v2711, 7
    %v2713 = vsub.s32 %v2442, %v2712
    %v2714 = vrot.slane %v2192, %v2713
    %v2715 = vlaneseq
    %v2716 = vshrl.u32 %v2715, 7
    %v2717 = vsub.s32 %v2442, %v2716
    %v2718 = vrot.slane %v2194, %v2717
    %v2719 = vlaneseq
    %v2720 = vshrl.u32 %v2719, 7
    %v2721 = vsub.s32 %v2442, %v2720
    %v2722 = vrot.slane %v2196, %v2721
    %v2723 = vlaneseq
    %v2724 = vshrl.u32 %v2723, 7
    %v2725 = vsub.s32 %v2442, %v2724
    %v2726 = vrot.slane %v2198, %v2725
    %v2727 = vlaneseq
    %v2728 = vshrl.u32 %v2727, 7
    %v2729 = vsub.s32 %v2442, %v2728
    %v2730 = vrot.slane %v2200, %v2729
    %v2731 = vlaneseq
    %v2732 = vshrl.u32 %v2731, 7
    %v2733 = vsub.s32 %v2442, %v2732
    %v2734 = vrot.slane %v2202, %v2733
    %v2735 = vlaneseq
    %v2736 = vshrl.u32 %v2735, 7
    %v2737 = vsub.s32 %v2442, %v2736
    %v2738 = vrot.slane %v2204, %v2737
    %v2739 = vlaneseq
    %v2740 = vshrl.u32 %v2739, 7
    %v2741 = vsub.s32 %v2442, %v2740
    %v2742 = vrot.slane %v2206, %v2741
    %v2743 = vlaneseq
    %v2744 = vshrl.u32 %v2743, 7
    %v2745 = vsub.s32 %v2442, %v2744
    %v2746 = vrot.slane %v2208, %v2745
    %v2747 = vlaneseq
    %v2748 = vshrl.u32 %v2747, 7
    %v2749 = vsub.s32 %v2442, %v2748
    %v2750 = vrot.slane %v2210, %v2749
    %v2751 = vlaneseq
    %v2752 = vshrl.u32 %v2751, 7
    %v2753 = vsub.s32 %v2442, %v2752
    %v2754 = vrot.slane %v2212, %v2753
    %v2755 = vlaneseq
    %v2756 = vshrl.u32 %v2755, 7
    %v2757 = vsub.s32 %v2442, %v2756
    %v2758 = vrot.slane %v2214, %v2757
    %v2759 = vlaneseq
    %v2760 = vshrl.u32 %v2759, 7
    %v2761 = vsub.s32 %v2442, %v2760
    %v2762 = vrot.slane %v2216, %v2761
    %v2763 = vlaneseq
    %v2764 = vshrl.u32 %v2763, 7
    %v2765 = vsub.s32 %v2442, %v2764
    %v2766 = vrot.slane %v2218, %v2765
    %v2767 = vlaneseq
    %v2768 = vshrl.u32 %v2767, 7
    %v2769 = vsub.s32 %v2442, %v2768
    %v2770 = vrot.slane %v2220, %v2769
    %v2771 = vlaneseq
    %v2772 = vshrl.u32 %v2771, 7
    %v2773 = vsub.s32 %v2442, %v2772
    %v2774 = vrot.slane %v2222, %v2773
    %v2775 = vlaneseq
    %v2776 = vshrl.u32 %v2775, 7
    %v2777 = vsub.s32 %v2442, %v2776
    %v2778 = vrot.slane %v2224, %v2777
    %v2779 = vlaneseq
    %v2780 = vshrl.u32 %v2779, 7
    %v2781 = vsub.s32 %v2442, %v2780
    %v2782 = vrot.slane %v2226, %v2781
    %v2783 = vlaneseq
    %v2784 = vshrl.u32 %v2783, 7
    %v2785 = vsub.s32 %v2442, %v2784
    %v2786 = vrot.slane %v2228, %v2785
    %v2787 = vlaneseq
    %v2788 = vshrl.u32 %v2787, 7
    %v2789 = vsub.s32 %v2442, %v2788
    %v2790 = vrot.slane %v2230, %v2789
    %v2791 = vlaneseq
    %v2792 = vshrl.u32 %v2791, 7
    %v2793 = vsub.s32 %v2442, %v2792
    %v2794 = vrot.slane %v2232, %v2793
    %v2795 = vlaneseq
    %v2796 = vshrl.u32 %v2795, 7
    %v2797 = vsub.s32 %v2442, %v2796
    %v2798 = vrot.slane %v2234, %v2797
    %v2799 = vlaneseq
    %v2800 = vshrl.u32 %v2799, 7
    %v2801 = vsub.s32 %v2442, %v2800
    %v2802 = vrot.slane %v2236, %v2801
    %v2803 = vlaneseq
    %v2804 = vshrl.u32 %v2803, 7
    %v2805 = vsub.s32 %v2442, %v2804
    %v2806 = vrot.slane %v2238, %v2805
    %v2807 = vlaneseq
    %v2808 = vshrl.u32 %v2807, 7
    %v2809 = vsub.s32 %v2442, %v2808
    %v2810 = vrot.slane %v2240, %v2809
    %v2811 = vlaneseq
    %v2812 = vshrl.u32 %v2811, 7
    %v2813 = vsub.s32 %v2442, %v2812
    %v2814 = vrot.slane %v2242, %v2813
    %v2815 = vlaneseq
    %v2816 = vshrl.u32 %v2815, 7
    %v2817 = vsub.s32 %v2442, %v2816
    %v2818 = vrot.slane %v2244, %v2817
    %v2819 = vlaneseq
    %v2820 = vshrl.u32 %v2819, 7
    %v2821 = vsub.s32 %v2442, %v2820
    %v2822 = vrot.slane %v2246, %v2821
    %v2823 = vlaneseq
    %v2824 = vshrl.u32 %v2823, 7
    %v2825 = vsub.s32 %v2442, %v2824
    %v2826 = vrot.slane %v2248, %v2825
    %v2827 = vlaneseq
    %v2828 = vshrl.u32 %v2827, 7
    %v2829 = vsub.s32 %v2442, %v2828
    %v2830 = vrot.slane %v2250, %v2829
    %v2831 = vlaneseq
    %v2832 = vshrl.u32 %v2831, 7
    %v2833 = vsub.s32 %v2442, %v2832
    %v2834 = vrot.slane %v2252, %v2833
    %v2835 = vlaneseq
    %v2836 = vshrl.u32 %v2835, 7
    %v2837 = vsub.s32 %v2442, %v2836
    %v2838 = vrot.slane %v2254, %v2837
    %v2839 = vlaneseq
    %v2840 = vshrl.u32 %v2839, 7
    %v2841 = vsub.s32 %v2442, %v2840
    %v2842 = vrot.slane %v2256, %v2841
    %v2843 = vlaneseq
    %v2844 = vshrl.u32 %v2843, 7
    %v2845 = vsub.s32 %v2442, %v2844
    %v2846 = vrot.slane %v2258, %v2845
    %v2847 = vlaneseq
    %v2848 = vshrl.u32 %v2847, 7
    %v2849 = vsub.s32 %v2442, %v2848
    %v2850 = vrot.slane %v2260, %v2849
    %v2851 = vlaneseq
    %v2852 = vshrl.u32 %v2851, 7
    %v2853 = vsub.s32 %v2442, %v2852
    %v2854 = vrot.slane %v2262, %v2853
    %v2855 = vlaneseq
    %v2856 = vshrl.u32 %v2855, 7
    %v2857 = vsub.s32 %v2442, %v2856
    %v2858 = vrot.slane %v2264, %v2857
    %v2859 = vlaneseq
    %v2860 = vshrl.u32 %v2859, 7
    %v2861 = vsub.s32 %v2442, %v2860
    %v2862 = vrot.slane %v2266, %v2861
    %v2863 = vlaneseq
    %v2864 = vshrl.u32 %v2863, 7
    %v2865 = vsub.s32 %v2442, %v2864
    %v2866 = vrot.slane %v2268, %v2865
    %v2867 = vlaneseq
    %v2868 = vshrl.u32 %v2867, 7
    %v2869 = vsub.s32 %v2442, %v2868
    %v2870 = vrot.slane %v2270, %v2869
    %v2871 = vlaneseq
    %v2872 = vshrl.u32 %v2871, 7
    %v2873 = vsub.s32 %v2442, %v2872
    %v2874 = vrot.slane %v2272, %v2873
    %v2875 = vlaneseq
    %v2876 = vshrl.u32 %v2875, 7
    %v2877 = vsub.s32 %v2442, %v2876
    %v2878 = vrot.slane %v2274, %v2877
    %v2879 = vlaneseq
    %v2880 = vshrl.u32 %v2879, 7
    %v2881 = vsub.s32 %v2442, %v2880
    %v2882 = vrot.slane %v2276, %v2881
    %v2883 = vlaneseq
    %v2884 = vshrl.u32 %v2883, 7
    %v2885 = vsub.s32 %v2442, %v2884
    %v2886 = vrot.slane %v2278, %v2885
    %v2887 = vlaneseq
    %v2888 = vshrl.u32 %v2887, 7
    %v2889 = vsub.s32 %v2442, %v2888
    %v2890 = vrot.slane %v2280, %v2889
    %v2891 = vlaneseq
    %v2892 = vshrl.u32 %v2891, 7
    %v2893 = vsub.s32 %v2442, %v2892
    %v2894 = vrot.slane %v2282, %v2893
    %v2895 = vlaneseq
    %v2896 = vshrl.u32 %v2895, 7
    %v2897 = vsub.s32 %v2442, %v2896
    %v2898 = vrot.slane %v2284, %v2897
    %v2899 = vlaneseq
    %v2900 = vshrl.u32 %v2899, 7
    %v2901 = vsub.s32 %v2442, %v2900
    %v2902 = vrot.slane %v2286, %v2901
    %v2903 = vlaneseq
    %v2904 = vshrl.u32 %v2903, 7
    %v2905 = vsub.s32 %v2442, %v2904
    %v2906 = vrot.slane %v2288, %v2905
    %v2907 = vlaneseq
    %v2908 = vshrl.u32 %v2907, 7
    %v2909 = vsub.s32 %v2442, %v2908
    %v2910 = vrot.slane %v2290, %v2909
    %v2911 = vlaneseq
    %v2912 = vshrl.u32 %v2911, 7
    %v2913 = vsub.s32 %v2442, %v2912
    %v2914 = vrot.slane %v2292, %v2913
    %v2915 = vlaneseq
    %v2916 = vshrl.u32 %v2915, 7
    %v2917 = vsub.s32 %v2442, %v2916
    %v2918 = vrot.slane %v2294, %v2917
    %v2919 = vlaneseq
    %v2920 = vshrl.u32 %v2919, 7
    %v2921 = vsub.s32 %v2442, %v2920
    %v2922 = vrot.slane %v2296, %v2921
    %v2923 = vlaneseq
    %v2924 = vshrl.u32 %v2923, 7
    %v2925 = vsub.s32 %v2442, %v2924
    %v2926 = vrot.slane %v2298, %v2925
    %v2927 = vlaneseq
    %v2928 = vshrl.u32 %v2927, 7
    %v2929 = vsub.s32 %v2442, %v2928
    %v2930 = vrot.slane %v2300, %v2929
    %v2931 = vlaneseq
    %v2932 = vshrl.u32 %v2931, 7
    %v2933 = vsub.s32 %v2442, %v2932
    %v2934 = vrot.slane %v2302, %v2933
    %v2935 = vlaneseq
    %v2936 = vshrl.u32 %v2935, 7
    %v2937 = vsub.s32 %v2442, %v2936
    %v2938 = vrot.slane %v2304, %v2937
    %v2939 = vlaneseq
    %v2940 = vshrl.u32 %v2939, 7
    %v2941 = vsub.s32 %v2442, %v2940
    %v2942 = vrot.slane %v2306, %v2941
    %v2943 = vlaneseq
    %v2944 = vshrl.u32 %v2943, 7
    %v2945 = vsub.s32 %v2442, %v2944
    %v2946 = vrot.slane %v2308, %v2945
    %v2947 = vlaneseq
    %v2948 = vshrl.u32 %v2947, 7
    %v2949 = vsub.s32 %v2442, %v2948
    %v2950 = vrot.slane %v2310, %v2949
    %v2951 = vlaneseq
    %v2952 = vshrl.u32 %v2951, 7
    %v2953 = vsub.s32 %v2442, %v2952
    %v2954 = vrot.slane %v2312, %v2953
    %vm2955 = vcmask 1041409
    %v2956 = vsel %vm2955, %v2450, %v2446
    %vm2957 = vcmask 1042434
    %v2958 = vsel %vm2957, %v2454, %v2956
    %vm2959 = vcmask 1043459
    %v2960 = vsel %vm2959, %v2458, %v2958
    %vm2961 = vcmask 1044484
    %v2962 = vsel %vm2961, %v2462, %v2960
    %vm2963 = vcmask 1045509
    %v2964 = vsel %vm2963, %v2466, %v2962
    %vm2965 = vcmask 1046534
    %v2966 = vsel %vm2965, %v2470, %v2964
    %vm2967 = vcmask 1047559
    %v2968 = vsel %vm2967, %v2474, %v2966
    %v2969 = vsel %vm2955, %v2482, %v2478
    %v2970 = vsel %vm2957, %v2486, %v2969
    %v2971 = vsel %vm2959, %v2490, %v2970
    %v2972 = vsel %vm2961, %v2494, %v2971
    %v2973 = vsel %vm2963, %v2498, %v2972
    %v2974 = vsel %vm2965, %v2502, %v2973
    %v2975 = vsel %vm2967, %v2506, %v2974
    %v2976 = vsel %vm2955, %v2514, %v2510
    %v2977 = vsel %vm2957, %v2518, %v2976
    %v2978 = vsel %vm2959, %v2522, %v2977
    %v2979 = vsel %vm2961, %v2526, %v2978
    %v2980 = vsel %vm2963, %v2530, %v2979
    %v2981 = vsel %vm2965, %v2534, %v2980
    %v2982 = vsel %vm2967, %v2538, %v2981
    %v2983 = vsel %vm2955, %v2546, %v2542
    %v2984 = vsel %vm2957, %v2550, %v2983
    %v2985 = vsel %vm2959, %v2554, %v2984
    %v2986 = vsel %vm2961, %v2558, %v2985
    %v2987 = vsel %vm2963, %v2562, %v2986
    %v2988 = vsel %vm2965, %v2566, %v2987
    %v2989 = vsel %vm2967, %v2570, %v2988
    %v2990 = vsel %vm2955, %v2578, %v2574
    %v2991 = vsel %vm2957, %v2582, %v2990
    %v2992 = vsel %vm2959, %v2586, %v2991
    %v2993 = vsel %vm2961, %v2590, %v2992
    %v2994 = vsel %vm2963, %v2594, %v2993
    %v2995 = vsel %vm2965, %v2598, %v2994
    %v2996 = vsel %vm2967, %v2602, %v2995
    %v2997 = vsel %vm2955, %v2610, %v2606
    %v2998 = vsel %vm2957, %v2614, %v2997
    %v2999 = vsel %vm2959, %v2618, %v2998
    %v3000 = vsel %vm2961, %v2622, %v2999
    %v3001 = vsel %vm2963, %v2626, %v3000
    %v3002 = vsel %vm2965, %v2630, %v3001
    %v3003 = vsel %vm2967, %v2634, %v3002
    %v3004 = vsel %vm2955, %v2642, %v2638
    %v3005 = vsel %vm2957, %v2646, %v3004
    %v3006 = vsel %vm2959, %v2650, %v3005
    %v3007 = vsel %vm2961, %v2654, %v3006
    %v3008 = vsel %vm2963, %v2658, %v3007
    %v3009 = vsel %vm2965, %v2662, %v3008
    %v3010 = vsel %vm2967, %v2666, %v3009
    %v3011 = vsel %vm2955, %v2674, %v2670
    %v3012 = vsel %vm2957, %v2678, %v3011
    %v3013 = vsel %vm2959, %v2682, %v3012
    %v3014 = vsel %vm2961, %v2686, %v3013
    %v3015 = vsel %vm2963, %v2690, %v3014
    %v3016 = vsel %vm2965, %v2694, %v3015
    %v3017 = vsel %vm2967, %v2698, %v3016
    %v3018 = vsel %vm2955, %v2706, %v2702
    %v3019 = vsel %vm2957, %v2710, %v3018
    %v3020 = vsel %vm2959, %v2714, %v3019
    %v3021 = vsel %vm2961, %v2718, %v3020
    %v3022 = vsel %vm2963, %v2722, %v3021
    %v3023 = vsel %vm2965, %v2726, %v3022
    %v3024 = vsel %vm2967, %v2730, %v3023
    %v3025 = vsel %vm2955, %v2738, %v2734
    %v3026 = vsel %vm2957, %v2742, %v3025
    %v3027 = vsel %vm2959, %v2746, %v3026
    %v3028 = vsel %vm2961, %v2750, %v3027
    %v3029 = vsel %vm2963, %v2754, %v3028
    %v3030 = vsel %vm2965, %v2758, %v3029
    %v3031 = vsel %vm2967, %v2762, %v3030
    %v3032 = vsel %vm2955, %v2770, %v2766
    %v3033 = vsel %vm2957, %v2774, %v3032
    %v3034 = vsel %vm2959, %v2778, %v3033
    %v3035 = vsel %vm2961, %v2782, %v3034
    %v3036 = vsel %vm2963, %v2786, %v3035
    %v3037 = vsel %vm2965, %v2790, %v3036
    %v3038 = vsel %vm2967, %v2794, %v3037
    %v3039 = vsel %vm2955, %v2802, %v2798
    %v3040 = vsel %vm2957, %v2806, %v3039
    %v3041 = vsel %vm2959, %v2810, %v3040
    %v3042 = vsel %vm2961, %v2814, %v3041
    %v3043 = vsel %vm2963, %v2818, %v3042
    %v3044 = vsel %vm2965, %v2822, %v3043
    %v3045 = vsel %vm2967, %v2826, %v3044
    %v3046 = vsel %vm2955, %v2834, %v2830
    %v3047 = vsel %vm2957, %v2838, %v3046
    %v3048 = vsel %vm2959, %v2842, %v3047
    %v3049 = vsel %vm2961, %v2846, %v3048
    %v3050 = vsel %vm2963, %v2850, %v3049
    %v3051 = vsel %vm2965, %v2854, %v3050
    %v3052 = vsel %vm2967, %v2858, %v3051
    %v3053 = vsel %vm2955, %v2866, %v2862
    %v3054 = vsel %vm2957, %v2870, %v3053
    %v3055 = vsel %vm2959, %v2874, %v3054
    %v3056 = vsel %vm2961, %v2878, %v3055
    %v3057 = vsel %vm2963, %v2882, %v3056
    %v3058 = vsel %vm2965, %v2886, %v3057
    %v3059 = vsel %vm2967, %v2890, %v3058
    %v3060 = vsel %vm2955, %v2898, %v2894
    %v3061 = vsel %vm2957, %v2902, %v3060
    %v3062 = vsel %vm2959, %v2906, %v3061
    %v3063 = vsel %vm2961, %v2910, %v3062
    %v3064 = vsel %vm2963, %v2914, %v3063
    %v3065 = vsel %vm2965, %v2918, %v3064
    %v3066 = vsel %vm2967, %v2922, %v3065
    %v3067 = vsel %vm2955, %v2930, %v2926
    %v3068 = vsel %vm2957, %v2934, %v3067
    %v3069 = vsel %vm2959, %v2938, %v3068
    %v3070 = vsel %vm2961, %v2942, %v3069
    %v3071 = vsel %vm2963, %v2946, %v3070
    %v3072 = vsel %vm2965, %v2950, %v3071
    %v3073 = vsel %vm2967, %v2954, %v3072
    %vm3090 = vcmask 64512
    %3091 = vst.msk [vmem:[#allocation2] sm:$0xff] %vm3090, %v2968
    %3092 = vst.msk [vmem:[#allocation2 + $0x8] sm:$0xff] %vm3090, %v2975
    %3093 = vst.msk [vmem:[#allocation2 + $0x10] sm:$0xff] %vm3090, %v2982
    %3094 = vst.msk [vmem:[#allocation2 + $0x18] sm:$0xff] %vm3090, %v2989
    %3095 = vst.msk [vmem:[#allocation2 + $0x20] sm:$0xff] %vm3090, %v2996
    %3096 = vst.msk [vmem:[#allocation2 + $0x28] sm:$0xff] %vm3090, %v3003
    %3097 = vst.msk [vmem:[#allocation2 + $0x30] sm:$0xff] %vm3090, %v3010
    %3098 = vst.msk [vmem:[#allocation2 + $0x38] sm:$0xff] %vm3090, %v3017
    %3099 = vst.msk [vmem:[#allocation2 + $0x40] sm:$0xff] %vm3090, %v3024
    %3100 = vst.msk [vmem:[#allocation2 + $0x48] sm:$0xff] %vm3090, %v3031
    %3101 = vst.msk [vmem:[#allocation2 + $0x50] sm:$0xff] %vm3090, %v3038
    %3102 = vst.msk [vmem:[#allocation2 + $0x58] sm:$0xff] %vm3090, %v3045
    %3103 = vst.msk [vmem:[#allocation2 + $0x60] sm:$0xff] %vm3090, %v3052
    %3104 = vst.msk [vmem:[#allocation2 + $0x68] sm:$0xff] %vm3090, %v3059
    %3105 = vst.msk [vmem:[#allocation2 + $0x70] sm:$0xff] %vm3090, %v3066
    %3106 = vst.msk [vmem:[#allocation2 + $0x78] sm:$0xff] %vm3090, %v3073
    %v3107 = vsel %vm1801, %v165, 0.0
    %v3108 = vsel %vm1802, %v165, 0.0
    %v3109 = vsel %vm1803, %v165, 0.0
    %v3110 = vsel %vm1804, %v165, 0.0
    %v3111 = vsel %vm1805, %v165, 0.0
    %v3112 = vsel %vm1806, %v165, 0.0
    %v3113 = vsel %vm1807, %v165, 0.0
    %v3114 = vsel %vm1808, %v165, 0.0
    %v3115 = vsel %vm1809, %v165, 0.0
    %v3116 = vsel %vm1810, %v165, 0.0
    %v3117 = vsel %vm1811, %v165, 0.0
    %v3118 = vsel %vm1812, %v165, 0.0
    %v3119 = vsel %vm1813, %v165, 0.0
    %v3120 = vsel %vm1814, %v165, 0.0
    %v3121 = vsel %vm1815, %v165, 0.0
    %v3122 = vsel %vm1816, %v165, 0.0
    %v3123 = vsel %vm1817, %v165, 0.0
    %v3124 = vsel %vm1818, %v165, 0.0
    %v3125 = vsel %vm1819, %v165, 0.0
    %v3126 = vsel %vm1820, %v165, 0.0
    %v3127 = vsel %vm1821, %v165, 0.0
    %v3128 = vsel %vm1822, %v165, 0.0
    %v3129 = vsel %vm1823, %v165, 0.0
    %v3130 = vsel %vm1824, %v165, 0.0
    %v3131 = vsel %vm1825, %v165, 0.0
    %v3132 = vsel %vm1826, %v165, 0.0
    %v3133 = vsel %vm1827, %v165, 0.0
    %v3134 = vsel %vm1828, %v165, 0.0
    %v3135 = vsel %vm1829, %v165, 0.0
    %v3136 = vsel %vm1830, %v165, 0.0
    %v3137 = vsel %vm1831, %v165, 0.0
    %v3138 = vsel %vm1832, %v165, 0.0
    %v3139 = vsel %vm1833, %v165, 0.0
    %v3140 = vsel %vm1834, %v165, 0.0
    %v3141 = vsel %vm1835, %v165, 0.0
    %v3142 = vsel %vm1836, %v165, 0.0
    %v3143 = vsel %vm1837, %v165, 0.0
    %v3144 = vsel %vm1838, %v165, 0.0
    %v3145 = vsel %vm1839, %v165, 0.0
    %v3146 = vsel %vm1840, %v165, 0.0
    %v3147 = vsel %vm1841, %v165, 0.0
    %v3148 = vsel %vm1842, %v165, 0.0
    %v3149 = vsel %vm1843, %v165, 0.0
    %v3150 = vsel %vm1844, %v165, 0.0
    %v3151 = vsel %vm1845, %v165, 0.0
    %v3152 = vsel %vm1846, %v165, 0.0
    %v3153 = vsel %vm1847, %v165, 0.0
    %v3154 = vsel %vm1848, %v165, 0.0
    %v3155 = vsel %vm1849, %v165, 0.0
    %v3156 = vsel %vm1850, %v165, 0.0
    %v3157 = vsel %vm1851, %v165, 0.0
    %v3158 = vsel %vm1852, %v165, 0.0
    %v3159 = vsel %vm1853, %v165, 0.0
    %v3160 = vsel %vm1854, %v165, 0.0
    %v3161 = vsel %vm1855, %v165, 0.0
    %v3162 = vsel %vm1856, %v165, 0.0
    %v3163 = vsel %vm1857, %v165, 0.0
    %v3164 = vsel %vm1858, %v165, 0.0
    %v3165 = vsel %vm1859, %v165, 0.0
    %v3166 = vsel %vm1860, %v165, 0.0
    %v3167 = vsel %vm1861, %v165, 0.0
    %v3168 = vsel %vm1862, %v165, 0.0
    %v3169 = vsel %vm1863, %v165, 0.0
    %v3170 = vsel %vm1864, %v165, 0.0
    %v3171 = vsel %vm1865, %v165, 0.0
    %v3172 = vsel %vm1866, %v165, 0.0
    %v3173 = vsel %vm1867, %v165, 0.0
    %v3174 = vsel %vm1868, %v165, 0.0
    %v3175 = vsel %vm1869, %v165, 0.0
    %v3176 = vsel %vm1870, %v165, 0.0
    %v3177 = vsel %vm1871, %v165, 0.0
    %v3178 = vsel %vm1872, %v165, 0.0
    %v3179 = vsel %vm1873, %v165, 0.0
    %v3180 = vsel %vm1874, %v165, 0.0
    %v3181 = vsel %vm1875, %v165, 0.0
    %v3182 = vsel %vm1876, %v165, 0.0
    %v3183 = vsel %vm1877, %v165, 0.0
    %v3184 = vsel %vm1878, %v165, 0.0
    %v3185 = vsel %vm1879, %v165, 0.0
    %v3186 = vsel %vm1880, %v165, 0.0
    %v3187 = vsel %vm1881, %v165, 0.0
    %v3188 = vsel %vm1882, %v165, 0.0
    %v3189 = vsel %vm1883, %v165, 0.0
    %v3190 = vsel %vm1884, %v165, 0.0
    %v3191 = vsel %vm1885, %v165, 0.0
    %v3192 = vsel %vm1886, %v165, 0.0
    %v3193 = vsel %vm1887, %v165, 0.0
    %v3194 = vsel %vm1888, %v165, 0.0
    %v3195 = vsel %vm1889, %v165, 0.0
    %v3196 = vsel %vm1890, %v165, 0.0
    %v3197 = vsel %vm1891, %v165, 0.0
    %v3198 = vsel %vm1892, %v165, 0.0
    %v3199 = vsel %vm1893, %v165, 0.0
    %v3200 = vsel %vm1894, %v165, 0.0
    %v3201 = vsel %vm1895, %v165, 0.0
    %v3202 = vsel %vm1896, %v165, 0.0
    %v3203 = vsel %vm1897, %v165, 0.0
    %v3204 = vsel %vm1898, %v165, 0.0
    %v3205 = vsel %vm1899, %v165, 0.0
    %v3206 = vsel %vm1900, %v165, 0.0
    %v3207 = vsel %vm1901, %v165, 0.0
    %v3208 = vsel %vm1902, %v165, 0.0
    %v3209 = vsel %vm1903, %v165, 0.0
    %v3210 = vsel %vm1904, %v165, 0.0
    %v3211 = vsel %vm1905, %v165, 0.0
    %v3212 = vsel %vm1906, %v165, 0.0
    %v3213 = vsel %vm1907, %v165, 0.0
    %v3214 = vsel %vm1908, %v165, 0.0
    %v3215 = vsel %vm1909, %v165, 0.0
    %v3216 = vsel %vm1910, %v165, 0.0
    %v3217 = vsel %vm1911, %v165, 0.0
    %v3218 = vsel %vm1912, %v165, 0.0
    %v3219 = vsel %vm1913, %v165, 0.0
    %v3220 = vsel %vm1914, %v165, 0.0
    %v3221 = vsel %vm1915, %v165, 0.0
    %v3222 = vsel %vm1916, %v165, 0.0
    %v3223 = vsel %vm1917, %v165, 0.0
    %v3224 = vsel %vm1918, %v165, 0.0
    %v3225 = vsel %vm1919, %v165, 0.0
    %v3226 = vsel %vm1920, %v165, 0.0
    %v3227 = vsel %vm1921, %v165, 0.0
    %v3228 = vsel %vm1922, %v165, 0.0
    %v3229 = vsel %vm1923, %v165, 0.0
    %v3230 = vsel %vm1924, %v165, 0.0
    %v3231 = vsel %vm1925, %v165, 0.0
    %v3232 = vsel %vm1926, %v165, 0.0
    %v3233 = vsel %vm1927, %v165, 0.0
    %v3234 = vsel %vm1928, %v165, 0.0
    %3235 = vmax.xlane.f32.xlu0 %v3107
    %v3236 = vpop.xlane.xlu0 %3235
    %3237 = vmax.xlane.f32.xlu0 %v3108
    %v3238 = vpop.xlane.xlu0 %3237
    %3239 = vmax.xlane.f32.xlu0 %v3109
    %v3240 = vpop.xlane.xlu0 %3239
    %3241 = vmax.xlane.f32.xlu0 %v3110
    %v3242 = vpop.xlane.xlu0 %3241
    %3243 = vmax.xlane.f32.xlu0 %v3111
    %v3244 = vpop.xlane.xlu0 %3243
    %3245 = vmax.xlane.f32.xlu0 %v3112
    %v3246 = vpop.xlane.xlu0 %3245
    %3247 = vmax.xlane.f32.xlu0 %v3113
    %v3248 = vpop.xlane.xlu0 %3247
    %3249 = vmax.xlane.f32.xlu0 %v3114
    %v3250 = vpop.xlane.xlu0 %3249
    %3251 = vmax.xlane.f32.xlu0 %v3115
    %v3252 = vpop.xlane.xlu0 %3251
    %3253 = vmax.xlane.f32.xlu0 %v3116
    %v3254 = vpop.xlane.xlu0 %3253
    %3255 = vmax.xlane.f32.xlu0 %v3117
    %v3256 = vpop.xlane.xlu0 %3255
    %3257 = vmax.xlane.f32.xlu0 %v3118
    %v3258 = vpop.xlane.xlu0 %3257
    %3259 = vmax.xlane.f32.xlu0 %v3119
    %v3260 = vpop.xlane.xlu0 %3259
    %3261 = vmax.xlane.f32.xlu0 %v3120
    %v3262 = vpop.xlane.xlu0 %3261
    %3263 = vmax.xlane.f32.xlu0 %v3121
    %v3264 = vpop.xlane.xlu0 %3263
    %3265 = vmax.xlane.f32.xlu0 %v3122
    %v3266 = vpop.xlane.xlu0 %3265
    %3267 = vmax.xlane.f32.xlu0 %v3123
    %v3268 = vpop.xlane.xlu0 %3267
    %3269 = vmax.xlane.f32.xlu0 %v3124
    %v3270 = vpop.xlane.xlu0 %3269
    %3271 = vmax.xlane.f32.xlu0 %v3125
    %v3272 = vpop.xlane.xlu0 %3271
    %3273 = vmax.xlane.f32.xlu0 %v3126
    %v3274 = vpop.xlane.xlu0 %3273
    %3275 = vmax.xlane.f32.xlu0 %v3127
    %v3276 = vpop.xlane.xlu0 %3275
    %3277 = vmax.xlane.f32.xlu0 %v3128
    %v3278 = vpop.xlane.xlu0 %3277
    %3279 = vmax.xlane.f32.xlu0 %v3129
    %v3280 = vpop.xlane.xlu0 %3279
    %3281 = vmax.xlane.f32.xlu0 %v3130
    %v3282 = vpop.xlane.xlu0 %3281
    %3283 = vmax.xlane.f32.xlu0 %v3131
    %v3284 = vpop.xlane.xlu0 %3283
    %3285 = vmax.xlane.f32.xlu0 %v3132
    %v3286 = vpop.xlane.xlu0 %3285
    %3287 = vmax.xlane.f32.xlu0 %v3133
    %v3288 = vpop.xlane.xlu0 %3287
    %3289 = vmax.xlane.f32.xlu0 %v3134
    %v3290 = vpop.xlane.xlu0 %3289
    %3291 = vmax.xlane.f32.xlu0 %v3135
    %v3292 = vpop.xlane.xlu0 %3291
    %3293 = vmax.xlane.f32.xlu0 %v3136
    %v3294 = vpop.xlane.xlu0 %3293
    %3295 = vmax.xlane.f32.xlu0 %v3137
    %v3296 = vpop.xlane.xlu0 %3295
    %3297 = vmax.xlane.f32.xlu0 %v3138
    %v3298 = vpop.xlane.xlu0 %3297
    %3299 = vmax.xlane.f32.xlu0 %v3139
    %v3300 = vpop.xlane.xlu0 %3299
    %3301 = vmax.xlane.f32.xlu0 %v3140
    %v3302 = vpop.xlane.xlu0 %3301
    %3303 = vmax.xlane.f32.xlu0 %v3141
    %v3304 = vpop.xlane.xlu0 %3303
    %3305 = vmax.xlane.f32.xlu0 %v3142
    %v3306 = vpop.xlane.xlu0 %3305
    %3307 = vmax.xlane.f32.xlu0 %v3143
    %v3308 = vpop.xlane.xlu0 %3307
    %3309 = vmax.xlane.f32.xlu0 %v3144
    %v3310 = vpop.xlane.xlu0 %3309
    %3311 = vmax.xlane.f32.xlu0 %v3145
    %v3312 = vpop.xlane.xlu0 %3311
    %3313 = vmax.xlane.f32.xlu0 %v3146
    %v3314 = vpop.xlane.xlu0 %3313
    %3315 = vmax.xlane.f32.xlu0 %v3147
    %v3316 = vpop.xlane.xlu0 %3315
    %3317 = vmax.xlane.f32.xlu0 %v3148
    %v3318 = vpop.xlane.xlu0 %3317
    %3319 = vmax.xlane.f32.xlu0 %v3149
    %v3320 = vpop.xlane.xlu0 %3319
    %3321 = vmax.xlane.f32.xlu0 %v3150
    %v3322 = vpop.xlane.xlu0 %3321
    %3323 = vmax.xlane.f32.xlu0 %v3151
    %v3324 = vpop.xlane.xlu0 %3323
    %3325 = vmax.xlane.f32.xlu0 %v3152
    %v3326 = vpop.xlane.xlu0 %3325
    %3327 = vmax.xlane.f32.xlu0 %v3153
    %v3328 = vpop.xlane.xlu0 %3327
    %3329 = vmax.xlane.f32.xlu0 %v3154
    %v3330 = vpop.xlane.xlu0 %3329
    %3331 = vmax.xlane.f32.xlu0 %v3155
    %v3332 = vpop.xlane.xlu0 %3331
    %3333 = vmax.xlane.f32.xlu0 %v3156
    %v3334 = vpop.xlane.xlu0 %3333
    %3335 = vmax.xlane.f32.xlu0 %v3157
    %v3336 = vpop.xlane.xlu0 %3335
    %3337 = vmax.xlane.f32.xlu0 %v3158
    %v3338 = vpop.xlane.xlu0 %3337
    %3339 = vmax.xlane.f32.xlu0 %v3159
    %v3340 = vpop.xlane.xlu0 %3339
    %3341 = vmax.xlane.f32.xlu0 %v3160
    %v3342 = vpop.xlane.xlu0 %3341
    %3343 = vmax.xlane.f32.xlu0 %v3161
    %v3344 = vpop.xlane.xlu0 %3343
    %3345 = vmax.xlane.f32.xlu0 %v3162
    %v3346 = vpop.xlane.xlu0 %3345
    %3347 = vmax.xlane.f32.xlu0 %v3163
    %v3348 = vpop.xlane.xlu0 %3347
    %3349 = vmax.xlane.f32.xlu0 %v3164
    %v3350 = vpop.xlane.xlu0 %3349
    %3351 = vmax.xlane.f32.xlu0 %v3165
    %v3352 = vpop.xlane.xlu0 %3351
    %3353 = vmax.xlane.f32.xlu0 %v3166
    %v3354 = vpop.xlane.xlu0 %3353
    %3355 = vmax.xlane.f32.xlu0 %v3167
    %v3356 = vpop.xlane.xlu0 %3355
    %3357 = vmax.xlane.f32.xlu0 %v3168
    %v3358 = vpop.xlane.xlu0 %3357
    %3359 = vmax.xlane.f32.xlu0 %v3169
    %v3360 = vpop.xlane.xlu0 %3359
    %3361 = vmax.xlane.f32.xlu0 %v3170
    %v3362 = vpop.xlane.xlu0 %3361
    %3363 = vmax.xlane.f32.xlu0 %v3171
    %v3364 = vpop.xlane.xlu0 %3363
    %3365 = vmax.xlane.f32.xlu0 %v3172
    %v3366 = vpop.xlane.xlu0 %3365
    %3367 = vmax.xlane.f32.xlu0 %v3173
    %v3368 = vpop.xlane.xlu0 %3367
    %3369 = vmax.xlane.f32.xlu0 %v3174
    %v3370 = vpop.xlane.xlu0 %3369
    %3371 = vmax.xlane.f32.xlu0 %v3175
    %v3372 = vpop.xlane.xlu0 %3371
    %3373 = vmax.xlane.f32.xlu0 %v3176
    %v3374 = vpop.xlane.xlu0 %3373
    %3375 = vmax.xlane.f32.xlu0 %v3177
    %v3376 = vpop.xlane.xlu0 %3375
    %3377 = vmax.xlane.f32.xlu0 %v3178
    %v3378 = vpop.xlane.xlu0 %3377
    %3379 = vmax.xlane.f32.xlu0 %v3179
    %v3380 = vpop.xlane.xlu0 %3379
    %3381 = vmax.xlane.f32.xlu0 %v3180
    %v3382 = vpop.xlane.xlu0 %3381
    %3383 = vmax.xlane.f32.xlu0 %v3181
    %v3384 = vpop.xlane.xlu0 %3383
    %3385 = vmax.xlane.f32.xlu0 %v3182
    %v3386 = vpop.xlane.xlu0 %3385
    %3387 = vmax.xlane.f32.xlu0 %v3183
    %v3388 = vpop.xlane.xlu0 %3387
    %3389 = vmax.xlane.f32.xlu0 %v3184
    %v3390 = vpop.xlane.xlu0 %3389
    %3391 = vmax.xlane.f32.xlu0 %v3185
    %v3392 = vpop.xlane.xlu0 %3391
    %3393 = vmax.xlane.f32.xlu0 %v3186
    %v3394 = vpop.xlane.xlu0 %3393
    %3395 = vmax.xlane.f32.xlu0 %v3187
    %v3396 = vpop.xlane.xlu0 %3395
    %3397 = vmax.xlane.f32.xlu0 %v3188
    %v3398 = vpop.xlane.xlu0 %3397
    %3399 = vmax.xlane.f32.xlu0 %v3189
    %v3400 = vpop.xlane.xlu0 %3399
    %3401 = vmax.xlane.f32.xlu0 %v3190
    %v3402 = vpop.xlane.xlu0 %3401
    %3403 = vmax.xlane.f32.xlu0 %v3191
    %v3404 = vpop.xlane.xlu0 %3403
    %3405 = vmax.xlane.f32.xlu0 %v3192
    %v3406 = vpop.xlane.xlu0 %3405
    %3407 = vmax.xlane.f32.xlu0 %v3193
    %v3408 = vpop.xlane.xlu0 %3407
    %3409 = vmax.xlane.f32.xlu0 %v3194
    %v3410 = vpop.xlane.xlu0 %3409
    %3411 = vmax.xlane.f32.xlu0 %v3195
    %v3412 = vpop.xlane.xlu0 %3411
    %3413 = vmax.xlane.f32.xlu0 %v3196
    %v3414 = vpop.xlane.xlu0 %3413
    %3415 = vmax.xlane.f32.xlu0 %v3197
    %v3416 = vpop.xlane.xlu0 %3415
    %3417 = vmax.xlane.f32.xlu0 %v3198
    %v3418 = vpop.xlane.xlu0 %3417
    %3419 = vmax.xlane.f32.xlu0 %v3199
    %v3420 = vpop.xlane.xlu0 %3419
    %3421 = vmax.xlane.f32.xlu0 %v3200
    %v3422 = vpop.xlane.xlu0 %3421
    %3423 = vmax.xlane.f32.xlu0 %v3201
    %v3424 = vpop.xlane.xlu0 %3423
    %3425 = vmax.xlane.f32.xlu0 %v3202
    %v3426 = vpop.xlane.xlu0 %3425
    %3427 = vmax.xlane.f32.xlu0 %v3203
    %v3428 = vpop.xlane.xlu0 %3427
    %3429 = vmax.xlane.f32.xlu0 %v3204
    %v3430 = vpop.xlane.xlu0 %3429
    %3431 = vmax.xlane.f32.xlu0 %v3205
    %v3432 = vpop.xlane.xlu0 %3431
    %3433 = vmax.xlane.f32.xlu0 %v3206
    %v3434 = vpop.xlane.xlu0 %3433
    %3435 = vmax.xlane.f32.xlu0 %v3207
    %v3436 = vpop.xlane.xlu0 %3435
    %3437 = vmax.xlane.f32.xlu0 %v3208
    %v3438 = vpop.xlane.xlu0 %3437
    %3439 = vmax.xlane.f32.xlu0 %v3209
    %v3440 = vpop.xlane.xlu0 %3439
    %3441 = vmax.xlane.f32.xlu0 %v3210
    %v3442 = vpop.xlane.xlu0 %3441
    %3443 = vmax.xlane.f32.xlu0 %v3211
    %v3444 = vpop.xlane.xlu0 %3443
    %3445 = vmax.xlane.f32.xlu0 %v3212
    %v3446 = vpop.xlane.xlu0 %3445
    %3447 = vmax.xlane.f32.xlu0 %v3213
    %v3448 = vpop.xlane.xlu0 %3447
    %3449 = vmax.xlane.f32.xlu0 %v3214
    %v3450 = vpop.xlane.xlu0 %3449
    %3451 = vmax.xlane.f32.xlu0 %v3215
    %v3452 = vpop.xlane.xlu0 %3451
    %3453 = vmax.xlane.f32.xlu0 %v3216
    %v3454 = vpop.xlane.xlu0 %3453
    %3455 = vmax.xlane.f32.xlu0 %v3217
    %v3456 = vpop.xlane.xlu0 %3455
    %3457 = vmax.xlane.f32.xlu0 %v3218
    %v3458 = vpop.xlane.xlu0 %3457
    %3459 = vmax.xlane.f32.xlu0 %v3219
    %v3460 = vpop.xlane.xlu0 %3459
    %3461 = vmax.xlane.f32.xlu0 %v3220
    %v3462 = vpop.xlane.xlu0 %3461
    %3463 = vmax.xlane.f32.xlu0 %v3221
    %v3464 = vpop.xlane.xlu0 %3463
    %3465 = vmax.xlane.f32.xlu0 %v3222
    %v3466 = vpop.xlane.xlu0 %3465
    %3467 = vmax.xlane.f32.xlu0 %v3223
    %v3468 = vpop.xlane.xlu0 %3467
    %3469 = vmax.xlane.f32.xlu0 %v3224
    %v3470 = vpop.xlane.xlu0 %3469
    %3471 = vmax.xlane.f32.xlu0 %v3225
    %v3472 = vpop.xlane.xlu0 %3471
    %3473 = vmax.xlane.f32.xlu0 %v3226
    %v3474 = vpop.xlane.xlu0 %3473
    %3475 = vmax.xlane.f32.xlu0 %v3227
    %v3476 = vpop.xlane.xlu0 %3475
    %3477 = vmax.xlane.f32.xlu0 %v3228
    %v3478 = vpop.xlane.xlu0 %3477
    %3479 = vmax.xlane.f32.xlu0 %v3229
    %v3480 = vpop.xlane.xlu0 %3479
    %3481 = vmax.xlane.f32.xlu0 %v3230
    %v3482 = vpop.xlane.xlu0 %3481
    %3483 = vmax.xlane.f32.xlu0 %v3231
    %v3484 = vpop.xlane.xlu0 %3483
    %3485 = vmax.xlane.f32.xlu0 %v3232
    %v3486 = vpop.xlane.xlu0 %3485
    %3487 = vmax.xlane.f32.xlu0 %v3233
    %v3488 = vpop.xlane.xlu0 %3487
    %3489 = vmax.xlane.f32.xlu0 %v3234
    %v3490 = vpop.xlane.xlu0 %3489
    %v3619 = vadd.s32 %v2442, 4294967288
    %v3620 = vlaneseq
    %v3621 = vshrl.u32 %v3620, 7
    %v3622 = vsub.s32 %v3619, %v3621
    %v3623 = vrot.slane %v3236, %v3622
    %v3624 = vlaneseq
    %v3625 = vshrl.u32 %v3624, 7
    %v3626 = vsub.s32 %v3619, %v3625
    %v3627 = vrot.slane %v3238, %v3626
    %v3628 = vlaneseq
    %v3629 = vshrl.u32 %v3628, 7
    %v3630 = vsub.s32 %v3619, %v3629
    %v3631 = vrot.slane %v3240, %v3630
    %v3632 = vlaneseq
    %v3633 = vshrl.u32 %v3632, 7
    %v3634 = vsub.s32 %v3619, %v3633
    %v3635 = vrot.slane %v3242, %v3634
    %v3636 = vlaneseq
    %v3637 = vshrl.u32 %v3636, 7
    %v3638 = vsub.s32 %v3619, %v3637
    %v3639 = vrot.slane %v3244, %v3638
    %v3640 = vlaneseq
    %v3641 = vshrl.u32 %v3640, 7
    %v3642 = vsub.s32 %v3619, %v3641
    %v3643 = vrot.slane %v3246, %v3642
    %v3644 = vlaneseq
    %v3645 = vshrl.u32 %v3644, 7
    %v3646 = vsub.s32 %v3619, %v3645
    %v3647 = vrot.slane %v3248, %v3646
    %v3648 = vlaneseq
    %v3649 = vshrl.u32 %v3648, 7
    %v3650 = vsub.s32 %v3619, %v3649
    %v3651 = vrot.slane %v3250, %v3650
    %v3652 = vlaneseq
    %v3653 = vshrl.u32 %v3652, 7
    %v3654 = vsub.s32 %v3619, %v3653
    %v3655 = vrot.slane %v3252, %v3654
    %v3656 = vlaneseq
    %v3657 = vshrl.u32 %v3656, 7
    %v3658 = vsub.s32 %v3619, %v3657
    %v3659 = vrot.slane %v3254, %v3658
    %v3660 = vlaneseq
    %v3661 = vshrl.u32 %v3660, 7
    %v3662 = vsub.s32 %v3619, %v3661
    %v3663 = vrot.slane %v3256, %v3662
    %v3664 = vlaneseq
    %v3665 = vshrl.u32 %v3664, 7
    %v3666 = vsub.s32 %v3619, %v3665
    %v3667 = vrot.slane %v3258, %v3666
    %v3668 = vlaneseq
    %v3669 = vshrl.u32 %v3668, 7
    %v3670 = vsub.s32 %v3619, %v3669
    %v3671 = vrot.slane %v3260, %v3670
    %v3672 = vlaneseq
    %v3673 = vshrl.u32 %v3672, 7
    %v3674 = vsub.s32 %v3619, %v3673
    %v3675 = vrot.slane %v3262, %v3674
    %v3676 = vlaneseq
    %v3677 = vshrl.u32 %v3676, 7
    %v3678 = vsub.s32 %v3619, %v3677
    %v3679 = vrot.slane %v3264, %v3678
    %v3680 = vlaneseq
    %v3681 = vshrl.u32 %v3680, 7
    %v3682 = vsub.s32 %v3619, %v3681
    %v3683 = vrot.slane %v3266, %v3682
    %v3684 = vlaneseq
    %v3685 = vshrl.u32 %v3684, 7
    %v3686 = vsub.s32 %v3619, %v3685
    %v3687 = vrot.slane %v3268, %v3686
    %v3688 = vlaneseq
    %v3689 = vshrl.u32 %v3688, 7
    %v3690 = vsub.s32 %v3619, %v3689
    %v3691 = vrot.slane %v3270, %v3690
    %v3692 = vlaneseq
    %v3693 = vshrl.u32 %v3692, 7
    %v3694 = vsub.s32 %v3619, %v3693
    %v3695 = vrot.slane %v3272, %v3694
    %v3696 = vlaneseq
    %v3697 = vshrl.u32 %v3696, 7
    %v3698 = vsub.s32 %v3619, %v3697
    %v3699 = vrot.slane %v3274, %v3698
    %v3700 = vlaneseq
    %v3701 = vshrl.u32 %v3700, 7
    %v3702 = vsub.s32 %v3619, %v3701
    %v3703 = vrot.slane %v3276, %v3702
    %v3704 = vlaneseq
    %v3705 = vshrl.u32 %v3704, 7
    %v3706 = vsub.s32 %v3619, %v3705
    %v3707 = vrot.slane %v3278, %v3706
    %v3708 = vlaneseq
    %v3709 = vshrl.u32 %v3708, 7
    %v3710 = vsub.s32 %v3619, %v3709
    %v3711 = vrot.slane %v3280, %v3710
    %v3712 = vlaneseq
    %v3713 = vshrl.u32 %v3712, 7
    %v3714 = vsub.s32 %v3619, %v3713
    %v3715 = vrot.slane %v3282, %v3714
    %v3716 = vlaneseq
    %v3717 = vshrl.u32 %v3716, 7
    %v3718 = vsub.s32 %v3619, %v3717
    %v3719 = vrot.slane %v3284, %v3718
    %v3720 = vlaneseq
    %v3721 = vshrl.u32 %v3720, 7
    %v3722 = vsub.s32 %v3619, %v3721
    %v3723 = vrot.slane %v3286, %v3722
    %v3724 = vlaneseq
    %v3725 = vshrl.u32 %v3724, 7
    %v3726 = vsub.s32 %v3619, %v3725
    %v3727 = vrot.slane %v3288, %v3726
    %v3728 = vlaneseq
    %v3729 = vshrl.u32 %v3728, 7
    %v3730 = vsub.s32 %v3619, %v3729
    %v3731 = vrot.slane %v3290, %v3730
    %v3732 = vlaneseq
    %v3733 = vshrl.u32 %v3732, 7
    %v3734 = vsub.s32 %v3619, %v3733
    %v3735 = vrot.slane %v3292, %v3734
    %v3736 = vlaneseq
    %v3737 = vshrl.u32 %v3736, 7
    %v3738 = vsub.s32 %v3619, %v3737
    %v3739 = vrot.slane %v3294, %v3738
    %v3740 = vlaneseq
    %v3741 = vshrl.u32 %v3740, 7
    %v3742 = vsub.s32 %v3619, %v3741
    %v3743 = vrot.slane %v3296, %v3742
    %v3744 = vlaneseq
    %v3745 = vshrl.u32 %v3744, 7
    %v3746 = vsub.s32 %v3619, %v3745
    %v3747 = vrot.slane %v3298, %v3746
    %v3748 = vlaneseq
    %v3749 = vshrl.u32 %v3748, 7
    %v3750 = vsub.s32 %v3619, %v3749
    %v3751 = vrot.slane %v3300, %v3750
    %v3752 = vlaneseq
    %v3753 = vshrl.u32 %v3752, 7
    %v3754 = vsub.s32 %v3619, %v3753
    %v3755 = vrot.slane %v3302, %v3754
    %v3756 = vlaneseq
    %v3757 = vshrl.u32 %v3756, 7
    %v3758 = vsub.s32 %v3619, %v3757
    %v3759 = vrot.slane %v3304, %v3758
    %v3760 = vlaneseq
    %v3761 = vshrl.u32 %v3760, 7
    %v3762 = vsub.s32 %v3619, %v3761
    %v3763 = vrot.slane %v3306, %v3762
    %v3764 = vlaneseq
    %v3765 = vshrl.u32 %v3764, 7
    %v3766 = vsub.s32 %v3619, %v3765
    %v3767 = vrot.slane %v3308, %v3766
    %v3768 = vlaneseq
    %v3769 = vshrl.u32 %v3768, 7
    %v3770 = vsub.s32 %v3619, %v3769
    %v3771 = vrot.slane %v3310, %v3770
    %v3772 = vlaneseq
    %v3773 = vshrl.u32 %v3772, 7
    %v3774 = vsub.s32 %v3619, %v3773
    %v3775 = vrot.slane %v3312, %v3774
    %v3776 = vlaneseq
    %v3777 = vshrl.u32 %v3776, 7
    %v3778 = vsub.s32 %v3619, %v3777
    %v3779 = vrot.slane %v3314, %v3778
    %v3780 = vlaneseq
    %v3781 = vshrl.u32 %v3780, 7
    %v3782 = vsub.s32 %v3619, %v3781
    %v3783 = vrot.slane %v3316, %v3782
    %v3784 = vlaneseq
    %v3785 = vshrl.u32 %v3784, 7
    %v3786 = vsub.s32 %v3619, %v3785
    %v3787 = vrot.slane %v3318, %v3786
    %v3788 = vlaneseq
    %v3789 = vshrl.u32 %v3788, 7
    %v3790 = vsub.s32 %v3619, %v3789
    %v3791 = vrot.slane %v3320, %v3790
    %v3792 = vlaneseq
    %v3793 = vshrl.u32 %v3792, 7
    %v3794 = vsub.s32 %v3619, %v3793
    %v3795 = vrot.slane %v3322, %v3794
    %v3796 = vlaneseq
    %v3797 = vshrl.u32 %v3796, 7
    %v3798 = vsub.s32 %v3619, %v3797
    %v3799 = vrot.slane %v3324, %v3798
    %v3800 = vlaneseq
    %v3801 = vshrl.u32 %v3800, 7
    %v3802 = vsub.s32 %v3619, %v3801
    %v3803 = vrot.slane %v3326, %v3802
    %v3804 = vlaneseq
    %v3805 = vshrl.u32 %v3804, 7
    %v3806 = vsub.s32 %v3619, %v3805
    %v3807 = vrot.slane %v3328, %v3806
    %v3808 = vlaneseq
    %v3809 = vshrl.u32 %v3808, 7
    %v3810 = vsub.s32 %v3619, %v3809
    %v3811 = vrot.slane %v3330, %v3810
    %v3812 = vlaneseq
    %v3813 = vshrl.u32 %v3812, 7
    %v3814 = vsub.s32 %v3619, %v3813
    %v3815 = vrot.slane %v3332, %v3814
    %v3816 = vlaneseq
    %v3817 = vshrl.u32 %v3816, 7
    %v3818 = vsub.s32 %v3619, %v3817
    %v3819 = vrot.slane %v3334, %v3818
    %v3820 = vlaneseq
    %v3821 = vshrl.u32 %v3820, 7
    %v3822 = vsub.s32 %v3619, %v3821
    %v3823 = vrot.slane %v3336, %v3822
    %v3824 = vlaneseq
    %v3825 = vshrl.u32 %v3824, 7
    %v3826 = vsub.s32 %v3619, %v3825
    %v3827 = vrot.slane %v3338, %v3826
    %v3828 = vlaneseq
    %v3829 = vshrl.u32 %v3828, 7
    %v3830 = vsub.s32 %v3619, %v3829
    %v3831 = vrot.slane %v3340, %v3830
    %v3832 = vlaneseq
    %v3833 = vshrl.u32 %v3832, 7
    %v3834 = vsub.s32 %v3619, %v3833
    %v3835 = vrot.slane %v3342, %v3834
    %v3836 = vlaneseq
    %v3837 = vshrl.u32 %v3836, 7
    %v3838 = vsub.s32 %v3619, %v3837
    %v3839 = vrot.slane %v3344, %v3838
    %v3840 = vlaneseq
    %v3841 = vshrl.u32 %v3840, 7
    %v3842 = vsub.s32 %v3619, %v3841
    %v3843 = vrot.slane %v3346, %v3842
    %v3844 = vlaneseq
    %v3845 = vshrl.u32 %v3844, 7
    %v3846 = vsub.s32 %v3619, %v3845
    %v3847 = vrot.slane %v3348, %v3846
    %v3848 = vlaneseq
    %v3849 = vshrl.u32 %v3848, 7
    %v3850 = vsub.s32 %v3619, %v3849
    %v3851 = vrot.slane %v3350, %v3850
    %v3852 = vlaneseq
    %v3853 = vshrl.u32 %v3852, 7
    %v3854 = vsub.s32 %v3619, %v3853
    %v3855 = vrot.slane %v3352, %v3854
    %v3856 = vlaneseq
    %v3857 = vshrl.u32 %v3856, 7
    %v3858 = vsub.s32 %v3619, %v3857
    %v3859 = vrot.slane %v3354, %v3858
    %v3860 = vlaneseq
    %v3861 = vshrl.u32 %v3860, 7
    %v3862 = vsub.s32 %v3619, %v3861
    %v3863 = vrot.slane %v3356, %v3862
    %v3864 = vlaneseq
    %v3865 = vshrl.u32 %v3864, 7
    %v3866 = vsub.s32 %v3619, %v3865
    %v3867 = vrot.slane %v3358, %v3866
    %v3868 = vlaneseq
    %v3869 = vshrl.u32 %v3868, 7
    %v3870 = vsub.s32 %v3619, %v3869
    %v3871 = vrot.slane %v3360, %v3870
    %v3872 = vlaneseq
    %v3873 = vshrl.u32 %v3872, 7
    %v3874 = vsub.s32 %v3619, %v3873
    %v3875 = vrot.slane %v3362, %v3874
    %v3876 = vlaneseq
    %v3877 = vshrl.u32 %v3876, 7
    %v3878 = vsub.s32 %v3619, %v3877
    %v3879 = vrot.slane %v3364, %v3878
    %v3880 = vlaneseq
    %v3881 = vshrl.u32 %v3880, 7
    %v3882 = vsub.s32 %v3619, %v3881
    %v3883 = vrot.slane %v3366, %v3882
    %v3884 = vlaneseq
    %v3885 = vshrl.u32 %v3884, 7
    %v3886 = vsub.s32 %v3619, %v3885
    %v3887 = vrot.slane %v3368, %v3886
    %v3888 = vlaneseq
    %v3889 = vshrl.u32 %v3888, 7
    %v3890 = vsub.s32 %v3619, %v3889
    %v3891 = vrot.slane %v3370, %v3890
    %v3892 = vlaneseq
    %v3893 = vshrl.u32 %v3892, 7
    %v3894 = vsub.s32 %v3619, %v3893
    %v3895 = vrot.slane %v3372, %v3894
    %v3896 = vlaneseq
    %v3897 = vshrl.u32 %v3896, 7
    %v3898 = vsub.s32 %v3619, %v3897
    %v3899 = vrot.slane %v3374, %v3898
    %v3900 = vlaneseq
    %v3901 = vshrl.u32 %v3900, 7
    %v3902 = vsub.s32 %v3619, %v3901
    %v3903 = vrot.slane %v3376, %v3902
    %v3904 = vlaneseq
    %v3905 = vshrl.u32 %v3904, 7
    %v3906 = vsub.s32 %v3619, %v3905
    %v3907 = vrot.slane %v3378, %v3906
    %v3908 = vlaneseq
    %v3909 = vshrl.u32 %v3908, 7
    %v3910 = vsub.s32 %v3619, %v3909
    %v3911 = vrot.slane %v3380, %v3910
    %v3912 = vlaneseq
    %v3913 = vshrl.u32 %v3912, 7
    %v3914 = vsub.s32 %v3619, %v3913
    %v3915 = vrot.slane %v3382, %v3914
    %v3916 = vlaneseq
    %v3917 = vshrl.u32 %v3916, 7
    %v3918 = vsub.s32 %v3619, %v3917
    %v3919 = vrot.slane %v3384, %v3918
    %v3920 = vlaneseq
    %v3921 = vshrl.u32 %v3920, 7
    %v3922 = vsub.s32 %v3619, %v3921
    %v3923 = vrot.slane %v3386, %v3922
    %v3924 = vlaneseq
    %v3925 = vshrl.u32 %v3924, 7
    %v3926 = vsub.s32 %v3619, %v3925
    %v3927 = vrot.slane %v3388, %v3926
    %v3928 = vlaneseq
    %v3929 = vshrl.u32 %v3928, 7
    %v3930 = vsub.s32 %v3619, %v3929
    %v3931 = vrot.slane %v3390, %v3930
    %v3932 = vlaneseq
    %v3933 = vshrl.u32 %v3932, 7
    %v3934 = vsub.s32 %v3619, %v3933
    %v3935 = vrot.slane %v3392, %v3934
    %v3936 = vlaneseq
    %v3937 = vshrl.u32 %v3936, 7
    %v3938 = vsub.s32 %v3619, %v3937
    %v3939 = vrot.slane %v3394, %v3938
    %v3940 = vlaneseq
    %v3941 = vshrl.u32 %v3940, 7
    %v3942 = vsub.s32 %v3619, %v3941
    %v3943 = vrot.slane %v3396, %v3942
    %v3944 = vlaneseq
    %v3945 = vshrl.u32 %v3944, 7
    %v3946 = vsub.s32 %v3619, %v3945
    %v3947 = vrot.slane %v3398, %v3946
    %v3948 = vlaneseq
    %v3949 = vshrl.u32 %v3948, 7
    %v3950 = vsub.s32 %v3619, %v3949
    %v3951 = vrot.slane %v3400, %v3950
    %v3952 = vlaneseq
    %v3953 = vshrl.u32 %v3952, 7
    %v3954 = vsub.s32 %v3619, %v3953
    %v3955 = vrot.slane %v3402, %v3954
    %v3956 = vlaneseq
    %v3957 = vshrl.u32 %v3956, 7
    %v3958 = vsub.s32 %v3619, %v3957
    %v3959 = vrot.slane %v3404, %v3958
    %v3960 = vlaneseq
    %v3961 = vshrl.u32 %v3960, 7
    %v3962 = vsub.s32 %v3619, %v3961
    %v3963 = vrot.slane %v3406, %v3962
    %v3964 = vlaneseq
    %v3965 = vshrl.u32 %v3964, 7
    %v3966 = vsub.s32 %v3619, %v3965
    %v3967 = vrot.slane %v3408, %v3966
    %v3968 = vlaneseq
    %v3969 = vshrl.u32 %v3968, 7
    %v3970 = vsub.s32 %v3619, %v3969
    %v3971 = vrot.slane %v3410, %v3970
    %v3972 = vlaneseq
    %v3973 = vshrl.u32 %v3972, 7
    %v3974 = vsub.s32 %v3619, %v3973
    %v3975 = vrot.slane %v3412, %v3974
    %v3976 = vlaneseq
    %v3977 = vshrl.u32 %v3976, 7
    %v3978 = vsub.s32 %v3619, %v3977
    %v3979 = vrot.slane %v3414, %v3978
    %v3980 = vlaneseq
    %v3981 = vshrl.u32 %v3980, 7
    %v3982 = vsub.s32 %v3619, %v3981
    %v3983 = vrot.slane %v3416, %v3982
    %v3984 = vlaneseq
    %v3985 = vshrl.u32 %v3984, 7
    %v3986 = vsub.s32 %v3619, %v3985
    %v3987 = vrot.slane %v3418, %v3986
    %v3988 = vlaneseq
    %v3989 = vshrl.u32 %v3988, 7
    %v3990 = vsub.s32 %v3619, %v3989
    %v3991 = vrot.slane %v3420, %v3990
    %v3992 = vlaneseq
    %v3993 = vshrl.u32 %v3992, 7
    %v3994 = vsub.s32 %v3619, %v3993
    %v3995 = vrot.slane %v3422, %v3994
    %v3996 = vlaneseq
    %v3997 = vshrl.u32 %v3996, 7
    %v3998 = vsub.s32 %v3619, %v3997
    %v3999 = vrot.slane %v3424, %v3998
    %v4000 = vlaneseq
    %v4001 = vshrl.u32 %v4000, 7
    %v4002 = vsub.s32 %v3619, %v4001
    %v4003 = vrot.slane %v3426, %v4002
    %v4004 = vlaneseq
    %v4005 = vshrl.u32 %v4004, 7
    %v4006 = vsub.s32 %v3619, %v4005
    %v4007 = vrot.slane %v3428, %v4006
    %v4008 = vlaneseq
    %v4009 = vshrl.u32 %v4008, 7
    %v4010 = vsub.s32 %v3619, %v4009
    %v4011 = vrot.slane %v3430, %v4010
    %v4012 = vlaneseq
    %v4013 = vshrl.u32 %v4012, 7
    %v4014 = vsub.s32 %v3619, %v4013
    %v4015 = vrot.slane %v3432, %v4014
    %v4016 = vlaneseq
    %v4017 = vshrl.u32 %v4016, 7
    %v4018 = vsub.s32 %v3619, %v4017
    %v4019 = vrot.slane %v3434, %v4018
    %v4020 = vlaneseq
    %v4021 = vshrl.u32 %v4020, 7
    %v4022 = vsub.s32 %v3619, %v4021
    %v4023 = vrot.slane %v3436, %v4022
    %v4024 = vlaneseq
    %v4025 = vshrl.u32 %v4024, 7
    %v4026 = vsub.s32 %v3619, %v4025
    %v4027 = vrot.slane %v3438, %v4026
    %v4028 = vlaneseq
    %v4029 = vshrl.u32 %v4028, 7
    %v4030 = vsub.s32 %v3619, %v4029
    %v4031 = vrot.slane %v3440, %v4030
    %v4032 = vlaneseq
    %v4033 = vshrl.u32 %v4032, 7
    %v4034 = vsub.s32 %v3619, %v4033
    %v4035 = vrot.slane %v3442, %v4034
    %v4036 = vlaneseq
    %v4037 = vshrl.u32 %v4036, 7
    %v4038 = vsub.s32 %v3619, %v4037
    %v4039 = vrot.slane %v3444, %v4038
    %v4040 = vlaneseq
    %v4041 = vshrl.u32 %v4040, 7
    %v4042 = vsub.s32 %v3619, %v4041
    %v4043 = vrot.slane %v3446, %v4042
    %v4044 = vlaneseq
    %v4045 = vshrl.u32 %v4044, 7
    %v4046 = vsub.s32 %v3619, %v4045
    %v4047 = vrot.slane %v3448, %v4046
    %v4048 = vlaneseq
    %v4049 = vshrl.u32 %v4048, 7
    %v4050 = vsub.s32 %v3619, %v4049
    %v4051 = vrot.slane %v3450, %v4050
    %v4052 = vlaneseq
    %v4053 = vshrl.u32 %v4052, 7
    %v4054 = vsub.s32 %v3619, %v4053
    %v4055 = vrot.slane %v3452, %v4054
    %v4056 = vlaneseq
    %v4057 = vshrl.u32 %v4056, 7
    %v4058 = vsub.s32 %v3619, %v4057
    %v4059 = vrot.slane %v3454, %v4058
    %v4060 = vlaneseq
    %v4061 = vshrl.u32 %v4060, 7
    %v4062 = vsub.s32 %v3619, %v4061
    %v4063 = vrot.slane %v3456, %v4062
    %v4064 = vlaneseq
    %v4065 = vshrl.u32 %v4064, 7
    %v4066 = vsub.s32 %v3619, %v4065
    %v4067 = vrot.slane %v3458, %v4066
    %v4068 = vlaneseq
    %v4069 = vshrl.u32 %v4068, 7
    %v4070 = vsub.s32 %v3619, %v4069
    %v4071 = vrot.slane %v3460, %v4070
    %v4072 = vlaneseq
    %v4073 = vshrl.u32 %v4072, 7
    %v4074 = vsub.s32 %v3619, %v4073
    %v4075 = vrot.slane %v3462, %v4074
    %v4076 = vlaneseq
    %v4077 = vshrl.u32 %v4076, 7
    %v4078 = vsub.s32 %v3619, %v4077
    %v4079 = vrot.slane %v3464, %v4078
    %v4080 = vlaneseq
    %v4081 = vshrl.u32 %v4080, 7
    %v4082 = vsub.s32 %v3619, %v4081
    %v4083 = vrot.slane %v3466, %v4082
    %v4084 = vlaneseq
    %v4085 = vshrl.u32 %v4084, 7
    %v4086 = vsub.s32 %v3619, %v4085
    %v4087 = vrot.slane %v3468, %v4086
    %v4088 = vlaneseq
    %v4089 = vshrl.u32 %v4088, 7
    %v4090 = vsub.s32 %v3619, %v4089
    %v4091 = vrot.slane %v3470, %v4090
    %v4092 = vlaneseq
    %v4093 = vshrl.u32 %v4092, 7
    %v4094 = vsub.s32 %v3619, %v4093
    %v4095 = vrot.slane %v3472, %v4094
    %v4096 = vlaneseq
    %v4097 = vshrl.u32 %v4096, 7
    %v4098 = vsub.s32 %v3619, %v4097
    %v4099 = vrot.slane %v3474, %v4098
    %v4100 = vlaneseq
    %v4101 = vshrl.u32 %v4100, 7
    %v4102 = vsub.s32 %v3619, %v4101
    %v4103 = vrot.slane %v3476, %v4102
    %v4104 = vlaneseq
    %v4105 = vshrl.u32 %v4104, 7
    %v4106 = vsub.s32 %v3619, %v4105
    %v4107 = vrot.slane %v3478, %v4106
    %v4108 = vlaneseq
    %v4109 = vshrl.u32 %v4108, 7
    %v4110 = vsub.s32 %v3619, %v4109
    %v4111 = vrot.slane %v3480, %v4110
    %v4112 = vlaneseq
    %v4113 = vshrl.u32 %v4112, 7
    %v4114 = vsub.s32 %v3619, %v4113
    %v4115 = vrot.slane %v3482, %v4114
    %v4116 = vlaneseq
    %v4117 = vshrl.u32 %v4116, 7
    %v4118 = vsub.s32 %v3619, %v4117
    %v4119 = vrot.slane %v3484, %v4118
    %v4120 = vlaneseq
    %v4121 = vshrl.u32 %v4120, 7
    %v4122 = vsub.s32 %v3619, %v4121
    %v4123 = vrot.slane %v3486, %v4122
    %v4124 = vlaneseq
    %v4125 = vshrl.u32 %v4124, 7
    %v4126 = vsub.s32 %v3619, %v4125
    %v4127 = vrot.slane %v3488, %v4126
    %v4128 = vlaneseq
    %v4129 = vshrl.u32 %v4128, 7
    %v4130 = vsub.s32 %v3619, %v4129
    %v4131 = vrot.slane %v3490, %v4130
    %v4132 = vsel %vm2955, %v3627, %v3623
    %v4133 = vsel %vm2957, %v3631, %v4132
    %v4134 = vsel %vm2959, %v3635, %v4133
    %v4135 = vsel %vm2961, %v3639, %v4134
    %v4136 = vsel %vm2963, %v3643, %v4135
    %v4137 = vsel %vm2965, %v3647, %v4136
    %v4138 = vsel %vm2967, %v3651, %v4137
    %v4139 = vsel %vm2955, %v3659, %v3655
    %v4140 = vsel %vm2957, %v3663, %v4139
    %v4141 = vsel %vm2959, %v3667, %v4140
    %v4142 = vsel %vm2961, %v3671, %v4141
    %v4143 = vsel %vm2963, %v3675, %v4142
    %v4144 = vsel %vm2965, %v3679, %v4143
    %v4145 = vsel %vm2967, %v3683, %v4144
    %v4146 = vsel %vm2955, %v3691, %v3687
    %v4147 = vsel %vm2957, %v3695, %v4146
    %v4148 = vsel %vm2959, %v3699, %v4147
    %v4149 = vsel %vm2961, %v3703, %v4148
    %v4150 = vsel %vm2963, %v3707, %v4149
    %v4151 = vsel %vm2965, %v3711, %v4150
    %v4152 = vsel %vm2967, %v3715, %v4151
    %v4153 = vsel %vm2955, %v3723, %v3719
    %v4154 = vsel %vm2957, %v3727, %v4153
    %v4155 = vsel %vm2959, %v3731, %v4154
    %v4156 = vsel %vm2961, %v3735, %v4155
    %v4157 = vsel %vm2963, %v3739, %v4156
    %v4158 = vsel %vm2965, %v3743, %v4157
    %v4159 = vsel %vm2967, %v3747, %v4158
    %v4160 = vsel %vm2955, %v3755, %v3751
    %v4161 = vsel %vm2957, %v3759, %v4160
    %v4162 = vsel %vm2959, %v3763, %v4161
    %v4163 = vsel %vm2961, %v3767, %v4162
    %v4164 = vsel %vm2963, %v3771, %v4163
    %v4165 = vsel %vm2965, %v3775, %v4164
    %v4166 = vsel %vm2967, %v3779, %v4165
    %v4167 = vsel %vm2955, %v3787, %v3783
    %v4168 = vsel %vm2957, %v3791, %v4167
    %v4169 = vsel %vm2959, %v3795, %v4168
    %v4170 = vsel %vm2961, %v3799, %v4169
    %v4171 = vsel %vm2963, %v3803, %v4170
    %v4172 = vsel %vm2965, %v3807, %v4171
    %v4173 = vsel %vm2967, %v3811, %v4172
    %v4174 = vsel %vm2955, %v3819, %v3815
    %v4175 = vsel %vm2957, %v3823, %v4174
    %v4176 = vsel %vm2959, %v3827, %v4175
    %v4177 = vsel %vm2961, %v3831, %v4176
    %v4178 = vsel %vm2963, %v3835, %v4177
    %v4179 = vsel %vm2965, %v3839, %v4178
    %v4180 = vsel %vm2967, %v3843, %v4179
    %v4181 = vsel %vm2955, %v3851, %v3847
    %v4182 = vsel %vm2957, %v3855, %v4181
    %v4183 = vsel %vm2959, %v3859, %v4182
    %v4184 = vsel %vm2961, %v3863, %v4183
    %v4185 = vsel %vm2963, %v3867, %v4184
    %v4186 = vsel %vm2965, %v3871, %v4185
    %v4187 = vsel %vm2967, %v3875, %v4186
    %v4188 = vsel %vm2955, %v3883, %v3879
    %v4189 = vsel %vm2957, %v3887, %v4188
    %v4190 = vsel %vm2959, %v3891, %v4189
    %v4191 = vsel %vm2961, %v3895, %v4190
    %v4192 = vsel %vm2963, %v3899, %v4191
    %v4193 = vsel %vm2965, %v3903, %v4192
    %v4194 = vsel %vm2967, %v3907, %v4193
    %v4195 = vsel %vm2955, %v3915, %v3911
    %v4196 = vsel %vm2957, %v3919, %v4195
    %v4197 = vsel %vm2959, %v3923, %v4196
    %v4198 = vsel %vm2961, %v3927, %v4197
    %v4199 = vsel %vm2963, %v3931, %v4198
    %v4200 = vsel %vm2965, %v3935, %v4199
    %v4201 = vsel %vm2967, %v3939, %v4200
    %v4202 = vsel %vm2955, %v3947, %v3943
    %v4203 = vsel %vm2957, %v3951, %v4202
    %v4204 = vsel %vm2959, %v3955, %v4203
    %v4205 = vsel %vm2961, %v3959, %v4204
    %v4206 = vsel %vm2963, %v3963, %v4205
    %v4207 = vsel %vm2965, %v3967, %v4206
    %v4208 = vsel %vm2967, %v3971, %v4207
    %v4209 = vsel %vm2955, %v3979, %v3975
    %v4210 = vsel %vm2957, %v3983, %v4209
    %v4211 = vsel %vm2959, %v3987, %v4210
    %v4212 = vsel %vm2961, %v3991, %v4211
    %v4213 = vsel %vm2963, %v3995, %v4212
    %v4214 = vsel %vm2965, %v3999, %v4213
    %v4215 = vsel %vm2967, %v4003, %v4214
    %v4216 = vsel %vm2955, %v4011, %v4007
    %v4217 = vsel %vm2957, %v4015, %v4216
    %v4218 = vsel %vm2959, %v4019, %v4217
    %v4219 = vsel %vm2961, %v4023, %v4218
    %v4220 = vsel %vm2963, %v4027, %v4219
    %v4221 = vsel %vm2965, %v4031, %v4220
    %v4222 = vsel %vm2967, %v4035, %v4221
    %v4223 = vsel %vm2955, %v4043, %v4039
    %v4224 = vsel %vm2957, %v4047, %v4223
    %v4225 = vsel %vm2959, %v4051, %v4224
    %v4226 = vsel %vm2961, %v4055, %v4225
    %v4227 = vsel %vm2963, %v4059, %v4226
    %v4228 = vsel %vm2965, %v4063, %v4227
    %v4229 = vsel %vm2967, %v4067, %v4228
    %v4230 = vsel %vm2955, %v4075, %v4071
    %v4231 = vsel %vm2957, %v4079, %v4230
    %v4232 = vsel %vm2959, %v4083, %v4231
    %v4233 = vsel %vm2961, %v4087, %v4232
    %v4234 = vsel %vm2963, %v4091, %v4233
    %v4235 = vsel %vm2965, %v4095, %v4234
    %v4236 = vsel %vm2967, %v4099, %v4235
    %v4237 = vsel %vm2955, %v4107, %v4103
    %v4238 = vsel %vm2957, %v4111, %v4237
    %v4239 = vsel %vm2959, %v4115, %v4238
    %v4240 = vsel %vm2961, %v4119, %v4239
    %v4241 = vsel %vm2963, %v4123, %v4240
    %v4242 = vsel %vm2965, %v4127, %v4241
    %v4243 = vsel %vm2967, %v4131, %v4242
    %vm4260 = vcmask 130112
    %4261 = vst.msk [vmem:[#allocation2] sm:$0xff] %vm4260, %v4138
    %4262 = vst.msk [vmem:[#allocation2 + $0x8] sm:$0xff] %vm4260, %v4145
    %4263 = vst.msk [vmem:[#allocation2 + $0x10] sm:$0xff] %vm4260, %v4152
    %4264 = vst.msk [vmem:[#allocation2 + $0x18] sm:$0xff] %vm4260, %v4159
    %4265 = vst.msk [vmem:[#allocation2 + $0x20] sm:$0xff] %vm4260, %v4166
    %4266 = vst.msk [vmem:[#allocation2 + $0x28] sm:$0xff] %vm4260, %v4173
    %4267 = vst.msk [vmem:[#allocation2 + $0x30] sm:$0xff] %vm4260, %v4180
    %4268 = vst.msk [vmem:[#allocation2 + $0x38] sm:$0xff] %vm4260, %v4187
    %4269 = vst.msk [vmem:[#allocation2 + $0x40] sm:$0xff] %vm4260, %v4194
    %4270 = vst.msk [vmem:[#allocation2 + $0x48] sm:$0xff] %vm4260, %v4201
    %4271 = vst.msk [vmem:[#allocation2 + $0x50] sm:$0xff] %vm4260, %v4208
    %4272 = vst.msk [vmem:[#allocation2 + $0x58] sm:$0xff] %vm4260, %v4215
    %4273 = vst.msk [vmem:[#allocation2 + $0x60] sm:$0xff] %vm4260, %v4222
    %4274 = vst.msk [vmem:[#allocation2 + $0x68] sm:$0xff] %vm4260, %v4229
    %4275 = vst.msk [vmem:[#allocation2 + $0x70] sm:$0xff] %vm4260, %v4236
    %4276 = vst.msk [vmem:[#allocation2 + $0x78] sm:$0xff] %vm4260, %v4243
    %s4277 = scalar_lea.vmem %s8, %s178
    %v4278 = vld [vmem:[%s4277] sm:$0xff]
    %v4279 = vld [vmem:[%s4277 + $0x8] sm:$0xff]
    %v4280 = vld [vmem:[%s4277 + $0x10] sm:$0xff]
    %v4281 = vld [vmem:[%s4277 + $0x18] sm:$0xff]
    %v4282 = vld [vmem:[%s4277 + $0x20] sm:$0xff]
    %v4283 = vld [vmem:[%s4277 + $0x28] sm:$0xff]
    %v4284 = vld [vmem:[%s4277 + $0x30] sm:$0xff]
    %v4285 = vld [vmem:[%s4277 + $0x38] sm:$0xff]
    %v4286 = vld [vmem:[%s4277 + $0x40] sm:$0xff]
    %v4287 = vld [vmem:[%s4277 + $0x48] sm:$0xff]
    %v4288 = vld [vmem:[%s4277 + $0x50] sm:$0xff]
    %v4289 = vld [vmem:[%s4277 + $0x58] sm:$0xff]
    %v4290 = vld [vmem:[%s4277 + $0x60] sm:$0xff]
    %v4291 = vld [vmem:[%s4277 + $0x68] sm:$0xff]
    %v4292 = vld [vmem:[%s4277 + $0x70] sm:$0xff]
    %v4293 = vld [vmem:[%s4277 + $0x78] sm:$0xff]
    %v4294 = vld [vmem:[#allocation2] sm:$0xff]
    %v4295 = vld [vmem:[#allocation2 + $0x8] sm:$0xff]
    %v4296 = vld [vmem:[#allocation2 + $0x10] sm:$0xff]
    %v4297 = vld [vmem:[#allocation2 + $0x18] sm:$0xff]
    %v4298 = vld [vmem:[#allocation2 + $0x20] sm:$0xff]
    %v4299 = vld [vmem:[#allocation2 + $0x28] sm:$0xff]
    %v4300 = vld [vmem:[#allocation2 + $0x30] sm:$0xff]
    %v4301 = vld [vmem:[#allocation2 + $0x38] sm:$0xff]
    %v4302 = vld [vmem:[#allocation2 + $0x40] sm:$0xff]
    %v4303 = vld [vmem:[#allocation2 + $0x48] sm:$0xff]
    %v4304 = vld [vmem:[#allocation2 + $0x50] sm:$0xff]
    %v4305 = vld [vmem:[#allocation2 + $0x58] sm:$0xff]
    %v4306 = vld [vmem:[#allocation2 + $0x60] sm:$0xff]
    %v4307 = vld [vmem:[#allocation2 + $0x68] sm:$0xff]
    %v4308 = vld [vmem:[#allocation2 + $0x70] sm:$0xff]
    %v4309 = vld [vmem:[#allocation2 + $0x78] sm:$0xff]
    %v4310 = vmax.f32 %v4278, %v4294
    %v4311 = vmax.f32 %v4279, %v4295
    %v4312 = vmax.f32 %v4280, %v4296
    %v4313 = vmax.f32 %v4281, %v4297
    %v4314 = vmax.f32 %v4282, %v4298
    %v4315 = vmax.f32 %v4283, %v4299
    %v4316 = vmax.f32 %v4284, %v4300
    %v4317 = vmax.f32 %v4285, %v4301
    %v4318 = vmax.f32 %v4286, %v4302
    %v4319 = vmax.f32 %v4287, %v4303
    %v4320 = vmax.f32 %v4288, %v4304
    %v4321 = vmax.f32 %v4289, %v4305
    %v4322 = vmax.f32 %v4290, %v4306
    %v4323 = vmax.f32 %v4291, %v4307
    %v4324 = vmax.f32 %v4292, %v4308
    %v4325 = vmax.f32 %v4293, %v4309
    %vm4326 = vcmask 130048
    %4327 = vst.msk [vmem:[%s4277] sm:$0xff] %vm4326, %v4310
    %4328 = vst.msk [vmem:[%s4277 + $0x8] sm:$0xff] %vm4326, %v4311
    %4329 = vst.msk [vmem:[%s4277 + $0x10] sm:$0xff] %vm4326, %v4312
    %4330 = vst.msk [vmem:[%s4277 + $0x18] sm:$0xff] %vm4326, %v4313
    %4331 = vst.msk [vmem:[%s4277 + $0x20] sm:$0xff] %vm4326, %v4314
    %4332 = vst.msk [vmem:[%s4277 + $0x28] sm:$0xff] %vm4326, %v4315
    %4333 = vst.msk [vmem:[%s4277 + $0x30] sm:$0xff] %vm4326, %v4316
    %4334 = vst.msk [vmem:[%s4277 + $0x38] sm:$0xff] %vm4326, %v4317
    %4335 = vst.msk [vmem:[%s4277 + $0x40] sm:$0xff] %vm4326, %v4318
    %4336 = vst.msk [vmem:[%s4277 + $0x48] sm:$0xff] %vm4326, %v4319
    %4337 = vst.msk [vmem:[%s4277 + $0x50] sm:$0xff] %vm4326, %v4320
    %4338 = vst.msk [vmem:[%s4277 + $0x58] sm:$0xff] %vm4326, %v4321
    %4339 = vst.msk [vmem:[%s4277 + $0x60] sm:$0xff] %vm4326, %v4322
    %4340 = vst.msk [vmem:[%s4277 + $0x68] sm:$0xff] %vm4326, %v4323
    %4341 = vst.msk [vmem:[%s4277 + $0x70] sm:$0xff] %vm4326, %v4324
    %4342 = vst.msk [vmem:[%s4277 + $0x78] sm:$0xff] %vm4326, %v4325
  $region30: #{self_adaptive_voxelization_forward.5} parent=0 // loop_footer
    %s175 = sadd.s32 %s173, 1
  $region31: #{self_adaptive_voxelization_forward.5} parent=0 // loop_footer_branch
    %172 = sbr.rel target = $region27
  $region32: #{self_adaptive_voxelization_forward.5} parent=0 // loop_exit
    _
  // Predicated region
  $region33: #{self_adaptive_voxelization_forward.5} parent=0 // pred_check
    _
  $region34: #{self_adaptive_voxelization_forward.5} parent=0 // pred_check_branch
    %4344 = sbr.rel (0) target = $region36
  $region35: #{self_adaptive_voxelization_forward.5} parent=0 // pred_region
    _
  $region36: #{self_adaptive_voxelization_forward.5} parent=0 // pred_fallthru
    _
  // Predicated region
  $region37: #{self_adaptive_voxelization_forward.5} parent=0 // pred_check
    _
  $region38: #{self_adaptive_voxelization_forward.5} parent=0 // pred_check_branch
    %4346 = sbr.rel (0) target = $region40
  $region39: #{self_adaptive_voxelization_forward.5} parent=0 // pred_region
    _
  $region40: #{self_adaptive_voxelization_forward.5} parent=0 // pred_fallthru
    _
  // Predicated region
  $region41: #{self_adaptive_voxelization_forward.5} parent=0 // pred_check
    _
  $region42: #{self_adaptive_voxelization_forward.5} parent=0 // pred_check_branch
    %4348 = sbr.rel (0) target = $region44
  $region43: #{self_adaptive_voxelization_forward.5} parent=0 // pred_region
    _
  $region44: #{self_adaptive_voxelization_forward.5} parent=0 // pred_fallthru
    _
  // Predicated region
  $region45: #{self_adaptive_voxelization_forward.5} parent=0 // pred_check
    _
  $region46: #{self_adaptive_voxelization_forward.5} parent=0 // pred_check_branch
    %4350 = sbr.rel (0) target = $region48
  $region47: #{self_adaptive_voxelization_forward.5} parent=0 // pred_region
    _
  $region48: #{self_adaptive_voxelization_forward.5} parent=0 // pred_fallthru
    _

// kernel: self_adaptive_voxelization_forward.7
$region0: #{self_adaptive_voxelization_forward.7}
  #allocation0 [shape = 'u32[]', space=smem, size = 0x4, offset = 0x4, fixed_abs, tag = 'smem constant byte address 0x4 - core index']
  #allocation1 [shape = 'u32[144,128]{1,0:T(1,128)}', space=vmem, size = 0x12000, scoped, tag = 'internal scratch']
  #allocation2 [shape = 'f32[128,32]{1,0:T(8,128)}', space=vmem, size = 0x10000, scoped, tag = 'scratch operand']
  #allocation3 [shape = 's32[1]{0}', space=sflag, size = 0x4, scoped, tag = 'scoped memory for self_adaptive_voxelization_forward.7']
  #allocation4 [shape = 's32[1]{0:T(128)S(6)}', space=smem, size = 0x200, scoped, tag = 'prefetched SMEM operand 0']
  #allocation5 [shape = 's32[1]{0:T(128)S(6)}', space=smem, size = 0x200, scoped, tag = 'prefetched SMEM operand 1']
  %s0 = inlined_call_operand.<no memory space> [shape: s32[1], index: 0, kind: input, shape index: {}]
  %s1 = inlined_call_operand.<no memory space> [shape: s32[1], index: 1, kind: input, shape index: {}]
  %s2 = inlined_call_operand.vmem [shape: s32[1,128], index: 2, kind: input, shape index: {}]
  %s3 = inlined_call_operand.vmem [shape: f32[16,128], index: 3, kind: input, shape index: {}]
  %s4 = inlined_call_operand.vmem [shape: f32[128,16], index: 4, kind: input, shape index: {}]
  %s5 = inlined_call_operand.vmem [shape: f32[32,16], index: 5, kind: input, shape index: {}]
  %s6 = inlined_call_operand.vmem [shape: f32[32,16], index: 6, kind: input, shape index: {}]
  %s7 = inlined_call_operand.vmem [shape: f32[32,1], index: 7, kind: input, shape index: {}]
  %s8 = inlined_call_operand.vmem [shape: f32[32,1], index: 8, kind: input, shape index: {}]
  %s9 = inlined_call_operand.vmem [shape: f32[128,32], index: 9, kind: output, shape index: {}]
  %s10 = sld [smem:[#allocation0]]
  $region49: #{self_adaptive_voxelization_forward.7} parent=0
    _
  %s12 = ssub.s32 1, %s10
  %s13 = scalar_select 0, %s12, %s10
  %14 = sst [smem:[#allocation4]] %s0
  %15 = sst [smem:[#allocation5]] %s1
  // Predicated region
  $region2: #{self_adaptive_voxelization_forward.7} parent=0 // pred_check
    _
  $region3: #{self_adaptive_voxelization_forward.7} parent=0 // pred_check_branch
    %17 = sbr.rel (0) target = $region5
  $region4: #{self_adaptive_voxelization_forward.7} parent=0 // pred_region
    _
  $region5: #{self_adaptive_voxelization_forward.7} parent=0 // pred_fallthru
    _
  // Predicated region
  $region6: #{self_adaptive_voxelization_forward.7} parent=0 // pred_check
    _
  $region7: #{self_adaptive_voxelization_forward.7} parent=0 // pred_check_branch
    %19 = sbr.rel (0) target = $region9
  $region8: #{self_adaptive_voxelization_forward.7} parent=0 // pred_region
    _
  $region9: #{self_adaptive_voxelization_forward.7} parent=0 // pred_fallthru
    _
  // Predicated region
  $region10: #{self_adaptive_voxelization_forward.7} parent=0 // pred_check
    _
  $region11: #{self_adaptive_voxelization_forward.7} parent=0 // pred_check_branch
    %21 = sbr.rel (0) target = $region13
  $region12: #{self_adaptive_voxelization_forward.7} parent=0 // pred_region
    _
  $region13: #{self_adaptive_voxelization_forward.7} parent=0 // pred_fallthru
    _
  // Predicated region
  $region14: #{self_adaptive_voxelization_forward.7} parent=0 // pred_check
    _
  $region15: #{self_adaptive_voxelization_forward.7} parent=0 // pred_check_branch
    %23 = sbr.rel (0) target = $region17
  $region16: #{self_adaptive_voxelization_forward.7} parent=0 // pred_region
    _
  $region17: #{self_adaptive_voxelization_forward.7} parent=0 // pred_fallthru
    _
  // Predicated region
  $region18: #{self_adaptive_voxelization_forward.7} parent=0 // pred_check
    _
  $region19: #{self_adaptive_voxelization_forward.7} parent=0 // pred_check_branch
    %25 = sbr.rel (0) target = $region21
  $region20: #{self_adaptive_voxelization_forward.7} parent=0 // pred_region
    _
  $region21: #{self_adaptive_voxelization_forward.7} parent=0 // pred_fallthru
    _
  // Predicated region
  $region22: #{self_adaptive_voxelization_forward.7} parent=0 // pred_check
    _
  $region23: #{self_adaptive_voxelization_forward.7} parent=0 // pred_check_branch
    %27 = sbr.rel (0) target = $region25
  $region24: #{self_adaptive_voxelization_forward.7} parent=0 // pred_region
    _
  $region25: #{self_adaptive_voxelization_forward.7} parent=0 // pred_fallthru
    _
  // Predicated region
  $region26: #{self_adaptive_voxelization_forward.7} parent=0 // pred_check
    _
  $region27: #{self_adaptive_voxelization_forward.7} parent=0 // pred_check_branch
    %29 = sbr.rel (0) target = $region29
  $region28: #{self_adaptive_voxelization_forward.7} parent=0 // pred_region
    _
  $region29: #{self_adaptive_voxelization_forward.7} parent=0 // pred_fallthru
    _
  %p30 = scmp.eq.s32.totalorder 0, 0
  // Predicated region
  $region30: #{self_adaptive_voxelization_forward.7} parent=0 // pred_check
    %p31 = pneg %p30
  $region31: #{self_adaptive_voxelization_forward.7} parent=0 // pred_check_branch
    %33 = sbr.rel (%p31) target = $region33
  $region32: #{self_adaptive_voxelization_forward.7} parent=0 // pred_region
    %vm34 = vcmask 261120
    %35 = vst.msk [vmem:[%s9] sm:$0xff] %vm34, 0.0
    %36 = vst.msk [vmem:[%s9 + $0x8] sm:$0xff] %vm34, 0.0
    %37 = vst.msk [vmem:[%s9 + $0x10] sm:$0xff] %vm34, 0.0
    %38 = vst.msk [vmem:[%s9 + $0x18] sm:$0xff] %vm34, 0.0
    %39 = vst.msk [vmem:[%s9 + $0x20] sm:$0xff] %vm34, 0.0
    %40 = vst.msk [vmem:[%s9 + $0x28] sm:$0xff] %vm34, 0.0
    %41 = vst.msk [vmem:[%s9 + $0x30] sm:$0xff] %vm34, 0.0
    %42 = vst.msk [vmem:[%s9 + $0x38] sm:$0xff] %vm34, 0.0
    %43 = vst.msk [vmem:[%s9 + $0x40] sm:$0xff] %vm34, 0.0
    %44 = vst.msk [vmem:[%s9 + $0x48] sm:$0xff] %vm34, 0.0
    %45 = vst.msk [vmem:[%s9 + $0x50] sm:$0xff] %vm34, 0.0
    %46 = vst.msk [vmem:[%s9 + $0x58] sm:$0xff] %vm34, 0.0
    %47 = vst.msk [vmem:[%s9 + $0x60] sm:$0xff] %vm34, 0.0
    %48 = vst.msk [vmem:[%s9 + $0x68] sm:$0xff] %vm34, 0.0
    %49 = vst.msk [vmem:[%s9 + $0x70] sm:$0xff] %vm34, 0.0
    %50 = vst.msk [vmem:[%s9 + $0x78] sm:$0xff] %vm34, 0.0
  $region33: #{self_adaptive_voxelization_forward.7} parent=0 // pred_fallthru
    _
  %v51 = vld [vmem:[%s5] sm:$0xff]
  %v52 = vld [vmem:[%s5 + $0x8] sm:$0xff]
  %v53 = vld [vmem:[%s5 + $0x10] sm:$0xff]
  %v54 = vld [vmem:[%s5 + $0x18] sm:$0xff]
  %v55 = vld [vmem:[%s3] sm:$0xff]
  %v56 = vld [vmem:[%s3 + $0x8] sm:$0xff]
  %v57 = vld [vmem:[%s6] sm:$0xff]
  %v58 = vld [vmem:[%s6 + $0x8] sm:$0xff]
  %v59 = vld [vmem:[%s6 + $0x10] sm:$0xff]
  %v60 = vld [vmem:[%s6 + $0x18] sm:$0xff]
  %v61 = vld [vmem:[%s4] sm:$0xff]
  %v62 = vld [vmem:[%s4 + $0x8] sm:$0xff]
  %v63 = vld [vmem:[%s4 + $0x10] sm:$0xff]
  %v64 = vld [vmem:[%s4 + $0x18] sm:$0xff]
  %v65 = vld [vmem:[%s4 + $0x20] sm:$0xff]
  %v66 = vld [vmem:[%s4 + $0x28] sm:$0xff]
  %v67 = vld [vmem:[%s4 + $0x30] sm:$0xff]
  %v68 = vld [vmem:[%s4 + $0x38] sm:$0xff]
  %v69 = vld [vmem:[%s4 + $0x40] sm:$0xff]
  %v70 = vld [vmem:[%s4 + $0x48] sm:$0xff]
  %v71 = vld [vmem:[%s4 + $0x50] sm:$0xff]
  %v72 = vld [vmem:[%s4 + $0x58] sm:$0xff]
  %v73 = vld [vmem:[%s4 + $0x60] sm:$0xff]
  %v74 = vld [vmem:[%s4 + $0x68] sm:$0xff]
  %v75 = vld [vmem:[%s4 + $0x70] sm:$0xff]
  %v76 = vld [vmem:[%s4 + $0x78] sm:$0xff]
  %vm77 = vcmask 130048
  %v79 = vsel %vm77, %v57, 0
  %v82 = vsel %vm77, %v58, 0
  %v85 = vsel %vm77, %v59, 0
  %v88 = vsel %vm77, %v60, 0
  %v91 = vsel %vm77, %v61, 0
  %v94 = vsel %vm77, %v62, 0
  %v97 = vsel %vm77, %v63, 0
  %v100 = vsel %vm77, %v64, 0
  %v103 = vsel %vm77, %v65, 0
  %v106 = vsel %vm77, %v66, 0
  %v109 = vsel %vm77, %v67, 0
  %v112 = vsel %vm77, %v68, 0
  %v115 = vsel %vm77, %v69, 0
  %v118 = vsel %vm77, %v70, 0
  %v121 = vsel %vm77, %v71, 0
  %v124 = vsel %vm77, %v72, 0
  %v127 = vsel %vm77, %v73, 0
  %v130 = vsel %vm77, %v74, 0
  %v133 = vsel %vm77, %v75, 0
  %v136 = vsel %vm77, %v76, 0
  %138 = vmatprep.subr.mxu0 0.0
  %139 = vmatpush1.xpose.msra.mxu0 %v136
  %140 = vmatprep.subr.mxu0 0.0
  %141 = vmatpush1.xpose.msra.mxu0 %v133
  %142 = vmatprep.subr.mxu0 0.0
  %143 = vmatpush1.xpose.msra.mxu0 %v130
  %144 = vmatprep.subr.mxu0 0.0
  %145 = vmatpush1.xpose.msra.mxu0 %v127
  %146 = vmatprep.subr.mxu0 0.0
  %147 = vmatpush1.xpose.msra.mxu0 %v124
  %148 = vmatprep.subr.mxu0 0.0
  %149 = vmatpush1.xpose.msra.mxu0 %v121
  %150 = vmatprep.subr.mxu0 0.0
  %151 = vmatpush1.xpose.msra.mxu0 %v118
  %152 = vmatprep.subr.mxu0 0.0
  %153 = vmatpush1.xpose.msra.mxu0 %v115
  %154 = vmatprep.subr.mxu0 0.0
  %155 = vmatpush1.xpose.msra.mxu0 %v112
  %156 = vmatprep.subr.mxu0 0.0
  %157 = vmatpush1.xpose.msra.mxu0 %v109
  %158 = vmatprep.subr.mxu0 0.0
  %159 = vmatpush1.xpose.msra.mxu0 %v106
  %160 = vmatprep.subr.mxu0 0.0
  %161 = vmatpush1.xpose.msra.mxu0 %v103
  %162 = vmatprep.subr.mxu0 0.0
  %163 = vmatpush1.xpose.msra.mxu0 %v100
  %164 = vmatprep.subr.mxu0 0.0
  %165 = vmatpush1.xpose.msra.mxu0 %v97
  %166 = vmatprep.subr.mxu0 0.0
  %167 = vmatpush1.xpose.msra.mxu0 %v94
  %168 = vmatprep.subr.mxu0 0.0
  %169 = vmatpush1.xpose.msra.mxu0 %v91
  %170 = vmatprep.subr.mxu0 0.0
  %171 = vmatpush2.xpose.msra.mxu0 0.0
  %172 = vmatprep.subr.mxu0 0.0
  %173 = vmatpush2.xpose.msra.mxu0 0.0
  %174 = vmatprep.subr.mxu0 0.0
  %175 = vmatpush2.xpose.msra.mxu0 0.0
  %176 = vmatprep.subr.mxu0 0.0
  %177 = vmatpush2.xpose.msra.mxu0 0.0
  %178 = vmatprep.subr.mxu0 0.0
  %179 = vmatpush2.xpose.msra.mxu0 0.0
  %180 = vmatprep.subr.mxu0 0.0
  %181 = vmatpush2.xpose.msra.mxu0 0.0
  %182 = vmatprep.subr.mxu0 0.0
  %183 = vmatpush2.xpose.msra.mxu0 0.0
  %184 = vmatprep.subr.mxu0 0.0
  %185 = vmatpush2.xpose.msra.mxu0 0.0
  %186 = vmatprep.subr.mxu0 0.0
  %187 = vmatpush2.xpose.msra.mxu0 0.0
  %188 = vmatprep.subr.mxu0 0.0
  %189 = vmatpush2.xpose.msra.mxu0 0.0
  %190 = vmatprep.subr.mxu0 0.0
  %191 = vmatpush2.xpose.msra.mxu0 0.0
  %192 = vmatprep.subr.mxu0 0.0
  %193 = vmatpush2.xpose.msra.mxu0 0.0
  %194 = vmatprep.subr.mxu0 0.0
  %195 = vmatpush2.xpose.msra.mxu0 0.0
  %196 = vmatprep.subr.mxu0 0.0
  %197 = vmatpush2.xpose.msra.mxu0 0.0
  %198 = vmatprep.subr.mxu0 0.0
  %199 = vmatpush2.xpose.msra.mxu0 0.0
  %200 = vmatprep.subr.mxu0 0.0
  %201 = vmatpush2.xpose.msra.mxu0 0.0
  %202 = vmatprep.mubr.f32.mxu0 0.0
  %203 = vmatmul.mubr.f32.gmra.mxu0 %v79
  %v204 = vpop.f32.mrf.mxu0
  %v205 = vadd.f32 0.0, %v204
  %v206 = vpop.f32.mrf.mxu0
  %207 = vmatprep.mubr.f32.mxu0 0.0
  %208 = vmatmul.mubr.f32.gmra.mxu0 %v82
  %v209 = vpop.f32.mrf.mxu0
  %v210 = vadd.f32 0.0, %v209
  %v211 = vpop.f32.mrf.mxu0
  %212 = vmatprep.mubr.f32.mxu0 0.0
  %213 = vmatmul.mubr.f32.gmra.mxu0 %v85
  %v214 = vpop.f32.mrf.mxu0
  %v215 = vadd.f32 0.0, %v214
  %v216 = vpop.f32.mrf.mxu0
  %217 = vmatprep.mubr.f32.mxu0 0.0
  %218 = vmatmul.mubr.f32.gmra.mxu0 %v88
  %v219 = vpop.f32.mrf.mxu0
  %v220 = vadd.f32 0.0, %v219
  %v221 = vpop.f32.mrf.mxu0
  %222 = vdwg.mxu0
  %v224 = vsel %vm77, %v51, 0
  %v227 = vsel %vm77, %v52, 0
  %v230 = vsel %vm77, %v53, 0
  %v233 = vsel %vm77, %v54, 0
  %235 = vmatprep.subr.mxu0 0.0
  %236 = vmatpush1.msra.mxu0 0.0
  %237 = vmatprep.subr.mxu0 0.0
  %238 = vmatpush1.msra.mxu0 0.0
  %239 = vmatprep.subr.mxu0 0.0
  %240 = vmatpush1.msra.mxu0 0.0
  %241 = vmatprep.subr.mxu0 0.0
  %242 = vmatpush1.msra.mxu0 0.0
  %243 = vmatprep.subr.mxu0 0.0
  %244 = vmatpush1.msra.mxu0 0.0
  %245 = vmatprep.subr.mxu0 0.0
  %246 = vmatpush1.msra.mxu0 0.0
  %247 = vmatprep.subr.mxu0 0.0
  %248 = vmatpush1.msra.mxu0 0.0
  %249 = vmatprep.subr.mxu0 0.0
  %250 = vmatpush1.msra.mxu0 0.0
  %251 = vmatprep.subr.mxu0 0.0
  %252 = vmatpush1.msra.mxu0 0.0
  %253 = vmatprep.subr.mxu0 0.0
  %254 = vmatpush1.msra.mxu0 0.0
  %255 = vmatprep.subr.mxu0 0.0
  %256 = vmatpush1.msra.mxu0 0.0
  %257 = vmatprep.subr.mxu0 0.0
  %258 = vmatpush1.msra.mxu0 0.0
  %259 = vmatprep.subr.mxu0 0.0
  %260 = vmatpush1.msra.mxu0 0.0
  %261 = vmatprep.subr.mxu0 0.0
  %262 = vmatpush1.msra.mxu0 0.0
  %263 = vmatprep.subr.mxu0 0.0
  %264 = vmatpush1.msra.mxu0 %v56
  %265 = vmatprep.subr.mxu0 0.0
  %266 = vmatpush1.msra.mxu0 %v55
  %267 = vmatprep.subr.mxu0 0.0
  %268 = vmatpush2.msra.mxu0 0.0
  %269 = vmatprep.subr.mxu0 0.0
  %270 = vmatpush2.msra.mxu0 0.0
  %271 = vmatprep.subr.mxu0 0.0
  %272 = vmatpush2.msra.mxu0 0.0
  %273 = vmatprep.subr.mxu0 0.0
  %274 = vmatpush2.msra.mxu0 0.0
  %275 = vmatprep.subr.mxu0 0.0
  %276 = vmatpush2.msra.mxu0 0.0
  %277 = vmatprep.subr.mxu0 0.0
  %278 = vmatpush2.msra.mxu0 0.0
  %279 = vmatprep.subr.mxu0 0.0
  %280 = vmatpush2.msra.mxu0 0.0
  %281 = vmatprep.subr.mxu0 0.0
  %282 = vmatpush2.msra.mxu0 0.0
  %283 = vmatprep.subr.mxu0 0.0
  %284 = vmatpush2.msra.mxu0 0.0
  %285 = vmatprep.subr.mxu0 0.0
  %286 = vmatpush2.msra.mxu0 0.0
  %287 = vmatprep.subr.mxu0 0.0
  %288 = vmatpush2.msra.mxu0 0.0
  %289 = vmatprep.subr.mxu0 0.0
  %290 = vmatpush2.msra.mxu0 0.0
  %291 = vmatprep.subr.mxu0 0.0
  %292 = vmatpush2.msra.mxu0 0.0
  %293 = vmatprep.subr.mxu0 0.0
  %294 = vmatpush2.msra.mxu0 0.0
  %295 = vmatprep.subr.mxu0 0.0
  %296 = vmatpush2.msra.mxu0 0.0
  %297 = vmatprep.subr.mxu0 0.0
  %298 = vmatpush2.msra.mxu0 0.0
  %299 = vmatprep.mubr.f32.mxu0 0.0
  %300 = vmatmul.mubr.f32.gmra.mxu0 %v224
  %v301 = vpop.f32.mrf.mxu0
  %v302 = vadd.f32 %v205, %v301
  %v303 = vpop.f32.mrf.mxu0
  %304 = vmatprep.mubr.f32.mxu0 0.0
  %305 = vmatmul.mubr.f32.gmra.mxu0 %v227
  %v306 = vpop.f32.mrf.mxu0
  %v307 = vadd.f32 %v210, %v306
  %v308 = vpop.f32.mrf.mxu0
  %309 = vmatprep.mubr.f32.mxu0 0.0
  %310 = vmatmul.mubr.f32.gmra.mxu0 %v230
  %v311 = vpop.f32.mrf.mxu0
  %v312 = vadd.f32 %v215, %v311
  %v313 = vpop.f32.mrf.mxu0
  %314 = vmatprep.mubr.f32.mxu0 0.0
  %315 = vmatmul.mubr.f32.gmra.mxu0 %v233
  %v316 = vpop.f32.mrf.mxu0
  %v317 = vadd.f32 %v220, %v316
  %v318 = vpop.f32.mrf.mxu0
  %319 = vdwg.mxu0
  %v320 = vld [vmem:[%s7] sm:$0xff]
  %v321 = vld [vmem:[%s7 + $0x8] sm:$0xff]
  %v322 = vld [vmem:[%s7 + $0x10] sm:$0xff]
  %v323 = vld [vmem:[%s7 + $0x18] sm:$0xff]
  %325 = vset.pattern.permute.xlu0 0
  %326 = vperm.xlu0 %325, %v320
  %v327 = vpop.permute.xlu0 %326
  %330 = vset.pattern.permute.xlu0 0
  %331 = vperm.xlu0 %330, %v321
  %v332 = vpop.permute.xlu0 %331
  %335 = vset.pattern.permute.xlu0 0
  %336 = vperm.xlu0 %335, %v322
  %v337 = vpop.permute.xlu0 %336
  %340 = vset.pattern.permute.xlu0 0
  %341 = vperm.xlu0 %340, %v323
  %v342 = vpop.permute.xlu0 %341
  %v344 = vmul.f32 %v302, %v327
  %v345 = vmul.f32 %v307, %v332
  %v346 = vmul.f32 %v312, %v337
  %v347 = vmul.f32 %v317, %v342
  %v348 = vld [vmem:[%s8] sm:$0xff]
  %v349 = vld [vmem:[%s8 + $0x8] sm:$0xff]
  %v350 = vld [vmem:[%s8 + $0x10] sm:$0xff]
  %v351 = vld [vmem:[%s8 + $0x18] sm:$0xff]
  %353 = vset.pattern.permute.xlu0 0
  %354 = vperm.xlu0 %353, %v348
  %v355 = vpop.permute.xlu0 %354
  %358 = vset.pattern.permute.xlu0 0
  %359 = vperm.xlu0 %358, %v349
  %v360 = vpop.permute.xlu0 %359
  %363 = vset.pattern.permute.xlu0 0
  %364 = vperm.xlu0 %363, %v350
  %v365 = vpop.permute.xlu0 %364
  %368 = vset.pattern.permute.xlu0 0
  %369 = vperm.xlu0 %368, %v351
  %v370 = vpop.permute.xlu0 %369
  %v372 = vadd.f32 %v344, %v355
  %v373 = vadd.f32 %v345, %v360
  %v374 = vadd.f32 %v346, %v365
  %v375 = vadd.f32 %v347, %v370
  %v376 = vmax.f32 %v372, 0.0
  %v377 = vmax.f32 %v373, 0.0
  %v378 = vmax.f32 %v374, 0.0
  %v379 = vmax.f32 %v375, 0.0
  %v380 = vld [vmem:[%s2] sm:$0x1]
  %s381 = sld [smem:[#allocation4]]
  %s382 = sld [smem:[#allocation5]]
  %s383 = sadd.s32 %s382, 1
  // While loop
  $region34: #{self_adaptive_voxelization_forward.7} parent=0 // loop_pre_header
    _
  $region35: #{self_adaptive_voxelization_forward.7} parent=0 // loop_header
    %s385 = sphi %s381, %s387
    %p386 = scmp.ge.s32.totalorder %s385, %s383
  $region36: #{self_adaptive_voxelization_forward.7} parent=0 // loop_header_branch
    %389 = sbr.rel (%p386) target = $region40
  $region37: #{self_adaptive_voxelization_forward.7} parent=0 // loop_body
    %s390 = smul.u32 %s385, 128
    %v391 = vlaneseq
    %v392 = vshrl.u32 %v391, 7
    %v393 = vadd.s32 %v392, 8
    %v394 = vadd.s32 %v392, 16
    %v395 = vadd.s32 %v392, 24
    %v396 = vadd.s32 %v392, 32
    %v397 = vadd.s32 %v392, 40
    %v398 = vadd.s32 %v392, 48
    %v399 = vadd.s32 %v392, 56
    %v400 = vadd.s32 %v392, 64
    %v401 = vadd.s32 %v392, 72
    %v402 = vadd.s32 %v392, 80
    %v403 = vadd.s32 %v392, 88
    %v404 = vadd.s32 %v392, 96
    %v405 = vadd.s32 %v392, 104
    %v406 = vadd.s32 %v392, 112
    %v407 = vadd.s32 %v392, 120
    %v408 = vstv %s390
    %v409 = vadd.s32 %v392, %v408
    %v410 = vadd.s32 %v393, %v408
    %v411 = vadd.s32 %v394, %v408
    %v412 = vadd.s32 %v395, %v408
    %v413 = vadd.s32 %v396, %v408
    %v414 = vadd.s32 %v397, %v408
    %v415 = vadd.s32 %v398, %v408
    %v416 = vadd.s32 %v399, %v408
    %v417 = vadd.s32 %v400, %v408
    %v418 = vadd.s32 %v401, %v408
    %v419 = vadd.s32 %v402, %v408
    %v420 = vadd.s32 %v403, %v408
    %v421 = vadd.s32 %v404, %v408
    %v422 = vadd.s32 %v405, %v408
    %v423 = vadd.s32 %v406, %v408
    %v424 = vadd.s32 %v407, %v408
    %v425 = vlaneseq
    %v426 = vshrl.u32 %v425, 7
    %v427 = vsub.s32 0, %v426
    %v428 = vrot.slane %v380, %v427
    %vm429 = vcmp.eq.s32.totalorder %v409, %v428
    %vm430 = vcmp.eq.s32.totalorder %v410, %v428
    %vm431 = vcmp.eq.s32.totalorder %v411, %v428
    %vm432 = vcmp.eq.s32.totalorder %v412, %v428
    %vm433 = vcmp.eq.s32.totalorder %v413, %v428
    %vm434 = vcmp.eq.s32.totalorder %v414, %v428
    %vm435 = vcmp.eq.s32.totalorder %v415, %v428
    %vm436 = vcmp.eq.s32.totalorder %v416, %v428
    %vm437 = vcmp.eq.s32.totalorder %v417, %v428
    %vm438 = vcmp.eq.s32.totalorder %v418, %v428
    %vm439 = vcmp.eq.s32.totalorder %v419, %v428
    %vm440 = vcmp.eq.s32.totalorder %v420, %v428
    %vm441 = vcmp.eq.s32.totalorder %v421, %v428
    %vm442 = vcmp.eq.s32.totalorder %v422, %v428
    %vm443 = vcmp.eq.s32.totalorder %v423, %v428
    %vm444 = vcmp.eq.s32.totalorder %v424, %v428
    %v445 = vsel %vm429, 1, 0
    %v446 = vsel %vm430, 1, 0
    %v447 = vsel %vm431, 1, 0
    %v448 = vsel %vm432, 1, 0
    %v449 = vsel %vm433, 1, 0
    %v450 = vsel %vm434, 1, 0
    %v451 = vsel %vm435, 1, 0
    %v452 = vsel %vm436, 1, 0
    %v453 = vsel %vm437, 1, 0
    %v454 = vsel %vm438, 1, 0
    %v455 = vsel %vm439, 1, 0
    %v456 = vsel %vm440, 1, 0
    %v457 = vsel %vm441, 1, 0
    %v458 = vsel %vm442, 1, 0
    %v459 = vsel %vm443, 1, 0
    %v460 = vsel %vm444, 1, 0
    %v461 = vcombine.high %v445, %v445
    %v463 = vunpack.c.l.s4 1966171168
    %v464 = vunpack.c.0.s8 %v463
    %v465 = vlaneseq
    %v466 = vshrl.u32 %v465, 7
    %v467 = vsub.s32 %v464, %v466
    %v468 = vrot.slane %v445, %v467
    %v470 = vunpack.c.l.s4 1966171168
    %v471 = vunpack.c.0.s8 %v470
    %v472 = vlaneseq
    %v473 = vshrl.u32 %v472, 7
    %v474 = vsub.s32 %v471, %v473
    %v475 = vrot.slane %v461, %v474
    %v476 = vcombine.high %v468, %v468
    %v477 = vcombine.high %v475, %v475
    %v479 = vunpack.c.l.s4 1966171168
    %v480 = vunpack.c.0.s8 %v479
    %v481 = vlaneseq
    %v482 = vshrl.u32 %v481, 7
    %v483 = vsub.s32 %v480, %v482
    %v484 = vrot.slane %v468, %v483
    %v486 = vunpack.c.l.s4 1966171168
    %v487 = vunpack.c.0.s8 %v486
    %v488 = vlaneseq
    %v489 = vshrl.u32 %v488, 7
    %v490 = vsub.s32 %v487, %v489
    %v491 = vrot.slane %v475, %v490
    %v493 = vunpack.c.l.s4 1966171168
    %v494 = vunpack.c.0.s8 %v493
    %v495 = vlaneseq
    %v496 = vshrl.u32 %v495, 7
    %v497 = vsub.s32 %v494, %v496
    %v498 = vrot.slane %v476, %v497
    %v500 = vunpack.c.l.s4 1966171168
    %v501 = vunpack.c.0.s8 %v500
    %v502 = vlaneseq
    %v503 = vshrl.u32 %v502, 7
    %v504 = vsub.s32 %v501, %v503
    %v505 = vrot.slane %v477, %v504
    %v506 = vcombine.high %v484, %v484
    %v507 = vcombine.high %v491, %v491
    %v508 = vcombine.high %v498, %v498
    %v509 = vcombine.high %v505, %v505
    %v510 = vcombine.high %v446, %v446
    %v512 = vunpack.c.l.s4 1966171168
    %v513 = vunpack.c.0.s8 %v512
    %v514 = vlaneseq
    %v515 = vshrl.u32 %v514, 7
    %v516 = vsub.s32 %v513, %v515
    %v517 = vrot.slane %v446, %v516
    %v519 = vunpack.c.l.s4 1966171168
    %v520 = vunpack.c.0.s8 %v519
    %v521 = vlaneseq
    %v522 = vshrl.u32 %v521, 7
    %v523 = vsub.s32 %v520, %v522
    %v524 = vrot.slane %v510, %v523
    %v525 = vcombine.high %v517, %v517
    %v526 = vcombine.high %v524, %v524
    %v528 = vunpack.c.l.s4 1966171168
    %v529 = vunpack.c.0.s8 %v528
    %v530 = vlaneseq
    %v531 = vshrl.u32 %v530, 7
    %v532 = vsub.s32 %v529, %v531
    %v533 = vrot.slane %v517, %v532
    %v535 = vunpack.c.l.s4 1966171168
    %v536 = vunpack.c.0.s8 %v535
    %v537 = vlaneseq
    %v538 = vshrl.u32 %v537, 7
    %v539 = vsub.s32 %v536, %v538
    %v540 = vrot.slane %v524, %v539
    %v542 = vunpack.c.l.s4 1966171168
    %v543 = vunpack.c.0.s8 %v542
    %v544 = vlaneseq
    %v545 = vshrl.u32 %v544, 7
    %v546 = vsub.s32 %v543, %v545
    %v547 = vrot.slane %v525, %v546
    %v549 = vunpack.c.l.s4 1966171168
    %v550 = vunpack.c.0.s8 %v549
    %v551 = vlaneseq
    %v552 = vshrl.u32 %v551, 7
    %v553 = vsub.s32 %v550, %v552
    %v554 = vrot.slane %v526, %v553
    %v555 = vcombine.high %v533, %v533
    %v556 = vcombine.high %v540, %v540
    %v557 = vcombine.high %v547, %v547
    %v558 = vcombine.high %v554, %v554
    %v559 = vcombine.high %v447, %v447
    %v561 = vunpack.c.l.s4 1966171168
    %v562 = vunpack.c.0.s8 %v561
    %v563 = vlaneseq
    %v564 = vshrl.u32 %v563, 7
    %v565 = vsub.s32 %v562, %v564
    %v566 = vrot.slane %v447, %v565
    %v568 = vunpack.c.l.s4 1966171168
    %v569 = vunpack.c.0.s8 %v568
    %v570 = vlaneseq
    %v571 = vshrl.u32 %v570, 7
    %v572 = vsub.s32 %v569, %v571
    %v573 = vrot.slane %v559, %v572
    %v574 = vcombine.high %v566, %v566
    %v575 = vcombine.high %v573, %v573
    %v577 = vunpack.c.l.s4 1966171168
    %v578 = vunpack.c.0.s8 %v577
    %v579 = vlaneseq
    %v580 = vshrl.u32 %v579, 7
    %v581 = vsub.s32 %v578, %v580
    %v582 = vrot.slane %v566, %v581
    %v584 = vunpack.c.l.s4 1966171168
    %v585 = vunpack.c.0.s8 %v584
    %v586 = vlaneseq
    %v587 = vshrl.u32 %v586, 7
    %v588 = vsub.s32 %v585, %v587
    %v589 = vrot.slane %v573, %v588
    %v591 = vunpack.c.l.s4 1966171168
    %v592 = vunpack.c.0.s8 %v591
    %v593 = vlaneseq
    %v594 = vshrl.u32 %v593, 7
    %v595 = vsub.s32 %v592, %v594
    %v596 = vrot.slane %v574, %v595
    %v598 = vunpack.c.l.s4 1966171168
    %v599 = vunpack.c.0.s8 %v598
    %v600 = vlaneseq
    %v601 = vshrl.u32 %v600, 7
    %v602 = vsub.s32 %v599, %v601
    %v603 = vrot.slane %v575, %v602
    %v604 = vcombine.high %v582, %v582
    %v605 = vcombine.high %v589, %v589
    %v606 = vcombine.high %v596, %v596
    %v607 = vcombine.high %v603, %v603
    %v608 = vcombine.high %v448, %v448
    %v610 = vunpack.c.l.s4 1966171168
    %v611 = vunpack.c.0.s8 %v610
    %v612 = vlaneseq
    %v613 = vshrl.u32 %v612, 7
    %v614 = vsub.s32 %v611, %v613
    %v615 = vrot.slane %v448, %v614
    %v617 = vunpack.c.l.s4 1966171168
    %v618 = vunpack.c.0.s8 %v617
    %v619 = vlaneseq
    %v620 = vshrl.u32 %v619, 7
    %v621 = vsub.s32 %v618, %v620
    %v622 = vrot.slane %v608, %v621
    %v623 = vcombine.high %v615, %v615
    %v624 = vcombine.high %v622, %v622
    %v626 = vunpack.c.l.s4 1966171168
    %v627 = vunpack.c.0.s8 %v626
    %v628 = vlaneseq
    %v629 = vshrl.u32 %v628, 7
    %v630 = vsub.s32 %v627, %v629
    %v631 = vrot.slane %v615, %v630
    %v633 = vunpack.c.l.s4 1966171168
    %v634 = vunpack.c.0.s8 %v633
    %v635 = vlaneseq
    %v636 = vshrl.u32 %v635, 7
    %v637 = vsub.s32 %v634, %v636
    %v638 = vrot.slane %v622, %v637
    %v640 = vunpack.c.l.s4 1966171168
    %v641 = vunpack.c.0.s8 %v640
    %v642 = vlaneseq
    %v643 = vshrl.u32 %v642, 7
    %v644 = vsub.s32 %v641, %v643
    %v645 = vrot.slane %v623, %v644
    %v647 = vunpack.c.l.s4 1966171168
    %v648 = vunpack.c.0.s8 %v647
    %v649 = vlaneseq
    %v650 = vshrl.u32 %v649, 7
    %v651 = vsub.s32 %v648, %v650
    %v652 = vrot.slane %v624, %v651
    %v653 = vcombine.high %v631, %v631
    %v654 = vcombine.high %v638, %v638
    %v655 = vcombine.high %v645, %v645
    %v656 = vcombine.high %v652, %v652
    %v657 = vcombine.high %v449, %v449
    %v659 = vunpack.c.l.s4 1966171168
    %v660 = vunpack.c.0.s8 %v659
    %v661 = vlaneseq
    %v662 = vshrl.u32 %v661, 7
    %v663 = vsub.s32 %v660, %v662
    %v664 = vrot.slane %v449, %v663
    %v666 = vunpack.c.l.s4 1966171168
    %v667 = vunpack.c.0.s8 %v666
    %v668 = vlaneseq
    %v669 = vshrl.u32 %v668, 7
    %v670 = vsub.s32 %v667, %v669
    %v671 = vrot.slane %v657, %v670
    %v672 = vcombine.high %v664, %v664
    %v673 = vcombine.high %v671, %v671
    %v675 = vunpack.c.l.s4 1966171168
    %v676 = vunpack.c.0.s8 %v675
    %v677 = vlaneseq
    %v678 = vshrl.u32 %v677, 7
    %v679 = vsub.s32 %v676, %v678
    %v680 = vrot.slane %v664, %v679
    %v682 = vunpack.c.l.s4 1966171168
    %v683 = vunpack.c.0.s8 %v682
    %v684 = vlaneseq
    %v685 = vshrl.u32 %v684, 7
    %v686 = vsub.s32 %v683, %v685
    %v687 = vrot.slane %v671, %v686
    %v689 = vunpack.c.l.s4 1966171168
    %v690 = vunpack.c.0.s8 %v689
    %v691 = vlaneseq
    %v692 = vshrl.u32 %v691, 7
    %v693 = vsub.s32 %v690, %v692
    %v694 = vrot.slane %v672, %v693
    %v696 = vunpack.c.l.s4 1966171168
    %v697 = vunpack.c.0.s8 %v696
    %v698 = vlaneseq
    %v699 = vshrl.u32 %v698, 7
    %v700 = vsub.s32 %v697, %v699
    %v701 = vrot.slane %v673, %v700
    %v702 = vcombine.high %v680, %v680
    %v703 = vcombine.high %v687, %v687
    %v704 = vcombine.high %v694, %v694
    %v705 = vcombine.high %v701, %v701
    %v706 = vcombine.high %v450, %v450
    %v708 = vunpack.c.l.s4 1966171168
    %v709 = vunpack.c.0.s8 %v708
    %v710 = vlaneseq
    %v711 = vshrl.u32 %v710, 7
    %v712 = vsub.s32 %v709, %v711
    %v713 = vrot.slane %v450, %v712
    %v715 = vunpack.c.l.s4 1966171168
    %v716 = vunpack.c.0.s8 %v715
    %v717 = vlaneseq
    %v718 = vshrl.u32 %v717, 7
    %v719 = vsub.s32 %v716, %v718
    %v720 = vrot.slane %v706, %v719
    %v721 = vcombine.high %v713, %v713
    %v722 = vcombine.high %v720, %v720
    %v724 = vunpack.c.l.s4 1966171168
    %v725 = vunpack.c.0.s8 %v724
    %v726 = vlaneseq
    %v727 = vshrl.u32 %v726, 7
    %v728 = vsub.s32 %v725, %v727
    %v729 = vrot.slane %v713, %v728
    %v731 = vunpack.c.l.s4 1966171168
    %v732 = vunpack.c.0.s8 %v731
    %v733 = vlaneseq
    %v734 = vshrl.u32 %v733, 7
    %v735 = vsub.s32 %v732, %v734
    %v736 = vrot.slane %v720, %v735
    %v738 = vunpack.c.l.s4 1966171168
    %v739 = vunpack.c.0.s8 %v738
    %v740 = vlaneseq
    %v741 = vshrl.u32 %v740, 7
    %v742 = vsub.s32 %v739, %v741
    %v743 = vrot.slane %v721, %v742
    %v745 = vunpack.c.l.s4 1966171168
    %v746 = vunpack.c.0.s8 %v745
    %v747 = vlaneseq
    %v748 = vshrl.u32 %v747, 7
    %v749 = vsub.s32 %v746, %v748
    %v750 = vrot.slane %v722, %v749
    %v751 = vcombine.high %v729, %v729
    %v752 = vcombine.high %v736, %v736
    %v753 = vcombine.high %v743, %v743
    %v754 = vcombine.high %v750, %v750
    %v755 = vcombine.high %v451, %v451
    %v757 = vunpack.c.l.s4 1966171168
    %v758 = vunpack.c.0.s8 %v757
    %v759 = vlaneseq
    %v760 = vshrl.u32 %v759, 7
    %v761 = vsub.s32 %v758, %v760
    %v762 = vrot.slane %v451, %v761
    %v764 = vunpack.c.l.s4 1966171168
    %v765 = vunpack.c.0.s8 %v764
    %v766 = vlaneseq
    %v767 = vshrl.u32 %v766, 7
    %v768 = vsub.s32 %v765, %v767
    %v769 = vrot.slane %v755, %v768
    %v770 = vcombine.high %v762, %v762
    %v771 = vcombine.high %v769, %v769
    %v773 = vunpack.c.l.s4 1966171168
    %v774 = vunpack.c.0.s8 %v773
    %v775 = vlaneseq
    %v776 = vshrl.u32 %v775, 7
    %v777 = vsub.s32 %v774, %v776
    %v778 = vrot.slane %v762, %v777
    %v780 = vunpack.c.l.s4 1966171168
    %v781 = vunpack.c.0.s8 %v780
    %v782 = vlaneseq
    %v783 = vshrl.u32 %v782, 7
    %v784 = vsub.s32 %v781, %v783
    %v785 = vrot.slane %v769, %v784
    %v787 = vunpack.c.l.s4 1966171168
    %v788 = vunpack.c.0.s8 %v787
    %v789 = vlaneseq
    %v790 = vshrl.u32 %v789, 7
    %v791 = vsub.s32 %v788, %v790
    %v792 = vrot.slane %v770, %v791
    %v794 = vunpack.c.l.s4 1966171168
    %v795 = vunpack.c.0.s8 %v794
    %v796 = vlaneseq
    %v797 = vshrl.u32 %v796, 7
    %v798 = vsub.s32 %v795, %v797
    %v799 = vrot.slane %v771, %v798
    %v800 = vcombine.high %v778, %v778
    %v801 = vcombine.high %v785, %v785
    %v802 = vcombine.high %v792, %v792
    %v803 = vcombine.high %v799, %v799
    %v804 = vcombine.high %v452, %v452
    %v806 = vunpack.c.l.s4 1966171168
    %v807 = vunpack.c.0.s8 %v806
    %v808 = vlaneseq
    %v809 = vshrl.u32 %v808, 7
    %v810 = vsub.s32 %v807, %v809
    %v811 = vrot.slane %v452, %v810
    %v813 = vunpack.c.l.s4 1966171168
    %v814 = vunpack.c.0.s8 %v813
    %v815 = vlaneseq
    %v816 = vshrl.u32 %v815, 7
    %v817 = vsub.s32 %v814, %v816
    %v818 = vrot.slane %v804, %v817
    %v819 = vcombine.high %v811, %v811
    %v820 = vcombine.high %v818, %v818
    %v822 = vunpack.c.l.s4 1966171168
    %v823 = vunpack.c.0.s8 %v822
    %v824 = vlaneseq
    %v825 = vshrl.u32 %v824, 7
    %v826 = vsub.s32 %v823, %v825
    %v827 = vrot.slane %v811, %v826
    %v829 = vunpack.c.l.s4 1966171168
    %v830 = vunpack.c.0.s8 %v829
    %v831 = vlaneseq
    %v832 = vshrl.u32 %v831, 7
    %v833 = vsub.s32 %v830, %v832
    %v834 = vrot.slane %v818, %v833
    %v836 = vunpack.c.l.s4 1966171168
    %v837 = vunpack.c.0.s8 %v836
    %v838 = vlaneseq
    %v839 = vshrl.u32 %v838, 7
    %v840 = vsub.s32 %v837, %v839
    %v841 = vrot.slane %v819, %v840
    %v843 = vunpack.c.l.s4 1966171168
    %v844 = vunpack.c.0.s8 %v843
    %v845 = vlaneseq
    %v846 = vshrl.u32 %v845, 7
    %v847 = vsub.s32 %v844, %v846
    %v848 = vrot.slane %v820, %v847
    %v849 = vcombine.high %v827, %v827
    %v850 = vcombine.high %v834, %v834
    %v851 = vcombine.high %v841, %v841
    %v852 = vcombine.high %v848, %v848
    %v853 = vcombine.high %v453, %v453
    %v855 = vunpack.c.l.s4 1966171168
    %v856 = vunpack.c.0.s8 %v855
    %v857 = vlaneseq
    %v858 = vshrl.u32 %v857, 7
    %v859 = vsub.s32 %v856, %v858
    %v860 = vrot.slane %v453, %v859
    %v862 = vunpack.c.l.s4 1966171168
    %v863 = vunpack.c.0.s8 %v862
    %v864 = vlaneseq
    %v865 = vshrl.u32 %v864, 7
    %v866 = vsub.s32 %v863, %v865
    %v867 = vrot.slane %v853, %v866
    %v868 = vcombine.high %v860, %v860
    %v869 = vcombine.high %v867, %v867
    %v871 = vunpack.c.l.s4 1966171168
    %v872 = vunpack.c.0.s8 %v871
    %v873 = vlaneseq
    %v874 = vshrl.u32 %v873, 7
    %v875 = vsub.s32 %v872, %v874
    %v876 = vrot.slane %v860, %v875
    %v878 = vunpack.c.l.s4 1966171168
    %v879 = vunpack.c.0.s8 %v878
    %v880 = vlaneseq
    %v881 = vshrl.u32 %v880, 7
    %v882 = vsub.s32 %v879, %v881
    %v883 = vrot.slane %v867, %v882
    %v885 = vunpack.c.l.s4 1966171168
    %v886 = vunpack.c.0.s8 %v885
    %v887 = vlaneseq
    %v888 = vshrl.u32 %v887, 7
    %v889 = vsub.s32 %v886, %v888
    %v890 = vrot.slane %v868, %v889
    %v892 = vunpack.c.l.s4 1966171168
    %v893 = vunpack.c.0.s8 %v892
    %v894 = vlaneseq
    %v895 = vshrl.u32 %v894, 7
    %v896 = vsub.s32 %v893, %v895
    %v897 = vrot.slane %v869, %v896
    %v898 = vcombine.high %v876, %v876
    %v899 = vcombine.high %v883, %v883
    %v900 = vcombine.high %v890, %v890
    %v901 = vcombine.high %v897, %v897
    %v902 = vcombine.high %v454, %v454
    %v904 = vunpack.c.l.s4 1966171168
    %v905 = vunpack.c.0.s8 %v904
    %v906 = vlaneseq
    %v907 = vshrl.u32 %v906, 7
    %v908 = vsub.s32 %v905, %v907
    %v909 = vrot.slane %v454, %v908
    %v911 = vunpack.c.l.s4 1966171168
    %v912 = vunpack.c.0.s8 %v911
    %v913 = vlaneseq
    %v914 = vshrl.u32 %v913, 7
    %v915 = vsub.s32 %v912, %v914
    %v916 = vrot.slane %v902, %v915
    %v917 = vcombine.high %v909, %v909
    %v918 = vcombine.high %v916, %v916
    %v920 = vunpack.c.l.s4 1966171168
    %v921 = vunpack.c.0.s8 %v920
    %v922 = vlaneseq
    %v923 = vshrl.u32 %v922, 7
    %v924 = vsub.s32 %v921, %v923
    %v925 = vrot.slane %v909, %v924
    %v927 = vunpack.c.l.s4 1966171168
    %v928 = vunpack.c.0.s8 %v927
    %v929 = vlaneseq
    %v930 = vshrl.u32 %v929, 7
    %v931 = vsub.s32 %v928, %v930
    %v932 = vrot.slane %v916, %v931
    %v934 = vunpack.c.l.s4 1966171168
    %v935 = vunpack.c.0.s8 %v934
    %v936 = vlaneseq
    %v937 = vshrl.u32 %v936, 7
    %v938 = vsub.s32 %v935, %v937
    %v939 = vrot.slane %v917, %v938
    %v941 = vunpack.c.l.s4 1966171168
    %v942 = vunpack.c.0.s8 %v941
    %v943 = vlaneseq
    %v944 = vshrl.u32 %v943, 7
    %v945 = vsub.s32 %v942, %v944
    %v946 = vrot.slane %v918, %v945
    %v947 = vcombine.high %v925, %v925
    %v948 = vcombine.high %v932, %v932
    %v949 = vcombine.high %v939, %v939
    %v950 = vcombine.high %v946, %v946
    %v951 = vcombine.high %v455, %v455
    %v953 = vunpack.c.l.s4 1966171168
    %v954 = vunpack.c.0.s8 %v953
    %v955 = vlaneseq
    %v956 = vshrl.u32 %v955, 7
    %v957 = vsub.s32 %v954, %v956
    %v958 = vrot.slane %v455, %v957
    %v960 = vunpack.c.l.s4 1966171168
    %v961 = vunpack.c.0.s8 %v960
    %v962 = vlaneseq
    %v963 = vshrl.u32 %v962, 7
    %v964 = vsub.s32 %v961, %v963
    %v965 = vrot.slane %v951, %v964
    %v966 = vcombine.high %v958, %v958
    %v967 = vcombine.high %v965, %v965
    %v969 = vunpack.c.l.s4 1966171168
    %v970 = vunpack.c.0.s8 %v969
    %v971 = vlaneseq
    %v972 = vshrl.u32 %v971, 7
    %v973 = vsub.s32 %v970, %v972
    %v974 = vrot.slane %v958, %v973
    %v976 = vunpack.c.l.s4 1966171168
    %v977 = vunpack.c.0.s8 %v976
    %v978 = vlaneseq
    %v979 = vshrl.u32 %v978, 7
    %v980 = vsub.s32 %v977, %v979
    %v981 = vrot.slane %v965, %v980
    %v983 = vunpack.c.l.s4 1966171168
    %v984 = vunpack.c.0.s8 %v983
    %v985 = vlaneseq
    %v986 = vshrl.u32 %v985, 7
    %v987 = vsub.s32 %v984, %v986
    %v988 = vrot.slane %v966, %v987
    %v990 = vunpack.c.l.s4 1966171168
    %v991 = vunpack.c.0.s8 %v990
    %v992 = vlaneseq
    %v993 = vshrl.u32 %v992, 7
    %v994 = vsub.s32 %v991, %v993
    %v995 = vrot.slane %v967, %v994
    %v996 = vcombine.high %v974, %v974
    %v997 = vcombine.high %v981, %v981
    %v998 = vcombine.high %v988, %v988
    %v999 = vcombine.high %v995, %v995
    %v1000 = vcombine.high %v456, %v456
    %v1002 = vunpack.c.l.s4 1966171168
    %v1003 = vunpack.c.0.s8 %v1002
    %v1004 = vlaneseq
    %v1005 = vshrl.u32 %v1004, 7
    %v1006 = vsub.s32 %v1003, %v1005
    %v1007 = vrot.slane %v456, %v1006
    %v1009 = vunpack.c.l.s4 1966171168
    %v1010 = vunpack.c.0.s8 %v1009
    %v1011 = vlaneseq
    %v1012 = vshrl.u32 %v1011, 7
    %v1013 = vsub.s32 %v1010, %v1012
    %v1014 = vrot.slane %v1000, %v1013
    %v1015 = vcombine.high %v1007, %v1007
    %v1016 = vcombine.high %v1014, %v1014
    %v1018 = vunpack.c.l.s4 1966171168
    %v1019 = vunpack.c.0.s8 %v1018
    %v1020 = vlaneseq
    %v1021 = vshrl.u32 %v1020, 7
    %v1022 = vsub.s32 %v1019, %v1021
    %v1023 = vrot.slane %v1007, %v1022
    %v1025 = vunpack.c.l.s4 1966171168
    %v1026 = vunpack.c.0.s8 %v1025
    %v1027 = vlaneseq
    %v1028 = vshrl.u32 %v1027, 7
    %v1029 = vsub.s32 %v1026, %v1028
    %v1030 = vrot.slane %v1014, %v1029
    %v1032 = vunpack.c.l.s4 1966171168
    %v1033 = vunpack.c.0.s8 %v1032
    %v1034 = vlaneseq
    %v1035 = vshrl.u32 %v1034, 7
    %v1036 = vsub.s32 %v1033, %v1035
    %v1037 = vrot.slane %v1015, %v1036
    %v1039 = vunpack.c.l.s4 1966171168
    %v1040 = vunpack.c.0.s8 %v1039
    %v1041 = vlaneseq
    %v1042 = vshrl.u32 %v1041, 7
    %v1043 = vsub.s32 %v1040, %v1042
    %v1044 = vrot.slane %v1016, %v1043
    %v1045 = vcombine.high %v1023, %v1023
    %v1046 = vcombine.high %v1030, %v1030
    %v1047 = vcombine.high %v1037, %v1037
    %v1048 = vcombine.high %v1044, %v1044
    %v1049 = vcombine.high %v457, %v457
    %v1051 = vunpack.c.l.s4 1966171168
    %v1052 = vunpack.c.0.s8 %v1051
    %v1053 = vlaneseq
    %v1054 = vshrl.u32 %v1053, 7
    %v1055 = vsub.s32 %v1052, %v1054
    %v1056 = vrot.slane %v457, %v1055
    %v1058 = vunpack.c.l.s4 1966171168
    %v1059 = vunpack.c.0.s8 %v1058
    %v1060 = vlaneseq
    %v1061 = vshrl.u32 %v1060, 7
    %v1062 = vsub.s32 %v1059, %v1061
    %v1063 = vrot.slane %v1049, %v1062
    %v1064 = vcombine.high %v1056, %v1056
    %v1065 = vcombine.high %v1063, %v1063
    %v1067 = vunpack.c.l.s4 1966171168
    %v1068 = vunpack.c.0.s8 %v1067
    %v1069 = vlaneseq
    %v1070 = vshrl.u32 %v1069, 7
    %v1071 = vsub.s32 %v1068, %v1070
    %v1072 = vrot.slane %v1056, %v1071
    %v1074 = vunpack.c.l.s4 1966171168
    %v1075 = vunpack.c.0.s8 %v1074
    %v1076 = vlaneseq
    %v1077 = vshrl.u32 %v1076, 7
    %v1078 = vsub.s32 %v1075, %v1077
    %v1079 = vrot.slane %v1063, %v1078
    %v1081 = vunpack.c.l.s4 1966171168
    %v1082 = vunpack.c.0.s8 %v1081
    %v1083 = vlaneseq
    %v1084 = vshrl.u32 %v1083, 7
    %v1085 = vsub.s32 %v1082, %v1084
    %v1086 = vrot.slane %v1064, %v1085
    %v1088 = vunpack.c.l.s4 1966171168
    %v1089 = vunpack.c.0.s8 %v1088
    %v1090 = vlaneseq
    %v1091 = vshrl.u32 %v1090, 7
    %v1092 = vsub.s32 %v1089, %v1091
    %v1093 = vrot.slane %v1065, %v1092
    %v1094 = vcombine.high %v1072, %v1072
    %v1095 = vcombine.high %v1079, %v1079
    %v1096 = vcombine.high %v1086, %v1086
    %v1097 = vcombine.high %v1093, %v1093
    %v1098 = vcombine.high %v458, %v458
    %v1100 = vunpack.c.l.s4 1966171168
    %v1101 = vunpack.c.0.s8 %v1100
    %v1102 = vlaneseq
    %v1103 = vshrl.u32 %v1102, 7
    %v1104 = vsub.s32 %v1101, %v1103
    %v1105 = vrot.slane %v458, %v1104
    %v1107 = vunpack.c.l.s4 1966171168
    %v1108 = vunpack.c.0.s8 %v1107
    %v1109 = vlaneseq
    %v1110 = vshrl.u32 %v1109, 7
    %v1111 = vsub.s32 %v1108, %v1110
    %v1112 = vrot.slane %v1098, %v1111
    %v1113 = vcombine.high %v1105, %v1105
    %v1114 = vcombine.high %v1112, %v1112
    %v1116 = vunpack.c.l.s4 1966171168
    %v1117 = vunpack.c.0.s8 %v1116
    %v1118 = vlaneseq
    %v1119 = vshrl.u32 %v1118, 7
    %v1120 = vsub.s32 %v1117, %v1119
    %v1121 = vrot.slane %v1105, %v1120
    %v1123 = vunpack.c.l.s4 1966171168
    %v1124 = vunpack.c.0.s8 %v1123
    %v1125 = vlaneseq
    %v1126 = vshrl.u32 %v1125, 7
    %v1127 = vsub.s32 %v1124, %v1126
    %v1128 = vrot.slane %v1112, %v1127
    %v1130 = vunpack.c.l.s4 1966171168
    %v1131 = vunpack.c.0.s8 %v1130
    %v1132 = vlaneseq
    %v1133 = vshrl.u32 %v1132, 7
    %v1134 = vsub.s32 %v1131, %v1133
    %v1135 = vrot.slane %v1113, %v1134
    %v1137 = vunpack.c.l.s4 1966171168
    %v1138 = vunpack.c.0.s8 %v1137
    %v1139 = vlaneseq
    %v1140 = vshrl.u32 %v1139, 7
    %v1141 = vsub.s32 %v1138, %v1140
    %v1142 = vrot.slane %v1114, %v1141
    %v1143 = vcombine.high %v1121, %v1121
    %v1144 = vcombine.high %v1128, %v1128
    %v1145 = vcombine.high %v1135, %v1135
    %v1146 = vcombine.high %v1142, %v1142
    %v1147 = vcombine.high %v459, %v459
    %v1149 = vunpack.c.l.s4 1966171168
    %v1150 = vunpack.c.0.s8 %v1149
    %v1151 = vlaneseq
    %v1152 = vshrl.u32 %v1151, 7
    %v1153 = vsub.s32 %v1150, %v1152
    %v1154 = vrot.slane %v459, %v1153
    %v1156 = vunpack.c.l.s4 1966171168
    %v1157 = vunpack.c.0.s8 %v1156
    %v1158 = vlaneseq
    %v1159 = vshrl.u32 %v1158, 7
    %v1160 = vsub.s32 %v1157, %v1159
    %v1161 = vrot.slane %v1147, %v1160
    %v1162 = vcombine.high %v1154, %v1154
    %v1163 = vcombine.high %v1161, %v1161
    %v1165 = vunpack.c.l.s4 1966171168
    %v1166 = vunpack.c.0.s8 %v1165
    %v1167 = vlaneseq
    %v1168 = vshrl.u32 %v1167, 7
    %v1169 = vsub.s32 %v1166, %v1168
    %v1170 = vrot.slane %v1154, %v1169
    %v1172 = vunpack.c.l.s4 1966171168
    %v1173 = vunpack.c.0.s8 %v1172
    %v1174 = vlaneseq
    %v1175 = vshrl.u32 %v1174, 7
    %v1176 = vsub.s32 %v1173, %v1175
    %v1177 = vrot.slane %v1161, %v1176
    %v1179 = vunpack.c.l.s4 1966171168
    %v1180 = vunpack.c.0.s8 %v1179
    %v1181 = vlaneseq
    %v1182 = vshrl.u32 %v1181, 7
    %v1183 = vsub.s32 %v1180, %v1182
    %v1184 = vrot.slane %v1162, %v1183
    %v1186 = vunpack.c.l.s4 1966171168
    %v1187 = vunpack.c.0.s8 %v1186
    %v1188 = vlaneseq
    %v1189 = vshrl.u32 %v1188, 7
    %v1190 = vsub.s32 %v1187, %v1189
    %v1191 = vrot.slane %v1163, %v1190
    %v1192 = vcombine.high %v1170, %v1170
    %v1193 = vcombine.high %v1177, %v1177
    %v1194 = vcombine.high %v1184, %v1184
    %v1195 = vcombine.high %v1191, %v1191
    %v1196 = vcombine.high %v460, %v460
    %v1198 = vunpack.c.l.s4 1966171168
    %v1199 = vunpack.c.0.s8 %v1198
    %v1200 = vlaneseq
    %v1201 = vshrl.u32 %v1200, 7
    %v1202 = vsub.s32 %v1199, %v1201
    %v1203 = vrot.slane %v460, %v1202
    %v1205 = vunpack.c.l.s4 1966171168
    %v1206 = vunpack.c.0.s8 %v1205
    %v1207 = vlaneseq
    %v1208 = vshrl.u32 %v1207, 7
    %v1209 = vsub.s32 %v1206, %v1208
    %v1210 = vrot.slane %v1196, %v1209
    %v1211 = vcombine.high %v1203, %v1203
    %v1212 = vcombine.high %v1210, %v1210
    %v1214 = vunpack.c.l.s4 1966171168
    %v1215 = vunpack.c.0.s8 %v1214
    %v1216 = vlaneseq
    %v1217 = vshrl.u32 %v1216, 7
    %v1218 = vsub.s32 %v1215, %v1217
    %v1219 = vrot.slane %v1203, %v1218
    %v1221 = vunpack.c.l.s4 1966171168
    %v1222 = vunpack.c.0.s8 %v1221
    %v1223 = vlaneseq
    %v1224 = vshrl.u32 %v1223, 7
    %v1225 = vsub.s32 %v1222, %v1224
    %v1226 = vrot.slane %v1210, %v1225
    %v1228 = vunpack.c.l.s4 1966171168
    %v1229 = vunpack.c.0.s8 %v1228
    %v1230 = vlaneseq
    %v1231 = vshrl.u32 %v1230, 7
    %v1232 = vsub.s32 %v1229, %v1231
    %v1233 = vrot.slane %v1211, %v1232
    %v1235 = vunpack.c.l.s4 1966171168
    %v1236 = vunpack.c.0.s8 %v1235
    %v1237 = vlaneseq
    %v1238 = vshrl.u32 %v1237, 7
    %v1239 = vsub.s32 %v1236, %v1238
    %v1240 = vrot.slane %v1212, %v1239
    %v1241 = vcombine.high %v1219, %v1219
    %v1242 = vcombine.high %v1226, %v1226
    %v1243 = vcombine.high %v1233, %v1233
    %v1244 = vcombine.high %v1240, %v1240
    %vm1245 = vcmp.ne.s32.totalorder %v484, 0
    %vm1246 = vcmp.ne.s32.totalorder %v498, 0
    %vm1247 = vcmp.ne.s32.totalorder %v506, 0
    %vm1248 = vcmp.ne.s32.totalorder %v508, 0
    %vm1249 = vcmp.ne.s32.totalorder %v491, 0
    %vm1250 = vcmp.ne.s32.totalorder %v505, 0
    %vm1251 = vcmp.ne.s32.totalorder %v507, 0
    %vm1252 = vcmp.ne.s32.totalorder %v509, 0
    %vm1253 = vcmp.ne.s32.totalorder %v533, 0
    %vm1254 = vcmp.ne.s32.totalorder %v547, 0
    %vm1255 = vcmp.ne.s32.totalorder %v555, 0
    %vm1256 = vcmp.ne.s32.totalorder %v557, 0
    %vm1257 = vcmp.ne.s32.totalorder %v540, 0
    %vm1258 = vcmp.ne.s32.totalorder %v554, 0
    %vm1259 = vcmp.ne.s32.totalorder %v556, 0
    %vm1260 = vcmp.ne.s32.totalorder %v558, 0
    %vm1261 = vcmp.ne.s32.totalorder %v582, 0
    %vm1262 = vcmp.ne.s32.totalorder %v596, 0
    %vm1263 = vcmp.ne.s32.totalorder %v604, 0
    %vm1264 = vcmp.ne.s32.totalorder %v606, 0
    %vm1265 = vcmp.ne.s32.totalorder %v589, 0
    %vm1266 = vcmp.ne.s32.totalorder %v603, 0
    %vm1267 = vcmp.ne.s32.totalorder %v605, 0
    %vm1268 = vcmp.ne.s32.totalorder %v607, 0
    %vm1269 = vcmp.ne.s32.totalorder %v631, 0
    %vm1270 = vcmp.ne.s32.totalorder %v645, 0
    %vm1271 = vcmp.ne.s32.totalorder %v653, 0
    %vm1272 = vcmp.ne.s32.totalorder %v655, 0
    %vm1273 = vcmp.ne.s32.totalorder %v638, 0
    %vm1274 = vcmp.ne.s32.totalorder %v652, 0
    %vm1275 = vcmp.ne.s32.totalorder %v654, 0
    %vm1276 = vcmp.ne.s32.totalorder %v656, 0
    %vm1277 = vcmp.ne.s32.totalorder %v680, 0
    %vm1278 = vcmp.ne.s32.totalorder %v694, 0
    %vm1279 = vcmp.ne.s32.totalorder %v702, 0
    %vm1280 = vcmp.ne.s32.totalorder %v704, 0
    %vm1281 = vcmp.ne.s32.totalorder %v687, 0
    %vm1282 = vcmp.ne.s32.totalorder %v701, 0
    %vm1283 = vcmp.ne.s32.totalorder %v703, 0
    %vm1284 = vcmp.ne.s32.totalorder %v705, 0
    %vm1285 = vcmp.ne.s32.totalorder %v729, 0
    %vm1286 = vcmp.ne.s32.totalorder %v743, 0
    %vm1287 = vcmp.ne.s32.totalorder %v751, 0
    %vm1288 = vcmp.ne.s32.totalorder %v753, 0
    %vm1289 = vcmp.ne.s32.totalorder %v736, 0
    %vm1290 = vcmp.ne.s32.totalorder %v750, 0
    %vm1291 = vcmp.ne.s32.totalorder %v752, 0
    %vm1292 = vcmp.ne.s32.totalorder %v754, 0
    %vm1293 = vcmp.ne.s32.totalorder %v778, 0
    %vm1294 = vcmp.ne.s32.totalorder %v792, 0
    %vm1295 = vcmp.ne.s32.totalorder %v800, 0
    %vm1296 = vcmp.ne.s32.totalorder %v802, 0
    %vm1297 = vcmp.ne.s32.totalorder %v785, 0
    %vm1298 = vcmp.ne.s32.totalorder %v799, 0
    %vm1299 = vcmp.ne.s32.totalorder %v801, 0
    %vm1300 = vcmp.ne.s32.totalorder %v803, 0
    %vm1301 = vcmp.ne.s32.totalorder %v827, 0
    %vm1302 = vcmp.ne.s32.totalorder %v841, 0
    %vm1303 = vcmp.ne.s32.totalorder %v849, 0
    %vm1304 = vcmp.ne.s32.totalorder %v851, 0
    %vm1305 = vcmp.ne.s32.totalorder %v834, 0
    %vm1306 = vcmp.ne.s32.totalorder %v848, 0
    %vm1307 = vcmp.ne.s32.totalorder %v850, 0
    %vm1308 = vcmp.ne.s32.totalorder %v852, 0
    %vm1309 = vcmp.ne.s32.totalorder %v876, 0
    %vm1310 = vcmp.ne.s32.totalorder %v890, 0
    %vm1311 = vcmp.ne.s32.totalorder %v898, 0
    %vm1312 = vcmp.ne.s32.totalorder %v900, 0
    %vm1313 = vcmp.ne.s32.totalorder %v883, 0
    %vm1314 = vcmp.ne.s32.totalorder %v897, 0
    %vm1315 = vcmp.ne.s32.totalorder %v899, 0
    %vm1316 = vcmp.ne.s32.totalorder %v901, 0
    %vm1317 = vcmp.ne.s32.totalorder %v925, 0
    %vm1318 = vcmp.ne.s32.totalorder %v939, 0
    %vm1319 = vcmp.ne.s32.totalorder %v947, 0
    %vm1320 = vcmp.ne.s32.totalorder %v949, 0
    %vm1321 = vcmp.ne.s32.totalorder %v932, 0
    %vm1322 = vcmp.ne.s32.totalorder %v946, 0
    %vm1323 = vcmp.ne.s32.totalorder %v948, 0
    %vm1324 = vcmp.ne.s32.totalorder %v950, 0
    %vm1325 = vcmp.ne.s32.totalorder %v974, 0
    %vm1326 = vcmp.ne.s32.totalorder %v988, 0
    %vm1327 = vcmp.ne.s32.totalorder %v996, 0
    %vm1328 = vcmp.ne.s32.totalorder %v998, 0
    %vm1329 = vcmp.ne.s32.totalorder %v981, 0
    %vm1330 = vcmp.ne.s32.totalorder %v995, 0
    %vm1331 = vcmp.ne.s32.totalorder %v997, 0
    %vm1332 = vcmp.ne.s32.totalorder %v999, 0
    %vm1333 = vcmp.ne.s32.totalorder %v1023, 0
    %vm1334 = vcmp.ne.s32.totalorder %v1037, 0
    %vm1335 = vcmp.ne.s32.totalorder %v1045, 0
    %vm1336 = vcmp.ne.s32.totalorder %v1047, 0
    %vm1337 = vcmp.ne.s32.totalorder %v1030, 0
    %vm1338 = vcmp.ne.s32.totalorder %v1044, 0
    %vm1339 = vcmp.ne.s32.totalorder %v1046, 0
    %vm1340 = vcmp.ne.s32.totalorder %v1048, 0
    %vm1341 = vcmp.ne.s32.totalorder %v1072, 0
    %vm1342 = vcmp.ne.s32.totalorder %v1086, 0
    %vm1343 = vcmp.ne.s32.totalorder %v1094, 0
    %vm1344 = vcmp.ne.s32.totalorder %v1096, 0
    %vm1345 = vcmp.ne.s32.totalorder %v1079, 0
    %vm1346 = vcmp.ne.s32.totalorder %v1093, 0
    %vm1347 = vcmp.ne.s32.totalorder %v1095, 0
    %vm1348 = vcmp.ne.s32.totalorder %v1097, 0
    %vm1349 = vcmp.ne.s32.totalorder %v1121, 0
    %vm1350 = vcmp.ne.s32.totalorder %v1135, 0
    %vm1351 = vcmp.ne.s32.totalorder %v1143, 0
    %vm1352 = vcmp.ne.s32.totalorder %v1145, 0
    %vm1353 = vcmp.ne.s32.totalorder %v1128, 0
    %vm1354 = vcmp.ne.s32.totalorder %v1142, 0
    %vm1355 = vcmp.ne.s32.totalorder %v1144, 0
    %vm1356 = vcmp.ne.s32.totalorder %v1146, 0
    %vm1357 = vcmp.ne.s32.totalorder %v1170, 0
    %vm1358 = vcmp.ne.s32.totalorder %v1184, 0
    %vm1359 = vcmp.ne.s32.totalorder %v1192, 0
    %vm1360 = vcmp.ne.s32.totalorder %v1194, 0
    %vm1361 = vcmp.ne.s32.totalorder %v1177, 0
    %vm1362 = vcmp.ne.s32.totalorder %v1191, 0
    %vm1363 = vcmp.ne.s32.totalorder %v1193, 0
    %vm1364 = vcmp.ne.s32.totalorder %v1195, 0
    %vm1365 = vcmp.ne.s32.totalorder %v1219, 0
    %vm1366 = vcmp.ne.s32.totalorder %v1233, 0
    %vm1367 = vcmp.ne.s32.totalorder %v1241, 0
    %vm1368 = vcmp.ne.s32.totalorder %v1243, 0
    %vm1369 = vcmp.ne.s32.totalorder %v1226, 0
    %vm1370 = vcmp.ne.s32.totalorder %v1240, 0
    %vm1371 = vcmp.ne.s32.totalorder %v1242, 0
    %vm1372 = vcmp.ne.s32.totalorder %v1244, 0
    %v1373 = vsel %vm1245, 1, 0
    %v1374 = vsel %vm1246, 1, 0
    %v1375 = vsel %vm1247, 1, 0
    %v1376 = vsel %vm1248, 1, 0
    %v1377 = vsel %vm1249, 1, 0
    %v1378 = vsel %vm1250, 1, 0
    %v1379 = vsel %vm1251, 1, 0
    %v1380 = vsel %vm1252, 1, 0
    %v1381 = vsel %vm1253, 1, 0
    %v1382 = vsel %vm1254, 1, 0
    %v1383 = vsel %vm1255, 1, 0
    %v1384 = vsel %vm1256, 1, 0
    %v1385 = vsel %vm1257, 1, 0
    %v1386 = vsel %vm1258, 1, 0
    %v1387 = vsel %vm1259, 1, 0
    %v1388 = vsel %vm1260, 1, 0
    %v1389 = vsel %vm1261, 1, 0
    %v1390 = vsel %vm1262, 1, 0
    %v1391 = vsel %vm1263, 1, 0
    %v1392 = vsel %vm1264, 1, 0
    %v1393 = vsel %vm1265, 1, 0
    %v1394 = vsel %vm1266, 1, 0
    %v1395 = vsel %vm1267, 1, 0
    %v1396 = vsel %vm1268, 1, 0
    %v1397 = vsel %vm1269, 1, 0
    %v1398 = vsel %vm1270, 1, 0
    %v1399 = vsel %vm1271, 1, 0
    %v1400 = vsel %vm1272, 1, 0
    %v1401 = vsel %vm1273, 1, 0
    %v1402 = vsel %vm1274, 1, 0
    %v1403 = vsel %vm1275, 1, 0
    %v1404 = vsel %vm1276, 1, 0
    %v1405 = vsel %vm1277, 1, 0
    %v1406 = vsel %vm1278, 1, 0
    %v1407 = vsel %vm1279, 1, 0
    %v1408 = vsel %vm1280, 1, 0
    %v1409 = vsel %vm1281, 1, 0
    %v1410 = vsel %vm1282, 1, 0
    %v1411 = vsel %vm1283, 1, 0
    %v1412 = vsel %vm1284, 1, 0
    %v1413 = vsel %vm1285, 1, 0
    %v1414 = vsel %vm1286, 1, 0
    %v1415 = vsel %vm1287, 1, 0
    %v1416 = vsel %vm1288, 1, 0
    %v1417 = vsel %vm1289, 1, 0
    %v1418 = vsel %vm1290, 1, 0
    %v1419 = vsel %vm1291, 1, 0
    %v1420 = vsel %vm1292, 1, 0
    %v1421 = vsel %vm1293, 1, 0
    %v1422 = vsel %vm1294, 1, 0
    %v1423 = vsel %vm1295, 1, 0
    %v1424 = vsel %vm1296, 1, 0
    %v1425 = vsel %vm1297, 1, 0
    %v1426 = vsel %vm1298, 1, 0
    %v1427 = vsel %vm1299, 1, 0
    %v1428 = vsel %vm1300, 1, 0
    %v1429 = vsel %vm1301, 1, 0
    %v1430 = vsel %vm1302, 1, 0
    %v1431 = vsel %vm1303, 1, 0
    %v1432 = vsel %vm1304, 1, 0
    %v1433 = vsel %vm1305, 1, 0
    %v1434 = vsel %vm1306, 1, 0
    %v1435 = vsel %vm1307, 1, 0
    %v1436 = vsel %vm1308, 1, 0
    %v1437 = vsel %vm1309, 1, 0
    %v1438 = vsel %vm1310, 1, 0
    %v1439 = vsel %vm1311, 1, 0
    %v1440 = vsel %vm1312, 1, 0
    %v1441 = vsel %vm1313, 1, 0
    %v1442 = vsel %vm1314, 1, 0
    %v1443 = vsel %vm1315, 1, 0
    %v1444 = vsel %vm1316, 1, 0
    %v1445 = vsel %vm1317, 1, 0
    %v1446 = vsel %vm1318, 1, 0
    %v1447 = vsel %vm1319, 1, 0
    %v1448 = vsel %vm1320, 1, 0
    %v1449 = vsel %vm1321, 1, 0
    %v1450 = vsel %vm1322, 1, 0
    %v1451 = vsel %vm1323, 1, 0
    %v1452 = vsel %vm1324, 1, 0
    %v1453 = vsel %vm1325, 1, 0
    %v1454 = vsel %vm1326, 1, 0
    %v1455 = vsel %vm1327, 1, 0
    %v1456 = vsel %vm1328, 1, 0
    %v1457 = vsel %vm1329, 1, 0
    %v1458 = vsel %vm1330, 1, 0
    %v1459 = vsel %vm1331, 1, 0
    %v1460 = vsel %vm1332, 1, 0
    %v1461 = vsel %vm1333, 1, 0
    %v1462 = vsel %vm1334, 1, 0
    %v1463 = vsel %vm1335, 1, 0
    %v1464 = vsel %vm1336, 1, 0
    %v1465 = vsel %vm1337, 1, 0
    %v1466 = vsel %vm1338, 1, 0
    %v1467 = vsel %vm1339, 1, 0
    %v1468 = vsel %vm1340, 1, 0
    %v1469 = vsel %vm1341, 1, 0
    %v1470 = vsel %vm1342, 1, 0
    %v1471 = vsel %vm1343, 1, 0
    %v1472 = vsel %vm1344, 1, 0
    %v1473 = vsel %vm1345, 1, 0
    %v1474 = vsel %vm1346, 1, 0
    %v1475 = vsel %vm1347, 1, 0
    %v1476 = vsel %vm1348, 1, 0
    %v1477 = vsel %vm1349, 1, 0
    %v1478 = vsel %vm1350, 1, 0
    %v1479 = vsel %vm1351, 1, 0
    %v1480 = vsel %vm1352, 1, 0
    %v1481 = vsel %vm1353, 1, 0
    %v1482 = vsel %vm1354, 1, 0
    %v1483 = vsel %vm1355, 1, 0
    %v1484 = vsel %vm1356, 1, 0
    %v1485 = vsel %vm1357, 1, 0
    %v1486 = vsel %vm1358, 1, 0
    %v1487 = vsel %vm1359, 1, 0
    %v1488 = vsel %vm1360, 1, 0
    %v1489 = vsel %vm1361, 1, 0
    %v1490 = vsel %vm1362, 1, 0
    %v1491 = vsel %vm1363, 1, 0
    %v1492 = vsel %vm1364, 1, 0
    %v1493 = vsel %vm1365, 1, 0
    %v1494 = vsel %vm1366, 1, 0
    %v1495 = vsel %vm1367, 1, 0
    %v1496 = vsel %vm1368, 1, 0
    %v1497 = vsel %vm1369, 1, 0
    %v1498 = vsel %vm1370, 1, 0
    %v1499 = vsel %vm1371, 1, 0
    %v1500 = vsel %vm1372, 1, 0
    %v1501 = vlaneseq
    %v1502 = vshrl.u32 %v1501, 7
    %v1503 = vsub.s32 0, %v1502
    %v1504 = vrot.slane %v1373, %v1503
    %v1505 = vlaneseq
    %v1506 = vshrl.u32 %v1505, 7
    %v1507 = vsub.s32 0, %v1506
    %v1508 = vrot.slane %v1374, %v1507
    %v1509 = vlaneseq
    %v1510 = vshrl.u32 %v1509, 7
    %v1511 = vsub.s32 0, %v1510
    %v1512 = vrot.slane %v1375, %v1511
    %v1513 = vlaneseq
    %v1514 = vshrl.u32 %v1513, 7
    %v1515 = vsub.s32 0, %v1514
    %v1516 = vrot.slane %v1376, %v1515
    %v1517 = vlaneseq
    %v1518 = vshrl.u32 %v1517, 7
    %v1519 = vsub.s32 0, %v1518
    %v1520 = vrot.slane %v1377, %v1519
    %v1521 = vlaneseq
    %v1522 = vshrl.u32 %v1521, 7
    %v1523 = vsub.s32 0, %v1522
    %v1524 = vrot.slane %v1378, %v1523
    %v1525 = vlaneseq
    %v1526 = vshrl.u32 %v1525, 7
    %v1527 = vsub.s32 0, %v1526
    %v1528 = vrot.slane %v1379, %v1527
    %v1529 = vlaneseq
    %v1530 = vshrl.u32 %v1529, 7
    %v1531 = vsub.s32 0, %v1530
    %v1532 = vrot.slane %v1380, %v1531
    %v1533 = vlaneseq
    %v1534 = vshrl.u32 %v1533, 7
    %v1535 = vsub.s32 0, %v1534
    %v1536 = vrot.slane %v1381, %v1535
    %v1537 = vlaneseq
    %v1538 = vshrl.u32 %v1537, 7
    %v1539 = vsub.s32 0, %v1538
    %v1540 = vrot.slane %v1382, %v1539
    %v1541 = vlaneseq
    %v1542 = vshrl.u32 %v1541, 7
    %v1543 = vsub.s32 0, %v1542
    %v1544 = vrot.slane %v1383, %v1543
    %v1545 = vlaneseq
    %v1546 = vshrl.u32 %v1545, 7
    %v1547 = vsub.s32 0, %v1546
    %v1548 = vrot.slane %v1384, %v1547
    %v1549 = vlaneseq
    %v1550 = vshrl.u32 %v1549, 7
    %v1551 = vsub.s32 0, %v1550
    %v1552 = vrot.slane %v1385, %v1551
    %v1553 = vlaneseq
    %v1554 = vshrl.u32 %v1553, 7
    %v1555 = vsub.s32 0, %v1554
    %v1556 = vrot.slane %v1386, %v1555
    %v1557 = vlaneseq
    %v1558 = vshrl.u32 %v1557, 7
    %v1559 = vsub.s32 0, %v1558
    %v1560 = vrot.slane %v1387, %v1559
    %v1561 = vlaneseq
    %v1562 = vshrl.u32 %v1561, 7
    %v1563 = vsub.s32 0, %v1562
    %v1564 = vrot.slane %v1388, %v1563
    %v1565 = vlaneseq
    %v1566 = vshrl.u32 %v1565, 7
    %v1567 = vsub.s32 0, %v1566
    %v1568 = vrot.slane %v1389, %v1567
    %v1569 = vlaneseq
    %v1570 = vshrl.u32 %v1569, 7
    %v1571 = vsub.s32 0, %v1570
    %v1572 = vrot.slane %v1390, %v1571
    %v1573 = vlaneseq
    %v1574 = vshrl.u32 %v1573, 7
    %v1575 = vsub.s32 0, %v1574
    %v1576 = vrot.slane %v1391, %v1575
    %v1577 = vlaneseq
    %v1578 = vshrl.u32 %v1577, 7
    %v1579 = vsub.s32 0, %v1578
    %v1580 = vrot.slane %v1392, %v1579
    %v1581 = vlaneseq
    %v1582 = vshrl.u32 %v1581, 7
    %v1583 = vsub.s32 0, %v1582
    %v1584 = vrot.slane %v1393, %v1583
    %v1585 = vlaneseq
    %v1586 = vshrl.u32 %v1585, 7
    %v1587 = vsub.s32 0, %v1586
    %v1588 = vrot.slane %v1394, %v1587
    %v1589 = vlaneseq
    %v1590 = vshrl.u32 %v1589, 7
    %v1591 = vsub.s32 0, %v1590
    %v1592 = vrot.slane %v1395, %v1591
    %v1593 = vlaneseq
    %v1594 = vshrl.u32 %v1593, 7
    %v1595 = vsub.s32 0, %v1594
    %v1596 = vrot.slane %v1396, %v1595
    %v1597 = vlaneseq
    %v1598 = vshrl.u32 %v1597, 7
    %v1599 = vsub.s32 0, %v1598
    %v1600 = vrot.slane %v1397, %v1599
    %v1601 = vlaneseq
    %v1602 = vshrl.u32 %v1601, 7
    %v1603 = vsub.s32 0, %v1602
    %v1604 = vrot.slane %v1398, %v1603
    %v1605 = vlaneseq
    %v1606 = vshrl.u32 %v1605, 7
    %v1607 = vsub.s32 0, %v1606
    %v1608 = vrot.slane %v1399, %v1607
    %v1609 = vlaneseq
    %v1610 = vshrl.u32 %v1609, 7
    %v1611 = vsub.s32 0, %v1610
    %v1612 = vrot.slane %v1400, %v1611
    %v1613 = vlaneseq
    %v1614 = vshrl.u32 %v1613, 7
    %v1615 = vsub.s32 0, %v1614
    %v1616 = vrot.slane %v1401, %v1615
    %v1617 = vlaneseq
    %v1618 = vshrl.u32 %v1617, 7
    %v1619 = vsub.s32 0, %v1618
    %v1620 = vrot.slane %v1402, %v1619
    %v1621 = vlaneseq
    %v1622 = vshrl.u32 %v1621, 7
    %v1623 = vsub.s32 0, %v1622
    %v1624 = vrot.slane %v1403, %v1623
    %v1625 = vlaneseq
    %v1626 = vshrl.u32 %v1625, 7
    %v1627 = vsub.s32 0, %v1626
    %v1628 = vrot.slane %v1404, %v1627
    %v1629 = vlaneseq
    %v1630 = vshrl.u32 %v1629, 7
    %v1631 = vsub.s32 0, %v1630
    %v1632 = vrot.slane %v1405, %v1631
    %v1633 = vlaneseq
    %v1634 = vshrl.u32 %v1633, 7
    %v1635 = vsub.s32 0, %v1634
    %v1636 = vrot.slane %v1406, %v1635
    %v1637 = vlaneseq
    %v1638 = vshrl.u32 %v1637, 7
    %v1639 = vsub.s32 0, %v1638
    %v1640 = vrot.slane %v1407, %v1639
    %v1641 = vlaneseq
    %v1642 = vshrl.u32 %v1641, 7
    %v1643 = vsub.s32 0, %v1642
    %v1644 = vrot.slane %v1408, %v1643
    %v1645 = vlaneseq
    %v1646 = vshrl.u32 %v1645, 7
    %v1647 = vsub.s32 0, %v1646
    %v1648 = vrot.slane %v1409, %v1647
    %v1649 = vlaneseq
    %v1650 = vshrl.u32 %v1649, 7
    %v1651 = vsub.s32 0, %v1650
    %v1652 = vrot.slane %v1410, %v1651
    %v1653 = vlaneseq
    %v1654 = vshrl.u32 %v1653, 7
    %v1655 = vsub.s32 0, %v1654
    %v1656 = vrot.slane %v1411, %v1655
    %v1657 = vlaneseq
    %v1658 = vshrl.u32 %v1657, 7
    %v1659 = vsub.s32 0, %v1658
    %v1660 = vrot.slane %v1412, %v1659
    %v1661 = vlaneseq
    %v1662 = vshrl.u32 %v1661, 7
    %v1663 = vsub.s32 0, %v1662
    %v1664 = vrot.slane %v1413, %v1663
    %v1665 = vlaneseq
    %v1666 = vshrl.u32 %v1665, 7
    %v1667 = vsub.s32 0, %v1666
    %v1668 = vrot.slane %v1414, %v1667
    %v1669 = vlaneseq
    %v1670 = vshrl.u32 %v1669, 7
    %v1671 = vsub.s32 0, %v1670
    %v1672 = vrot.slane %v1415, %v1671
    %v1673 = vlaneseq
    %v1674 = vshrl.u32 %v1673, 7
    %v1675 = vsub.s32 0, %v1674
    %v1676 = vrot.slane %v1416, %v1675
    %v1677 = vlaneseq
    %v1678 = vshrl.u32 %v1677, 7
    %v1679 = vsub.s32 0, %v1678
    %v1680 = vrot.slane %v1417, %v1679
    %v1681 = vlaneseq
    %v1682 = vshrl.u32 %v1681, 7
    %v1683 = vsub.s32 0, %v1682
    %v1684 = vrot.slane %v1418, %v1683
    %v1685 = vlaneseq
    %v1686 = vshrl.u32 %v1685, 7
    %v1687 = vsub.s32 0, %v1686
    %v1688 = vrot.slane %v1419, %v1687
    %v1689 = vlaneseq
    %v1690 = vshrl.u32 %v1689, 7
    %v1691 = vsub.s32 0, %v1690
    %v1692 = vrot.slane %v1420, %v1691
    %v1693 = vlaneseq
    %v1694 = vshrl.u32 %v1693, 7
    %v1695 = vsub.s32 0, %v1694
    %v1696 = vrot.slane %v1421, %v1695
    %v1697 = vlaneseq
    %v1698 = vshrl.u32 %v1697, 7
    %v1699 = vsub.s32 0, %v1698
    %v1700 = vrot.slane %v1422, %v1699
    %v1701 = vlaneseq
    %v1702 = vshrl.u32 %v1701, 7
    %v1703 = vsub.s32 0, %v1702
    %v1704 = vrot.slane %v1423, %v1703
    %v1705 = vlaneseq
    %v1706 = vshrl.u32 %v1705, 7
    %v1707 = vsub.s32 0, %v1706
    %v1708 = vrot.slane %v1424, %v1707
    %v1709 = vlaneseq
    %v1710 = vshrl.u32 %v1709, 7
    %v1711 = vsub.s32 0, %v1710
    %v1712 = vrot.slane %v1425, %v1711
    %v1713 = vlaneseq
    %v1714 = vshrl.u32 %v1713, 7
    %v1715 = vsub.s32 0, %v1714
    %v1716 = vrot.slane %v1426, %v1715
    %v1717 = vlaneseq
    %v1718 = vshrl.u32 %v1717, 7
    %v1719 = vsub.s32 0, %v1718
    %v1720 = vrot.slane %v1427, %v1719
    %v1721 = vlaneseq
    %v1722 = vshrl.u32 %v1721, 7
    %v1723 = vsub.s32 0, %v1722
    %v1724 = vrot.slane %v1428, %v1723
    %v1725 = vlaneseq
    %v1726 = vshrl.u32 %v1725, 7
    %v1727 = vsub.s32 0, %v1726
    %v1728 = vrot.slane %v1429, %v1727
    %v1729 = vlaneseq
    %v1730 = vshrl.u32 %v1729, 7
    %v1731 = vsub.s32 0, %v1730
    %v1732 = vrot.slane %v1430, %v1731
    %v1733 = vlaneseq
    %v1734 = vshrl.u32 %v1733, 7
    %v1735 = vsub.s32 0, %v1734
    %v1736 = vrot.slane %v1431, %v1735
    %v1737 = vlaneseq
    %v1738 = vshrl.u32 %v1737, 7
    %v1739 = vsub.s32 0, %v1738
    %v1740 = vrot.slane %v1432, %v1739
    %v1741 = vlaneseq
    %v1742 = vshrl.u32 %v1741, 7
    %v1743 = vsub.s32 0, %v1742
    %v1744 = vrot.slane %v1433, %v1743
    %v1745 = vlaneseq
    %v1746 = vshrl.u32 %v1745, 7
    %v1747 = vsub.s32 0, %v1746
    %v1748 = vrot.slane %v1434, %v1747
    %v1749 = vlaneseq
    %v1750 = vshrl.u32 %v1749, 7
    %v1751 = vsub.s32 0, %v1750
    %v1752 = vrot.slane %v1435, %v1751
    %v1753 = vlaneseq
    %v1754 = vshrl.u32 %v1753, 7
    %v1755 = vsub.s32 0, %v1754
    %v1756 = vrot.slane %v1436, %v1755
    %v1757 = vlaneseq
    %v1758 = vshrl.u32 %v1757, 7
    %v1759 = vsub.s32 0, %v1758
    %v1760 = vrot.slane %v1437, %v1759
    %v1761 = vlaneseq
    %v1762 = vshrl.u32 %v1761, 7
    %v1763 = vsub.s32 0, %v1762
    %v1764 = vrot.slane %v1438, %v1763
    %v1765 = vlaneseq
    %v1766 = vshrl.u32 %v1765, 7
    %v1767 = vsub.s32 0, %v1766
    %v1768 = vrot.slane %v1439, %v1767
    %v1769 = vlaneseq
    %v1770 = vshrl.u32 %v1769, 7
    %v1771 = vsub.s32 0, %v1770
    %v1772 = vrot.slane %v1440, %v1771
    %v1773 = vlaneseq
    %v1774 = vshrl.u32 %v1773, 7
    %v1775 = vsub.s32 0, %v1774
    %v1776 = vrot.slane %v1441, %v1775
    %v1777 = vlaneseq
    %v1778 = vshrl.u32 %v1777, 7
    %v1779 = vsub.s32 0, %v1778
    %v1780 = vrot.slane %v1442, %v1779
    %v1781 = vlaneseq
    %v1782 = vshrl.u32 %v1781, 7
    %v1783 = vsub.s32 0, %v1782
    %v1784 = vrot.slane %v1443, %v1783
    %v1785 = vlaneseq
    %v1786 = vshrl.u32 %v1785, 7
    %v1787 = vsub.s32 0, %v1786
    %v1788 = vrot.slane %v1444, %v1787
    %v1789 = vlaneseq
    %v1790 = vshrl.u32 %v1789, 7
    %v1791 = vsub.s32 0, %v1790
    %v1792 = vrot.slane %v1445, %v1791
    %v1793 = vlaneseq
    %v1794 = vshrl.u32 %v1793, 7
    %v1795 = vsub.s32 0, %v1794
    %v1796 = vrot.slane %v1446, %v1795
    %v1797 = vlaneseq
    %v1798 = vshrl.u32 %v1797, 7
    %v1799 = vsub.s32 0, %v1798
    %v1800 = vrot.slane %v1447, %v1799
    %v1801 = vlaneseq
    %v1802 = vshrl.u32 %v1801, 7
    %v1803 = vsub.s32 0, %v1802
    %v1804 = vrot.slane %v1448, %v1803
    %v1805 = vlaneseq
    %v1806 = vshrl.u32 %v1805, 7
    %v1807 = vsub.s32 0, %v1806
    %v1808 = vrot.slane %v1449, %v1807
    %v1809 = vlaneseq
    %v1810 = vshrl.u32 %v1809, 7
    %v1811 = vsub.s32 0, %v1810
    %v1812 = vrot.slane %v1450, %v1811
    %v1813 = vlaneseq
    %v1814 = vshrl.u32 %v1813, 7
    %v1815 = vsub.s32 0, %v1814
    %v1816 = vrot.slane %v1451, %v1815
    %v1817 = vlaneseq
    %v1818 = vshrl.u32 %v1817, 7
    %v1819 = vsub.s32 0, %v1818
    %v1820 = vrot.slane %v1452, %v1819
    %v1821 = vlaneseq
    %v1822 = vshrl.u32 %v1821, 7
    %v1823 = vsub.s32 0, %v1822
    %v1824 = vrot.slane %v1453, %v1823
    %v1825 = vlaneseq
    %v1826 = vshrl.u32 %v1825, 7
    %v1827 = vsub.s32 0, %v1826
    %v1828 = vrot.slane %v1454, %v1827
    %v1829 = vlaneseq
    %v1830 = vshrl.u32 %v1829, 7
    %v1831 = vsub.s32 0, %v1830
    %v1832 = vrot.slane %v1455, %v1831
    %v1833 = vlaneseq
    %v1834 = vshrl.u32 %v1833, 7
    %v1835 = vsub.s32 0, %v1834
    %v1836 = vrot.slane %v1456, %v1835
    %v1837 = vlaneseq
    %v1838 = vshrl.u32 %v1837, 7
    %v1839 = vsub.s32 0, %v1838
    %v1840 = vrot.slane %v1457, %v1839
    %v1841 = vlaneseq
    %v1842 = vshrl.u32 %v1841, 7
    %v1843 = vsub.s32 0, %v1842
    %v1844 = vrot.slane %v1458, %v1843
    %v1845 = vlaneseq
    %v1846 = vshrl.u32 %v1845, 7
    %v1847 = vsub.s32 0, %v1846
    %v1848 = vrot.slane %v1459, %v1847
    %v1849 = vlaneseq
    %v1850 = vshrl.u32 %v1849, 7
    %v1851 = vsub.s32 0, %v1850
    %v1852 = vrot.slane %v1460, %v1851
    %v1853 = vlaneseq
    %v1854 = vshrl.u32 %v1853, 7
    %v1855 = vsub.s32 0, %v1854
    %v1856 = vrot.slane %v1461, %v1855
    %v1857 = vlaneseq
    %v1858 = vshrl.u32 %v1857, 7
    %v1859 = vsub.s32 0, %v1858
    %v1860 = vrot.slane %v1462, %v1859
    %v1861 = vlaneseq
    %v1862 = vshrl.u32 %v1861, 7
    %v1863 = vsub.s32 0, %v1862
    %v1864 = vrot.slane %v1463, %v1863
    %v1865 = vlaneseq
    %v1866 = vshrl.u32 %v1865, 7
    %v1867 = vsub.s32 0, %v1866
    %v1868 = vrot.slane %v1464, %v1867
    %v1869 = vlaneseq
    %v1870 = vshrl.u32 %v1869, 7
    %v1871 = vsub.s32 0, %v1870
    %v1872 = vrot.slane %v1465, %v1871
    %v1873 = vlaneseq
    %v1874 = vshrl.u32 %v1873, 7
    %v1875 = vsub.s32 0, %v1874
    %v1876 = vrot.slane %v1466, %v1875
    %v1877 = vlaneseq
    %v1878 = vshrl.u32 %v1877, 7
    %v1879 = vsub.s32 0, %v1878
    %v1880 = vrot.slane %v1467, %v1879
    %v1881 = vlaneseq
    %v1882 = vshrl.u32 %v1881, 7
    %v1883 = vsub.s32 0, %v1882
    %v1884 = vrot.slane %v1468, %v1883
    %v1885 = vlaneseq
    %v1886 = vshrl.u32 %v1885, 7
    %v1887 = vsub.s32 0, %v1886
    %v1888 = vrot.slane %v1469, %v1887
    %v1889 = vlaneseq
    %v1890 = vshrl.u32 %v1889, 7
    %v1891 = vsub.s32 0, %v1890
    %v1892 = vrot.slane %v1470, %v1891
    %v1893 = vlaneseq
    %v1894 = vshrl.u32 %v1893, 7
    %v1895 = vsub.s32 0, %v1894
    %v1896 = vrot.slane %v1471, %v1895
    %v1897 = vlaneseq
    %v1898 = vshrl.u32 %v1897, 7
    %v1899 = vsub.s32 0, %v1898
    %v1900 = vrot.slane %v1472, %v1899
    %v1901 = vlaneseq
    %v1902 = vshrl.u32 %v1901, 7
    %v1903 = vsub.s32 0, %v1902
    %v1904 = vrot.slane %v1473, %v1903
    %v1905 = vlaneseq
    %v1906 = vshrl.u32 %v1905, 7
    %v1907 = vsub.s32 0, %v1906
    %v1908 = vrot.slane %v1474, %v1907
    %v1909 = vlaneseq
    %v1910 = vshrl.u32 %v1909, 7
    %v1911 = vsub.s32 0, %v1910
    %v1912 = vrot.slane %v1475, %v1911
    %v1913 = vlaneseq
    %v1914 = vshrl.u32 %v1913, 7
    %v1915 = vsub.s32 0, %v1914
    %v1916 = vrot.slane %v1476, %v1915
    %v1917 = vlaneseq
    %v1918 = vshrl.u32 %v1917, 7
    %v1919 = vsub.s32 0, %v1918
    %v1920 = vrot.slane %v1477, %v1919
    %v1921 = vlaneseq
    %v1922 = vshrl.u32 %v1921, 7
    %v1923 = vsub.s32 0, %v1922
    %v1924 = vrot.slane %v1478, %v1923
    %v1925 = vlaneseq
    %v1926 = vshrl.u32 %v1925, 7
    %v1927 = vsub.s32 0, %v1926
    %v1928 = vrot.slane %v1479, %v1927
    %v1929 = vlaneseq
    %v1930 = vshrl.u32 %v1929, 7
    %v1931 = vsub.s32 0, %v1930
    %v1932 = vrot.slane %v1480, %v1931
    %v1933 = vlaneseq
    %v1934 = vshrl.u32 %v1933, 7
    %v1935 = vsub.s32 0, %v1934
    %v1936 = vrot.slane %v1481, %v1935
    %v1937 = vlaneseq
    %v1938 = vshrl.u32 %v1937, 7
    %v1939 = vsub.s32 0, %v1938
    %v1940 = vrot.slane %v1482, %v1939
    %v1941 = vlaneseq
    %v1942 = vshrl.u32 %v1941, 7
    %v1943 = vsub.s32 0, %v1942
    %v1944 = vrot.slane %v1483, %v1943
    %v1945 = vlaneseq
    %v1946 = vshrl.u32 %v1945, 7
    %v1947 = vsub.s32 0, %v1946
    %v1948 = vrot.slane %v1484, %v1947
    %v1949 = vlaneseq
    %v1950 = vshrl.u32 %v1949, 7
    %v1951 = vsub.s32 0, %v1950
    %v1952 = vrot.slane %v1485, %v1951
    %v1953 = vlaneseq
    %v1954 = vshrl.u32 %v1953, 7
    %v1955 = vsub.s32 0, %v1954
    %v1956 = vrot.slane %v1486, %v1955
    %v1957 = vlaneseq
    %v1958 = vshrl.u32 %v1957, 7
    %v1959 = vsub.s32 0, %v1958
    %v1960 = vrot.slane %v1487, %v1959
    %v1961 = vlaneseq
    %v1962 = vshrl.u32 %v1961, 7
    %v1963 = vsub.s32 0, %v1962
    %v1964 = vrot.slane %v1488, %v1963
    %v1965 = vlaneseq
    %v1966 = vshrl.u32 %v1965, 7
    %v1967 = vsub.s32 0, %v1966
    %v1968 = vrot.slane %v1489, %v1967
    %v1969 = vlaneseq
    %v1970 = vshrl.u32 %v1969, 7
    %v1971 = vsub.s32 0, %v1970
    %v1972 = vrot.slane %v1490, %v1971
    %v1973 = vlaneseq
    %v1974 = vshrl.u32 %v1973, 7
    %v1975 = vsub.s32 0, %v1974
    %v1976 = vrot.slane %v1491, %v1975
    %v1977 = vlaneseq
    %v1978 = vshrl.u32 %v1977, 7
    %v1979 = vsub.s32 0, %v1978
    %v1980 = vrot.slane %v1492, %v1979
    %v1981 = vlaneseq
    %v1982 = vshrl.u32 %v1981, 7
    %v1983 = vsub.s32 0, %v1982
    %v1984 = vrot.slane %v1493, %v1983
    %v1985 = vlaneseq
    %v1986 = vshrl.u32 %v1985, 7
    %v1987 = vsub.s32 0, %v1986
    %v1988 = vrot.slane %v1494, %v1987
    %v1989 = vlaneseq
    %v1990 = vshrl.u32 %v1989, 7
    %v1991 = vsub.s32 0, %v1990
    %v1992 = vrot.slane %v1495, %v1991
    %v1993 = vlaneseq
    %v1994 = vshrl.u32 %v1993, 7
    %v1995 = vsub.s32 0, %v1994
    %v1996 = vrot.slane %v1496, %v1995
    %v1997 = vlaneseq
    %v1998 = vshrl.u32 %v1997, 7
    %v1999 = vsub.s32 0, %v1998
    %v2000 = vrot.slane %v1497, %v1999
    %v2001 = vlaneseq
    %v2002 = vshrl.u32 %v2001, 7
    %v2003 = vsub.s32 0, %v2002
    %v2004 = vrot.slane %v1498, %v2003
    %v2005 = vlaneseq
    %v2006 = vshrl.u32 %v2005, 7
    %v2007 = vsub.s32 0, %v2006
    %v2008 = vrot.slane %v1499, %v2007
    %v2009 = vlaneseq
    %v2010 = vshrl.u32 %v2009, 7
    %v2011 = vsub.s32 0, %v2010
    %v2012 = vrot.slane %v1500, %v2011
    %vm2013 = vcmp.eq.s32.totalorder %v1504, 1
    %vm2014 = vcmp.eq.s32.totalorder %v1508, 1
    %vm2015 = vcmp.eq.s32.totalorder %v1512, 1
    %vm2016 = vcmp.eq.s32.totalorder %v1516, 1
    %vm2017 = vcmp.eq.s32.totalorder %v1520, 1
    %vm2018 = vcmp.eq.s32.totalorder %v1524, 1
    %vm2019 = vcmp.eq.s32.totalorder %v1528, 1
    %vm2020 = vcmp.eq.s32.totalorder %v1532, 1
    %vm2021 = vcmp.eq.s32.totalorder %v1536, 1
    %vm2022 = vcmp.eq.s32.totalorder %v1540, 1
    %vm2023 = vcmp.eq.s32.totalorder %v1544, 1
    %vm2024 = vcmp.eq.s32.totalorder %v1548, 1
    %vm2025 = vcmp.eq.s32.totalorder %v1552, 1
    %vm2026 = vcmp.eq.s32.totalorder %v1556, 1
    %vm2027 = vcmp.eq.s32.totalorder %v1560, 1
    %vm2028 = vcmp.eq.s32.totalorder %v1564, 1
    %vm2029 = vcmp.eq.s32.totalorder %v1568, 1
    %vm2030 = vcmp.eq.s32.totalorder %v1572, 1
    %vm2031 = vcmp.eq.s32.totalorder %v1576, 1
    %vm2032 = vcmp.eq.s32.totalorder %v1580, 1
    %vm2033 = vcmp.eq.s32.totalorder %v1584, 1
    %vm2034 = vcmp.eq.s32.totalorder %v1588, 1
    %vm2035 = vcmp.eq.s32.totalorder %v1592, 1
    %vm2036 = vcmp.eq.s32.totalorder %v1596, 1
    %vm2037 = vcmp.eq.s32.totalorder %v1600, 1
    %vm2038 = vcmp.eq.s32.totalorder %v1604, 1
    %vm2039 = vcmp.eq.s32.totalorder %v1608, 1
    %vm2040 = vcmp.eq.s32.totalorder %v1612, 1
    %vm2041 = vcmp.eq.s32.totalorder %v1616, 1
    %vm2042 = vcmp.eq.s32.totalorder %v1620, 1
    %vm2043 = vcmp.eq.s32.totalorder %v1624, 1
    %vm2044 = vcmp.eq.s32.totalorder %v1628, 1
    %vm2045 = vcmp.eq.s32.totalorder %v1632, 1
    %vm2046 = vcmp.eq.s32.totalorder %v1636, 1
    %vm2047 = vcmp.eq.s32.totalorder %v1640, 1
    %vm2048 = vcmp.eq.s32.totalorder %v1644, 1
    %vm2049 = vcmp.eq.s32.totalorder %v1648, 1
    %vm2050 = vcmp.eq.s32.totalorder %v1652, 1
    %vm2051 = vcmp.eq.s32.totalorder %v1656, 1
    %vm2052 = vcmp.eq.s32.totalorder %v1660, 1
    %vm2053 = vcmp.eq.s32.totalorder %v1664, 1
    %vm2054 = vcmp.eq.s32.totalorder %v1668, 1
    %vm2055 = vcmp.eq.s32.totalorder %v1672, 1
    %vm2056 = vcmp.eq.s32.totalorder %v1676, 1
    %vm2057 = vcmp.eq.s32.totalorder %v1680, 1
    %vm2058 = vcmp.eq.s32.totalorder %v1684, 1
    %vm2059 = vcmp.eq.s32.totalorder %v1688, 1
    %vm2060 = vcmp.eq.s32.totalorder %v1692, 1
    %vm2061 = vcmp.eq.s32.totalorder %v1696, 1
    %vm2062 = vcmp.eq.s32.totalorder %v1700, 1
    %vm2063 = vcmp.eq.s32.totalorder %v1704, 1
    %vm2064 = vcmp.eq.s32.totalorder %v1708, 1
    %vm2065 = vcmp.eq.s32.totalorder %v1712, 1
    %vm2066 = vcmp.eq.s32.totalorder %v1716, 1
    %vm2067 = vcmp.eq.s32.totalorder %v1720, 1
    %vm2068 = vcmp.eq.s32.totalorder %v1724, 1
    %vm2069 = vcmp.eq.s32.totalorder %v1728, 1
    %vm2070 = vcmp.eq.s32.totalorder %v1732, 1
    %vm2071 = vcmp.eq.s32.totalorder %v1736, 1
    %vm2072 = vcmp.eq.s32.totalorder %v1740, 1
    %vm2073 = vcmp.eq.s32.totalorder %v1744, 1
    %vm2074 = vcmp.eq.s32.totalorder %v1748, 1
    %vm2075 = vcmp.eq.s32.totalorder %v1752, 1
    %vm2076 = vcmp.eq.s32.totalorder %v1756, 1
    %vm2077 = vcmp.eq.s32.totalorder %v1760, 1
    %vm2078 = vcmp.eq.s32.totalorder %v1764, 1
    %vm2079 = vcmp.eq.s32.totalorder %v1768, 1
    %vm2080 = vcmp.eq.s32.totalorder %v1772, 1
    %vm2081 = vcmp.eq.s32.totalorder %v1776, 1
    %vm2082 = vcmp.eq.s32.totalorder %v1780, 1
    %vm2083 = vcmp.eq.s32.totalorder %v1784, 1
    %vm2084 = vcmp.eq.s32.totalorder %v1788, 1
    %vm2085 = vcmp.eq.s32.totalorder %v1792, 1
    %vm2086 = vcmp.eq.s32.totalorder %v1796, 1
    %vm2087 = vcmp.eq.s32.totalorder %v1800, 1
    %vm2088 = vcmp.eq.s32.totalorder %v1804, 1
    %vm2089 = vcmp.eq.s32.totalorder %v1808, 1
    %vm2090 = vcmp.eq.s32.totalorder %v1812, 1
    %vm2091 = vcmp.eq.s32.totalorder %v1816, 1
    %vm2092 = vcmp.eq.s32.totalorder %v1820, 1
    %vm2093 = vcmp.eq.s32.totalorder %v1824, 1
    %vm2094 = vcmp.eq.s32.totalorder %v1828, 1
    %vm2095 = vcmp.eq.s32.totalorder %v1832, 1
    %vm2096 = vcmp.eq.s32.totalorder %v1836, 1
    %vm2097 = vcmp.eq.s32.totalorder %v1840, 1
    %vm2098 = vcmp.eq.s32.totalorder %v1844, 1
    %vm2099 = vcmp.eq.s32.totalorder %v1848, 1
    %vm2100 = vcmp.eq.s32.totalorder %v1852, 1
    %vm2101 = vcmp.eq.s32.totalorder %v1856, 1
    %vm2102 = vcmp.eq.s32.totalorder %v1860, 1
    %vm2103 = vcmp.eq.s32.totalorder %v1864, 1
    %vm2104 = vcmp.eq.s32.totalorder %v1868, 1
    %vm2105 = vcmp.eq.s32.totalorder %v1872, 1
    %vm2106 = vcmp.eq.s32.totalorder %v1876, 1
    %vm2107 = vcmp.eq.s32.totalorder %v1880, 1
    %vm2108 = vcmp.eq.s32.totalorder %v1884, 1
    %vm2109 = vcmp.eq.s32.totalorder %v1888, 1
    %vm2110 = vcmp.eq.s32.totalorder %v1892, 1
    %vm2111 = vcmp.eq.s32.totalorder %v1896, 1
    %vm2112 = vcmp.eq.s32.totalorder %v1900, 1
    %vm2113 = vcmp.eq.s32.totalorder %v1904, 1
    %vm2114 = vcmp.eq.s32.totalorder %v1908, 1
    %vm2115 = vcmp.eq.s32.totalorder %v1912, 1
    %vm2116 = vcmp.eq.s32.totalorder %v1916, 1
    %vm2117 = vcmp.eq.s32.totalorder %v1920, 1
    %vm2118 = vcmp.eq.s32.totalorder %v1924, 1
    %vm2119 = vcmp.eq.s32.totalorder %v1928, 1
    %vm2120 = vcmp.eq.s32.totalorder %v1932, 1
    %vm2121 = vcmp.eq.s32.totalorder %v1936, 1
    %vm2122 = vcmp.eq.s32.totalorder %v1940, 1
    %vm2123 = vcmp.eq.s32.totalorder %v1944, 1
    %vm2124 = vcmp.eq.s32.totalorder %v1948, 1
    %vm2125 = vcmp.eq.s32.totalorder %v1952, 1
    %vm2126 = vcmp.eq.s32.totalorder %v1956, 1
    %vm2127 = vcmp.eq.s32.totalorder %v1960, 1
    %vm2128 = vcmp.eq.s32.totalorder %v1964, 1
    %vm2129 = vcmp.eq.s32.totalorder %v1968, 1
    %vm2130 = vcmp.eq.s32.totalorder %v1972, 1
    %vm2131 = vcmp.eq.s32.totalorder %v1976, 1
    %vm2132 = vcmp.eq.s32.totalorder %v1980, 1
    %vm2133 = vcmp.eq.s32.totalorder %v1984, 1
    %vm2134 = vcmp.eq.s32.totalorder %v1988, 1
    %vm2135 = vcmp.eq.s32.totalorder %v1992, 1
    %vm2136 = vcmp.eq.s32.totalorder %v1996, 1
    %vm2137 = vcmp.eq.s32.totalorder %v2000, 1
    %vm2138 = vcmp.eq.s32.totalorder %v2004, 1
    %vm2139 = vcmp.eq.s32.totalorder %v2008, 1
    %vm2140 = vcmp.eq.s32.totalorder %v2012, 1
    %v2141 = vsel %vm2013, %v376, 0.0
    %v2142 = vsel %vm2014, %v376, 0.0
    %v2143 = vsel %vm2015, %v376, 0.0
    %v2144 = vsel %vm2016, %v376, 0.0
    %v2145 = vsel %vm2017, %v376, 0.0
    %v2146 = vsel %vm2018, %v376, 0.0
    %v2147 = vsel %vm2019, %v376, 0.0
    %v2148 = vsel %vm2020, %v376, 0.0
    %v2149 = vsel %vm2021, %v376, 0.0
    %v2150 = vsel %vm2022, %v376, 0.0
    %v2151 = vsel %vm2023, %v376, 0.0
    %v2152 = vsel %vm2024, %v376, 0.0
    %v2153 = vsel %vm2025, %v376, 0.0
    %v2154 = vsel %vm2026, %v376, 0.0
    %v2155 = vsel %vm2027, %v376, 0.0
    %v2156 = vsel %vm2028, %v376, 0.0
    %v2157 = vsel %vm2029, %v376, 0.0
    %v2158 = vsel %vm2030, %v376, 0.0
    %v2159 = vsel %vm2031, %v376, 0.0
    %v2160 = vsel %vm2032, %v376, 0.0
    %v2161 = vsel %vm2033, %v376, 0.0
    %v2162 = vsel %vm2034, %v376, 0.0
    %v2163 = vsel %vm2035, %v376, 0.0
    %v2164 = vsel %vm2036, %v376, 0.0
    %v2165 = vsel %vm2037, %v376, 0.0
    %v2166 = vsel %vm2038, %v376, 0.0
    %v2167 = vsel %vm2039, %v376, 0.0
    %v2168 = vsel %vm2040, %v376, 0.0
    %v2169 = vsel %vm2041, %v376, 0.0
    %v2170 = vsel %vm2042, %v376, 0.0
    %v2171 = vsel %vm2043, %v376, 0.0
    %v2172 = vsel %vm2044, %v376, 0.0
    %v2173 = vsel %vm2045, %v376, 0.0
    %v2174 = vsel %vm2046, %v376, 0.0
    %v2175 = vsel %vm2047, %v376, 0.0
    %v2176 = vsel %vm2048, %v376, 0.0
    %v2177 = vsel %vm2049, %v376, 0.0
    %v2178 = vsel %vm2050, %v376, 0.0
    %v2179 = vsel %vm2051, %v376, 0.0
    %v2180 = vsel %vm2052, %v376, 0.0
    %v2181 = vsel %vm2053, %v376, 0.0
    %v2182 = vsel %vm2054, %v376, 0.0
    %v2183 = vsel %vm2055, %v376, 0.0
    %v2184 = vsel %vm2056, %v376, 0.0
    %v2185 = vsel %vm2057, %v376, 0.0
    %v2186 = vsel %vm2058, %v376, 0.0
    %v2187 = vsel %vm2059, %v376, 0.0
    %v2188 = vsel %vm2060, %v376, 0.0
    %v2189 = vsel %vm2061, %v376, 0.0
    %v2190 = vsel %vm2062, %v376, 0.0
    %v2191 = vsel %vm2063, %v376, 0.0
    %v2192 = vsel %vm2064, %v376, 0.0
    %v2193 = vsel %vm2065, %v376, 0.0
    %v2194 = vsel %vm2066, %v376, 0.0
    %v2195 = vsel %vm2067, %v376, 0.0
    %v2196 = vsel %vm2068, %v376, 0.0
    %v2197 = vsel %vm2069, %v376, 0.0
    %v2198 = vsel %vm2070, %v376, 0.0
    %v2199 = vsel %vm2071, %v376, 0.0
    %v2200 = vsel %vm2072, %v376, 0.0
    %v2201 = vsel %vm2073, %v376, 0.0
    %v2202 = vsel %vm2074, %v376, 0.0
    %v2203 = vsel %vm2075, %v376, 0.0
    %v2204 = vsel %vm2076, %v376, 0.0
    %v2205 = vsel %vm2077, %v376, 0.0
    %v2206 = vsel %vm2078, %v376, 0.0
    %v2207 = vsel %vm2079, %v376, 0.0
    %v2208 = vsel %vm2080, %v376, 0.0
    %v2209 = vsel %vm2081, %v376, 0.0
    %v2210 = vsel %vm2082, %v376, 0.0
    %v2211 = vsel %vm2083, %v376, 0.0
    %v2212 = vsel %vm2084, %v376, 0.0
    %v2213 = vsel %vm2085, %v376, 0.0
    %v2214 = vsel %vm2086, %v376, 0.0
    %v2215 = vsel %vm2087, %v376, 0.0
    %v2216 = vsel %vm2088, %v376, 0.0
    %v2217 = vsel %vm2089, %v376, 0.0
    %v2218 = vsel %vm2090, %v376, 0.0
    %v2219 = vsel %vm2091, %v376, 0.0
    %v2220 = vsel %vm2092, %v376, 0.0
    %v2221 = vsel %vm2093, %v376, 0.0
    %v2222 = vsel %vm2094, %v376, 0.0
    %v2223 = vsel %vm2095, %v376, 0.0
    %v2224 = vsel %vm2096, %v376, 0.0
    %v2225 = vsel %vm2097, %v376, 0.0
    %v2226 = vsel %vm2098, %v376, 0.0
    %v2227 = vsel %vm2099, %v376, 0.0
    %v2228 = vsel %vm2100, %v376, 0.0
    %v2229 = vsel %vm2101, %v376, 0.0
    %v2230 = vsel %vm2102, %v376, 0.0
    %v2231 = vsel %vm2103, %v376, 0.0
    %v2232 = vsel %vm2104, %v376, 0.0
    %v2233 = vsel %vm2105, %v376, 0.0
    %v2234 = vsel %vm2106, %v376, 0.0
    %v2235 = vsel %vm2107, %v376, 0.0
    %v2236 = vsel %vm2108, %v376, 0.0
    %v2237 = vsel %vm2109, %v376, 0.0
    %v2238 = vsel %vm2110, %v376, 0.0
    %v2239 = vsel %vm2111, %v376, 0.0
    %v2240 = vsel %vm2112, %v376, 0.0
    %v2241 = vsel %vm2113, %v376, 0.0
    %v2242 = vsel %vm2114, %v376, 0.0
    %v2243 = vsel %vm2115, %v376, 0.0
    %v2244 = vsel %vm2116, %v376, 0.0
    %v2245 = vsel %vm2117, %v376, 0.0
    %v2246 = vsel %vm2118, %v376, 0.0
    %v2247 = vsel %vm2119, %v376, 0.0
    %v2248 = vsel %vm2120, %v376, 0.0
    %v2249 = vsel %vm2121, %v376, 0.0
    %v2250 = vsel %vm2122, %v376, 0.0
    %v2251 = vsel %vm2123, %v376, 0.0
    %v2252 = vsel %vm2124, %v376, 0.0
    %v2253 = vsel %vm2125, %v376, 0.0
    %v2254 = vsel %vm2126, %v376, 0.0
    %v2255 = vsel %vm2127, %v376, 0.0
    %v2256 = vsel %vm2128, %v376, 0.0
    %v2257 = vsel %vm2129, %v376, 0.0
    %v2258 = vsel %vm2130, %v376, 0.0
    %v2259 = vsel %vm2131, %v376, 0.0
    %v2260 = vsel %vm2132, %v376, 0.0
    %v2261 = vsel %vm2133, %v376, 0.0
    %v2262 = vsel %vm2134, %v376, 0.0
    %v2263 = vsel %vm2135, %v376, 0.0
    %v2264 = vsel %vm2136, %v376, 0.0
    %v2265 = vsel %vm2137, %v376, 0.0
    %v2266 = vsel %vm2138, %v376, 0.0
    %v2267 = vsel %vm2139, %v376, 0.0
    %v2268 = vsel %vm2140, %v376, 0.0
    %2269 = vmax.xlane.f32.xlu0 %v2141
    %v2270 = vpop.xlane.xlu0 %2269
    %2271 = vmax.xlane.f32.xlu0 %v2142
    %v2272 = vpop.xlane.xlu0 %2271
    %2273 = vmax.xlane.f32.xlu0 %v2143
    %v2274 = vpop.xlane.xlu0 %2273
    %2275 = vmax.xlane.f32.xlu0 %v2144
    %v2276 = vpop.xlane.xlu0 %2275
    %2277 = vmax.xlane.f32.xlu0 %v2145
    %v2278 = vpop.xlane.xlu0 %2277
    %2279 = vmax.xlane.f32.xlu0 %v2146
    %v2280 = vpop.xlane.xlu0 %2279
    %2281 = vmax.xlane.f32.xlu0 %v2147
    %v2282 = vpop.xlane.xlu0 %2281
    %2283 = vmax.xlane.f32.xlu0 %v2148
    %v2284 = vpop.xlane.xlu0 %2283
    %2285 = vmax.xlane.f32.xlu0 %v2149
    %v2286 = vpop.xlane.xlu0 %2285
    %2287 = vmax.xlane.f32.xlu0 %v2150
    %v2288 = vpop.xlane.xlu0 %2287
    %2289 = vmax.xlane.f32.xlu0 %v2151
    %v2290 = vpop.xlane.xlu0 %2289
    %2291 = vmax.xlane.f32.xlu0 %v2152
    %v2292 = vpop.xlane.xlu0 %2291
    %2293 = vmax.xlane.f32.xlu0 %v2153
    %v2294 = vpop.xlane.xlu0 %2293
    %2295 = vmax.xlane.f32.xlu0 %v2154
    %v2296 = vpop.xlane.xlu0 %2295
    %2297 = vmax.xlane.f32.xlu0 %v2155
    %v2298 = vpop.xlane.xlu0 %2297
    %2299 = vmax.xlane.f32.xlu0 %v2156
    %v2300 = vpop.xlane.xlu0 %2299
    %2301 = vmax.xlane.f32.xlu0 %v2157
    %v2302 = vpop.xlane.xlu0 %2301
    %2303 = vmax.xlane.f32.xlu0 %v2158
    %v2304 = vpop.xlane.xlu0 %2303
    %2305 = vmax.xlane.f32.xlu0 %v2159
    %v2306 = vpop.xlane.xlu0 %2305
    %2307 = vmax.xlane.f32.xlu0 %v2160
    %v2308 = vpop.xlane.xlu0 %2307
    %2309 = vmax.xlane.f32.xlu0 %v2161
    %v2310 = vpop.xlane.xlu0 %2309
    %2311 = vmax.xlane.f32.xlu0 %v2162
    %v2312 = vpop.xlane.xlu0 %2311
    %2313 = vmax.xlane.f32.xlu0 %v2163
    %v2314 = vpop.xlane.xlu0 %2313
    %2315 = vmax.xlane.f32.xlu0 %v2164
    %v2316 = vpop.xlane.xlu0 %2315
    %2317 = vmax.xlane.f32.xlu0 %v2165
    %v2318 = vpop.xlane.xlu0 %2317
    %2319 = vmax.xlane.f32.xlu0 %v2166
    %v2320 = vpop.xlane.xlu0 %2319
    %2321 = vmax.xlane.f32.xlu0 %v2167
    %v2322 = vpop.xlane.xlu0 %2321
    %2323 = vmax.xlane.f32.xlu0 %v2168
    %v2324 = vpop.xlane.xlu0 %2323
    %2325 = vmax.xlane.f32.xlu0 %v2169
    %v2326 = vpop.xlane.xlu0 %2325
    %2327 = vmax.xlane.f32.xlu0 %v2170
    %v2328 = vpop.xlane.xlu0 %2327
    %2329 = vmax.xlane.f32.xlu0 %v2171
    %v2330 = vpop.xlane.xlu0 %2329
    %2331 = vmax.xlane.f32.xlu0 %v2172
    %v2332 = vpop.xlane.xlu0 %2331
    %2333 = vmax.xlane.f32.xlu0 %v2173
    %v2334 = vpop.xlane.xlu0 %2333
    %2335 = vmax.xlane.f32.xlu0 %v2174
    %v2336 = vpop.xlane.xlu0 %2335
    %2337 = vmax.xlane.f32.xlu0 %v2175
    %v2338 = vpop.xlane.xlu0 %2337
    %2339 = vmax.xlane.f32.xlu0 %v2176
    %v2340 = vpop.xlane.xlu0 %2339
    %2341 = vmax.xlane.f32.xlu0 %v2177
    %v2342 = vpop.xlane.xlu0 %2341
    %2343 = vmax.xlane.f32.xlu0 %v2178
    %v2344 = vpop.xlane.xlu0 %2343
    %2345 = vmax.xlane.f32.xlu0 %v2179
    %v2346 = vpop.xlane.xlu0 %2345
    %2347 = vmax.xlane.f32.xlu0 %v2180
    %v2348 = vpop.xlane.xlu0 %2347
    %2349 = vmax.xlane.f32.xlu0 %v2181
    %v2350 = vpop.xlane.xlu0 %2349
    %2351 = vmax.xlane.f32.xlu0 %v2182
    %v2352 = vpop.xlane.xlu0 %2351
    %2353 = vmax.xlane.f32.xlu0 %v2183
    %v2354 = vpop.xlane.xlu0 %2353
    %2355 = vmax.xlane.f32.xlu0 %v2184
    %v2356 = vpop.xlane.xlu0 %2355
    %2357 = vmax.xlane.f32.xlu0 %v2185
    %v2358 = vpop.xlane.xlu0 %2357
    %2359 = vmax.xlane.f32.xlu0 %v2186
    %v2360 = vpop.xlane.xlu0 %2359
    %2361 = vmax.xlane.f32.xlu0 %v2187
    %v2362 = vpop.xlane.xlu0 %2361
    %2363 = vmax.xlane.f32.xlu0 %v2188
    %v2364 = vpop.xlane.xlu0 %2363
    %2365 = vmax.xlane.f32.xlu0 %v2189
    %v2366 = vpop.xlane.xlu0 %2365
    %2367 = vmax.xlane.f32.xlu0 %v2190
    %v2368 = vpop.xlane.xlu0 %2367
    %2369 = vmax.xlane.f32.xlu0 %v2191
    %v2370 = vpop.xlane.xlu0 %2369
    %2371 = vmax.xlane.f32.xlu0 %v2192
    %v2372 = vpop.xlane.xlu0 %2371
    %2373 = vmax.xlane.f32.xlu0 %v2193
    %v2374 = vpop.xlane.xlu0 %2373
    %2375 = vmax.xlane.f32.xlu0 %v2194
    %v2376 = vpop.xlane.xlu0 %2375
    %2377 = vmax.xlane.f32.xlu0 %v2195
    %v2378 = vpop.xlane.xlu0 %2377
    %2379 = vmax.xlane.f32.xlu0 %v2196
    %v2380 = vpop.xlane.xlu0 %2379
    %2381 = vmax.xlane.f32.xlu0 %v2197
    %v2382 = vpop.xlane.xlu0 %2381
    %2383 = vmax.xlane.f32.xlu0 %v2198
    %v2384 = vpop.xlane.xlu0 %2383
    %2385 = vmax.xlane.f32.xlu0 %v2199
    %v2386 = vpop.xlane.xlu0 %2385
    %2387 = vmax.xlane.f32.xlu0 %v2200
    %v2388 = vpop.xlane.xlu0 %2387
    %2389 = vmax.xlane.f32.xlu0 %v2201
    %v2390 = vpop.xlane.xlu0 %2389
    %2391 = vmax.xlane.f32.xlu0 %v2202
    %v2392 = vpop.xlane.xlu0 %2391
    %2393 = vmax.xlane.f32.xlu0 %v2203
    %v2394 = vpop.xlane.xlu0 %2393
    %2395 = vmax.xlane.f32.xlu0 %v2204
    %v2396 = vpop.xlane.xlu0 %2395
    %2397 = vmax.xlane.f32.xlu0 %v2205
    %v2398 = vpop.xlane.xlu0 %2397
    %2399 = vmax.xlane.f32.xlu0 %v2206
    %v2400 = vpop.xlane.xlu0 %2399
    %2401 = vmax.xlane.f32.xlu0 %v2207
    %v2402 = vpop.xlane.xlu0 %2401
    %2403 = vmax.xlane.f32.xlu0 %v2208
    %v2404 = vpop.xlane.xlu0 %2403
    %2405 = vmax.xlane.f32.xlu0 %v2209
    %v2406 = vpop.xlane.xlu0 %2405
    %2407 = vmax.xlane.f32.xlu0 %v2210
    %v2408 = vpop.xlane.xlu0 %2407
    %2409 = vmax.xlane.f32.xlu0 %v2211
    %v2410 = vpop.xlane.xlu0 %2409
    %2411 = vmax.xlane.f32.xlu0 %v2212
    %v2412 = vpop.xlane.xlu0 %2411
    %2413 = vmax.xlane.f32.xlu0 %v2213
    %v2414 = vpop.xlane.xlu0 %2413
    %2415 = vmax.xlane.f32.xlu0 %v2214
    %v2416 = vpop.xlane.xlu0 %2415
    %2417 = vmax.xlane.f32.xlu0 %v2215
    %v2418 = vpop.xlane.xlu0 %2417
    %2419 = vmax.xlane.f32.xlu0 %v2216
    %v2420 = vpop.xlane.xlu0 %2419
    %2421 = vmax.xlane.f32.xlu0 %v2217
    %v2422 = vpop.xlane.xlu0 %2421
    %2423 = vmax.xlane.f32.xlu0 %v2218
    %v2424 = vpop.xlane.xlu0 %2423
    %2425 = vmax.xlane.f32.xlu0 %v2219
    %v2426 = vpop.xlane.xlu0 %2425
    %2427 = vmax.xlane.f32.xlu0 %v2220
    %v2428 = vpop.xlane.xlu0 %2427
    %2429 = vmax.xlane.f32.xlu0 %v2221
    %v2430 = vpop.xlane.xlu0 %2429
    %2431 = vmax.xlane.f32.xlu0 %v2222
    %v2432 = vpop.xlane.xlu0 %2431
    %2433 = vmax.xlane.f32.xlu0 %v2223
    %v2434 = vpop.xlane.xlu0 %2433
    %2435 = vmax.xlane.f32.xlu0 %v2224
    %v2436 = vpop.xlane.xlu0 %2435
    %2437 = vmax.xlane.f32.xlu0 %v2225
    %v2438 = vpop.xlane.xlu0 %2437
    %2439 = vmax.xlane.f32.xlu0 %v2226
    %v2440 = vpop.xlane.xlu0 %2439
    %2441 = vmax.xlane.f32.xlu0 %v2227
    %v2442 = vpop.xlane.xlu0 %2441
    %2443 = vmax.xlane.f32.xlu0 %v2228
    %v2444 = vpop.xlane.xlu0 %2443
    %2445 = vmax.xlane.f32.xlu0 %v2229
    %v2446 = vpop.xlane.xlu0 %2445
    %2447 = vmax.xlane.f32.xlu0 %v2230
    %v2448 = vpop.xlane.xlu0 %2447
    %2449 = vmax.xlane.f32.xlu0 %v2231
    %v2450 = vpop.xlane.xlu0 %2449
    %2451 = vmax.xlane.f32.xlu0 %v2232
    %v2452 = vpop.xlane.xlu0 %2451
    %2453 = vmax.xlane.f32.xlu0 %v2233
    %v2454 = vpop.xlane.xlu0 %2453
    %2455 = vmax.xlane.f32.xlu0 %v2234
    %v2456 = vpop.xlane.xlu0 %2455
    %2457 = vmax.xlane.f32.xlu0 %v2235
    %v2458 = vpop.xlane.xlu0 %2457
    %2459 = vmax.xlane.f32.xlu0 %v2236
    %v2460 = vpop.xlane.xlu0 %2459
    %2461 = vmax.xlane.f32.xlu0 %v2237
    %v2462 = vpop.xlane.xlu0 %2461
    %2463 = vmax.xlane.f32.xlu0 %v2238
    %v2464 = vpop.xlane.xlu0 %2463
    %2465 = vmax.xlane.f32.xlu0 %v2239
    %v2466 = vpop.xlane.xlu0 %2465
    %2467 = vmax.xlane.f32.xlu0 %v2240
    %v2468 = vpop.xlane.xlu0 %2467
    %2469 = vmax.xlane.f32.xlu0 %v2241
    %v2470 = vpop.xlane.xlu0 %2469
    %2471 = vmax.xlane.f32.xlu0 %v2242
    %v2472 = vpop.xlane.xlu0 %2471
    %2473 = vmax.xlane.f32.xlu0 %v2243
    %v2474 = vpop.xlane.xlu0 %2473
    %2475 = vmax.xlane.f32.xlu0 %v2244
    %v2476 = vpop.xlane.xlu0 %2475
    %2477 = vmax.xlane.f32.xlu0 %v2245
    %v2478 = vpop.xlane.xlu0 %2477
    %2479 = vmax.xlane.f32.xlu0 %v2246
    %v2480 = vpop.xlane.xlu0 %2479
    %2481 = vmax.xlane.f32.xlu0 %v2247
    %v2482 = vpop.xlane.xlu0 %2481
    %2483 = vmax.xlane.f32.xlu0 %v2248
    %v2484 = vpop.xlane.xlu0 %2483
    %2485 = vmax.xlane.f32.xlu0 %v2249
    %v2486 = vpop.xlane.xlu0 %2485
    %2487 = vmax.xlane.f32.xlu0 %v2250
    %v2488 = vpop.xlane.xlu0 %2487
    %2489 = vmax.xlane.f32.xlu0 %v2251
    %v2490 = vpop.xlane.xlu0 %2489
    %2491 = vmax.xlane.f32.xlu0 %v2252
    %v2492 = vpop.xlane.xlu0 %2491
    %2493 = vmax.xlane.f32.xlu0 %v2253
    %v2494 = vpop.xlane.xlu0 %2493
    %2495 = vmax.xlane.f32.xlu0 %v2254
    %v2496 = vpop.xlane.xlu0 %2495
    %2497 = vmax.xlane.f32.xlu0 %v2255
    %v2498 = vpop.xlane.xlu0 %2497
    %2499 = vmax.xlane.f32.xlu0 %v2256
    %v2500 = vpop.xlane.xlu0 %2499
    %2501 = vmax.xlane.f32.xlu0 %v2257
    %v2502 = vpop.xlane.xlu0 %2501
    %2503 = vmax.xlane.f32.xlu0 %v2258
    %v2504 = vpop.xlane.xlu0 %2503
    %2505 = vmax.xlane.f32.xlu0 %v2259
    %v2506 = vpop.xlane.xlu0 %2505
    %2507 = vmax.xlane.f32.xlu0 %v2260
    %v2508 = vpop.xlane.xlu0 %2507
    %2509 = vmax.xlane.f32.xlu0 %v2261
    %v2510 = vpop.xlane.xlu0 %2509
    %2511 = vmax.xlane.f32.xlu0 %v2262
    %v2512 = vpop.xlane.xlu0 %2511
    %2513 = vmax.xlane.f32.xlu0 %v2263
    %v2514 = vpop.xlane.xlu0 %2513
    %2515 = vmax.xlane.f32.xlu0 %v2264
    %v2516 = vpop.xlane.xlu0 %2515
    %2517 = vmax.xlane.f32.xlu0 %v2265
    %v2518 = vpop.xlane.xlu0 %2517
    %2519 = vmax.xlane.f32.xlu0 %v2266
    %v2520 = vpop.xlane.xlu0 %2519
    %2521 = vmax.xlane.f32.xlu0 %v2267
    %v2522 = vpop.xlane.xlu0 %2521
    %2523 = vmax.xlane.f32.xlu0 %v2268
    %v2524 = vpop.xlane.xlu0 %2523
    %v2653 = vlaneseq
    %v2654 = vand.u32 %v2653, 127
    %v2655 = vlaneseq
    %v2656 = vshrl.u32 %v2655, 7
    %v2657 = vsub.s32 %v2654, %v2656
    %v2658 = vrot.slane %v2270, %v2657
    %v2659 = vlaneseq
    %v2660 = vshrl.u32 %v2659, 7
    %v2661 = vsub.s32 %v2654, %v2660
    %v2662 = vrot.slane %v2272, %v2661
    %v2663 = vlaneseq
    %v2664 = vshrl.u32 %v2663, 7
    %v2665 = vsub.s32 %v2654, %v2664
    %v2666 = vrot.slane %v2274, %v2665
    %v2667 = vlaneseq
    %v2668 = vshrl.u32 %v2667, 7
    %v2669 = vsub.s32 %v2654, %v2668
    %v2670 = vrot.slane %v2276, %v2669
    %v2671 = vlaneseq
    %v2672 = vshrl.u32 %v2671, 7
    %v2673 = vsub.s32 %v2654, %v2672
    %v2674 = vrot.slane %v2278, %v2673
    %v2675 = vlaneseq
    %v2676 = vshrl.u32 %v2675, 7
    %v2677 = vsub.s32 %v2654, %v2676
    %v2678 = vrot.slane %v2280, %v2677
    %v2679 = vlaneseq
    %v2680 = vshrl.u32 %v2679, 7
    %v2681 = vsub.s32 %v2654, %v2680
    %v2682 = vrot.slane %v2282, %v2681
    %v2683 = vlaneseq
    %v2684 = vshrl.u32 %v2683, 7
    %v2685 = vsub.s32 %v2654, %v2684
    %v2686 = vrot.slane %v2284, %v2685
    %v2687 = vlaneseq
    %v2688 = vshrl.u32 %v2687, 7
    %v2689 = vsub.s32 %v2654, %v2688
    %v2690 = vrot.slane %v2286, %v2689
    %v2691 = vlaneseq
    %v2692 = vshrl.u32 %v2691, 7
    %v2693 = vsub.s32 %v2654, %v2692
    %v2694 = vrot.slane %v2288, %v2693
    %v2695 = vlaneseq
    %v2696 = vshrl.u32 %v2695, 7
    %v2697 = vsub.s32 %v2654, %v2696
    %v2698 = vrot.slane %v2290, %v2697
    %v2699 = vlaneseq
    %v2700 = vshrl.u32 %v2699, 7
    %v2701 = vsub.s32 %v2654, %v2700
    %v2702 = vrot.slane %v2292, %v2701
    %v2703 = vlaneseq
    %v2704 = vshrl.u32 %v2703, 7
    %v2705 = vsub.s32 %v2654, %v2704
    %v2706 = vrot.slane %v2294, %v2705
    %v2707 = vlaneseq
    %v2708 = vshrl.u32 %v2707, 7
    %v2709 = vsub.s32 %v2654, %v2708
    %v2710 = vrot.slane %v2296, %v2709
    %v2711 = vlaneseq
    %v2712 = vshrl.u32 %v2711, 7
    %v2713 = vsub.s32 %v2654, %v2712
    %v2714 = vrot.slane %v2298, %v2713
    %v2715 = vlaneseq
    %v2716 = vshrl.u32 %v2715, 7
    %v2717 = vsub.s32 %v2654, %v2716
    %v2718 = vrot.slane %v2300, %v2717
    %v2719 = vlaneseq
    %v2720 = vshrl.u32 %v2719, 7
    %v2721 = vsub.s32 %v2654, %v2720
    %v2722 = vrot.slane %v2302, %v2721
    %v2723 = vlaneseq
    %v2724 = vshrl.u32 %v2723, 7
    %v2725 = vsub.s32 %v2654, %v2724
    %v2726 = vrot.slane %v2304, %v2725
    %v2727 = vlaneseq
    %v2728 = vshrl.u32 %v2727, 7
    %v2729 = vsub.s32 %v2654, %v2728
    %v2730 = vrot.slane %v2306, %v2729
    %v2731 = vlaneseq
    %v2732 = vshrl.u32 %v2731, 7
    %v2733 = vsub.s32 %v2654, %v2732
    %v2734 = vrot.slane %v2308, %v2733
    %v2735 = vlaneseq
    %v2736 = vshrl.u32 %v2735, 7
    %v2737 = vsub.s32 %v2654, %v2736
    %v2738 = vrot.slane %v2310, %v2737
    %v2739 = vlaneseq
    %v2740 = vshrl.u32 %v2739, 7
    %v2741 = vsub.s32 %v2654, %v2740
    %v2742 = vrot.slane %v2312, %v2741
    %v2743 = vlaneseq
    %v2744 = vshrl.u32 %v2743, 7
    %v2745 = vsub.s32 %v2654, %v2744
    %v2746 = vrot.slane %v2314, %v2745
    %v2747 = vlaneseq
    %v2748 = vshrl.u32 %v2747, 7
    %v2749 = vsub.s32 %v2654, %v2748
    %v2750 = vrot.slane %v2316, %v2749
    %v2751 = vlaneseq
    %v2752 = vshrl.u32 %v2751, 7
    %v2753 = vsub.s32 %v2654, %v2752
    %v2754 = vrot.slane %v2318, %v2753
    %v2755 = vlaneseq
    %v2756 = vshrl.u32 %v2755, 7
    %v2757 = vsub.s32 %v2654, %v2756
    %v2758 = vrot.slane %v2320, %v2757
    %v2759 = vlaneseq
    %v2760 = vshrl.u32 %v2759, 7
    %v2761 = vsub.s32 %v2654, %v2760
    %v2762 = vrot.slane %v2322, %v2761
    %v2763 = vlaneseq
    %v2764 = vshrl.u32 %v2763, 7
    %v2765 = vsub.s32 %v2654, %v2764
    %v2766 = vrot.slane %v2324, %v2765
    %v2767 = vlaneseq
    %v2768 = vshrl.u32 %v2767, 7
    %v2769 = vsub.s32 %v2654, %v2768
    %v2770 = vrot.slane %v2326, %v2769
    %v2771 = vlaneseq
    %v2772 = vshrl.u32 %v2771, 7
    %v2773 = vsub.s32 %v2654, %v2772
    %v2774 = vrot.slane %v2328, %v2773
    %v2775 = vlaneseq
    %v2776 = vshrl.u32 %v2775, 7
    %v2777 = vsub.s32 %v2654, %v2776
    %v2778 = vrot.slane %v2330, %v2777
    %v2779 = vlaneseq
    %v2780 = vshrl.u32 %v2779, 7
    %v2781 = vsub.s32 %v2654, %v2780
    %v2782 = vrot.slane %v2332, %v2781
    %v2783 = vlaneseq
    %v2784 = vshrl.u32 %v2783, 7
    %v2785 = vsub.s32 %v2654, %v2784
    %v2786 = vrot.slane %v2334, %v2785
    %v2787 = vlaneseq
    %v2788 = vshrl.u32 %v2787, 7
    %v2789 = vsub.s32 %v2654, %v2788
    %v2790 = vrot.slane %v2336, %v2789
    %v2791 = vlaneseq
    %v2792 = vshrl.u32 %v2791, 7
    %v2793 = vsub.s32 %v2654, %v2792
    %v2794 = vrot.slane %v2338, %v2793
    %v2795 = vlaneseq
    %v2796 = vshrl.u32 %v2795, 7
    %v2797 = vsub.s32 %v2654, %v2796
    %v2798 = vrot.slane %v2340, %v2797
    %v2799 = vlaneseq
    %v2800 = vshrl.u32 %v2799, 7
    %v2801 = vsub.s32 %v2654, %v2800
    %v2802 = vrot.slane %v2342, %v2801
    %v2803 = vlaneseq
    %v2804 = vshrl.u32 %v2803, 7
    %v2805 = vsub.s32 %v2654, %v2804
    %v2806 = vrot.slane %v2344, %v2805
    %v2807 = vlaneseq
    %v2808 = vshrl.u32 %v2807, 7
    %v2809 = vsub.s32 %v2654, %v2808
    %v2810 = vrot.slane %v2346, %v2809
    %v2811 = vlaneseq
    %v2812 = vshrl.u32 %v2811, 7
    %v2813 = vsub.s32 %v2654, %v2812
    %v2814 = vrot.slane %v2348, %v2813
    %v2815 = vlaneseq
    %v2816 = vshrl.u32 %v2815, 7
    %v2817 = vsub.s32 %v2654, %v2816
    %v2818 = vrot.slane %v2350, %v2817
    %v2819 = vlaneseq
    %v2820 = vshrl.u32 %v2819, 7
    %v2821 = vsub.s32 %v2654, %v2820
    %v2822 = vrot.slane %v2352, %v2821
    %v2823 = vlaneseq
    %v2824 = vshrl.u32 %v2823, 7
    %v2825 = vsub.s32 %v2654, %v2824
    %v2826 = vrot.slane %v2354, %v2825
    %v2827 = vlaneseq
    %v2828 = vshrl.u32 %v2827, 7
    %v2829 = vsub.s32 %v2654, %v2828
    %v2830 = vrot.slane %v2356, %v2829
    %v2831 = vlaneseq
    %v2832 = vshrl.u32 %v2831, 7
    %v2833 = vsub.s32 %v2654, %v2832
    %v2834 = vrot.slane %v2358, %v2833
    %v2835 = vlaneseq
    %v2836 = vshrl.u32 %v2835, 7
    %v2837 = vsub.s32 %v2654, %v2836
    %v2838 = vrot.slane %v2360, %v2837
    %v2839 = vlaneseq
    %v2840 = vshrl.u32 %v2839, 7
    %v2841 = vsub.s32 %v2654, %v2840
    %v2842 = vrot.slane %v2362, %v2841
    %v2843 = vlaneseq
    %v2844 = vshrl.u32 %v2843, 7
    %v2845 = vsub.s32 %v2654, %v2844
    %v2846 = vrot.slane %v2364, %v2845
    %v2847 = vlaneseq
    %v2848 = vshrl.u32 %v2847, 7
    %v2849 = vsub.s32 %v2654, %v2848
    %v2850 = vrot.slane %v2366, %v2849
    %v2851 = vlaneseq
    %v2852 = vshrl.u32 %v2851, 7
    %v2853 = vsub.s32 %v2654, %v2852
    %v2854 = vrot.slane %v2368, %v2853
    %v2855 = vlaneseq
    %v2856 = vshrl.u32 %v2855, 7
    %v2857 = vsub.s32 %v2654, %v2856
    %v2858 = vrot.slane %v2370, %v2857
    %v2859 = vlaneseq
    %v2860 = vshrl.u32 %v2859, 7
    %v2861 = vsub.s32 %v2654, %v2860
    %v2862 = vrot.slane %v2372, %v2861
    %v2863 = vlaneseq
    %v2864 = vshrl.u32 %v2863, 7
    %v2865 = vsub.s32 %v2654, %v2864
    %v2866 = vrot.slane %v2374, %v2865
    %v2867 = vlaneseq
    %v2868 = vshrl.u32 %v2867, 7
    %v2869 = vsub.s32 %v2654, %v2868
    %v2870 = vrot.slane %v2376, %v2869
    %v2871 = vlaneseq
    %v2872 = vshrl.u32 %v2871, 7
    %v2873 = vsub.s32 %v2654, %v2872
    %v2874 = vrot.slane %v2378, %v2873
    %v2875 = vlaneseq
    %v2876 = vshrl.u32 %v2875, 7
    %v2877 = vsub.s32 %v2654, %v2876
    %v2878 = vrot.slane %v2380, %v2877
    %v2879 = vlaneseq
    %v2880 = vshrl.u32 %v2879, 7
    %v2881 = vsub.s32 %v2654, %v2880
    %v2882 = vrot.slane %v2382, %v2881
    %v2883 = vlaneseq
    %v2884 = vshrl.u32 %v2883, 7
    %v2885 = vsub.s32 %v2654, %v2884
    %v2886 = vrot.slane %v2384, %v2885
    %v2887 = vlaneseq
    %v2888 = vshrl.u32 %v2887, 7
    %v2889 = vsub.s32 %v2654, %v2888
    %v2890 = vrot.slane %v2386, %v2889
    %v2891 = vlaneseq
    %v2892 = vshrl.u32 %v2891, 7
    %v2893 = vsub.s32 %v2654, %v2892
    %v2894 = vrot.slane %v2388, %v2893
    %v2895 = vlaneseq
    %v2896 = vshrl.u32 %v2895, 7
    %v2897 = vsub.s32 %v2654, %v2896
    %v2898 = vrot.slane %v2390, %v2897
    %v2899 = vlaneseq
    %v2900 = vshrl.u32 %v2899, 7
    %v2901 = vsub.s32 %v2654, %v2900
    %v2902 = vrot.slane %v2392, %v2901
    %v2903 = vlaneseq
    %v2904 = vshrl.u32 %v2903, 7
    %v2905 = vsub.s32 %v2654, %v2904
    %v2906 = vrot.slane %v2394, %v2905
    %v2907 = vlaneseq
    %v2908 = vshrl.u32 %v2907, 7
    %v2909 = vsub.s32 %v2654, %v2908
    %v2910 = vrot.slane %v2396, %v2909
    %v2911 = vlaneseq
    %v2912 = vshrl.u32 %v2911, 7
    %v2913 = vsub.s32 %v2654, %v2912
    %v2914 = vrot.slane %v2398, %v2913
    %v2915 = vlaneseq
    %v2916 = vshrl.u32 %v2915, 7
    %v2917 = vsub.s32 %v2654, %v2916
    %v2918 = vrot.slane %v2400, %v2917
    %v2919 = vlaneseq
    %v2920 = vshrl.u32 %v2919, 7
    %v2921 = vsub.s32 %v2654, %v2920
    %v2922 = vrot.slane %v2402, %v2921
    %v2923 = vlaneseq
    %v2924 = vshrl.u32 %v2923, 7
    %v2925 = vsub.s32 %v2654, %v2924
    %v2926 = vrot.slane %v2404, %v2925
    %v2927 = vlaneseq
    %v2928 = vshrl.u32 %v2927, 7
    %v2929 = vsub.s32 %v2654, %v2928
    %v2930 = vrot.slane %v2406, %v2929
    %v2931 = vlaneseq
    %v2932 = vshrl.u32 %v2931, 7
    %v2933 = vsub.s32 %v2654, %v2932
    %v2934 = vrot.slane %v2408, %v2933
    %v2935 = vlaneseq
    %v2936 = vshrl.u32 %v2935, 7
    %v2937 = vsub.s32 %v2654, %v2936
    %v2938 = vrot.slane %v2410, %v2937
    %v2939 = vlaneseq
    %v2940 = vshrl.u32 %v2939, 7
    %v2941 = vsub.s32 %v2654, %v2940
    %v2942 = vrot.slane %v2412, %v2941
    %v2943 = vlaneseq
    %v2944 = vshrl.u32 %v2943, 7
    %v2945 = vsub.s32 %v2654, %v2944
    %v2946 = vrot.slane %v2414, %v2945
    %v2947 = vlaneseq
    %v2948 = vshrl.u32 %v2947, 7
    %v2949 = vsub.s32 %v2654, %v2948
    %v2950 = vrot.slane %v2416, %v2949
    %v2951 = vlaneseq
    %v2952 = vshrl.u32 %v2951, 7
    %v2953 = vsub.s32 %v2654, %v2952
    %v2954 = vrot.slane %v2418, %v2953
    %v2955 = vlaneseq
    %v2956 = vshrl.u32 %v2955, 7
    %v2957 = vsub.s32 %v2654, %v2956
    %v2958 = vrot.slane %v2420, %v2957
    %v2959 = vlaneseq
    %v2960 = vshrl.u32 %v2959, 7
    %v2961 = vsub.s32 %v2654, %v2960
    %v2962 = vrot.slane %v2422, %v2961
    %v2963 = vlaneseq
    %v2964 = vshrl.u32 %v2963, 7
    %v2965 = vsub.s32 %v2654, %v2964
    %v2966 = vrot.slane %v2424, %v2965
    %v2967 = vlaneseq
    %v2968 = vshrl.u32 %v2967, 7
    %v2969 = vsub.s32 %v2654, %v2968
    %v2970 = vrot.slane %v2426, %v2969
    %v2971 = vlaneseq
    %v2972 = vshrl.u32 %v2971, 7
    %v2973 = vsub.s32 %v2654, %v2972
    %v2974 = vrot.slane %v2428, %v2973
    %v2975 = vlaneseq
    %v2976 = vshrl.u32 %v2975, 7
    %v2977 = vsub.s32 %v2654, %v2976
    %v2978 = vrot.slane %v2430, %v2977
    %v2979 = vlaneseq
    %v2980 = vshrl.u32 %v2979, 7
    %v2981 = vsub.s32 %v2654, %v2980
    %v2982 = vrot.slane %v2432, %v2981
    %v2983 = vlaneseq
    %v2984 = vshrl.u32 %v2983, 7
    %v2985 = vsub.s32 %v2654, %v2984
    %v2986 = vrot.slane %v2434, %v2985
    %v2987 = vlaneseq
    %v2988 = vshrl.u32 %v2987, 7
    %v2989 = vsub.s32 %v2654, %v2988
    %v2990 = vrot.slane %v2436, %v2989
    %v2991 = vlaneseq
    %v2992 = vshrl.u32 %v2991, 7
    %v2993 = vsub.s32 %v2654, %v2992
    %v2994 = vrot.slane %v2438, %v2993
    %v2995 = vlaneseq
    %v2996 = vshrl.u32 %v2995, 7
    %v2997 = vsub.s32 %v2654, %v2996
    %v2998 = vrot.slane %v2440, %v2997
    %v2999 = vlaneseq
    %v3000 = vshrl.u32 %v2999, 7
    %v3001 = vsub.s32 %v2654, %v3000
    %v3002 = vrot.slane %v2442, %v3001
    %v3003 = vlaneseq
    %v3004 = vshrl.u32 %v3003, 7
    %v3005 = vsub.s32 %v2654, %v3004
    %v3006 = vrot.slane %v2444, %v3005
    %v3007 = vlaneseq
    %v3008 = vshrl.u32 %v3007, 7
    %v3009 = vsub.s32 %v2654, %v3008
    %v3010 = vrot.slane %v2446, %v3009
    %v3011 = vlaneseq
    %v3012 = vshrl.u32 %v3011, 7
    %v3013 = vsub.s32 %v2654, %v3012
    %v3014 = vrot.slane %v2448, %v3013
    %v3015 = vlaneseq
    %v3016 = vshrl.u32 %v3015, 7
    %v3017 = vsub.s32 %v2654, %v3016
    %v3018 = vrot.slane %v2450, %v3017
    %v3019 = vlaneseq
    %v3020 = vshrl.u32 %v3019, 7
    %v3021 = vsub.s32 %v2654, %v3020
    %v3022 = vrot.slane %v2452, %v3021
    %v3023 = vlaneseq
    %v3024 = vshrl.u32 %v3023, 7
    %v3025 = vsub.s32 %v2654, %v3024
    %v3026 = vrot.slane %v2454, %v3025
    %v3027 = vlaneseq
    %v3028 = vshrl.u32 %v3027, 7
    %v3029 = vsub.s32 %v2654, %v3028
    %v3030 = vrot.slane %v2456, %v3029
    %v3031 = vlaneseq
    %v3032 = vshrl.u32 %v3031, 7
    %v3033 = vsub.s32 %v2654, %v3032
    %v3034 = vrot.slane %v2458, %v3033
    %v3035 = vlaneseq
    %v3036 = vshrl.u32 %v3035, 7
    %v3037 = vsub.s32 %v2654, %v3036
    %v3038 = vrot.slane %v2460, %v3037
    %v3039 = vlaneseq
    %v3040 = vshrl.u32 %v3039, 7
    %v3041 = vsub.s32 %v2654, %v3040
    %v3042 = vrot.slane %v2462, %v3041
    %v3043 = vlaneseq
    %v3044 = vshrl.u32 %v3043, 7
    %v3045 = vsub.s32 %v2654, %v3044
    %v3046 = vrot.slane %v2464, %v3045
    %v3047 = vlaneseq
    %v3048 = vshrl.u32 %v3047, 7
    %v3049 = vsub.s32 %v2654, %v3048
    %v3050 = vrot.slane %v2466, %v3049
    %v3051 = vlaneseq
    %v3052 = vshrl.u32 %v3051, 7
    %v3053 = vsub.s32 %v2654, %v3052
    %v3054 = vrot.slane %v2468, %v3053
    %v3055 = vlaneseq
    %v3056 = vshrl.u32 %v3055, 7
    %v3057 = vsub.s32 %v2654, %v3056
    %v3058 = vrot.slane %v2470, %v3057
    %v3059 = vlaneseq
    %v3060 = vshrl.u32 %v3059, 7
    %v3061 = vsub.s32 %v2654, %v3060
    %v3062 = vrot.slane %v2472, %v3061
    %v3063 = vlaneseq
    %v3064 = vshrl.u32 %v3063, 7
    %v3065 = vsub.s32 %v2654, %v3064
    %v3066 = vrot.slane %v2474, %v3065
    %v3067 = vlaneseq
    %v3068 = vshrl.u32 %v3067, 7
    %v3069 = vsub.s32 %v2654, %v3068
    %v3070 = vrot.slane %v2476, %v3069
    %v3071 = vlaneseq
    %v3072 = vshrl.u32 %v3071, 7
    %v3073 = vsub.s32 %v2654, %v3072
    %v3074 = vrot.slane %v2478, %v3073
    %v3075 = vlaneseq
    %v3076 = vshrl.u32 %v3075, 7
    %v3077 = vsub.s32 %v2654, %v3076
    %v3078 = vrot.slane %v2480, %v3077
    %v3079 = vlaneseq
    %v3080 = vshrl.u32 %v3079, 7
    %v3081 = vsub.s32 %v2654, %v3080
    %v3082 = vrot.slane %v2482, %v3081
    %v3083 = vlaneseq
    %v3084 = vshrl.u32 %v3083, 7
    %v3085 = vsub.s32 %v2654, %v3084
    %v3086 = vrot.slane %v2484, %v3085
    %v3087 = vlaneseq
    %v3088 = vshrl.u32 %v3087, 7
    %v3089 = vsub.s32 %v2654, %v3088
    %v3090 = vrot.slane %v2486, %v3089
    %v3091 = vlaneseq
    %v3092 = vshrl.u32 %v3091, 7
    %v3093 = vsub.s32 %v2654, %v3092
    %v3094 = vrot.slane %v2488, %v3093
    %v3095 = vlaneseq
    %v3096 = vshrl.u32 %v3095, 7
    %v3097 = vsub.s32 %v2654, %v3096
    %v3098 = vrot.slane %v2490, %v3097
    %v3099 = vlaneseq
    %v3100 = vshrl.u32 %v3099, 7
    %v3101 = vsub.s32 %v2654, %v3100
    %v3102 = vrot.slane %v2492, %v3101
    %v3103 = vlaneseq
    %v3104 = vshrl.u32 %v3103, 7
    %v3105 = vsub.s32 %v2654, %v3104
    %v3106 = vrot.slane %v2494, %v3105
    %v3107 = vlaneseq
    %v3108 = vshrl.u32 %v3107, 7
    %v3109 = vsub.s32 %v2654, %v3108
    %v3110 = vrot.slane %v2496, %v3109
    %v3111 = vlaneseq
    %v3112 = vshrl.u32 %v3111, 7
    %v3113 = vsub.s32 %v2654, %v3112
    %v3114 = vrot.slane %v2498, %v3113
    %v3115 = vlaneseq
    %v3116 = vshrl.u32 %v3115, 7
    %v3117 = vsub.s32 %v2654, %v3116
    %v3118 = vrot.slane %v2500, %v3117
    %v3119 = vlaneseq
    %v3120 = vshrl.u32 %v3119, 7
    %v3121 = vsub.s32 %v2654, %v3120
    %v3122 = vrot.slane %v2502, %v3121
    %v3123 = vlaneseq
    %v3124 = vshrl.u32 %v3123, 7
    %v3125 = vsub.s32 %v2654, %v3124
    %v3126 = vrot.slane %v2504, %v3125
    %v3127 = vlaneseq
    %v3128 = vshrl.u32 %v3127, 7
    %v3129 = vsub.s32 %v2654, %v3128
    %v3130 = vrot.slane %v2506, %v3129
    %v3131 = vlaneseq
    %v3132 = vshrl.u32 %v3131, 7
    %v3133 = vsub.s32 %v2654, %v3132
    %v3134 = vrot.slane %v2508, %v3133
    %v3135 = vlaneseq
    %v3136 = vshrl.u32 %v3135, 7
    %v3137 = vsub.s32 %v2654, %v3136
    %v3138 = vrot.slane %v2510, %v3137
    %v3139 = vlaneseq
    %v3140 = vshrl.u32 %v3139, 7
    %v3141 = vsub.s32 %v2654, %v3140
    %v3142 = vrot.slane %v2512, %v3141
    %v3143 = vlaneseq
    %v3144 = vshrl.u32 %v3143, 7
    %v3145 = vsub.s32 %v2654, %v3144
    %v3146 = vrot.slane %v2514, %v3145
    %v3147 = vlaneseq
    %v3148 = vshrl.u32 %v3147, 7
    %v3149 = vsub.s32 %v2654, %v3148
    %v3150 = vrot.slane %v2516, %v3149
    %v3151 = vlaneseq
    %v3152 = vshrl.u32 %v3151, 7
    %v3153 = vsub.s32 %v2654, %v3152
    %v3154 = vrot.slane %v2518, %v3153
    %v3155 = vlaneseq
    %v3156 = vshrl.u32 %v3155, 7
    %v3157 = vsub.s32 %v2654, %v3156
    %v3158 = vrot.slane %v2520, %v3157
    %v3159 = vlaneseq
    %v3160 = vshrl.u32 %v3159, 7
    %v3161 = vsub.s32 %v2654, %v3160
    %v3162 = vrot.slane %v2522, %v3161
    %v3163 = vlaneseq
    %v3164 = vshrl.u32 %v3163, 7
    %v3165 = vsub.s32 %v2654, %v3164
    %v3166 = vrot.slane %v2524, %v3165
    %vm3167 = vcmask 1041409
    %v3168 = vsel %vm3167, %v2662, %v2658
    %vm3169 = vcmask 1042434
    %v3170 = vsel %vm3169, %v2666, %v3168
    %vm3171 = vcmask 1043459
    %v3172 = vsel %vm3171, %v2670, %v3170
    %vm3173 = vcmask 1044484
    %v3174 = vsel %vm3173, %v2674, %v3172
    %vm3175 = vcmask 1045509
    %v3176 = vsel %vm3175, %v2678, %v3174
    %vm3177 = vcmask 1046534
    %v3178 = vsel %vm3177, %v2682, %v3176
    %vm3179 = vcmask 1047559
    %v3180 = vsel %vm3179, %v2686, %v3178
    %v3181 = vsel %vm3167, %v2694, %v2690
    %v3182 = vsel %vm3169, %v2698, %v3181
    %v3183 = vsel %vm3171, %v2702, %v3182
    %v3184 = vsel %vm3173, %v2706, %v3183
    %v3185 = vsel %vm3175, %v2710, %v3184
    %v3186 = vsel %vm3177, %v2714, %v3185
    %v3187 = vsel %vm3179, %v2718, %v3186
    %v3188 = vsel %vm3167, %v2726, %v2722
    %v3189 = vsel %vm3169, %v2730, %v3188
    %v3190 = vsel %vm3171, %v2734, %v3189
    %v3191 = vsel %vm3173, %v2738, %v3190
    %v3192 = vsel %vm3175, %v2742, %v3191
    %v3193 = vsel %vm3177, %v2746, %v3192
    %v3194 = vsel %vm3179, %v2750, %v3193
    %v3195 = vsel %vm3167, %v2758, %v2754
    %v3196 = vsel %vm3169, %v2762, %v3195
    %v3197 = vsel %vm3171, %v2766, %v3196
    %v3198 = vsel %vm3173, %v2770, %v3197
    %v3199 = vsel %vm3175, %v2774, %v3198
    %v3200 = vsel %vm3177, %v2778, %v3199
    %v3201 = vsel %vm3179, %v2782, %v3200
    %v3202 = vsel %vm3167, %v2790, %v2786
    %v3203 = vsel %vm3169, %v2794, %v3202
    %v3204 = vsel %vm3171, %v2798, %v3203
    %v3205 = vsel %vm3173, %v2802, %v3204
    %v3206 = vsel %vm3175, %v2806, %v3205
    %v3207 = vsel %vm3177, %v2810, %v3206
    %v3208 = vsel %vm3179, %v2814, %v3207
    %v3209 = vsel %vm3167, %v2822, %v2818
    %v3210 = vsel %vm3169, %v2826, %v3209
    %v3211 = vsel %vm3171, %v2830, %v3210
    %v3212 = vsel %vm3173, %v2834, %v3211
    %v3213 = vsel %vm3175, %v2838, %v3212
    %v3214 = vsel %vm3177, %v2842, %v3213
    %v3215 = vsel %vm3179, %v2846, %v3214
    %v3216 = vsel %vm3167, %v2854, %v2850
    %v3217 = vsel %vm3169, %v2858, %v3216
    %v3218 = vsel %vm3171, %v2862, %v3217
    %v3219 = vsel %vm3173, %v2866, %v3218
    %v3220 = vsel %vm3175, %v2870, %v3219
    %v3221 = vsel %vm3177, %v2874, %v3220
    %v3222 = vsel %vm3179, %v2878, %v3221
    %v3223 = vsel %vm3167, %v2886, %v2882
    %v3224 = vsel %vm3169, %v2890, %v3223
    %v3225 = vsel %vm3171, %v2894, %v3224
    %v3226 = vsel %vm3173, %v2898, %v3225
    %v3227 = vsel %vm3175, %v2902, %v3226
    %v3228 = vsel %vm3177, %v2906, %v3227
    %v3229 = vsel %vm3179, %v2910, %v3228
    %v3230 = vsel %vm3167, %v2918, %v2914
    %v3231 = vsel %vm3169, %v2922, %v3230
    %v3232 = vsel %vm3171, %v2926, %v3231
    %v3233 = vsel %vm3173, %v2930, %v3232
    %v3234 = vsel %vm3175, %v2934, %v3233
    %v3235 = vsel %vm3177, %v2938, %v3234
    %v3236 = vsel %vm3179, %v2942, %v3235
    %v3237 = vsel %vm3167, %v2950, %v2946
    %v3238 = vsel %vm3169, %v2954, %v3237
    %v3239 = vsel %vm3171, %v2958, %v3238
    %v3240 = vsel %vm3173, %v2962, %v3239
    %v3241 = vsel %vm3175, %v2966, %v3240
    %v3242 = vsel %vm3177, %v2970, %v3241
    %v3243 = vsel %vm3179, %v2974, %v3242
    %v3244 = vsel %vm3167, %v2982, %v2978
    %v3245 = vsel %vm3169, %v2986, %v3244
    %v3246 = vsel %vm3171, %v2990, %v3245
    %v3247 = vsel %vm3173, %v2994, %v3246
    %v3248 = vsel %vm3175, %v2998, %v3247
    %v3249 = vsel %vm3177, %v3002, %v3248
    %v3250 = vsel %vm3179, %v3006, %v3249
    %v3251 = vsel %vm3167, %v3014, %v3010
    %v3252 = vsel %vm3169, %v3018, %v3251
    %v3253 = vsel %vm3171, %v3022, %v3252
    %v3254 = vsel %vm3173, %v3026, %v3253
    %v3255 = vsel %vm3175, %v3030, %v3254
    %v3256 = vsel %vm3177, %v3034, %v3255
    %v3257 = vsel %vm3179, %v3038, %v3256
    %v3258 = vsel %vm3167, %v3046, %v3042
    %v3259 = vsel %vm3169, %v3050, %v3258
    %v3260 = vsel %vm3171, %v3054, %v3259
    %v3261 = vsel %vm3173, %v3058, %v3260
    %v3262 = vsel %vm3175, %v3062, %v3261
    %v3263 = vsel %vm3177, %v3066, %v3262
    %v3264 = vsel %vm3179, %v3070, %v3263
    %v3265 = vsel %vm3167, %v3078, %v3074
    %v3266 = vsel %vm3169, %v3082, %v3265
    %v3267 = vsel %vm3171, %v3086, %v3266
    %v3268 = vsel %vm3173, %v3090, %v3267
    %v3269 = vsel %vm3175, %v3094, %v3268
    %v3270 = vsel %vm3177, %v3098, %v3269
    %v3271 = vsel %vm3179, %v3102, %v3270
    %v3272 = vsel %vm3167, %v3110, %v3106
    %v3273 = vsel %vm3169, %v3114, %v3272
    %v3274 = vsel %vm3171, %v3118, %v3273
    %v3275 = vsel %vm3173, %v3122, %v3274
    %v3276 = vsel %vm3175, %v3126, %v3275
    %v3277 = vsel %vm3177, %v3130, %v3276
    %v3278 = vsel %vm3179, %v3134, %v3277
    %v3279 = vsel %vm3167, %v3142, %v3138
    %v3280 = vsel %vm3169, %v3146, %v3279
    %v3281 = vsel %vm3171, %v3150, %v3280
    %v3282 = vsel %vm3173, %v3154, %v3281
    %v3283 = vsel %vm3175, %v3158, %v3282
    %v3284 = vsel %vm3177, %v3162, %v3283
    %v3285 = vsel %vm3179, %v3166, %v3284
    %vm3302 = vcmask 64512
    %3303 = vst.msk [vmem:[#allocation2] sm:$0xff] %vm3302, %v3180
    %3304 = vst.msk [vmem:[#allocation2 + $0x8] sm:$0xff] %vm3302, %v3187
    %3305 = vst.msk [vmem:[#allocation2 + $0x10] sm:$0xff] %vm3302, %v3194
    %3306 = vst.msk [vmem:[#allocation2 + $0x18] sm:$0xff] %vm3302, %v3201
    %3307 = vst.msk [vmem:[#allocation2 + $0x20] sm:$0xff] %vm3302, %v3208
    %3308 = vst.msk [vmem:[#allocation2 + $0x28] sm:$0xff] %vm3302, %v3215
    %3309 = vst.msk [vmem:[#allocation2 + $0x30] sm:$0xff] %vm3302, %v3222
    %3310 = vst.msk [vmem:[#allocation2 + $0x38] sm:$0xff] %vm3302, %v3229
    %3311 = vst.msk [vmem:[#allocation2 + $0x40] sm:$0xff] %vm3302, %v3236
    %3312 = vst.msk [vmem:[#allocation2 + $0x48] sm:$0xff] %vm3302, %v3243
    %3313 = vst.msk [vmem:[#allocation2 + $0x50] sm:$0xff] %vm3302, %v3250
    %3314 = vst.msk [vmem:[#allocation2 + $0x58] sm:$0xff] %vm3302, %v3257
    %3315 = vst.msk [vmem:[#allocation2 + $0x60] sm:$0xff] %vm3302, %v3264
    %3316 = vst.msk [vmem:[#allocation2 + $0x68] sm:$0xff] %vm3302, %v3271
    %3317 = vst.msk [vmem:[#allocation2 + $0x70] sm:$0xff] %vm3302, %v3278
    %3318 = vst.msk [vmem:[#allocation2 + $0x78] sm:$0xff] %vm3302, %v3285
    %v3319 = vsel %vm2013, %v377, 0.0
    %v3320 = vsel %vm2014, %v377, 0.0
    %v3321 = vsel %vm2015, %v377, 0.0
    %v3322 = vsel %vm2016, %v377, 0.0
    %v3323 = vsel %vm2017, %v377, 0.0
    %v3324 = vsel %vm2018, %v377, 0.0
    %v3325 = vsel %vm2019, %v377, 0.0
    %v3326 = vsel %vm2020, %v377, 0.0
    %v3327 = vsel %vm2021, %v377, 0.0
    %v3328 = vsel %vm2022, %v377, 0.0
    %v3329 = vsel %vm2023, %v377, 0.0
    %v3330 = vsel %vm2024, %v377, 0.0
    %v3331 = vsel %vm2025, %v377, 0.0
    %v3332 = vsel %vm2026, %v377, 0.0
    %v3333 = vsel %vm2027, %v377, 0.0
    %v3334 = vsel %vm2028, %v377, 0.0
    %v3335 = vsel %vm2029, %v377, 0.0
    %v3336 = vsel %vm2030, %v377, 0.0
    %v3337 = vsel %vm2031, %v377, 0.0
    %v3338 = vsel %vm2032, %v377, 0.0
    %v3339 = vsel %vm2033, %v377, 0.0
    %v3340 = vsel %vm2034, %v377, 0.0
    %v3341 = vsel %vm2035, %v377, 0.0
    %v3342 = vsel %vm2036, %v377, 0.0
    %v3343 = vsel %vm2037, %v377, 0.0
    %v3344 = vsel %vm2038, %v377, 0.0
    %v3345 = vsel %vm2039, %v377, 0.0
    %v3346 = vsel %vm2040, %v377, 0.0
    %v3347 = vsel %vm2041, %v377, 0.0
    %v3348 = vsel %vm2042, %v377, 0.0
    %v3349 = vsel %vm2043, %v377, 0.0
    %v3350 = vsel %vm2044, %v377, 0.0
    %v3351 = vsel %vm2045, %v377, 0.0
    %v3352 = vsel %vm2046, %v377, 0.0
    %v3353 = vsel %vm2047, %v377, 0.0
    %v3354 = vsel %vm2048, %v377, 0.0
    %v3355 = vsel %vm2049, %v377, 0.0
    %v3356 = vsel %vm2050, %v377, 0.0
    %v3357 = vsel %vm2051, %v377, 0.0
    %v3358 = vsel %vm2052, %v377, 0.0
    %v3359 = vsel %vm2053, %v377, 0.0
    %v3360 = vsel %vm2054, %v377, 0.0
    %v3361 = vsel %vm2055, %v377, 0.0
    %v3362 = vsel %vm2056, %v377, 0.0
    %v3363 = vsel %vm2057, %v377, 0.0
    %v3364 = vsel %vm2058, %v377, 0.0
    %v3365 = vsel %vm2059, %v377, 0.0
    %v3366 = vsel %vm2060, %v377, 0.0
    %v3367 = vsel %vm2061, %v377, 0.0
    %v3368 = vsel %vm2062, %v377, 0.0
    %v3369 = vsel %vm2063, %v377, 0.0
    %v3370 = vsel %vm2064, %v377, 0.0
    %v3371 = vsel %vm2065, %v377, 0.0
    %v3372 = vsel %vm2066, %v377, 0.0
    %v3373 = vsel %vm2067, %v377, 0.0
    %v3374 = vsel %vm2068, %v377, 0.0
    %v3375 = vsel %vm2069, %v377, 0.0
    %v3376 = vsel %vm2070, %v377, 0.0
    %v3377 = vsel %vm2071, %v377, 0.0
    %v3378 = vsel %vm2072, %v377, 0.0
    %v3379 = vsel %vm2073, %v377, 0.0
    %v3380 = vsel %vm2074, %v377, 0.0
    %v3381 = vsel %vm2075, %v377, 0.0
    %v3382 = vsel %vm2076, %v377, 0.0
    %v3383 = vsel %vm2077, %v377, 0.0
    %v3384 = vsel %vm2078, %v377, 0.0
    %v3385 = vsel %vm2079, %v377, 0.0
    %v3386 = vsel %vm2080, %v377, 0.0
    %v3387 = vsel %vm2081, %v377, 0.0
    %v3388 = vsel %vm2082, %v377, 0.0
    %v3389 = vsel %vm2083, %v377, 0.0
    %v3390 = vsel %vm2084, %v377, 0.0
    %v3391 = vsel %vm2085, %v377, 0.0
    %v3392 = vsel %vm2086, %v377, 0.0
    %v3393 = vsel %vm2087, %v377, 0.0
    %v3394 = vsel %vm2088, %v377, 0.0
    %v3395 = vsel %vm2089, %v377, 0.0
    %v3396 = vsel %vm2090, %v377, 0.0
    %v3397 = vsel %vm2091, %v377, 0.0
    %v3398 = vsel %vm2092, %v377, 0.0
    %v3399 = vsel %vm2093, %v377, 0.0
    %v3400 = vsel %vm2094, %v377, 0.0
    %v3401 = vsel %vm2095, %v377, 0.0
    %v3402 = vsel %vm2096, %v377, 0.0
    %v3403 = vsel %vm2097, %v377, 0.0
    %v3404 = vsel %vm2098, %v377, 0.0
    %v3405 = vsel %vm2099, %v377, 0.0
    %v3406 = vsel %vm2100, %v377, 0.0
    %v3407 = vsel %vm2101, %v377, 0.0
    %v3408 = vsel %vm2102, %v377, 0.0
    %v3409 = vsel %vm2103, %v377, 0.0
    %v3410 = vsel %vm2104, %v377, 0.0
    %v3411 = vsel %vm2105, %v377, 0.0
    %v3412 = vsel %vm2106, %v377, 0.0
    %v3413 = vsel %vm2107, %v377, 0.0
    %v3414 = vsel %vm2108, %v377, 0.0
    %v3415 = vsel %vm2109, %v377, 0.0
    %v3416 = vsel %vm2110, %v377, 0.0
    %v3417 = vsel %vm2111, %v377, 0.0
    %v3418 = vsel %vm2112, %v377, 0.0
    %v3419 = vsel %vm2113, %v377, 0.0
    %v3420 = vsel %vm2114, %v377, 0.0
    %v3421 = vsel %vm2115, %v377, 0.0
    %v3422 = vsel %vm2116, %v377, 0.0
    %v3423 = vsel %vm2117, %v377, 0.0
    %v3424 = vsel %vm2118, %v377, 0.0
    %v3425 = vsel %vm2119, %v377, 0.0
    %v3426 = vsel %vm2120, %v377, 0.0
    %v3427 = vsel %vm2121, %v377, 0.0
    %v3428 = vsel %vm2122, %v377, 0.0
    %v3429 = vsel %vm2123, %v377, 0.0
    %v3430 = vsel %vm2124, %v377, 0.0
    %v3431 = vsel %vm2125, %v377, 0.0
    %v3432 = vsel %vm2126, %v377, 0.0
    %v3433 = vsel %vm2127, %v377, 0.0
    %v3434 = vsel %vm2128, %v377, 0.0
    %v3435 = vsel %vm2129, %v377, 0.0
    %v3436 = vsel %vm2130, %v377, 0.0
    %v3437 = vsel %vm2131, %v377, 0.0
    %v3438 = vsel %vm2132, %v377, 0.0
    %v3439 = vsel %vm2133, %v377, 0.0
    %v3440 = vsel %vm2134, %v377, 0.0
    %v3441 = vsel %vm2135, %v377, 0.0
    %v3442 = vsel %vm2136, %v377, 0.0
    %v3443 = vsel %vm2137, %v377, 0.0
    %v3444 = vsel %vm2138, %v377, 0.0
    %v3445 = vsel %vm2139, %v377, 0.0
    %v3446 = vsel %vm2140, %v377, 0.0
    %3447 = vmax.xlane.f32.xlu0 %v3319
    %v3448 = vpop.xlane.xlu0 %3447
    %3449 = vmax.xlane.f32.xlu0 %v3320
    %v3450 = vpop.xlane.xlu0 %3449
    %3451 = vmax.xlane.f32.xlu0 %v3321
    %v3452 = vpop.xlane.xlu0 %3451
    %3453 = vmax.xlane.f32.xlu0 %v3322
    %v3454 = vpop.xlane.xlu0 %3453
    %3455 = vmax.xlane.f32.xlu0 %v3323
    %v3456 = vpop.xlane.xlu0 %3455
    %3457 = vmax.xlane.f32.xlu0 %v3324
    %v3458 = vpop.xlane.xlu0 %3457
    %3459 = vmax.xlane.f32.xlu0 %v3325
    %v3460 = vpop.xlane.xlu0 %3459
    %3461 = vmax.xlane.f32.xlu0 %v3326
    %v3462 = vpop.xlane.xlu0 %3461
    %3463 = vmax.xlane.f32.xlu0 %v3327
    %v3464 = vpop.xlane.xlu0 %3463
    %3465 = vmax.xlane.f32.xlu0 %v3328
    %v3466 = vpop.xlane.xlu0 %3465
    %3467 = vmax.xlane.f32.xlu0 %v3329
    %v3468 = vpop.xlane.xlu0 %3467
    %3469 = vmax.xlane.f32.xlu0 %v3330
    %v3470 = vpop.xlane.xlu0 %3469
    %3471 = vmax.xlane.f32.xlu0 %v3331
    %v3472 = vpop.xlane.xlu0 %3471
    %3473 = vmax.xlane.f32.xlu0 %v3332
    %v3474 = vpop.xlane.xlu0 %3473
    %3475 = vmax.xlane.f32.xlu0 %v3333
    %v3476 = vpop.xlane.xlu0 %3475
    %3477 = vmax.xlane.f32.xlu0 %v3334
    %v3478 = vpop.xlane.xlu0 %3477
    %3479 = vmax.xlane.f32.xlu0 %v3335
    %v3480 = vpop.xlane.xlu0 %3479
    %3481 = vmax.xlane.f32.xlu0 %v3336
    %v3482 = vpop.xlane.xlu0 %3481
    %3483 = vmax.xlane.f32.xlu0 %v3337
    %v3484 = vpop.xlane.xlu0 %3483
    %3485 = vmax.xlane.f32.xlu0 %v3338
    %v3486 = vpop.xlane.xlu0 %3485
    %3487 = vmax.xlane.f32.xlu0 %v3339
    %v3488 = vpop.xlane.xlu0 %3487
    %3489 = vmax.xlane.f32.xlu0 %v3340
    %v3490 = vpop.xlane.xlu0 %3489
    %3491 = vmax.xlane.f32.xlu0 %v3341
    %v3492 = vpop.xlane.xlu0 %3491
    %3493 = vmax.xlane.f32.xlu0 %v3342
    %v3494 = vpop.xlane.xlu0 %3493
    %3495 = vmax.xlane.f32.xlu0 %v3343
    %v3496 = vpop.xlane.xlu0 %3495
    %3497 = vmax.xlane.f32.xlu0 %v3344
    %v3498 = vpop.xlane.xlu0 %3497
    %3499 = vmax.xlane.f32.xlu0 %v3345
    %v3500 = vpop.xlane.xlu0 %3499
    %3501 = vmax.xlane.f32.xlu0 %v3346
    %v3502 = vpop.xlane.xlu0 %3501
    %3503 = vmax.xlane.f32.xlu0 %v3347
    %v3504 = vpop.xlane.xlu0 %3503
    %3505 = vmax.xlane.f32.xlu0 %v3348
    %v3506 = vpop.xlane.xlu0 %3505
    %3507 = vmax.xlane.f32.xlu0 %v3349
    %v3508 = vpop.xlane.xlu0 %3507
    %3509 = vmax.xlane.f32.xlu0 %v3350
    %v3510 = vpop.xlane.xlu0 %3509
    %3511 = vmax.xlane.f32.xlu0 %v3351
    %v3512 = vpop.xlane.xlu0 %3511
    %3513 = vmax.xlane.f32.xlu0 %v3352
    %v3514 = vpop.xlane.xlu0 %3513
    %3515 = vmax.xlane.f32.xlu0 %v3353
    %v3516 = vpop.xlane.xlu0 %3515
    %3517 = vmax.xlane.f32.xlu0 %v3354
    %v3518 = vpop.xlane.xlu0 %3517
    %3519 = vmax.xlane.f32.xlu0 %v3355
    %v3520 = vpop.xlane.xlu0 %3519
    %3521 = vmax.xlane.f32.xlu0 %v3356
    %v3522 = vpop.xlane.xlu0 %3521
    %3523 = vmax.xlane.f32.xlu0 %v3357
    %v3524 = vpop.xlane.xlu0 %3523
    %3525 = vmax.xlane.f32.xlu0 %v3358
    %v3526 = vpop.xlane.xlu0 %3525
    %3527 = vmax.xlane.f32.xlu0 %v3359
    %v3528 = vpop.xlane.xlu0 %3527
    %3529 = vmax.xlane.f32.xlu0 %v3360
    %v3530 = vpop.xlane.xlu0 %3529
    %3531 = vmax.xlane.f32.xlu0 %v3361
    %v3532 = vpop.xlane.xlu0 %3531
    %3533 = vmax.xlane.f32.xlu0 %v3362
    %v3534 = vpop.xlane.xlu0 %3533
    %3535 = vmax.xlane.f32.xlu0 %v3363
    %v3536 = vpop.xlane.xlu0 %3535
    %3537 = vmax.xlane.f32.xlu0 %v3364
    %v3538 = vpop.xlane.xlu0 %3537
    %3539 = vmax.xlane.f32.xlu0 %v3365
    %v3540 = vpop.xlane.xlu0 %3539
    %3541 = vmax.xlane.f32.xlu0 %v3366
    %v3542 = vpop.xlane.xlu0 %3541
    %3543 = vmax.xlane.f32.xlu0 %v3367
    %v3544 = vpop.xlane.xlu0 %3543
    %3545 = vmax.xlane.f32.xlu0 %v3368
    %v3546 = vpop.xlane.xlu0 %3545
    %3547 = vmax.xlane.f32.xlu0 %v3369
    %v3548 = vpop.xlane.xlu0 %3547
    %3549 = vmax.xlane.f32.xlu0 %v3370
    %v3550 = vpop.xlane.xlu0 %3549
    %3551 = vmax.xlane.f32.xlu0 %v3371
    %v3552 = vpop.xlane.xlu0 %3551
    %3553 = vmax.xlane.f32.xlu0 %v3372
    %v3554 = vpop.xlane.xlu0 %3553
    %3555 = vmax.xlane.f32.xlu0 %v3373
    %v3556 = vpop.xlane.xlu0 %3555
    %3557 = vmax.xlane.f32.xlu0 %v3374
    %v3558 = vpop.xlane.xlu0 %3557
    %3559 = vmax.xlane.f32.xlu0 %v3375
    %v3560 = vpop.xlane.xlu0 %3559
    %3561 = vmax.xlane.f32.xlu0 %v3376
    %v3562 = vpop.xlane.xlu0 %3561
    %3563 = vmax.xlane.f32.xlu0 %v3377
    %v3564 = vpop.xlane.xlu0 %3563
    %3565 = vmax.xlane.f32.xlu0 %v3378
    %v3566 = vpop.xlane.xlu0 %3565
    %3567 = vmax.xlane.f32.xlu0 %v3379
    %v3568 = vpop.xlane.xlu0 %3567
    %3569 = vmax.xlane.f32.xlu0 %v3380
    %v3570 = vpop.xlane.xlu0 %3569
    %3571 = vmax.xlane.f32.xlu0 %v3381
    %v3572 = vpop.xlane.xlu0 %3571
    %3573 = vmax.xlane.f32.xlu0 %v3382
    %v3574 = vpop.xlane.xlu0 %3573
    %3575 = vmax.xlane.f32.xlu0 %v3383
    %v3576 = vpop.xlane.xlu0 %3575
    %3577 = vmax.xlane.f32.xlu0 %v3384
    %v3578 = vpop.xlane.xlu0 %3577
    %3579 = vmax.xlane.f32.xlu0 %v3385
    %v3580 = vpop.xlane.xlu0 %3579
    %3581 = vmax.xlane.f32.xlu0 %v3386
    %v3582 = vpop.xlane.xlu0 %3581
    %3583 = vmax.xlane.f32.xlu0 %v3387
    %v3584 = vpop.xlane.xlu0 %3583
    %3585 = vmax.xlane.f32.xlu0 %v3388
    %v3586 = vpop.xlane.xlu0 %3585
    %3587 = vmax.xlane.f32.xlu0 %v3389
    %v3588 = vpop.xlane.xlu0 %3587
    %3589 = vmax.xlane.f32.xlu0 %v3390
    %v3590 = vpop.xlane.xlu0 %3589
    %3591 = vmax.xlane.f32.xlu0 %v3391
    %v3592 = vpop.xlane.xlu0 %3591
    %3593 = vmax.xlane.f32.xlu0 %v3392
    %v3594 = vpop.xlane.xlu0 %3593
    %3595 = vmax.xlane.f32.xlu0 %v3393
    %v3596 = vpop.xlane.xlu0 %3595
    %3597 = vmax.xlane.f32.xlu0 %v3394
    %v3598 = vpop.xlane.xlu0 %3597
    %3599 = vmax.xlane.f32.xlu0 %v3395
    %v3600 = vpop.xlane.xlu0 %3599
    %3601 = vmax.xlane.f32.xlu0 %v3396
    %v3602 = vpop.xlane.xlu0 %3601
    %3603 = vmax.xlane.f32.xlu0 %v3397
    %v3604 = vpop.xlane.xlu0 %3603
    %3605 = vmax.xlane.f32.xlu0 %v3398
    %v3606 = vpop.xlane.xlu0 %3605
    %3607 = vmax.xlane.f32.xlu0 %v3399
    %v3608 = vpop.xlane.xlu0 %3607
    %3609 = vmax.xlane.f32.xlu0 %v3400
    %v3610 = vpop.xlane.xlu0 %3609
    %3611 = vmax.xlane.f32.xlu0 %v3401
    %v3612 = vpop.xlane.xlu0 %3611
    %3613 = vmax.xlane.f32.xlu0 %v3402
    %v3614 = vpop.xlane.xlu0 %3613
    %3615 = vmax.xlane.f32.xlu0 %v3403
    %v3616 = vpop.xlane.xlu0 %3615
    %3617 = vmax.xlane.f32.xlu0 %v3404
    %v3618 = vpop.xlane.xlu0 %3617
    %3619 = vmax.xlane.f32.xlu0 %v3405
    %v3620 = vpop.xlane.xlu0 %3619
    %3621 = vmax.xlane.f32.xlu0 %v3406
    %v3622 = vpop.xlane.xlu0 %3621
    %3623 = vmax.xlane.f32.xlu0 %v3407
    %v3624 = vpop.xlane.xlu0 %3623
    %3625 = vmax.xlane.f32.xlu0 %v3408
    %v3626 = vpop.xlane.xlu0 %3625
    %3627 = vmax.xlane.f32.xlu0 %v3409
    %v3628 = vpop.xlane.xlu0 %3627
    %3629 = vmax.xlane.f32.xlu0 %v3410
    %v3630 = vpop.xlane.xlu0 %3629
    %3631 = vmax.xlane.f32.xlu0 %v3411
    %v3632 = vpop.xlane.xlu0 %3631
    %3633 = vmax.xlane.f32.xlu0 %v3412
    %v3634 = vpop.xlane.xlu0 %3633
    %3635 = vmax.xlane.f32.xlu0 %v3413
    %v3636 = vpop.xlane.xlu0 %3635
    %3637 = vmax.xlane.f32.xlu0 %v3414
    %v3638 = vpop.xlane.xlu0 %3637
    %3639 = vmax.xlane.f32.xlu0 %v3415
    %v3640 = vpop.xlane.xlu0 %3639
    %3641 = vmax.xlane.f32.xlu0 %v3416
    %v3642 = vpop.xlane.xlu0 %3641
    %3643 = vmax.xlane.f32.xlu0 %v3417
    %v3644 = vpop.xlane.xlu0 %3643
    %3645 = vmax.xlane.f32.xlu0 %v3418
    %v3646 = vpop.xlane.xlu0 %3645
    %3647 = vmax.xlane.f32.xlu0 %v3419
    %v3648 = vpop.xlane.xlu0 %3647
    %3649 = vmax.xlane.f32.xlu0 %v3420
    %v3650 = vpop.xlane.xlu0 %3649
    %3651 = vmax.xlane.f32.xlu0 %v3421
    %v3652 = vpop.xlane.xlu0 %3651
    %3653 = vmax.xlane.f32.xlu0 %v3422
    %v3654 = vpop.xlane.xlu0 %3653
    %3655 = vmax.xlane.f32.xlu0 %v3423
    %v3656 = vpop.xlane.xlu0 %3655
    %3657 = vmax.xlane.f32.xlu0 %v3424
    %v3658 = vpop.xlane.xlu0 %3657
    %3659 = vmax.xlane.f32.xlu0 %v3425
    %v3660 = vpop.xlane.xlu0 %3659
    %3661 = vmax.xlane.f32.xlu0 %v3426
    %v3662 = vpop.xlane.xlu0 %3661
    %3663 = vmax.xlane.f32.xlu0 %v3427
    %v3664 = vpop.xlane.xlu0 %3663
    %3665 = vmax.xlane.f32.xlu0 %v3428
    %v3666 = vpop.xlane.xlu0 %3665
    %3667 = vmax.xlane.f32.xlu0 %v3429
    %v3668 = vpop.xlane.xlu0 %3667
    %3669 = vmax.xlane.f32.xlu0 %v3430
    %v3670 = vpop.xlane.xlu0 %3669
    %3671 = vmax.xlane.f32.xlu0 %v3431
    %v3672 = vpop.xlane.xlu0 %3671
    %3673 = vmax.xlane.f32.xlu0 %v3432
    %v3674 = vpop.xlane.xlu0 %3673
    %3675 = vmax.xlane.f32.xlu0 %v3433
    %v3676 = vpop.xlane.xlu0 %3675
    %3677 = vmax.xlane.f32.xlu0 %v3434
    %v3678 = vpop.xlane.xlu0 %3677
    %3679 = vmax.xlane.f32.xlu0 %v3435
    %v3680 = vpop.xlane.xlu0 %3679
    %3681 = vmax.xlane.f32.xlu0 %v3436
    %v3682 = vpop.xlane.xlu0 %3681
    %3683 = vmax.xlane.f32.xlu0 %v3437
    %v3684 = vpop.xlane.xlu0 %3683
    %3685 = vmax.xlane.f32.xlu0 %v3438
    %v3686 = vpop.xlane.xlu0 %3685
    %3687 = vmax.xlane.f32.xlu0 %v3439
    %v3688 = vpop.xlane.xlu0 %3687
    %3689 = vmax.xlane.f32.xlu0 %v3440
    %v3690 = vpop.xlane.xlu0 %3689
    %3691 = vmax.xlane.f32.xlu0 %v3441
    %v3692 = vpop.xlane.xlu0 %3691
    %3693 = vmax.xlane.f32.xlu0 %v3442
    %v3694 = vpop.xlane.xlu0 %3693
    %3695 = vmax.xlane.f32.xlu0 %v3443
    %v3696 = vpop.xlane.xlu0 %3695
    %3697 = vmax.xlane.f32.xlu0 %v3444
    %v3698 = vpop.xlane.xlu0 %3697
    %3699 = vmax.xlane.f32.xlu0 %v3445
    %v3700 = vpop.xlane.xlu0 %3699
    %3701 = vmax.xlane.f32.xlu0 %v3446
    %v3702 = vpop.xlane.xlu0 %3701
    %v3831 = vadd.s32 %v2654, 4294967288
    %v3832 = vlaneseq
    %v3833 = vshrl.u32 %v3832, 7
    %v3834 = vsub.s32 %v3831, %v3833
    %v3835 = vrot.slane %v3448, %v3834
    %v3836 = vlaneseq
    %v3837 = vshrl.u32 %v3836, 7
    %v3838 = vsub.s32 %v3831, %v3837
    %v3839 = vrot.slane %v3450, %v3838
    %v3840 = vlaneseq
    %v3841 = vshrl.u32 %v3840, 7
    %v3842 = vsub.s32 %v3831, %v3841
    %v3843 = vrot.slane %v3452, %v3842
    %v3844 = vlaneseq
    %v3845 = vshrl.u32 %v3844, 7
    %v3846 = vsub.s32 %v3831, %v3845
    %v3847 = vrot.slane %v3454, %v3846
    %v3848 = vlaneseq
    %v3849 = vshrl.u32 %v3848, 7
    %v3850 = vsub.s32 %v3831, %v3849
    %v3851 = vrot.slane %v3456, %v3850
    %v3852 = vlaneseq
    %v3853 = vshrl.u32 %v3852, 7
    %v3854 = vsub.s32 %v3831, %v3853
    %v3855 = vrot.slane %v3458, %v3854
    %v3856 = vlaneseq
    %v3857 = vshrl.u32 %v3856, 7
    %v3858 = vsub.s32 %v3831, %v3857
    %v3859 = vrot.slane %v3460, %v3858
    %v3860 = vlaneseq
    %v3861 = vshrl.u32 %v3860, 7
    %v3862 = vsub.s32 %v3831, %v3861
    %v3863 = vrot.slane %v3462, %v3862
    %v3864 = vlaneseq
    %v3865 = vshrl.u32 %v3864, 7
    %v3866 = vsub.s32 %v3831, %v3865
    %v3867 = vrot.slane %v3464, %v3866
    %v3868 = vlaneseq
    %v3869 = vshrl.u32 %v3868, 7
    %v3870 = vsub.s32 %v3831, %v3869
    %v3871 = vrot.slane %v3466, %v3870
    %v3872 = vlaneseq
    %v3873 = vshrl.u32 %v3872, 7
    %v3874 = vsub.s32 %v3831, %v3873
    %v3875 = vrot.slane %v3468, %v3874
    %v3876 = vlaneseq
    %v3877 = vshrl.u32 %v3876, 7
    %v3878 = vsub.s32 %v3831, %v3877
    %v3879 = vrot.slane %v3470, %v3878
    %v3880 = vlaneseq
    %v3881 = vshrl.u32 %v3880, 7
    %v3882 = vsub.s32 %v3831, %v3881
    %v3883 = vrot.slane %v3472, %v3882
    %v3884 = vlaneseq
    %v3885 = vshrl.u32 %v3884, 7
    %v3886 = vsub.s32 %v3831, %v3885
    %v3887 = vrot.slane %v3474, %v3886
    %v3888 = vlaneseq
    %v3889 = vshrl.u32 %v3888, 7
    %v3890 = vsub.s32 %v3831, %v3889
    %v3891 = vrot.slane %v3476, %v3890
    %v3892 = vlaneseq
    %v3893 = vshrl.u32 %v3892, 7
    %v3894 = vsub.s32 %v3831, %v3893
    %v3895 = vrot.slane %v3478, %v3894
    %v3896 = vlaneseq
    %v3897 = vshrl.u32 %v3896, 7
    %v3898 = vsub.s32 %v3831, %v3897
    %v3899 = vrot.slane %v3480, %v3898
    %v3900 = vlaneseq
    %v3901 = vshrl.u32 %v3900, 7
    %v3902 = vsub.s32 %v3831, %v3901
    %v3903 = vrot.slane %v3482, %v3902
    %v3904 = vlaneseq
    %v3905 = vshrl.u32 %v3904, 7
    %v3906 = vsub.s32 %v3831, %v3905
    %v3907 = vrot.slane %v3484, %v3906
    %v3908 = vlaneseq
    %v3909 = vshrl.u32 %v3908, 7
    %v3910 = vsub.s32 %v3831, %v3909
    %v3911 = vrot.slane %v3486, %v3910
    %v3912 = vlaneseq
    %v3913 = vshrl.u32 %v3912, 7
    %v3914 = vsub.s32 %v3831, %v3913
    %v3915 = vrot.slane %v3488, %v3914
    %v3916 = vlaneseq
    %v3917 = vshrl.u32 %v3916, 7
    %v3918 = vsub.s32 %v3831, %v3917
    %v3919 = vrot.slane %v3490, %v3918
    %v3920 = vlaneseq
    %v3921 = vshrl.u32 %v3920, 7
    %v3922 = vsub.s32 %v3831, %v3921
    %v3923 = vrot.slane %v3492, %v3922
    %v3924 = vlaneseq
    %v3925 = vshrl.u32 %v3924, 7
    %v3926 = vsub.s32 %v3831, %v3925
    %v3927 = vrot.slane %v3494, %v3926
    %v3928 = vlaneseq
    %v3929 = vshrl.u32 %v3928, 7
    %v3930 = vsub.s32 %v3831, %v3929
    %v3931 = vrot.slane %v3496, %v3930
    %v3932 = vlaneseq
    %v3933 = vshrl.u32 %v3932, 7
    %v3934 = vsub.s32 %v3831, %v3933
    %v3935 = vrot.slane %v3498, %v3934
    %v3936 = vlaneseq
    %v3937 = vshrl.u32 %v3936, 7
    %v3938 = vsub.s32 %v3831, %v3937
    %v3939 = vrot.slane %v3500, %v3938
    %v3940 = vlaneseq
    %v3941 = vshrl.u32 %v3940, 7
    %v3942 = vsub.s32 %v3831, %v3941
    %v3943 = vrot.slane %v3502, %v3942
    %v3944 = vlaneseq
    %v3945 = vshrl.u32 %v3944, 7
    %v3946 = vsub.s32 %v3831, %v3945
    %v3947 = vrot.slane %v3504, %v3946
    %v3948 = vlaneseq
    %v3949 = vshrl.u32 %v3948, 7
    %v3950 = vsub.s32 %v3831, %v3949
    %v3951 = vrot.slane %v3506, %v3950
    %v3952 = vlaneseq
    %v3953 = vshrl.u32 %v3952, 7
    %v3954 = vsub.s32 %v3831, %v3953
    %v3955 = vrot.slane %v3508, %v3954
    %v3956 = vlaneseq
    %v3957 = vshrl.u32 %v3956, 7
    %v3958 = vsub.s32 %v3831, %v3957
    %v3959 = vrot.slane %v3510, %v3958
    %v3960 = vlaneseq
    %v3961 = vshrl.u32 %v3960, 7
    %v3962 = vsub.s32 %v3831, %v3961
    %v3963 = vrot.slane %v3512, %v3962
    %v3964 = vlaneseq
    %v3965 = vshrl.u32 %v3964, 7
    %v3966 = vsub.s32 %v3831, %v3965
    %v3967 = vrot.slane %v3514, %v3966
    %v3968 = vlaneseq
    %v3969 = vshrl.u32 %v3968, 7
    %v3970 = vsub.s32 %v3831, %v3969
    %v3971 = vrot.slane %v3516, %v3970
    %v3972 = vlaneseq
    %v3973 = vshrl.u32 %v3972, 7
    %v3974 = vsub.s32 %v3831, %v3973
    %v3975 = vrot.slane %v3518, %v3974
    %v3976 = vlaneseq
    %v3977 = vshrl.u32 %v3976, 7
    %v3978 = vsub.s32 %v3831, %v3977
    %v3979 = vrot.slane %v3520, %v3978
    %v3980 = vlaneseq
    %v3981 = vshrl.u32 %v3980, 7
    %v3982 = vsub.s32 %v3831, %v3981
    %v3983 = vrot.slane %v3522, %v3982
    %v3984 = vlaneseq
    %v3985 = vshrl.u32 %v3984, 7
    %v3986 = vsub.s32 %v3831, %v3985
    %v3987 = vrot.slane %v3524, %v3986
    %v3988 = vlaneseq
    %v3989 = vshrl.u32 %v3988, 7
    %v3990 = vsub.s32 %v3831, %v3989
    %v3991 = vrot.slane %v3526, %v3990
    %v3992 = vlaneseq
    %v3993 = vshrl.u32 %v3992, 7
    %v3994 = vsub.s32 %v3831, %v3993
    %v3995 = vrot.slane %v3528, %v3994
    %v3996 = vlaneseq
    %v3997 = vshrl.u32 %v3996, 7
    %v3998 = vsub.s32 %v3831, %v3997
    %v3999 = vrot.slane %v3530, %v3998
    %v4000 = vlaneseq
    %v4001 = vshrl.u32 %v4000, 7
    %v4002 = vsub.s32 %v3831, %v4001
    %v4003 = vrot.slane %v3532, %v4002
    %v4004 = vlaneseq
    %v4005 = vshrl.u32 %v4004, 7
    %v4006 = vsub.s32 %v3831, %v4005
    %v4007 = vrot.slane %v3534, %v4006
    %v4008 = vlaneseq
    %v4009 = vshrl.u32 %v4008, 7
    %v4010 = vsub.s32 %v3831, %v4009
    %v4011 = vrot.slane %v3536, %v4010
    %v4012 = vlaneseq
    %v4013 = vshrl.u32 %v4012, 7
    %v4014 = vsub.s32 %v3831, %v4013
    %v4015 = vrot.slane %v3538, %v4014
    %v4016 = vlaneseq
    %v4017 = vshrl.u32 %v4016, 7
    %v4018 = vsub.s32 %v3831, %v4017
    %v4019 = vrot.slane %v3540, %v4018
    %v4020 = vlaneseq
    %v4021 = vshrl.u32 %v4020, 7
    %v4022 = vsub.s32 %v3831, %v4021
    %v4023 = vrot.slane %v3542, %v4022
    %v4024 = vlaneseq
    %v4025 = vshrl.u32 %v4024, 7
    %v4026 = vsub.s32 %v3831, %v4025
    %v4027 = vrot.slane %v3544, %v4026
    %v4028 = vlaneseq
    %v4029 = vshrl.u32 %v4028, 7
    %v4030 = vsub.s32 %v3831, %v4029
    %v4031 = vrot.slane %v3546, %v4030
    %v4032 = vlaneseq
    %v4033 = vshrl.u32 %v4032, 7
    %v4034 = vsub.s32 %v3831, %v4033
    %v4035 = vrot.slane %v3548, %v4034
    %v4036 = vlaneseq
    %v4037 = vshrl.u32 %v4036, 7
    %v4038 = vsub.s32 %v3831, %v4037
    %v4039 = vrot.slane %v3550, %v4038
    %v4040 = vlaneseq
    %v4041 = vshrl.u32 %v4040, 7
    %v4042 = vsub.s32 %v3831, %v4041
    %v4043 = vrot.slane %v3552, %v4042
    %v4044 = vlaneseq
    %v4045 = vshrl.u32 %v4044, 7
    %v4046 = vsub.s32 %v3831, %v4045
    %v4047 = vrot.slane %v3554, %v4046
    %v4048 = vlaneseq
    %v4049 = vshrl.u32 %v4048, 7
    %v4050 = vsub.s32 %v3831, %v4049
    %v4051 = vrot.slane %v3556, %v4050
    %v4052 = vlaneseq
    %v4053 = vshrl.u32 %v4052, 7
    %v4054 = vsub.s32 %v3831, %v4053
    %v4055 = vrot.slane %v3558, %v4054
    %v4056 = vlaneseq
    %v4057 = vshrl.u32 %v4056, 7
    %v4058 = vsub.s32 %v3831, %v4057
    %v4059 = vrot.slane %v3560, %v4058
    %v4060 = vlaneseq
    %v4061 = vshrl.u32 %v4060, 7
    %v4062 = vsub.s32 %v3831, %v4061
    %v4063 = vrot.slane %v3562, %v4062
    %v4064 = vlaneseq
    %v4065 = vshrl.u32 %v4064, 7
    %v4066 = vsub.s32 %v3831, %v4065
    %v4067 = vrot.slane %v3564, %v4066
    %v4068 = vlaneseq
    %v4069 = vshrl.u32 %v4068, 7
    %v4070 = vsub.s32 %v3831, %v4069
    %v4071 = vrot.slane %v3566, %v4070
    %v4072 = vlaneseq
    %v4073 = vshrl.u32 %v4072, 7
    %v4074 = vsub.s32 %v3831, %v4073
    %v4075 = vrot.slane %v3568, %v4074
    %v4076 = vlaneseq
    %v4077 = vshrl.u32 %v4076, 7
    %v4078 = vsub.s32 %v3831, %v4077
    %v4079 = vrot.slane %v3570, %v4078
    %v4080 = vlaneseq
    %v4081 = vshrl.u32 %v4080, 7
    %v4082 = vsub.s32 %v3831, %v4081
    %v4083 = vrot.slane %v3572, %v4082
    %v4084 = vlaneseq
    %v4085 = vshrl.u32 %v4084, 7
    %v4086 = vsub.s32 %v3831, %v4085
    %v4087 = vrot.slane %v3574, %v4086
    %v4088 = vlaneseq
    %v4089 = vshrl.u32 %v4088, 7
    %v4090 = vsub.s32 %v3831, %v4089
    %v4091 = vrot.slane %v3576, %v4090
    %v4092 = vlaneseq
    %v4093 = vshrl.u32 %v4092, 7
    %v4094 = vsub.s32 %v3831, %v4093
    %v4095 = vrot.slane %v3578, %v4094
    %v4096 = vlaneseq
    %v4097 = vshrl.u32 %v4096, 7
    %v4098 = vsub.s32 %v3831, %v4097
    %v4099 = vrot.slane %v3580, %v4098
    %v4100 = vlaneseq
    %v4101 = vshrl.u32 %v4100, 7
    %v4102 = vsub.s32 %v3831, %v4101
    %v4103 = vrot.slane %v3582, %v4102
    %v4104 = vlaneseq
    %v4105 = vshrl.u32 %v4104, 7
    %v4106 = vsub.s32 %v3831, %v4105
    %v4107 = vrot.slane %v3584, %v4106
    %v4108 = vlaneseq
    %v4109 = vshrl.u32 %v4108, 7
    %v4110 = vsub.s32 %v3831, %v4109
    %v4111 = vrot.slane %v3586, %v4110
    %v4112 = vlaneseq
    %v4113 = vshrl.u32 %v4112, 7
    %v4114 = vsub.s32 %v3831, %v4113
    %v4115 = vrot.slane %v3588, %v4114
    %v4116 = vlaneseq
    %v4117 = vshrl.u32 %v4116, 7
    %v4118 = vsub.s32 %v3831, %v4117
    %v4119 = vrot.slane %v3590, %v4118
    %v4120 = vlaneseq
    %v4121 = vshrl.u32 %v4120, 7
    %v4122 = vsub.s32 %v3831, %v4121
    %v4123 = vrot.slane %v3592, %v4122
    %v4124 = vlaneseq
    %v4125 = vshrl.u32 %v4124, 7
    %v4126 = vsub.s32 %v3831, %v4125
    %v4127 = vrot.slane %v3594, %v4126
    %v4128 = vlaneseq
    %v4129 = vshrl.u32 %v4128, 7
    %v4130 = vsub.s32 %v3831, %v4129
    %v4131 = vrot.slane %v3596, %v4130
    %v4132 = vlaneseq
    %v4133 = vshrl.u32 %v4132, 7
    %v4134 = vsub.s32 %v3831, %v4133
    %v4135 = vrot.slane %v3598, %v4134
    %v4136 = vlaneseq
    %v4137 = vshrl.u32 %v4136, 7
    %v4138 = vsub.s32 %v3831, %v4137
    %v4139 = vrot.slane %v3600, %v4138
    %v4140 = vlaneseq
    %v4141 = vshrl.u32 %v4140, 7
    %v4142 = vsub.s32 %v3831, %v4141
    %v4143 = vrot.slane %v3602, %v4142
    %v4144 = vlaneseq
    %v4145 = vshrl.u32 %v4144, 7
    %v4146 = vsub.s32 %v3831, %v4145
    %v4147 = vrot.slane %v3604, %v4146
    %v4148 = vlaneseq
    %v4149 = vshrl.u32 %v4148, 7
    %v4150 = vsub.s32 %v3831, %v4149
    %v4151 = vrot.slane %v3606, %v4150
    %v4152 = vlaneseq
    %v4153 = vshrl.u32 %v4152, 7
    %v4154 = vsub.s32 %v3831, %v4153
    %v4155 = vrot.slane %v3608, %v4154
    %v4156 = vlaneseq
    %v4157 = vshrl.u32 %v4156, 7
    %v4158 = vsub.s32 %v3831, %v4157
    %v4159 = vrot.slane %v3610, %v4158
    %v4160 = vlaneseq
    %v4161 = vshrl.u32 %v4160, 7
    %v4162 = vsub.s32 %v3831, %v4161
    %v4163 = vrot.slane %v3612, %v4162
    %v4164 = vlaneseq
    %v4165 = vshrl.u32 %v4164, 7
    %v4166 = vsub.s32 %v3831, %v4165
    %v4167 = vrot.slane %v3614, %v4166
    %v4168 = vlaneseq
    %v4169 = vshrl.u32 %v4168, 7
    %v4170 = vsub.s32 %v3831, %v4169
    %v4171 = vrot.slane %v3616, %v4170
    %v4172 = vlaneseq
    %v4173 = vshrl.u32 %v4172, 7
    %v4174 = vsub.s32 %v3831, %v4173
    %v4175 = vrot.slane %v3618, %v4174
    %v4176 = vlaneseq
    %v4177 = vshrl.u32 %v4176, 7
    %v4178 = vsub.s32 %v3831, %v4177
    %v4179 = vrot.slane %v3620, %v4178
    %v4180 = vlaneseq
    %v4181 = vshrl.u32 %v4180, 7
    %v4182 = vsub.s32 %v3831, %v4181
    %v4183 = vrot.slane %v3622, %v4182
    %v4184 = vlaneseq
    %v4185 = vshrl.u32 %v4184, 7
    %v4186 = vsub.s32 %v3831, %v4185
    %v4187 = vrot.slane %v3624, %v4186
    %v4188 = vlaneseq
    %v4189 = vshrl.u32 %v4188, 7
    %v4190 = vsub.s32 %v3831, %v4189
    %v4191 = vrot.slane %v3626, %v4190
    %v4192 = vlaneseq
    %v4193 = vshrl.u32 %v4192, 7
    %v4194 = vsub.s32 %v3831, %v4193
    %v4195 = vrot.slane %v3628, %v4194
    %v4196 = vlaneseq
    %v4197 = vshrl.u32 %v4196, 7
    %v4198 = vsub.s32 %v3831, %v4197
    %v4199 = vrot.slane %v3630, %v4198
    %v4200 = vlaneseq
    %v4201 = vshrl.u32 %v4200, 7
    %v4202 = vsub.s32 %v3831, %v4201
    %v4203 = vrot.slane %v3632, %v4202
    %v4204 = vlaneseq
    %v4205 = vshrl.u32 %v4204, 7
    %v4206 = vsub.s32 %v3831, %v4205
    %v4207 = vrot.slane %v3634, %v4206
    %v4208 = vlaneseq
    %v4209 = vshrl.u32 %v4208, 7
    %v4210 = vsub.s32 %v3831, %v4209
    %v4211 = vrot.slane %v3636, %v4210
    %v4212 = vlaneseq
    %v4213 = vshrl.u32 %v4212, 7
    %v4214 = vsub.s32 %v3831, %v4213
    %v4215 = vrot.slane %v3638, %v4214
    %v4216 = vlaneseq
    %v4217 = vshrl.u32 %v4216, 7
    %v4218 = vsub.s32 %v3831, %v4217
    %v4219 = vrot.slane %v3640, %v4218
    %v4220 = vlaneseq
    %v4221 = vshrl.u32 %v4220, 7
    %v4222 = vsub.s32 %v3831, %v4221
    %v4223 = vrot.slane %v3642, %v4222
    %v4224 = vlaneseq
    %v4225 = vshrl.u32 %v4224, 7
    %v4226 = vsub.s32 %v3831, %v4225
    %v4227 = vrot.slane %v3644, %v4226
    %v4228 = vlaneseq
    %v4229 = vshrl.u32 %v4228, 7
    %v4230 = vsub.s32 %v3831, %v4229
    %v4231 = vrot.slane %v3646, %v4230
    %v4232 = vlaneseq
    %v4233 = vshrl.u32 %v4232, 7
    %v4234 = vsub.s32 %v3831, %v4233
    %v4235 = vrot.slane %v3648, %v4234
    %v4236 = vlaneseq
    %v4237 = vshrl.u32 %v4236, 7
    %v4238 = vsub.s32 %v3831, %v4237
    %v4239 = vrot.slane %v3650, %v4238
    %v4240 = vlaneseq
    %v4241 = vshrl.u32 %v4240, 7
    %v4242 = vsub.s32 %v3831, %v4241
    %v4243 = vrot.slane %v3652, %v4242
    %v4244 = vlaneseq
    %v4245 = vshrl.u32 %v4244, 7
    %v4246 = vsub.s32 %v3831, %v4245
    %v4247 = vrot.slane %v3654, %v4246
    %v4248 = vlaneseq
    %v4249 = vshrl.u32 %v4248, 7
    %v4250 = vsub.s32 %v3831, %v4249
    %v4251 = vrot.slane %v3656, %v4250
    %v4252 = vlaneseq
    %v4253 = vshrl.u32 %v4252, 7
    %v4254 = vsub.s32 %v3831, %v4253
    %v4255 = vrot.slane %v3658, %v4254
    %v4256 = vlaneseq
    %v4257 = vshrl.u32 %v4256, 7
    %v4258 = vsub.s32 %v3831, %v4257
    %v4259 = vrot.slane %v3660, %v4258
    %v4260 = vlaneseq
    %v4261 = vshrl.u32 %v4260, 7
    %v4262 = vsub.s32 %v3831, %v4261
    %v4263 = vrot.slane %v3662, %v4262
    %v4264 = vlaneseq
    %v4265 = vshrl.u32 %v4264, 7
    %v4266 = vsub.s32 %v3831, %v4265
    %v4267 = vrot.slane %v3664, %v4266
    %v4268 = vlaneseq
    %v4269 = vshrl.u32 %v4268, 7
    %v4270 = vsub.s32 %v3831, %v4269
    %v4271 = vrot.slane %v3666, %v4270
    %v4272 = vlaneseq
    %v4273 = vshrl.u32 %v4272, 7
    %v4274 = vsub.s32 %v3831, %v4273
    %v4275 = vrot.slane %v3668, %v4274
    %v4276 = vlaneseq
    %v4277 = vshrl.u32 %v4276, 7
    %v4278 = vsub.s32 %v3831, %v4277
    %v4279 = vrot.slane %v3670, %v4278
    %v4280 = vlaneseq
    %v4281 = vshrl.u32 %v4280, 7
    %v4282 = vsub.s32 %v3831, %v4281
    %v4283 = vrot.slane %v3672, %v4282
    %v4284 = vlaneseq
    %v4285 = vshrl.u32 %v4284, 7
    %v4286 = vsub.s32 %v3831, %v4285
    %v4287 = vrot.slane %v3674, %v4286
    %v4288 = vlaneseq
    %v4289 = vshrl.u32 %v4288, 7
    %v4290 = vsub.s32 %v3831, %v4289
    %v4291 = vrot.slane %v3676, %v4290
    %v4292 = vlaneseq
    %v4293 = vshrl.u32 %v4292, 7
    %v4294 = vsub.s32 %v3831, %v4293
    %v4295 = vrot.slane %v3678, %v4294
    %v4296 = vlaneseq
    %v4297 = vshrl.u32 %v4296, 7
    %v4298 = vsub.s32 %v3831, %v4297
    %v4299 = vrot.slane %v3680, %v4298
    %v4300 = vlaneseq
    %v4301 = vshrl.u32 %v4300, 7
    %v4302 = vsub.s32 %v3831, %v4301
    %v4303 = vrot.slane %v3682, %v4302
    %v4304 = vlaneseq
    %v4305 = vshrl.u32 %v4304, 7
    %v4306 = vsub.s32 %v3831, %v4305
    %v4307 = vrot.slane %v3684, %v4306
    %v4308 = vlaneseq
    %v4309 = vshrl.u32 %v4308, 7
    %v4310 = vsub.s32 %v3831, %v4309
    %v4311 = vrot.slane %v3686, %v4310
    %v4312 = vlaneseq
    %v4313 = vshrl.u32 %v4312, 7
    %v4314 = vsub.s32 %v3831, %v4313
    %v4315 = vrot.slane %v3688, %v4314
    %v4316 = vlaneseq
    %v4317 = vshrl.u32 %v4316, 7
    %v4318 = vsub.s32 %v3831, %v4317
    %v4319 = vrot.slane %v3690, %v4318
    %v4320 = vlaneseq
    %v4321 = vshrl.u32 %v4320, 7
    %v4322 = vsub.s32 %v3831, %v4321
    %v4323 = vrot.slane %v3692, %v4322
    %v4324 = vlaneseq
    %v4325 = vshrl.u32 %v4324, 7
    %v4326 = vsub.s32 %v3831, %v4325
    %v4327 = vrot.slane %v3694, %v4326
    %v4328 = vlaneseq
    %v4329 = vshrl.u32 %v4328, 7
    %v4330 = vsub.s32 %v3831, %v4329
    %v4331 = vrot.slane %v3696, %v4330
    %v4332 = vlaneseq
    %v4333 = vshrl.u32 %v4332, 7
    %v4334 = vsub.s32 %v3831, %v4333
    %v4335 = vrot.slane %v3698, %v4334
    %v4336 = vlaneseq
    %v4337 = vshrl.u32 %v4336, 7
    %v4338 = vsub.s32 %v3831, %v4337
    %v4339 = vrot.slane %v3700, %v4338
    %v4340 = vlaneseq
    %v4341 = vshrl.u32 %v4340, 7
    %v4342 = vsub.s32 %v3831, %v4341
    %v4343 = vrot.slane %v3702, %v4342
    %v4344 = vsel %vm3167, %v3839, %v3835
    %v4345 = vsel %vm3169, %v3843, %v4344
    %v4346 = vsel %vm3171, %v3847, %v4345
    %v4347 = vsel %vm3173, %v3851, %v4346
    %v4348 = vsel %vm3175, %v3855, %v4347
    %v4349 = vsel %vm3177, %v3859, %v4348
    %v4350 = vsel %vm3179, %v3863, %v4349
    %v4351 = vsel %vm3167, %v3871, %v3867
    %v4352 = vsel %vm3169, %v3875, %v4351
    %v4353 = vsel %vm3171, %v3879, %v4352
    %v4354 = vsel %vm3173, %v3883, %v4353
    %v4355 = vsel %vm3175, %v3887, %v4354
    %v4356 = vsel %vm3177, %v3891, %v4355
    %v4357 = vsel %vm3179, %v3895, %v4356
    %v4358 = vsel %vm3167, %v3903, %v3899
    %v4359 = vsel %vm3169, %v3907, %v4358
    %v4360 = vsel %vm3171, %v3911, %v4359
    %v4361 = vsel %vm3173, %v3915, %v4360
    %v4362 = vsel %vm3175, %v3919, %v4361
    %v4363 = vsel %vm3177, %v3923, %v4362
    %v4364 = vsel %vm3179, %v3927, %v4363
    %v4365 = vsel %vm3167, %v3935, %v3931
    %v4366 = vsel %vm3169, %v3939, %v4365
    %v4367 = vsel %vm3171, %v3943, %v4366
    %v4368 = vsel %vm3173, %v3947, %v4367
    %v4369 = vsel %vm3175, %v3951, %v4368
    %v4370 = vsel %vm3177, %v3955, %v4369
    %v4371 = vsel %vm3179, %v3959, %v4370
    %v4372 = vsel %vm3167, %v3967, %v3963
    %v4373 = vsel %vm3169, %v3971, %v4372
    %v4374 = vsel %vm3171, %v3975, %v4373
    %v4375 = vsel %vm3173, %v3979, %v4374
    %v4376 = vsel %vm3175, %v3983, %v4375
    %v4377 = vsel %vm3177, %v3987, %v4376
    %v4378 = vsel %vm3179, %v3991, %v4377
    %v4379 = vsel %vm3167, %v3999, %v3995
    %v4380 = vsel %vm3169, %v4003, %v4379
    %v4381 = vsel %vm3171, %v4007, %v4380
    %v4382 = vsel %vm3173, %v4011, %v4381
    %v4383 = vsel %vm3175, %v4015, %v4382
    %v4384 = vsel %vm3177, %v4019, %v4383
    %v4385 = vsel %vm3179, %v4023, %v4384
    %v4386 = vsel %vm3167, %v4031, %v4027
    %v4387 = vsel %vm3169, %v4035, %v4386
    %v4388 = vsel %vm3171, %v4039, %v4387
    %v4389 = vsel %vm3173, %v4043, %v4388
    %v4390 = vsel %vm3175, %v4047, %v4389
    %v4391 = vsel %vm3177, %v4051, %v4390
    %v4392 = vsel %vm3179, %v4055, %v4391
    %v4393 = vsel %vm3167, %v4063, %v4059
    %v4394 = vsel %vm3169, %v4067, %v4393
    %v4395 = vsel %vm3171, %v4071, %v4394
    %v4396 = vsel %vm3173, %v4075, %v4395
    %v4397 = vsel %vm3175, %v4079, %v4396
    %v4398 = vsel %vm3177, %v4083, %v4397
    %v4399 = vsel %vm3179, %v4087, %v4398
    %v4400 = vsel %vm3167, %v4095, %v4091
    %v4401 = vsel %vm3169, %v4099, %v4400
    %v4402 = vsel %vm3171, %v4103, %v4401
    %v4403 = vsel %vm3173, %v4107, %v4402
    %v4404 = vsel %vm3175, %v4111, %v4403
    %v4405 = vsel %vm3177, %v4115, %v4404
    %v4406 = vsel %vm3179, %v4119, %v4405
    %v4407 = vsel %vm3167, %v4127, %v4123
    %v4408 = vsel %vm3169, %v4131, %v4407
    %v4409 = vsel %vm3171, %v4135, %v4408
    %v4410 = vsel %vm3173, %v4139, %v4409
    %v4411 = vsel %vm3175, %v4143, %v4410
    %v4412 = vsel %vm3177, %v4147, %v4411
    %v4413 = vsel %vm3179, %v4151, %v4412
    %v4414 = vsel %vm3167, %v4159, %v4155
    %v4415 = vsel %vm3169, %v4163, %v4414
    %v4416 = vsel %vm3171, %v4167, %v4415
    %v4417 = vsel %vm3173, %v4171, %v4416
    %v4418 = vsel %vm3175, %v4175, %v4417
    %v4419 = vsel %vm3177, %v4179, %v4418
    %v4420 = vsel %vm3179, %v4183, %v4419
    %v4421 = vsel %vm3167, %v4191, %v4187
    %v4422 = vsel %vm3169, %v4195, %v4421
    %v4423 = vsel %vm3171, %v4199, %v4422
    %v4424 = vsel %vm3173, %v4203, %v4423
    %v4425 = vsel %vm3175, %v4207, %v4424
    %v4426 = vsel %vm3177, %v4211, %v4425
    %v4427 = vsel %vm3179, %v4215, %v4426
    %v4428 = vsel %vm3167, %v4223, %v4219
    %v4429 = vsel %vm3169, %v4227, %v4428
    %v4430 = vsel %vm3171, %v4231, %v4429
    %v4431 = vsel %vm3173, %v4235, %v4430
    %v4432 = vsel %vm3175, %v4239, %v4431
    %v4433 = vsel %vm3177, %v4243, %v4432
    %v4434 = vsel %vm3179, %v4247, %v4433
    %v4435 = vsel %vm3167, %v4255, %v4251
    %v4436 = vsel %vm3169, %v4259, %v4435
    %v4437 = vsel %vm3171, %v4263, %v4436
    %v4438 = vsel %vm3173, %v4267, %v4437
    %v4439 = vsel %vm3175, %v4271, %v4438
    %v4440 = vsel %vm3177, %v4275, %v4439
    %v4441 = vsel %vm3179, %v4279, %v4440
    %v4442 = vsel %vm3167, %v4287, %v4283
    %v4443 = vsel %vm3169, %v4291, %v4442
    %v4444 = vsel %vm3171, %v4295, %v4443
    %v4445 = vsel %vm3173, %v4299, %v4444
    %v4446 = vsel %vm3175, %v4303, %v4445
    %v4447 = vsel %vm3177, %v4307, %v4446
    %v4448 = vsel %vm3179, %v4311, %v4447
    %v4449 = vsel %vm3167, %v4319, %v4315
    %v4450 = vsel %vm3169, %v4323, %v4449
    %v4451 = vsel %vm3171, %v4327, %v4450
    %v4452 = vsel %vm3173, %v4331, %v4451
    %v4453 = vsel %vm3175, %v4335, %v4452
    %v4454 = vsel %vm3177, %v4339, %v4453
    %v4455 = vsel %vm3179, %v4343, %v4454
    %vm4472 = vcmask 130112
    %4473 = vst.msk [vmem:[#allocation2] sm:$0xff] %vm4472, %v4350
    %4474 = vst.msk [vmem:[#allocation2 + $0x8] sm:$0xff] %vm4472, %v4357
    %4475 = vst.msk [vmem:[#allocation2 + $0x10] sm:$0xff] %vm4472, %v4364
    %4476 = vst.msk [vmem:[#allocation2 + $0x18] sm:$0xff] %vm4472, %v4371
    %4477 = vst.msk [vmem:[#allocation2 + $0x20] sm:$0xff] %vm4472, %v4378
    %4478 = vst.msk [vmem:[#allocation2 + $0x28] sm:$0xff] %vm4472, %v4385
    %4479 = vst.msk [vmem:[#allocation2 + $0x30] sm:$0xff] %vm4472, %v4392
    %4480 = vst.msk [vmem:[#allocation2 + $0x38] sm:$0xff] %vm4472, %v4399
    %4481 = vst.msk [vmem:[#allocation2 + $0x40] sm:$0xff] %vm4472, %v4406
    %4482 = vst.msk [vmem:[#allocation2 + $0x48] sm:$0xff] %vm4472, %v4413
    %4483 = vst.msk [vmem:[#allocation2 + $0x50] sm:$0xff] %vm4472, %v4420
    %4484 = vst.msk [vmem:[#allocation2 + $0x58] sm:$0xff] %vm4472, %v4427
    %4485 = vst.msk [vmem:[#allocation2 + $0x60] sm:$0xff] %vm4472, %v4434
    %4486 = vst.msk [vmem:[#allocation2 + $0x68] sm:$0xff] %vm4472, %v4441
    %4487 = vst.msk [vmem:[#allocation2 + $0x70] sm:$0xff] %vm4472, %v4448
    %4488 = vst.msk [vmem:[#allocation2 + $0x78] sm:$0xff] %vm4472, %v4455
    %v4489 = vsel %vm2013, %v378, 0.0
    %v4490 = vsel %vm2014, %v378, 0.0
    %v4491 = vsel %vm2015, %v378, 0.0
    %v4492 = vsel %vm2016, %v378, 0.0
    %v4493 = vsel %vm2017, %v378, 0.0
    %v4494 = vsel %vm2018, %v378, 0.0
    %v4495 = vsel %vm2019, %v378, 0.0
    %v4496 = vsel %vm2020, %v378, 0.0
    %v4497 = vsel %vm2021, %v378, 0.0
    %v4498 = vsel %vm2022, %v378, 0.0
    %v4499 = vsel %vm2023, %v378, 0.0
    %v4500 = vsel %vm2024, %v378, 0.0
    %v4501 = vsel %vm2025, %v378, 0.0
    %v4502 = vsel %vm2026, %v378, 0.0
    %v4503 = vsel %vm2027, %v378, 0.0
    %v4504 = vsel %vm2028, %v378, 0.0
    %v4505 = vsel %vm2029, %v378, 0.0
    %v4506 = vsel %vm2030, %v378, 0.0
    %v4507 = vsel %vm2031, %v378, 0.0
    %v4508 = vsel %vm2032, %v378, 0.0
    %v4509 = vsel %vm2033, %v378, 0.0
    %v4510 = vsel %vm2034, %v378, 0.0
    %v4511 = vsel %vm2035, %v378, 0.0
    %v4512 = vsel %vm2036, %v378, 0.0
    %v4513 = vsel %vm2037, %v378, 0.0
    %v4514 = vsel %vm2038, %v378, 0.0
    %v4515 = vsel %vm2039, %v378, 0.0
    %v4516 = vsel %vm2040, %v378, 0.0
    %v4517 = vsel %vm2041, %v378, 0.0
    %v4518 = vsel %vm2042, %v378, 0.0
    %v4519 = vsel %vm2043, %v378, 0.0
    %v4520 = vsel %vm2044, %v378, 0.0
    %v4521 = vsel %vm2045, %v378, 0.0
    %v4522 = vsel %vm2046, %v378, 0.0
    %v4523 = vsel %vm2047, %v378, 0.0
    %v4524 = vsel %vm2048, %v378, 0.0
    %v4525 = vsel %vm2049, %v378, 0.0
    %v4526 = vsel %vm2050, %v378, 0.0
    %v4527 = vsel %vm2051, %v378, 0.0
    %v4528 = vsel %vm2052, %v378, 0.0
    %v4529 = vsel %vm2053, %v378, 0.0
    %v4530 = vsel %vm2054, %v378, 0.0
    %v4531 = vsel %vm2055, %v378, 0.0
    %v4532 = vsel %vm2056, %v378, 0.0
    %v4533 = vsel %vm2057, %v378, 0.0
    %v4534 = vsel %vm2058, %v378, 0.0
    %v4535 = vsel %vm2059, %v378, 0.0
    %v4536 = vsel %vm2060, %v378, 0.0
    %v4537 = vsel %vm2061, %v378, 0.0
    %v4538 = vsel %vm2062, %v378, 0.0
    %v4539 = vsel %vm2063, %v378, 0.0
    %v4540 = vsel %vm2064, %v378, 0.0
    %v4541 = vsel %vm2065, %v378, 0.0
    %v4542 = vsel %vm2066, %v378, 0.0
    %v4543 = vsel %vm2067, %v378, 0.0
    %v4544 = vsel %vm2068, %v378, 0.0
    %v4545 = vsel %vm2069, %v378, 0.0
    %v4546 = vsel %vm2070, %v378, 0.0
    %v4547 = vsel %vm2071, %v378, 0.0
    %v4548 = vsel %vm2072, %v378, 0.0
    %v4549 = vsel %vm2073, %v378, 0.0
    %v4550 = vsel %vm2074, %v378, 0.0
    %v4551 = vsel %vm2075, %v378, 0.0
    %v4552 = vsel %vm2076, %v378, 0.0
    %v4553 = vsel %vm2077, %v378, 0.0
    %v4554 = vsel %vm2078, %v378, 0.0
    %v4555 = vsel %vm2079, %v378, 0.0
    %v4556 = vsel %vm2080, %v378, 0.0
    %v4557 = vsel %vm2081, %v378, 0.0
    %v4558 = vsel %vm2082, %v378, 0.0
    %v4559 = vsel %vm2083, %v378, 0.0
    %v4560 = vsel %vm2084, %v378, 0.0
    %v4561 = vsel %vm2085, %v378, 0.0
    %v4562 = vsel %vm2086, %v378, 0.0
    %v4563 = vsel %vm2087, %v378, 0.0
    %v4564 = vsel %vm2088, %v378, 0.0
    %v4565 = vsel %vm2089, %v378, 0.0
    %v4566 = vsel %vm2090, %v378, 0.0
    %v4567 = vsel %vm2091, %v378, 0.0
    %v4568 = vsel %vm2092, %v378, 0.0
    %v4569 = vsel %vm2093, %v378, 0.0
    %v4570 = vsel %vm2094, %v378, 0.0
    %v4571 = vsel %vm2095, %v378, 0.0
    %v4572 = vsel %vm2096, %v378, 0.0
    %v4573 = vsel %vm2097, %v378, 0.0
    %v4574 = vsel %vm2098, %v378, 0.0
    %v4575 = vsel %vm2099, %v378, 0.0
    %v4576 = vsel %vm2100, %v378, 0.0
    %v4577 = vsel %vm2101, %v378, 0.0
    %v4578 = vsel %vm2102, %v378, 0.0
    %v4579 = vsel %vm2103, %v378, 0.0
    %v4580 = vsel %vm2104, %v378, 0.0
    %v4581 = vsel %vm2105, %v378, 0.0
    %v4582 = vsel %vm2106, %v378, 0.0
    %v4583 = vsel %vm2107, %v378, 0.0
    %v4584 = vsel %vm2108, %v378, 0.0
    %v4585 = vsel %vm2109, %v378, 0.0
    %v4586 = vsel %vm2110, %v378, 0.0
    %v4587 = vsel %vm2111, %v378, 0.0
    %v4588 = vsel %vm2112, %v378, 0.0
    %v4589 = vsel %vm2113, %v378, 0.0
    %v4590 = vsel %vm2114, %v378, 0.0
    %v4591 = vsel %vm2115, %v378, 0.0
    %v4592 = vsel %vm2116, %v378, 0.0
    %v4593 = vsel %vm2117, %v378, 0.0
    %v4594 = vsel %vm2118, %v378, 0.0
    %v4595 = vsel %vm2119, %v378, 0.0
    %v4596 = vsel %vm2120, %v378, 0.0
    %v4597 = vsel %vm2121, %v378, 0.0
    %v4598 = vsel %vm2122, %v378, 0.0
    %v4599 = vsel %vm2123, %v378, 0.0
    %v4600 = vsel %vm2124, %v378, 0.0
    %v4601 = vsel %vm2125, %v378, 0.0
    %v4602 = vsel %vm2126, %v378, 0.0
    %v4603 = vsel %vm2127, %v378, 0.0
    %v4604 = vsel %vm2128, %v378, 0.0
    %v4605 = vsel %vm2129, %v378, 0.0
    %v4606 = vsel %vm2130, %v378, 0.0
    %v4607 = vsel %vm2131, %v378, 0.0
    %v4608 = vsel %vm2132, %v378, 0.0
    %v4609 = vsel %vm2133, %v378, 0.0
    %v4610 = vsel %vm2134, %v378, 0.0
    %v4611 = vsel %vm2135, %v378, 0.0
    %v4612 = vsel %vm2136, %v378, 0.0
    %v4613 = vsel %vm2137, %v378, 0.0
    %v4614 = vsel %vm2138, %v378, 0.0
    %v4615 = vsel %vm2139, %v378, 0.0
    %v4616 = vsel %vm2140, %v378, 0.0
    %4617 = vmax.xlane.f32.xlu0 %v4489
    %v4618 = vpop.xlane.xlu0 %4617
    %4619 = vmax.xlane.f32.xlu0 %v4490
    %v4620 = vpop.xlane.xlu0 %4619
    %4621 = vmax.xlane.f32.xlu0 %v4491
    %v4622 = vpop.xlane.xlu0 %4621
    %4623 = vmax.xlane.f32.xlu0 %v4492
    %v4624 = vpop.xlane.xlu0 %4623
    %4625 = vmax.xlane.f32.xlu0 %v4493
    %v4626 = vpop.xlane.xlu0 %4625
    %4627 = vmax.xlane.f32.xlu0 %v4494
    %v4628 = vpop.xlane.xlu0 %4627
    %4629 = vmax.xlane.f32.xlu0 %v4495
    %v4630 = vpop.xlane.xlu0 %4629
    %4631 = vmax.xlane.f32.xlu0 %v4496
    %v4632 = vpop.xlane.xlu0 %4631
    %4633 = vmax.xlane.f32.xlu0 %v4497
    %v4634 = vpop.xlane.xlu0 %4633
    %4635 = vmax.xlane.f32.xlu0 %v4498
    %v4636 = vpop.xlane.xlu0 %4635
    %4637 = vmax.xlane.f32.xlu0 %v4499
    %v4638 = vpop.xlane.xlu0 %4637
    %4639 = vmax.xlane.f32.xlu0 %v4500
    %v4640 = vpop.xlane.xlu0 %4639
    %4641 = vmax.xlane.f32.xlu0 %v4501
    %v4642 = vpop.xlane.xlu0 %4641
    %4643 = vmax.xlane.f32.xlu0 %v4502
    %v4644 = vpop.xlane.xlu0 %4643
    %4645 = vmax.xlane.f32.xlu0 %v4503
    %v4646 = vpop.xlane.xlu0 %4645
    %4647 = vmax.xlane.f32.xlu0 %v4504
    %v4648 = vpop.xlane.xlu0 %4647
    %4649 = vmax.xlane.f32.xlu0 %v4505
    %v4650 = vpop.xlane.xlu0 %4649
    %4651 = vmax.xlane.f32.xlu0 %v4506
    %v4652 = vpop.xlane.xlu0 %4651
    %4653 = vmax.xlane.f32.xlu0 %v4507
    %v4654 = vpop.xlane.xlu0 %4653
    %4655 = vmax.xlane.f32.xlu0 %v4508
    %v4656 = vpop.xlane.xlu0 %4655
    %4657 = vmax.xlane.f32.xlu0 %v4509
    %v4658 = vpop.xlane.xlu0 %4657
    %4659 = vmax.xlane.f32.xlu0 %v4510
    %v4660 = vpop.xlane.xlu0 %4659
    %4661 = vmax.xlane.f32.xlu0 %v4511
    %v4662 = vpop.xlane.xlu0 %4661
    %4663 = vmax.xlane.f32.xlu0 %v4512
    %v4664 = vpop.xlane.xlu0 %4663
    %4665 = vmax.xlane.f32.xlu0 %v4513
    %v4666 = vpop.xlane.xlu0 %4665
    %4667 = vmax.xlane.f32.xlu0 %v4514
    %v4668 = vpop.xlane.xlu0 %4667
    %4669 = vmax.xlane.f32.xlu0 %v4515
    %v4670 = vpop.xlane.xlu0 %4669
    %4671 = vmax.xlane.f32.xlu0 %v4516
    %v4672 = vpop.xlane.xlu0 %4671
    %4673 = vmax.xlane.f32.xlu0 %v4517
    %v4674 = vpop.xlane.xlu0 %4673
    %4675 = vmax.xlane.f32.xlu0 %v4518
    %v4676 = vpop.xlane.xlu0 %4675
    %4677 = vmax.xlane.f32.xlu0 %v4519
    %v4678 = vpop.xlane.xlu0 %4677
    %4679 = vmax.xlane.f32.xlu0 %v4520
    %v4680 = vpop.xlane.xlu0 %4679
    %4681 = vmax.xlane.f32.xlu0 %v4521
    %v4682 = vpop.xlane.xlu0 %4681
    %4683 = vmax.xlane.f32.xlu0 %v4522
    %v4684 = vpop.xlane.xlu0 %4683
    %4685 = vmax.xlane.f32.xlu0 %v4523
    %v4686 = vpop.xlane.xlu0 %4685
    %4687 = vmax.xlane.f32.xlu0 %v4524
    %v4688 = vpop.xlane.xlu0 %4687
    %4689 = vmax.xlane.f32.xlu0 %v4525
    %v4690 = vpop.xlane.xlu0 %4689
    %4691 = vmax.xlane.f32.xlu0 %v4526
    %v4692 = vpop.xlane.xlu0 %4691
    %4693 = vmax.xlane.f32.xlu0 %v4527
    %v4694 = vpop.xlane.xlu0 %4693
    %4695 = vmax.xlane.f32.xlu0 %v4528
    %v4696 = vpop.xlane.xlu0 %4695
    %4697 = vmax.xlane.f32.xlu0 %v4529
    %v4698 = vpop.xlane.xlu0 %4697
    %4699 = vmax.xlane.f32.xlu0 %v4530
    %v4700 = vpop.xlane.xlu0 %4699
    %4701 = vmax.xlane.f32.xlu0 %v4531
    %v4702 = vpop.xlane.xlu0 %4701
    %4703 = vmax.xlane.f32.xlu0 %v4532
    %v4704 = vpop.xlane.xlu0 %4703
    %4705 = vmax.xlane.f32.xlu0 %v4533
    %v4706 = vpop.xlane.xlu0 %4705
    %4707 = vmax.xlane.f32.xlu0 %v4534
    %v4708 = vpop.xlane.xlu0 %4707
    %4709 = vmax.xlane.f32.xlu0 %v4535
    %v4710 = vpop.xlane.xlu0 %4709
    %4711 = vmax.xlane.f32.xlu0 %v4536
    %v4712 = vpop.xlane.xlu0 %4711
    %4713 = vmax.xlane.f32.xlu0 %v4537
    %v4714 = vpop.xlane.xlu0 %4713
    %4715 = vmax.xlane.f32.xlu0 %v4538
    %v4716 = vpop.xlane.xlu0 %4715
    %4717 = vmax.xlane.f32.xlu0 %v4539
    %v4718 = vpop.xlane.xlu0 %4717
    %4719 = vmax.xlane.f32.xlu0 %v4540
    %v4720 = vpop.xlane.xlu0 %4719
    %4721 = vmax.xlane.f32.xlu0 %v4541
    %v4722 = vpop.xlane.xlu0 %4721
    %4723 = vmax.xlane.f32.xlu0 %v4542
    %v4724 = vpop.xlane.xlu0 %4723
    %4725 = vmax.xlane.f32.xlu0 %v4543
    %v4726 = vpop.xlane.xlu0 %4725
    %4727 = vmax.xlane.f32.xlu0 %v4544
    %v4728 = vpop.xlane.xlu0 %4727
    %4729 = vmax.xlane.f32.xlu0 %v4545
    %v4730 = vpop.xlane.xlu0 %4729
    %4731 = vmax.xlane.f32.xlu0 %v4546
    %v4732 = vpop.xlane.xlu0 %4731
    %4733 = vmax.xlane.f32.xlu0 %v4547
    %v4734 = vpop.xlane.xlu0 %4733
    %4735 = vmax.xlane.f32.xlu0 %v4548
    %v4736 = vpop.xlane.xlu0 %4735
    %4737 = vmax.xlane.f32.xlu0 %v4549
    %v4738 = vpop.xlane.xlu0 %4737
    %4739 = vmax.xlane.f32.xlu0 %v4550
    %v4740 = vpop.xlane.xlu0 %4739
    %4741 = vmax.xlane.f32.xlu0 %v4551
    %v4742 = vpop.xlane.xlu0 %4741
    %4743 = vmax.xlane.f32.xlu0 %v4552
    %v4744 = vpop.xlane.xlu0 %4743
    %4745 = vmax.xlane.f32.xlu0 %v4553
    %v4746 = vpop.xlane.xlu0 %4745
    %4747 = vmax.xlane.f32.xlu0 %v4554
    %v4748 = vpop.xlane.xlu0 %4747
    %4749 = vmax.xlane.f32.xlu0 %v4555
    %v4750 = vpop.xlane.xlu0 %4749
    %4751 = vmax.xlane.f32.xlu0 %v4556
    %v4752 = vpop.xlane.xlu0 %4751
    %4753 = vmax.xlane.f32.xlu0 %v4557
    %v4754 = vpop.xlane.xlu0 %4753
    %4755 = vmax.xlane.f32.xlu0 %v4558
    %v4756 = vpop.xlane.xlu0 %4755
    %4757 = vmax.xlane.f32.xlu0 %v4559
    %v4758 = vpop.xlane.xlu0 %4757
    %4759 = vmax.xlane.f32.xlu0 %v4560
    %v4760 = vpop.xlane.xlu0 %4759
    %4761 = vmax.xlane.f32.xlu0 %v4561
    %v4762 = vpop.xlane.xlu0 %4761
    %4763 = vmax.xlane.f32.xlu0 %v4562
    %v4764 = vpop.xlane.xlu0 %4763
    %4765 = vmax.xlane.f32.xlu0 %v4563
    %v4766 = vpop.xlane.xlu0 %4765
    %4767 = vmax.xlane.f32.xlu0 %v4564
    %v4768 = vpop.xlane.xlu0 %4767
    %4769 = vmax.xlane.f32.xlu0 %v4565
    %v4770 = vpop.xlane.xlu0 %4769
    %4771 = vmax.xlane.f32.xlu0 %v4566
    %v4772 = vpop.xlane.xlu0 %4771
    %4773 = vmax.xlane.f32.xlu0 %v4567
    %v4774 = vpop.xlane.xlu0 %4773
    %4775 = vmax.xlane.f32.xlu0 %v4568
    %v4776 = vpop.xlane.xlu0 %4775
    %4777 = vmax.xlane.f32.xlu0 %v4569
    %v4778 = vpop.xlane.xlu0 %4777
    %4779 = vmax.xlane.f32.xlu0 %v4570
    %v4780 = vpop.xlane.xlu0 %4779
    %4781 = vmax.xlane.f32.xlu0 %v4571
    %v4782 = vpop.xlane.xlu0 %4781
    %4783 = vmax.xlane.f32.xlu0 %v4572
    %v4784 = vpop.xlane.xlu0 %4783
    %4785 = vmax.xlane.f32.xlu0 %v4573
    %v4786 = vpop.xlane.xlu0 %4785
    %4787 = vmax.xlane.f32.xlu0 %v4574
    %v4788 = vpop.xlane.xlu0 %4787
    %4789 = vmax.xlane.f32.xlu0 %v4575
    %v4790 = vpop.xlane.xlu0 %4789
    %4791 = vmax.xlane.f32.xlu0 %v4576
    %v4792 = vpop.xlane.xlu0 %4791
    %4793 = vmax.xlane.f32.xlu0 %v4577
    %v4794 = vpop.xlane.xlu0 %4793
    %4795 = vmax.xlane.f32.xlu0 %v4578
    %v4796 = vpop.xlane.xlu0 %4795
    %4797 = vmax.xlane.f32.xlu0 %v4579
    %v4798 = vpop.xlane.xlu0 %4797
    %4799 = vmax.xlane.f32.xlu0 %v4580
    %v4800 = vpop.xlane.xlu0 %4799
    %4801 = vmax.xlane.f32.xlu0 %v4581
    %v4802 = vpop.xlane.xlu0 %4801
    %4803 = vmax.xlane.f32.xlu0 %v4582
    %v4804 = vpop.xlane.xlu0 %4803
    %4805 = vmax.xlane.f32.xlu0 %v4583
    %v4806 = vpop.xlane.xlu0 %4805
    %4807 = vmax.xlane.f32.xlu0 %v4584
    %v4808 = vpop.xlane.xlu0 %4807
    %4809 = vmax.xlane.f32.xlu0 %v4585
    %v4810 = vpop.xlane.xlu0 %4809
    %4811 = vmax.xlane.f32.xlu0 %v4586
    %v4812 = vpop.xlane.xlu0 %4811
    %4813 = vmax.xlane.f32.xlu0 %v4587
    %v4814 = vpop.xlane.xlu0 %4813
    %4815 = vmax.xlane.f32.xlu0 %v4588
    %v4816 = vpop.xlane.xlu0 %4815
    %4817 = vmax.xlane.f32.xlu0 %v4589
    %v4818 = vpop.xlane.xlu0 %4817
    %4819 = vmax.xlane.f32.xlu0 %v4590
    %v4820 = vpop.xlane.xlu0 %4819
    %4821 = vmax.xlane.f32.xlu0 %v4591
    %v4822 = vpop.xlane.xlu0 %4821
    %4823 = vmax.xlane.f32.xlu0 %v4592
    %v4824 = vpop.xlane.xlu0 %4823
    %4825 = vmax.xlane.f32.xlu0 %v4593
    %v4826 = vpop.xlane.xlu0 %4825
    %4827 = vmax.xlane.f32.xlu0 %v4594
    %v4828 = vpop.xlane.xlu0 %4827
    %4829 = vmax.xlane.f32.xlu0 %v4595
    %v4830 = vpop.xlane.xlu0 %4829
    %4831 = vmax.xlane.f32.xlu0 %v4596
    %v4832 = vpop.xlane.xlu0 %4831
    %4833 = vmax.xlane.f32.xlu0 %v4597
    %v4834 = vpop.xlane.xlu0 %4833
    %4835 = vmax.xlane.f32.xlu0 %v4598
    %v4836 = vpop.xlane.xlu0 %4835
    %4837 = vmax.xlane.f32.xlu0 %v4599
    %v4838 = vpop.xlane.xlu0 %4837
    %4839 = vmax.xlane.f32.xlu0 %v4600
    %v4840 = vpop.xlane.xlu0 %4839
    %4841 = vmax.xlane.f32.xlu0 %v4601
    %v4842 = vpop.xlane.xlu0 %4841
    %4843 = vmax.xlane.f32.xlu0 %v4602
    %v4844 = vpop.xlane.xlu0 %4843
    %4845 = vmax.xlane.f32.xlu0 %v4603
    %v4846 = vpop.xlane.xlu0 %4845
    %4847 = vmax.xlane.f32.xlu0 %v4604
    %v4848 = vpop.xlane.xlu0 %4847
    %4849 = vmax.xlane.f32.xlu0 %v4605
    %v4850 = vpop.xlane.xlu0 %4849
    %4851 = vmax.xlane.f32.xlu0 %v4606
    %v4852 = vpop.xlane.xlu0 %4851
    %4853 = vmax.xlane.f32.xlu0 %v4607
    %v4854 = vpop.xlane.xlu0 %4853
    %4855 = vmax.xlane.f32.xlu0 %v4608
    %v4856 = vpop.xlane.xlu0 %4855
    %4857 = vmax.xlane.f32.xlu0 %v4609
    %v4858 = vpop.xlane.xlu0 %4857
    %4859 = vmax.xlane.f32.xlu0 %v4610
    %v4860 = vpop.xlane.xlu0 %4859
    %4861 = vmax.xlane.f32.xlu0 %v4611
    %v4862 = vpop.xlane.xlu0 %4861
    %4863 = vmax.xlane.f32.xlu0 %v4612
    %v4864 = vpop.xlane.xlu0 %4863
    %4865 = vmax.xlane.f32.xlu0 %v4613
    %v4866 = vpop.xlane.xlu0 %4865
    %4867 = vmax.xlane.f32.xlu0 %v4614
    %v4868 = vpop.xlane.xlu0 %4867
    %4869 = vmax.xlane.f32.xlu0 %v4615
    %v4870 = vpop.xlane.xlu0 %4869
    %4871 = vmax.xlane.f32.xlu0 %v4616
    %v4872 = vpop.xlane.xlu0 %4871
    %v5001 = vadd.s32 %v2654, 4294967280
    %v5002 = vlaneseq
    %v5003 = vshrl.u32 %v5002, 7
    %v5004 = vsub.s32 %v5001, %v5003
    %v5005 = vrot.slane %v4618, %v5004
    %v5006 = vlaneseq
    %v5007 = vshrl.u32 %v5006, 7
    %v5008 = vsub.s32 %v5001, %v5007
    %v5009 = vrot.slane %v4620, %v5008
    %v5010 = vlaneseq
    %v5011 = vshrl.u32 %v5010, 7
    %v5012 = vsub.s32 %v5001, %v5011
    %v5013 = vrot.slane %v4622, %v5012
    %v5014 = vlaneseq
    %v5015 = vshrl.u32 %v5014, 7
    %v5016 = vsub.s32 %v5001, %v5015
    %v5017 = vrot.slane %v4624, %v5016
    %v5018 = vlaneseq
    %v5019 = vshrl.u32 %v5018, 7
    %v5020 = vsub.s32 %v5001, %v5019
    %v5021 = vrot.slane %v4626, %v5020
    %v5022 = vlaneseq
    %v5023 = vshrl.u32 %v5022, 7
    %v5024 = vsub.s32 %v5001, %v5023
    %v5025 = vrot.slane %v4628, %v5024
    %v5026 = vlaneseq
    %v5027 = vshrl.u32 %v5026, 7
    %v5028 = vsub.s32 %v5001, %v5027
    %v5029 = vrot.slane %v4630, %v5028
    %v5030 = vlaneseq
    %v5031 = vshrl.u32 %v5030, 7
    %v5032 = vsub.s32 %v5001, %v5031
    %v5033 = vrot.slane %v4632, %v5032
    %v5034 = vlaneseq
    %v5035 = vshrl.u32 %v5034, 7
    %v5036 = vsub.s32 %v5001, %v5035
    %v5037 = vrot.slane %v4634, %v5036
    %v5038 = vlaneseq
    %v5039 = vshrl.u32 %v5038, 7
    %v5040 = vsub.s32 %v5001, %v5039
    %v5041 = vrot.slane %v4636, %v5040
    %v5042 = vlaneseq
    %v5043 = vshrl.u32 %v5042, 7
    %v5044 = vsub.s32 %v5001, %v5043
    %v5045 = vrot.slane %v4638, %v5044
    %v5046 = vlaneseq
    %v5047 = vshrl.u32 %v5046, 7
    %v5048 = vsub.s32 %v5001, %v5047
    %v5049 = vrot.slane %v4640, %v5048
    %v5050 = vlaneseq
    %v5051 = vshrl.u32 %v5050, 7
    %v5052 = vsub.s32 %v5001, %v5051
    %v5053 = vrot.slane %v4642, %v5052
    %v5054 = vlaneseq
    %v5055 = vshrl.u32 %v5054, 7
    %v5056 = vsub.s32 %v5001, %v5055
    %v5057 = vrot.slane %v4644, %v5056
    %v5058 = vlaneseq
    %v5059 = vshrl.u32 %v5058, 7
    %v5060 = vsub.s32 %v5001, %v5059
    %v5061 = vrot.slane %v4646, %v5060
    %v5062 = vlaneseq
    %v5063 = vshrl.u32 %v5062, 7
    %v5064 = vsub.s32 %v5001, %v5063
    %v5065 = vrot.slane %v4648, %v5064
    %v5066 = vlaneseq
    %v5067 = vshrl.u32 %v5066, 7
    %v5068 = vsub.s32 %v5001, %v5067
    %v5069 = vrot.slane %v4650, %v5068
    %v5070 = vlaneseq
    %v5071 = vshrl.u32 %v5070, 7
    %v5072 = vsub.s32 %v5001, %v5071
    %v5073 = vrot.slane %v4652, %v5072
    %v5074 = vlaneseq
    %v5075 = vshrl.u32 %v5074, 7
    %v5076 = vsub.s32 %v5001, %v5075
    %v5077 = vrot.slane %v4654, %v5076
    %v5078 = vlaneseq
    %v5079 = vshrl.u32 %v5078, 7
    %v5080 = vsub.s32 %v5001, %v5079
    %v5081 = vrot.slane %v4656, %v5080
    %v5082 = vlaneseq
    %v5083 = vshrl.u32 %v5082, 7
    %v5084 = vsub.s32 %v5001, %v5083
    %v5085 = vrot.slane %v4658, %v5084
    %v5086 = vlaneseq
    %v5087 = vshrl.u32 %v5086, 7
    %v5088 = vsub.s32 %v5001, %v5087
    %v5089 = vrot.slane %v4660, %v5088
    %v5090 = vlaneseq
    %v5091 = vshrl.u32 %v5090, 7
    %v5092 = vsub.s32 %v5001, %v5091
    %v5093 = vrot.slane %v4662, %v5092
    %v5094 = vlaneseq
    %v5095 = vshrl.u32 %v5094, 7
    %v5096 = vsub.s32 %v5001, %v5095
    %v5097 = vrot.slane %v4664, %v5096
    %v5098 = vlaneseq
    %v5099 = vshrl.u32 %v5098, 7
    %v5100 = vsub.s32 %v5001, %v5099
    %v5101 = vrot.slane %v4666, %v5100
    %v5102 = vlaneseq
    %v5103 = vshrl.u32 %v5102, 7
    %v5104 = vsub.s32 %v5001, %v5103
    %v5105 = vrot.slane %v4668, %v5104
    %v5106 = vlaneseq
    %v5107 = vshrl.u32 %v5106, 7
    %v5108 = vsub.s32 %v5001, %v5107
    %v5109 = vrot.slane %v4670, %v5108
    %v5110 = vlaneseq
    %v5111 = vshrl.u32 %v5110, 7
    %v5112 = vsub.s32 %v5001, %v5111
    %v5113 = vrot.slane %v4672, %v5112
    %v5114 = vlaneseq
    %v5115 = vshrl.u32 %v5114, 7
    %v5116 = vsub.s32 %v5001, %v5115
    %v5117 = vrot.slane %v4674, %v5116
    %v5118 = vlaneseq
    %v5119 = vshrl.u32 %v5118, 7
    %v5120 = vsub.s32 %v5001, %v5119
    %v5121 = vrot.slane %v4676, %v5120
    %v5122 = vlaneseq
    %v5123 = vshrl.u32 %v5122, 7
    %v5124 = vsub.s32 %v5001, %v5123
    %v5125 = vrot.slane %v4678, %v5124
    %v5126 = vlaneseq
    %v5127 = vshrl.u32 %v5126, 7
    %v5128 = vsub.s32 %v5001, %v5127
    %v5129 = vrot.slane %v4680, %v5128
    %v5130 = vlaneseq
    %v5131 = vshrl.u32 %v5130, 7
    %v5132 = vsub.s32 %v5001, %v5131
    %v5133 = vrot.slane %v4682, %v5132
    %v5134 = vlaneseq
    %v5135 = vshrl.u32 %v5134, 7
    %v5136 = vsub.s32 %v5001, %v5135
    %v5137 = vrot.slane %v4684, %v5136
    %v5138 = vlaneseq
    %v5139 = vshrl.u32 %v5138, 7
    %v5140 = vsub.s32 %v5001, %v5139
    %v5141 = vrot.slane %v4686, %v5140
    %v5142 = vlaneseq
    %v5143 = vshrl.u32 %v5142, 7
    %v5144 = vsub.s32 %v5001, %v5143
    %v5145 = vrot.slane %v4688, %v5144
    %v5146 = vlaneseq
    %v5147 = vshrl.u32 %v5146, 7
    %v5148 = vsub.s32 %v5001, %v5147
    %v5149 = vrot.slane %v4690, %v5148
    %v5150 = vlaneseq
    %v5151 = vshrl.u32 %v5150, 7
    %v5152 = vsub.s32 %v5001, %v5151
    %v5153 = vrot.slane %v4692, %v5152
    %v5154 = vlaneseq
    %v5155 = vshrl.u32 %v5154, 7
    %v5156 = vsub.s32 %v5001, %v5155
    %v5157 = vrot.slane %v4694, %v5156
    %v5158 = vlaneseq
    %v5159 = vshrl.u32 %v5158, 7
    %v5160 = vsub.s32 %v5001, %v5159
    %v5161 = vrot.slane %v4696, %v5160
    %v5162 = vlaneseq
    %v5163 = vshrl.u32 %v5162, 7
    %v5164 = vsub.s32 %v5001, %v5163
    %v5165 = vrot.slane %v4698, %v5164
    %v5166 = vlaneseq
    %v5167 = vshrl.u32 %v5166, 7
    %v5168 = vsub.s32 %v5001, %v5167
    %v5169 = vrot.slane %v4700, %v5168
    %v5170 = vlaneseq
    %v5171 = vshrl.u32 %v5170, 7
    %v5172 = vsub.s32 %v5001, %v5171
    %v5173 = vrot.slane %v4702, %v5172
    %v5174 = vlaneseq
    %v5175 = vshrl.u32 %v5174, 7
    %v5176 = vsub.s32 %v5001, %v5175
    %v5177 = vrot.slane %v4704, %v5176
    %v5178 = vlaneseq
    %v5179 = vshrl.u32 %v5178, 7
    %v5180 = vsub.s32 %v5001, %v5179
    %v5181 = vrot.slane %v4706, %v5180
    %v5182 = vlaneseq
    %v5183 = vshrl.u32 %v5182, 7
    %v5184 = vsub.s32 %v5001, %v5183
    %v5185 = vrot.slane %v4708, %v5184
    %v5186 = vlaneseq
    %v5187 = vshrl.u32 %v5186, 7
    %v5188 = vsub.s32 %v5001, %v5187
    %v5189 = vrot.slane %v4710, %v5188
    %v5190 = vlaneseq
    %v5191 = vshrl.u32 %v5190, 7
    %v5192 = vsub.s32 %v5001, %v5191
    %v5193 = vrot.slane %v4712, %v5192
    %v5194 = vlaneseq
    %v5195 = vshrl.u32 %v5194, 7
    %v5196 = vsub.s32 %v5001, %v5195
    %v5197 = vrot.slane %v4714, %v5196
    %v5198 = vlaneseq
    %v5199 = vshrl.u32 %v5198, 7
    %v5200 = vsub.s32 %v5001, %v5199
    %v5201 = vrot.slane %v4716, %v5200
    %v5202 = vlaneseq
    %v5203 = vshrl.u32 %v5202, 7
    %v5204 = vsub.s32 %v5001, %v5203
    %v5205 = vrot.slane %v4718, %v5204
    %v5206 = vlaneseq
    %v5207 = vshrl.u32 %v5206, 7
    %v5208 = vsub.s32 %v5001, %v5207
    %v5209 = vrot.slane %v4720, %v5208
    %v5210 = vlaneseq
    %v5211 = vshrl.u32 %v5210, 7
    %v5212 = vsub.s32 %v5001, %v5211
    %v5213 = vrot.slane %v4722, %v5212
    %v5214 = vlaneseq
    %v5215 = vshrl.u32 %v5214, 7
    %v5216 = vsub.s32 %v5001, %v5215
    %v5217 = vrot.slane %v4724, %v5216
    %v5218 = vlaneseq
    %v5219 = vshrl.u32 %v5218, 7
    %v5220 = vsub.s32 %v5001, %v5219
    %v5221 = vrot.slane %v4726, %v5220
    %v5222 = vlaneseq
    %v5223 = vshrl.u32 %v5222, 7
    %v5224 = vsub.s32 %v5001, %v5223
    %v5225 = vrot.slane %v4728, %v5224
    %v5226 = vlaneseq
    %v5227 = vshrl.u32 %v5226, 7
    %v5228 = vsub.s32 %v5001, %v5227
    %v5229 = vrot.slane %v4730, %v5228
    %v5230 = vlaneseq
    %v5231 = vshrl.u32 %v5230, 7
    %v5232 = vsub.s32 %v5001, %v5231
    %v5233 = vrot.slane %v4732, %v5232
    %v5234 = vlaneseq
    %v5235 = vshrl.u32 %v5234, 7
    %v5236 = vsub.s32 %v5001, %v5235
    %v5237 = vrot.slane %v4734, %v5236
    %v5238 = vlaneseq
    %v5239 = vshrl.u32 %v5238, 7
    %v5240 = vsub.s32 %v5001, %v5239
    %v5241 = vrot.slane %v4736, %v5240
    %v5242 = vlaneseq
    %v5243 = vshrl.u32 %v5242, 7
    %v5244 = vsub.s32 %v5001, %v5243
    %v5245 = vrot.slane %v4738, %v5244
    %v5246 = vlaneseq
    %v5247 = vshrl.u32 %v5246, 7
    %v5248 = vsub.s32 %v5001, %v5247
    %v5249 = vrot.slane %v4740, %v5248
    %v5250 = vlaneseq
    %v5251 = vshrl.u32 %v5250, 7
    %v5252 = vsub.s32 %v5001, %v5251
    %v5253 = vrot.slane %v4742, %v5252
    %v5254 = vlaneseq
    %v5255 = vshrl.u32 %v5254, 7
    %v5256 = vsub.s32 %v5001, %v5255
    %v5257 = vrot.slane %v4744, %v5256
    %v5258 = vlaneseq
    %v5259 = vshrl.u32 %v5258, 7
    %v5260 = vsub.s32 %v5001, %v5259
    %v5261 = vrot.slane %v4746, %v5260
    %v5262 = vlaneseq
    %v5263 = vshrl.u32 %v5262, 7
    %v5264 = vsub.s32 %v5001, %v5263
    %v5265 = vrot.slane %v4748, %v5264
    %v5266 = vlaneseq
    %v5267 = vshrl.u32 %v5266, 7
    %v5268 = vsub.s32 %v5001, %v5267
    %v5269 = vrot.slane %v4750, %v5268
    %v5270 = vlaneseq
    %v5271 = vshrl.u32 %v5270, 7
    %v5272 = vsub.s32 %v5001, %v5271
    %v5273 = vrot.slane %v4752, %v5272
    %v5274 = vlaneseq
    %v5275 = vshrl.u32 %v5274, 7
    %v5276 = vsub.s32 %v5001, %v5275
    %v5277 = vrot.slane %v4754, %v5276
    %v5278 = vlaneseq
    %v5279 = vshrl.u32 %v5278, 7
    %v5280 = vsub.s32 %v5001, %v5279
    %v5281 = vrot.slane %v4756, %v5280
    %v5282 = vlaneseq
    %v5283 = vshrl.u32 %v5282, 7
    %v5284 = vsub.s32 %v5001, %v5283
    %v5285 = vrot.slane %v4758, %v5284
    %v5286 = vlaneseq
    %v5287 = vshrl.u32 %v5286, 7
    %v5288 = vsub.s32 %v5001, %v5287
    %v5289 = vrot.slane %v4760, %v5288
    %v5290 = vlaneseq
    %v5291 = vshrl.u32 %v5290, 7
    %v5292 = vsub.s32 %v5001, %v5291
    %v5293 = vrot.slane %v4762, %v5292
    %v5294 = vlaneseq
    %v5295 = vshrl.u32 %v5294, 7
    %v5296 = vsub.s32 %v5001, %v5295
    %v5297 = vrot.slane %v4764, %v5296
    %v5298 = vlaneseq
    %v5299 = vshrl.u32 %v5298, 7
    %v5300 = vsub.s32 %v5001, %v5299
    %v5301 = vrot.slane %v4766, %v5300
    %v5302 = vlaneseq
    %v5303 = vshrl.u32 %v5302, 7
    %v5304 = vsub.s32 %v5001, %v5303
    %v5305 = vrot.slane %v4768, %v5304
    %v5306 = vlaneseq
    %v5307 = vshrl.u32 %v5306, 7
    %v5308 = vsub.s32 %v5001, %v5307
    %v5309 = vrot.slane %v4770, %v5308
    %v5310 = vlaneseq
    %v5311 = vshrl.u32 %v5310, 7
    %v5312 = vsub.s32 %v5001, %v5311
    %v5313 = vrot.slane %v4772, %v5312
    %v5314 = vlaneseq
    %v5315 = vshrl.u32 %v5314, 7
    %v5316 = vsub.s32 %v5001, %v5315
    %v5317 = vrot.slane %v4774, %v5316
    %v5318 = vlaneseq
    %v5319 = vshrl.u32 %v5318, 7
    %v5320 = vsub.s32 %v5001, %v5319
    %v5321 = vrot.slane %v4776, %v5320
    %v5322 = vlaneseq
    %v5323 = vshrl.u32 %v5322, 7
    %v5324 = vsub.s32 %v5001, %v5323
    %v5325 = vrot.slane %v4778, %v5324
    %v5326 = vlaneseq
    %v5327 = vshrl.u32 %v5326, 7
    %v5328 = vsub.s32 %v5001, %v5327
    %v5329 = vrot.slane %v4780, %v5328
    %v5330 = vlaneseq
    %v5331 = vshrl.u32 %v5330, 7
    %v5332 = vsub.s32 %v5001, %v5331
    %v5333 = vrot.slane %v4782, %v5332
    %v5334 = vlaneseq
    %v5335 = vshrl.u32 %v5334, 7
    %v5336 = vsub.s32 %v5001, %v5335
    %v5337 = vrot.slane %v4784, %v5336
    %v5338 = vlaneseq
    %v5339 = vshrl.u32 %v5338, 7
    %v5340 = vsub.s32 %v5001, %v5339
    %v5341 = vrot.slane %v4786, %v5340
    %v5342 = vlaneseq
    %v5343 = vshrl.u32 %v5342, 7
    %v5344 = vsub.s32 %v5001, %v5343
    %v5345 = vrot.slane %v4788, %v5344
    %v5346 = vlaneseq
    %v5347 = vshrl.u32 %v5346, 7
    %v5348 = vsub.s32 %v5001, %v5347
    %v5349 = vrot.slane %v4790, %v5348
    %v5350 = vlaneseq
    %v5351 = vshrl.u32 %v5350, 7
    %v5352 = vsub.s32 %v5001, %v5351
    %v5353 = vrot.slane %v4792, %v5352
    %v5354 = vlaneseq
    %v5355 = vshrl.u32 %v5354, 7
    %v5356 = vsub.s32 %v5001, %v5355
    %v5357 = vrot.slane %v4794, %v5356
    %v5358 = vlaneseq
    %v5359 = vshrl.u32 %v5358, 7
    %v5360 = vsub.s32 %v5001, %v5359
    %v5361 = vrot.slane %v4796, %v5360
    %v5362 = vlaneseq
    %v5363 = vshrl.u32 %v5362, 7
    %v5364 = vsub.s32 %v5001, %v5363
    %v5365 = vrot.slane %v4798, %v5364
    %v5366 = vlaneseq
    %v5367 = vshrl.u32 %v5366, 7
    %v5368 = vsub.s32 %v5001, %v5367
    %v5369 = vrot.slane %v4800, %v5368
    %v5370 = vlaneseq
    %v5371 = vshrl.u32 %v5370, 7
    %v5372 = vsub.s32 %v5001, %v5371
    %v5373 = vrot.slane %v4802, %v5372
    %v5374 = vlaneseq
    %v5375 = vshrl.u32 %v5374, 7
    %v5376 = vsub.s32 %v5001, %v5375
    %v5377 = vrot.slane %v4804, %v5376
    %v5378 = vlaneseq
    %v5379 = vshrl.u32 %v5378, 7
    %v5380 = vsub.s32 %v5001, %v5379
    %v5381 = vrot.slane %v4806, %v5380
    %v5382 = vlaneseq
    %v5383 = vshrl.u32 %v5382, 7
    %v5384 = vsub.s32 %v5001, %v5383
    %v5385 = vrot.slane %v4808, %v5384
    %v5386 = vlaneseq
    %v5387 = vshrl.u32 %v5386, 7
    %v5388 = vsub.s32 %v5001, %v5387
    %v5389 = vrot.slane %v4810, %v5388
    %v5390 = vlaneseq
    %v5391 = vshrl.u32 %v5390, 7
    %v5392 = vsub.s32 %v5001, %v5391
    %v5393 = vrot.slane %v4812, %v5392
    %v5394 = vlaneseq
    %v5395 = vshrl.u32 %v5394, 7
    %v5396 = vsub.s32 %v5001, %v5395
    %v5397 = vrot.slane %v4814, %v5396
    %v5398 = vlaneseq
    %v5399 = vshrl.u32 %v5398, 7
    %v5400 = vsub.s32 %v5001, %v5399
    %v5401 = vrot.slane %v4816, %v5400
    %v5402 = vlaneseq
    %v5403 = vshrl.u32 %v5402, 7
    %v5404 = vsub.s32 %v5001, %v5403
    %v5405 = vrot.slane %v4818, %v5404
    %v5406 = vlaneseq
    %v5407 = vshrl.u32 %v5406, 7
    %v5408 = vsub.s32 %v5001, %v5407
    %v5409 = vrot.slane %v4820, %v5408
    %v5410 = vlaneseq
    %v5411 = vshrl.u32 %v5410, 7
    %v5412 = vsub.s32 %v5001, %v5411
    %v5413 = vrot.slane %v4822, %v5412
    %v5414 = vlaneseq
    %v5415 = vshrl.u32 %v5414, 7
    %v5416 = vsub.s32 %v5001, %v5415
    %v5417 = vrot.slane %v4824, %v5416
    %v5418 = vlaneseq
    %v5419 = vshrl.u32 %v5418, 7
    %v5420 = vsub.s32 %v5001, %v5419
    %v5421 = vrot.slane %v4826, %v5420
    %v5422 = vlaneseq
    %v5423 = vshrl.u32 %v5422, 7
    %v5424 = vsub.s32 %v5001, %v5423
    %v5425 = vrot.slane %v4828, %v5424
    %v5426 = vlaneseq
    %v5427 = vshrl.u32 %v5426, 7
    %v5428 = vsub.s32 %v5001, %v5427
    %v5429 = vrot.slane %v4830, %v5428
    %v5430 = vlaneseq
    %v5431 = vshrl.u32 %v5430, 7
    %v5432 = vsub.s32 %v5001, %v5431
    %v5433 = vrot.slane %v4832, %v5432
    %v5434 = vlaneseq
    %v5435 = vshrl.u32 %v5434, 7
    %v5436 = vsub.s32 %v5001, %v5435
    %v5437 = vrot.slane %v4834, %v5436
    %v5438 = vlaneseq
    %v5439 = vshrl.u32 %v5438, 7
    %v5440 = vsub.s32 %v5001, %v5439
    %v5441 = vrot.slane %v4836, %v5440
    %v5442 = vlaneseq
    %v5443 = vshrl.u32 %v5442, 7
    %v5444 = vsub.s32 %v5001, %v5443
    %v5445 = vrot.slane %v4838, %v5444
    %v5446 = vlaneseq
    %v5447 = vshrl.u32 %v5446, 7
    %v5448 = vsub.s32 %v5001, %v5447
    %v5449 = vrot.slane %v4840, %v5448
    %v5450 = vlaneseq
    %v5451 = vshrl.u32 %v5450, 7
    %v5452 = vsub.s32 %v5001, %v5451
    %v5453 = vrot.slane %v4842, %v5452
    %v5454 = vlaneseq
    %v5455 = vshrl.u32 %v5454, 7
    %v5456 = vsub.s32 %v5001, %v5455
    %v5457 = vrot.slane %v4844, %v5456
    %v5458 = vlaneseq
    %v5459 = vshrl.u32 %v5458, 7
    %v5460 = vsub.s32 %v5001, %v5459
    %v5461 = vrot.slane %v4846, %v5460
    %v5462 = vlaneseq
    %v5463 = vshrl.u32 %v5462, 7
    %v5464 = vsub.s32 %v5001, %v5463
    %v5465 = vrot.slane %v4848, %v5464
    %v5466 = vlaneseq
    %v5467 = vshrl.u32 %v5466, 7
    %v5468 = vsub.s32 %v5001, %v5467
    %v5469 = vrot.slane %v4850, %v5468
    %v5470 = vlaneseq
    %v5471 = vshrl.u32 %v5470, 7
    %v5472 = vsub.s32 %v5001, %v5471
    %v5473 = vrot.slane %v4852, %v5472
    %v5474 = vlaneseq
    %v5475 = vshrl.u32 %v5474, 7
    %v5476 = vsub.s32 %v5001, %v5475
    %v5477 = vrot.slane %v4854, %v5476
    %v5478 = vlaneseq
    %v5479 = vshrl.u32 %v5478, 7
    %v5480 = vsub.s32 %v5001, %v5479
    %v5481 = vrot.slane %v4856, %v5480
    %v5482 = vlaneseq
    %v5483 = vshrl.u32 %v5482, 7
    %v5484 = vsub.s32 %v5001, %v5483
    %v5485 = vrot.slane %v4858, %v5484
    %v5486 = vlaneseq
    %v5487 = vshrl.u32 %v5486, 7
    %v5488 = vsub.s32 %v5001, %v5487
    %v5489 = vrot.slane %v4860, %v5488
    %v5490 = vlaneseq
    %v5491 = vshrl.u32 %v5490, 7
    %v5492 = vsub.s32 %v5001, %v5491
    %v5493 = vrot.slane %v4862, %v5492
    %v5494 = vlaneseq
    %v5495 = vshrl.u32 %v5494, 7
    %v5496 = vsub.s32 %v5001, %v5495
    %v5497 = vrot.slane %v4864, %v5496
    %v5498 = vlaneseq
    %v5499 = vshrl.u32 %v5498, 7
    %v5500 = vsub.s32 %v5001, %v5499
    %v5501 = vrot.slane %v4866, %v5500
    %v5502 = vlaneseq
    %v5503 = vshrl.u32 %v5502, 7
    %v5504 = vsub.s32 %v5001, %v5503
    %v5505 = vrot.slane %v4868, %v5504
    %v5506 = vlaneseq
    %v5507 = vshrl.u32 %v5506, 7
    %v5508 = vsub.s32 %v5001, %v5507
    %v5509 = vrot.slane %v4870, %v5508
    %v5510 = vlaneseq
    %v5511 = vshrl.u32 %v5510, 7
    %v5512 = vsub.s32 %v5001, %v5511
    %v5513 = vrot.slane %v4872, %v5512
    %v5514 = vsel %vm3167, %v5009, %v5005
    %v5515 = vsel %vm3169, %v5013, %v5514
    %v5516 = vsel %vm3171, %v5017, %v5515
    %v5517 = vsel %vm3173, %v5021, %v5516
    %v5518 = vsel %vm3175, %v5025, %v5517
    %v5519 = vsel %vm3177, %v5029, %v5518
    %v5520 = vsel %vm3179, %v5033, %v5519
    %v5521 = vsel %vm3167, %v5041, %v5037
    %v5522 = vsel %vm3169, %v5045, %v5521
    %v5523 = vsel %vm3171, %v5049, %v5522
    %v5524 = vsel %vm3173, %v5053, %v5523
    %v5525 = vsel %vm3175, %v5057, %v5524
    %v5526 = vsel %vm3177, %v5061, %v5525
    %v5527 = vsel %vm3179, %v5065, %v5526
    %v5528 = vsel %vm3167, %v5073, %v5069
    %v5529 = vsel %vm3169, %v5077, %v5528
    %v5530 = vsel %vm3171, %v5081, %v5529
    %v5531 = vsel %vm3173, %v5085, %v5530
    %v5532 = vsel %vm3175, %v5089, %v5531
    %v5533 = vsel %vm3177, %v5093, %v5532
    %v5534 = vsel %vm3179, %v5097, %v5533
    %v5535 = vsel %vm3167, %v5105, %v5101
    %v5536 = vsel %vm3169, %v5109, %v5535
    %v5537 = vsel %vm3171, %v5113, %v5536
    %v5538 = vsel %vm3173, %v5117, %v5537
    %v5539 = vsel %vm3175, %v5121, %v5538
    %v5540 = vsel %vm3177, %v5125, %v5539
    %v5541 = vsel %vm3179, %v5129, %v5540
    %v5542 = vsel %vm3167, %v5137, %v5133
    %v5543 = vsel %vm3169, %v5141, %v5542
    %v5544 = vsel %vm3171, %v5145, %v5543
    %v5545 = vsel %vm3173, %v5149, %v5544
    %v5546 = vsel %vm3175, %v5153, %v5545
    %v5547 = vsel %vm3177, %v5157, %v5546
    %v5548 = vsel %vm3179, %v5161, %v5547
    %v5549 = vsel %vm3167, %v5169, %v5165
    %v5550 = vsel %vm3169, %v5173, %v5549
    %v5551 = vsel %vm3171, %v5177, %v5550
    %v5552 = vsel %vm3173, %v5181, %v5551
    %v5553 = vsel %vm3175, %v5185, %v5552
    %v5554 = vsel %vm3177, %v5189, %v5553
    %v5555 = vsel %vm3179, %v5193, %v5554
    %v5556 = vsel %vm3167, %v5201, %v5197
    %v5557 = vsel %vm3169, %v5205, %v5556
    %v5558 = vsel %vm3171, %v5209, %v5557
    %v5559 = vsel %vm3173, %v5213, %v5558
    %v5560 = vsel %vm3175, %v5217, %v5559
    %v5561 = vsel %vm3177, %v5221, %v5560
    %v5562 = vsel %vm3179, %v5225, %v5561
    %v5563 = vsel %vm3167, %v5233, %v5229
    %v5564 = vsel %vm3169, %v5237, %v5563
    %v5565 = vsel %vm3171, %v5241, %v5564
    %v5566 = vsel %vm3173, %v5245, %v5565
    %v5567 = vsel %vm3175, %v5249, %v5566
    %v5568 = vsel %vm3177, %v5253, %v5567
    %v5569 = vsel %vm3179, %v5257, %v5568
    %v5570 = vsel %vm3167, %v5265, %v5261
    %v5571 = vsel %vm3169, %v5269, %v5570
    %v5572 = vsel %vm3171, %v5273, %v5571
    %v5573 = vsel %vm3173, %v5277, %v5572
    %v5574 = vsel %vm3175, %v5281, %v5573
    %v5575 = vsel %vm3177, %v5285, %v5574
    %v5576 = vsel %vm3179, %v5289, %v5575
    %v5577 = vsel %vm3167, %v5297, %v5293
    %v5578 = vsel %vm3169, %v5301, %v5577
    %v5579 = vsel %vm3171, %v5305, %v5578
    %v5580 = vsel %vm3173, %v5309, %v5579
    %v5581 = vsel %vm3175, %v5313, %v5580
    %v5582 = vsel %vm3177, %v5317, %v5581
    %v5583 = vsel %vm3179, %v5321, %v5582
    %v5584 = vsel %vm3167, %v5329, %v5325
    %v5585 = vsel %vm3169, %v5333, %v5584
    %v5586 = vsel %vm3171, %v5337, %v5585
    %v5587 = vsel %vm3173, %v5341, %v5586
    %v5588 = vsel %vm3175, %v5345, %v5587
    %v5589 = vsel %vm3177, %v5349, %v5588
    %v5590 = vsel %vm3179, %v5353, %v5589
    %v5591 = vsel %vm3167, %v5361, %v5357
    %v5592 = vsel %vm3169, %v5365, %v5591
    %v5593 = vsel %vm3171, %v5369, %v5592
    %v5594 = vsel %vm3173, %v5373, %v5593
    %v5595 = vsel %vm3175, %v5377, %v5594
    %v5596 = vsel %vm3177, %v5381, %v5595
    %v5597 = vsel %vm3179, %v5385, %v5596
    %v5598 = vsel %vm3167, %v5393, %v5389
    %v5599 = vsel %vm3169, %v5397, %v5598
    %v5600 = vsel %vm3171, %v5401, %v5599
    %v5601 = vsel %vm3173, %v5405, %v5600
    %v5602 = vsel %vm3175, %v5409, %v5601
    %v5603 = vsel %vm3177, %v5413, %v5602
    %v5604 = vsel %vm3179, %v5417, %v5603
    %v5605 = vsel %vm3167, %v5425, %v5421
    %v5606 = vsel %vm3169, %v5429, %v5605
    %v5607 = vsel %vm3171, %v5433, %v5606
    %v5608 = vsel %vm3173, %v5437, %v5607
    %v5609 = vsel %vm3175, %v5441, %v5608
    %v5610 = vsel %vm3177, %v5445, %v5609
    %v5611 = vsel %vm3179, %v5449, %v5610
    %v5612 = vsel %vm3167, %v5457, %v5453
    %v5613 = vsel %vm3169, %v5461, %v5612
    %v5614 = vsel %vm3171, %v5465, %v5613
    %v5615 = vsel %vm3173, %v5469, %v5614
    %v5616 = vsel %vm3175, %v5473, %v5615
    %v5617 = vsel %vm3177, %v5477, %v5616
    %v5618 = vsel %vm3179, %v5481, %v5617
    %v5619 = vsel %vm3167, %v5489, %v5485
    %v5620 = vsel %vm3169, %v5493, %v5619
    %v5621 = vsel %vm3171, %v5497, %v5620
    %v5622 = vsel %vm3173, %v5501, %v5621
    %v5623 = vsel %vm3175, %v5505, %v5622
    %v5624 = vsel %vm3177, %v5509, %v5623
    %v5625 = vsel %vm3179, %v5513, %v5624
    %vm5642 = vcmask 195712
    %5643 = vst.msk [vmem:[#allocation2] sm:$0xff] %vm5642, %v5520
    %5644 = vst.msk [vmem:[#allocation2 + $0x8] sm:$0xff] %vm5642, %v5527
    %5645 = vst.msk [vmem:[#allocation2 + $0x10] sm:$0xff] %vm5642, %v5534
    %5646 = vst.msk [vmem:[#allocation2 + $0x18] sm:$0xff] %vm5642, %v5541
    %5647 = vst.msk [vmem:[#allocation2 + $0x20] sm:$0xff] %vm5642, %v5548
    %5648 = vst.msk [vmem:[#allocation2 + $0x28] sm:$0xff] %vm5642, %v5555
    %5649 = vst.msk [vmem:[#allocation2 + $0x30] sm:$0xff] %vm5642, %v5562
    %5650 = vst.msk [vmem:[#allocation2 + $0x38] sm:$0xff] %vm5642, %v5569
    %5651 = vst.msk [vmem:[#allocation2 + $0x40] sm:$0xff] %vm5642, %v5576
    %5652 = vst.msk [vmem:[#allocation2 + $0x48] sm:$0xff] %vm5642, %v5583
    %5653 = vst.msk [vmem:[#allocation2 + $0x50] sm:$0xff] %vm5642, %v5590
    %5654 = vst.msk [vmem:[#allocation2 + $0x58] sm:$0xff] %vm5642, %v5597
    %5655 = vst.msk [vmem:[#allocation2 + $0x60] sm:$0xff] %vm5642, %v5604
    %5656 = vst.msk [vmem:[#allocation2 + $0x68] sm:$0xff] %vm5642, %v5611
    %5657 = vst.msk [vmem:[#allocation2 + $0x70] sm:$0xff] %vm5642, %v5618
    %5658 = vst.msk [vmem:[#allocation2 + $0x78] sm:$0xff] %vm5642, %v5625
    %v5659 = vsel %vm2013, %v379, 0.0
    %v5660 = vsel %vm2014, %v379, 0.0
    %v5661 = vsel %vm2015, %v379, 0.0
    %v5662 = vsel %vm2016, %v379, 0.0
    %v5663 = vsel %vm2017, %v379, 0.0
    %v5664 = vsel %vm2018, %v379, 0.0
    %v5665 = vsel %vm2019, %v379, 0.0
    %v5666 = vsel %vm2020, %v379, 0.0
    %v5667 = vsel %vm2021, %v379, 0.0
    %v5668 = vsel %vm2022, %v379, 0.0
    %v5669 = vsel %vm2023, %v379, 0.0
    %v5670 = vsel %vm2024, %v379, 0.0
    %v5671 = vsel %vm2025, %v379, 0.0
    %v5672 = vsel %vm2026, %v379, 0.0
    %v5673 = vsel %vm2027, %v379, 0.0
    %v5674 = vsel %vm2028, %v379, 0.0
    %v5675 = vsel %vm2029, %v379, 0.0
    %v5676 = vsel %vm2030, %v379, 0.0
    %v5677 = vsel %vm2031, %v379, 0.0
    %v5678 = vsel %vm2032, %v379, 0.0
    %v5679 = vsel %vm2033, %v379, 0.0
    %v5680 = vsel %vm2034, %v379, 0.0
    %v5681 = vsel %vm2035, %v379, 0.0
    %v5682 = vsel %vm2036, %v379, 0.0
    %v5683 = vsel %vm2037, %v379, 0.0
    %v5684 = vsel %vm2038, %v379, 0.0
    %v5685 = vsel %vm2039, %v379, 0.0
    %v5686 = vsel %vm2040, %v379, 0.0
    %v5687 = vsel %vm2041, %v379, 0.0
    %v5688 = vsel %vm2042, %v379, 0.0
    %v5689 = vsel %vm2043, %v379, 0.0
    %v5690 = vsel %vm2044, %v379, 0.0
    %v5691 = vsel %vm2045, %v379, 0.0
    %v5692 = vsel %vm2046, %v379, 0.0
    %v5693 = vsel %vm2047, %v379, 0.0
    %v5694 = vsel %vm2048, %v379, 0.0
    %v5695 = vsel %vm2049, %v379, 0.0
    %v5696 = vsel %vm2050, %v379, 0.0
    %v5697 = vsel %vm2051, %v379, 0.0
    %v5698 = vsel %vm2052, %v379, 0.0
    %v5699 = vsel %vm2053, %v379, 0.0
    %v5700 = vsel %vm2054, %v379, 0.0
    %v5701 = vsel %vm2055, %v379, 0.0
    %v5702 = vsel %vm2056, %v379, 0.0
    %v5703 = vsel %vm2057, %v379, 0.0
    %v5704 = vsel %vm2058, %v379, 0.0
    %v5705 = vsel %vm2059, %v379, 0.0
    %v5706 = vsel %vm2060, %v379, 0.0
    %v5707 = vsel %vm2061, %v379, 0.0
    %v5708 = vsel %vm2062, %v379, 0.0
    %v5709 = vsel %vm2063, %v379, 0.0
    %v5710 = vsel %vm2064, %v379, 0.0
    %v5711 = vsel %vm2065, %v379, 0.0
    %v5712 = vsel %vm2066, %v379, 0.0
    %v5713 = vsel %vm2067, %v379, 0.0
    %v5714 = vsel %vm2068, %v379, 0.0
    %v5715 = vsel %vm2069, %v379, 0.0
    %v5716 = vsel %vm2070, %v379, 0.0
    %v5717 = vsel %vm2071, %v379, 0.0
    %v5718 = vsel %vm2072, %v379, 0.0
    %v5719 = vsel %vm2073, %v379, 0.0
    %v5720 = vsel %vm2074, %v379, 0.0
    %v5721 = vsel %vm2075, %v379, 0.0
    %v5722 = vsel %vm2076, %v379, 0.0
    %v5723 = vsel %vm2077, %v379, 0.0
    %v5724 = vsel %vm2078, %v379, 0.0
    %v5725 = vsel %vm2079, %v379, 0.0
    %v5726 = vsel %vm2080, %v379, 0.0
    %v5727 = vsel %vm2081, %v379, 0.0
    %v5728 = vsel %vm2082, %v379, 0.0
    %v5729 = vsel %vm2083, %v379, 0.0
    %v5730 = vsel %vm2084, %v379, 0.0
    %v5731 = vsel %vm2085, %v379, 0.0
    %v5732 = vsel %vm2086, %v379, 0.0
    %v5733 = vsel %vm2087, %v379, 0.0
    %v5734 = vsel %vm2088, %v379, 0.0
    %v5735 = vsel %vm2089, %v379, 0.0
    %v5736 = vsel %vm2090, %v379, 0.0
    %v5737 = vsel %vm2091, %v379, 0.0
    %v5738 = vsel %vm2092, %v379, 0.0
    %v5739 = vsel %vm2093, %v379, 0.0
    %v5740 = vsel %vm2094, %v379, 0.0
    %v5741 = vsel %vm2095, %v379, 0.0
    %v5742 = vsel %vm2096, %v379, 0.0
    %v5743 = vsel %vm2097, %v379, 0.0
    %v5744 = vsel %vm2098, %v379, 0.0
    %v5745 = vsel %vm2099, %v379, 0.0
    %v5746 = vsel %vm2100, %v379, 0.0
    %v5747 = vsel %vm2101, %v379, 0.0
    %v5748 = vsel %vm2102, %v379, 0.0
    %v5749 = vsel %vm2103, %v379, 0.0
    %v5750 = vsel %vm2104, %v379, 0.0
    %v5751 = vsel %vm2105, %v379, 0.0
    %v5752 = vsel %vm2106, %v379, 0.0
    %v5753 = vsel %vm2107, %v379, 0.0
    %v5754 = vsel %vm2108, %v379, 0.0
    %v5755 = vsel %vm2109, %v379, 0.0
    %v5756 = vsel %vm2110, %v379, 0.0
    %v5757 = vsel %vm2111, %v379, 0.0
    %v5758 = vsel %vm2112, %v379, 0.0
    %v5759 = vsel %vm2113, %v379, 0.0
    %v5760 = vsel %vm2114, %v379, 0.0
    %v5761 = vsel %vm2115, %v379, 0.0
    %v5762 = vsel %vm2116, %v379, 0.0
    %v5763 = vsel %vm2117, %v379, 0.0
    %v5764 = vsel %vm2118, %v379, 0.0
    %v5765 = vsel %vm2119, %v379, 0.0
    %v5766 = vsel %vm2120, %v379, 0.0
    %v5767 = vsel %vm2121, %v379, 0.0
    %v5768 = vsel %vm2122, %v379, 0.0
    %v5769 = vsel %vm2123, %v379, 0.0
    %v5770 = vsel %vm2124, %v379, 0.0
    %v5771 = vsel %vm2125, %v379, 0.0
    %v5772 = vsel %vm2126, %v379, 0.0
    %v5773 = vsel %vm2127, %v379, 0.0
    %v5774 = vsel %vm2128, %v379, 0.0
    %v5775 = vsel %vm2129, %v379, 0.0
    %v5776 = vsel %vm2130, %v379, 0.0
    %v5777 = vsel %vm2131, %v379, 0.0
    %v5778 = vsel %vm2132, %v379, 0.0
    %v5779 = vsel %vm2133, %v379, 0.0
    %v5780 = vsel %vm2134, %v379, 0.0
    %v5781 = vsel %vm2135, %v379, 0.0
    %v5782 = vsel %vm2136, %v379, 0.0
    %v5783 = vsel %vm2137, %v379, 0.0
    %v5784 = vsel %vm2138, %v379, 0.0
    %v5785 = vsel %vm2139, %v379, 0.0
    %v5786 = vsel %vm2140, %v379, 0.0
    %5787 = vmax.xlane.f32.xlu0 %v5659
    %v5788 = vpop.xlane.xlu0 %5787
    %5789 = vmax.xlane.f32.xlu0 %v5660
    %v5790 = vpop.xlane.xlu0 %5789
    %5791 = vmax.xlane.f32.xlu0 %v5661
    %v5792 = vpop.xlane.xlu0 %5791
    %5793 = vmax.xlane.f32.xlu0 %v5662
    %v5794 = vpop.xlane.xlu0 %5793
    %5795 = vmax.xlane.f32.xlu0 %v5663
    %v5796 = vpop.xlane.xlu0 %5795
    %5797 = vmax.xlane.f32.xlu0 %v5664
    %v5798 = vpop.xlane.xlu0 %5797
    %5799 = vmax.xlane.f32.xlu0 %v5665
    %v5800 = vpop.xlane.xlu0 %5799
    %5801 = vmax.xlane.f32.xlu0 %v5666
    %v5802 = vpop.xlane.xlu0 %5801
    %5803 = vmax.xlane.f32.xlu0 %v5667
    %v5804 = vpop.xlane.xlu0 %5803
    %5805 = vmax.xlane.f32.xlu0 %v5668
    %v5806 = vpop.xlane.xlu0 %5805
    %5807 = vmax.xlane.f32.xlu0 %v5669
    %v5808 = vpop.xlane.xlu0 %5807
    %5809 = vmax.xlane.f32.xlu0 %v5670
    %v5810 = vpop.xlane.xlu0 %5809
    %5811 = vmax.xlane.f32.xlu0 %v5671
    %v5812 = vpop.xlane.xlu0 %5811
    %5813 = vmax.xlane.f32.xlu0 %v5672
    %v5814 = vpop.xlane.xlu0 %5813
    %5815 = vmax.xlane.f32.xlu0 %v5673
    %v5816 = vpop.xlane.xlu0 %5815
    %5817 = vmax.xlane.f32.xlu0 %v5674
    %v5818 = vpop.xlane.xlu0 %5817
    %5819 = vmax.xlane.f32.xlu0 %v5675
    %v5820 = vpop.xlane.xlu0 %5819
    %5821 = vmax.xlane.f32.xlu0 %v5676
    %v5822 = vpop.xlane.xlu0 %5821
    %5823 = vmax.xlane.f32.xlu0 %v5677
    %v5824 = vpop.xlane.xlu0 %5823
    %5825 = vmax.xlane.f32.xlu0 %v5678
    %v5826 = vpop.xlane.xlu0 %5825
    %5827 = vmax.xlane.f32.xlu0 %v5679
    %v5828 = vpop.xlane.xlu0 %5827
    %5829 = vmax.xlane.f32.xlu0 %v5680
    %v5830 = vpop.xlane.xlu0 %5829
    %5831 = vmax.xlane.f32.xlu0 %v5681
    %v5832 = vpop.xlane.xlu0 %5831
    %5833 = vmax.xlane.f32.xlu0 %v5682
    %v5834 = vpop.xlane.xlu0 %5833
    %5835 = vmax.xlane.f32.xlu0 %v5683
    %v5836 = vpop.xlane.xlu0 %5835
    %5837 = vmax.xlane.f32.xlu0 %v5684
    %v5838 = vpop.xlane.xlu0 %5837
    %5839 = vmax.xlane.f32.xlu0 %v5685
    %v5840 = vpop.xlane.xlu0 %5839
    %5841 = vmax.xlane.f32.xlu0 %v5686
    %v5842 = vpop.xlane.xlu0 %5841
    %5843 = vmax.xlane.f32.xlu0 %v5687
    %v5844 = vpop.xlane.xlu0 %5843
    %5845 = vmax.xlane.f32.xlu0 %v5688
    %v5846 = vpop.xlane.xlu0 %5845
    %5847 = vmax.xlane.f32.xlu0 %v5689
    %v5848 = vpop.xlane.xlu0 %5847
    %5849 = vmax.xlane.f32.xlu0 %v5690
    %v5850 = vpop.xlane.xlu0 %5849
    %5851 = vmax.xlane.f32.xlu0 %v5691
    %v5852 = vpop.xlane.xlu0 %5851
    %5853 = vmax.xlane.f32.xlu0 %v5692
    %v5854 = vpop.xlane.xlu0 %5853
    %5855 = vmax.xlane.f32.xlu0 %v5693
    %v5856 = vpop.xlane.xlu0 %5855
    %5857 = vmax.xlane.f32.xlu0 %v5694
    %v5858 = vpop.xlane.xlu0 %5857
    %5859 = vmax.xlane.f32.xlu0 %v5695
    %v5860 = vpop.xlane.xlu0 %5859
    %5861 = vmax.xlane.f32.xlu0 %v5696
    %v5862 = vpop.xlane.xlu0 %5861
    %5863 = vmax.xlane.f32.xlu0 %v5697
    %v5864 = vpop.xlane.xlu0 %5863
    %5865 = vmax.xlane.f32.xlu0 %v5698
    %v5866 = vpop.xlane.xlu0 %5865
    %5867 = vmax.xlane.f32.xlu0 %v5699
    %v5868 = vpop.xlane.xlu0 %5867
    %5869 = vmax.xlane.f32.xlu0 %v5700
    %v5870 = vpop.xlane.xlu0 %5869
    %5871 = vmax.xlane.f32.xlu0 %v5701
    %v5872 = vpop.xlane.xlu0 %5871
    %5873 = vmax.xlane.f32.xlu0 %v5702
    %v5874 = vpop.xlane.xlu0 %5873
    %5875 = vmax.xlane.f32.xlu0 %v5703
    %v5876 = vpop.xlane.xlu0 %5875
    %5877 = vmax.xlane.f32.xlu0 %v5704
    %v5878 = vpop.xlane.xlu0 %5877
    %5879 = vmax.xlane.f32.xlu0 %v5705
    %v5880 = vpop.xlane.xlu0 %5879
    %5881 = vmax.xlane.f32.xlu0 %v5706
    %v5882 = vpop.xlane.xlu0 %5881
    %5883 = vmax.xlane.f32.xlu0 %v5707
    %v5884 = vpop.xlane.xlu0 %5883
    %5885 = vmax.xlane.f32.xlu0 %v5708
    %v5886 = vpop.xlane.xlu0 %5885
    %5887 = vmax.xlane.f32.xlu0 %v5709
    %v5888 = vpop.xlane.xlu0 %5887
    %5889 = vmax.xlane.f32.xlu0 %v5710
    %v5890 = vpop.xlane.xlu0 %5889
    %5891 = vmax.xlane.f32.xlu0 %v5711
    %v5892 = vpop.xlane.xlu0 %5891
    %5893 = vmax.xlane.f32.xlu0 %v5712
    %v5894 = vpop.xlane.xlu0 %5893
    %5895 = vmax.xlane.f32.xlu0 %v5713
    %v5896 = vpop.xlane.xlu0 %5895
    %5897 = vmax.xlane.f32.xlu0 %v5714
    %v5898 = vpop.xlane.xlu0 %5897
    %5899 = vmax.xlane.f32.xlu0 %v5715
    %v5900 = vpop.xlane.xlu0 %5899
    %5901 = vmax.xlane.f32.xlu0 %v5716
    %v5902 = vpop.xlane.xlu0 %5901
    %5903 = vmax.xlane.f32.xlu0 %v5717
    %v5904 = vpop.xlane.xlu0 %5903
    %5905 = vmax.xlane.f32.xlu0 %v5718
    %v5906 = vpop.xlane.xlu0 %5905
    %5907 = vmax.xlane.f32.xlu0 %v5719
    %v5908 = vpop.xlane.xlu0 %5907
    %5909 = vmax.xlane.f32.xlu0 %v5720
    %v5910 = vpop.xlane.xlu0 %5909
    %5911 = vmax.xlane.f32.xlu0 %v5721
    %v5912 = vpop.xlane.xlu0 %5911
    %5913 = vmax.xlane.f32.xlu0 %v5722
    %v5914 = vpop.xlane.xlu0 %5913
    %5915 = vmax.xlane.f32.xlu0 %v5723
    %v5916 = vpop.xlane.xlu0 %5915
    %5917 = vmax.xlane.f32.xlu0 %v5724
    %v5918 = vpop.xlane.xlu0 %5917
    %5919 = vmax.xlane.f32.xlu0 %v5725
    %v5920 = vpop.xlane.xlu0 %5919
    %5921 = vmax.xlane.f32.xlu0 %v5726
    %v5922 = vpop.xlane.xlu0 %5921
    %5923 = vmax.xlane.f32.xlu0 %v5727
    %v5924 = vpop.xlane.xlu0 %5923
    %5925 = vmax.xlane.f32.xlu0 %v5728
    %v5926 = vpop.xlane.xlu0 %5925
    %5927 = vmax.xlane.f32.xlu0 %v5729
    %v5928 = vpop.xlane.xlu0 %5927
    %5929 = vmax.xlane.f32.xlu0 %v5730
    %v5930 = vpop.xlane.xlu0 %5929
    %5931 = vmax.xlane.f32.xlu0 %v5731
    %v5932 = vpop.xlane.xlu0 %5931
    %5933 = vmax.xlane.f32.xlu0 %v5732
    %v5934 = vpop.xlane.xlu0 %5933
    %5935 = vmax.xlane.f32.xlu0 %v5733
    %v5936 = vpop.xlane.xlu0 %5935
    %5937 = vmax.xlane.f32.xlu0 %v5734
    %v5938 = vpop.xlane.xlu0 %5937
    %5939 = vmax.xlane.f32.xlu0 %v5735
    %v5940 = vpop.xlane.xlu0 %5939
    %5941 = vmax.xlane.f32.xlu0 %v5736
    %v5942 = vpop.xlane.xlu0 %5941
    %5943 = vmax.xlane.f32.xlu0 %v5737
    %v5944 = vpop.xlane.xlu0 %5943
    %5945 = vmax.xlane.f32.xlu0 %v5738
    %v5946 = vpop.xlane.xlu0 %5945
    %5947 = vmax.xlane.f32.xlu0 %v5739
    %v5948 = vpop.xlane.xlu0 %5947
    %5949 = vmax.xlane.f32.xlu0 %v5740
    %v5950 = vpop.xlane.xlu0 %5949
    %5951 = vmax.xlane.f32.xlu0 %v5741
    %v5952 = vpop.xlane.xlu0 %5951
    %5953 = vmax.xlane.f32.xlu0 %v5742
    %v5954 = vpop.xlane.xlu0 %5953
    %5955 = vmax.xlane.f32.xlu0 %v5743
    %v5956 = vpop.xlane.xlu0 %5955
    %5957 = vmax.xlane.f32.xlu0 %v5744
    %v5958 = vpop.xlane.xlu0 %5957
    %5959 = vmax.xlane.f32.xlu0 %v5745
    %v5960 = vpop.xlane.xlu0 %5959
    %5961 = vmax.xlane.f32.xlu0 %v5746
    %v5962 = vpop.xlane.xlu0 %5961
    %5963 = vmax.xlane.f32.xlu0 %v5747
    %v5964 = vpop.xlane.xlu0 %5963
    %5965 = vmax.xlane.f32.xlu0 %v5748
    %v5966 = vpop.xlane.xlu0 %5965
    %5967 = vmax.xlane.f32.xlu0 %v5749
    %v5968 = vpop.xlane.xlu0 %5967
    %5969 = vmax.xlane.f32.xlu0 %v5750
    %v5970 = vpop.xlane.xlu0 %5969
    %5971 = vmax.xlane.f32.xlu0 %v5751
    %v5972 = vpop.xlane.xlu0 %5971
    %5973 = vmax.xlane.f32.xlu0 %v5752
    %v5974 = vpop.xlane.xlu0 %5973
    %5975 = vmax.xlane.f32.xlu0 %v5753
    %v5976 = vpop.xlane.xlu0 %5975
    %5977 = vmax.xlane.f32.xlu0 %v5754
    %v5978 = vpop.xlane.xlu0 %5977
    %5979 = vmax.xlane.f32.xlu0 %v5755
    %v5980 = vpop.xlane.xlu0 %5979
    %5981 = vmax.xlane.f32.xlu0 %v5756
    %v5982 = vpop.xlane.xlu0 %5981
    %5983 = vmax.xlane.f32.xlu0 %v5757
    %v5984 = vpop.xlane.xlu0 %5983
    %5985 = vmax.xlane.f32.xlu0 %v5758
    %v5986 = vpop.xlane.xlu0 %5985
    %5987 = vmax.xlane.f32.xlu0 %v5759
    %v5988 = vpop.xlane.xlu0 %5987
    %5989 = vmax.xlane.f32.xlu0 %v5760
    %v5990 = vpop.xlane.xlu0 %5989
    %5991 = vmax.xlane.f32.xlu0 %v5761
    %v5992 = vpop.xlane.xlu0 %5991
    %5993 = vmax.xlane.f32.xlu0 %v5762
    %v5994 = vpop.xlane.xlu0 %5993
    %5995 = vmax.xlane.f32.xlu0 %v5763
    %v5996 = vpop.xlane.xlu0 %5995
    %5997 = vmax.xlane.f32.xlu0 %v5764
    %v5998 = vpop.xlane.xlu0 %5997
    %5999 = vmax.xlane.f32.xlu0 %v5765
    %v6000 = vpop.xlane.xlu0 %5999
    %6001 = vmax.xlane.f32.xlu0 %v5766
    %v6002 = vpop.xlane.xlu0 %6001
    %6003 = vmax.xlane.f32.xlu0 %v5767
    %v6004 = vpop.xlane.xlu0 %6003
    %6005 = vmax.xlane.f32.xlu0 %v5768
    %v6006 = vpop.xlane.xlu0 %6005
    %6007 = vmax.xlane.f32.xlu0 %v5769
    %v6008 = vpop.xlane.xlu0 %6007
    %6009 = vmax.xlane.f32.xlu0 %v5770
    %v6010 = vpop.xlane.xlu0 %6009
    %6011 = vmax.xlane.f32.xlu0 %v5771
    %v6012 = vpop.xlane.xlu0 %6011
    %6013 = vmax.xlane.f32.xlu0 %v5772
    %v6014 = vpop.xlane.xlu0 %6013
    %6015 = vmax.xlane.f32.xlu0 %v5773
    %v6016 = vpop.xlane.xlu0 %6015
    %6017 = vmax.xlane.f32.xlu0 %v5774
    %v6018 = vpop.xlane.xlu0 %6017
    %6019 = vmax.xlane.f32.xlu0 %v5775
    %v6020 = vpop.xlane.xlu0 %6019
    %6021 = vmax.xlane.f32.xlu0 %v5776
    %v6022 = vpop.xlane.xlu0 %6021
    %6023 = vmax.xlane.f32.xlu0 %v5777
    %v6024 = vpop.xlane.xlu0 %6023
    %6025 = vmax.xlane.f32.xlu0 %v5778
    %v6026 = vpop.xlane.xlu0 %6025
    %6027 = vmax.xlane.f32.xlu0 %v5779
    %v6028 = vpop.xlane.xlu0 %6027
    %6029 = vmax.xlane.f32.xlu0 %v5780
    %v6030 = vpop.xlane.xlu0 %6029
    %6031 = vmax.xlane.f32.xlu0 %v5781
    %v6032 = vpop.xlane.xlu0 %6031
    %6033 = vmax.xlane.f32.xlu0 %v5782
    %v6034 = vpop.xlane.xlu0 %6033
    %6035 = vmax.xlane.f32.xlu0 %v5783
    %v6036 = vpop.xlane.xlu0 %6035
    %6037 = vmax.xlane.f32.xlu0 %v5784
    %v6038 = vpop.xlane.xlu0 %6037
    %6039 = vmax.xlane.f32.xlu0 %v5785
    %v6040 = vpop.xlane.xlu0 %6039
    %6041 = vmax.xlane.f32.xlu0 %v5786
    %v6042 = vpop.xlane.xlu0 %6041
    %v6171 = vadd.s32 %v2654, 4294967272
    %v6172 = vlaneseq
    %v6173 = vshrl.u32 %v6172, 7
    %v6174 = vsub.s32 %v6171, %v6173
    %v6175 = vrot.slane %v5788, %v6174
    %v6176 = vlaneseq
    %v6177 = vshrl.u32 %v6176, 7
    %v6178 = vsub.s32 %v6171, %v6177
    %v6179 = vrot.slane %v5790, %v6178
    %v6180 = vlaneseq
    %v6181 = vshrl.u32 %v6180, 7
    %v6182 = vsub.s32 %v6171, %v6181
    %v6183 = vrot.slane %v5792, %v6182
    %v6184 = vlaneseq
    %v6185 = vshrl.u32 %v6184, 7
    %v6186 = vsub.s32 %v6171, %v6185
    %v6187 = vrot.slane %v5794, %v6186
    %v6188 = vlaneseq
    %v6189 = vshrl.u32 %v6188, 7
    %v6190 = vsub.s32 %v6171, %v6189
    %v6191 = vrot.slane %v5796, %v6190
    %v6192 = vlaneseq
    %v6193 = vshrl.u32 %v6192, 7
    %v6194 = vsub.s32 %v6171, %v6193
    %v6195 = vrot.slane %v5798, %v6194
    %v6196 = vlaneseq
    %v6197 = vshrl.u32 %v6196, 7
    %v6198 = vsub.s32 %v6171, %v6197
    %v6199 = vrot.slane %v5800, %v6198
    %v6200 = vlaneseq
    %v6201 = vshrl.u32 %v6200, 7
    %v6202 = vsub.s32 %v6171, %v6201
    %v6203 = vrot.slane %v5802, %v6202
    %v6204 = vlaneseq
    %v6205 = vshrl.u32 %v6204, 7
    %v6206 = vsub.s32 %v6171, %v6205
    %v6207 = vrot.slane %v5804, %v6206
    %v6208 = vlaneseq
    %v6209 = vshrl.u32 %v6208, 7
    %v6210 = vsub.s32 %v6171, %v6209
    %v6211 = vrot.slane %v5806, %v6210
    %v6212 = vlaneseq
    %v6213 = vshrl.u32 %v6212, 7
    %v6214 = vsub.s32 %v6171, %v6213
    %v6215 = vrot.slane %v5808, %v6214
    %v6216 = vlaneseq
    %v6217 = vshrl.u32 %v6216, 7
    %v6218 = vsub.s32 %v6171, %v6217
    %v6219 = vrot.slane %v5810, %v6218
    %v6220 = vlaneseq
    %v6221 = vshrl.u32 %v6220, 7
    %v6222 = vsub.s32 %v6171, %v6221
    %v6223 = vrot.slane %v5812, %v6222
    %v6224 = vlaneseq
    %v6225 = vshrl.u32 %v6224, 7
    %v6226 = vsub.s32 %v6171, %v6225
    %v6227 = vrot.slane %v5814, %v6226
    %v6228 = vlaneseq
    %v6229 = vshrl.u32 %v6228, 7
    %v6230 = vsub.s32 %v6171, %v6229
    %v6231 = vrot.slane %v5816, %v6230
    %v6232 = vlaneseq
    %v6233 = vshrl.u32 %v6232, 7
    %v6234 = vsub.s32 %v6171, %v6233
    %v6235 = vrot.slane %v5818, %v6234
    %v6236 = vlaneseq
    %v6237 = vshrl.u32 %v6236, 7
    %v6238 = vsub.s32 %v6171, %v6237
    %v6239 = vrot.slane %v5820, %v6238
    %v6240 = vlaneseq
    %v6241 = vshrl.u32 %v6240, 7
    %v6242 = vsub.s32 %v6171, %v6241
    %v6243 = vrot.slane %v5822, %v6242
    %v6244 = vlaneseq
    %v6245 = vshrl.u32 %v6244, 7
    %v6246 = vsub.s32 %v6171, %v6245
    %v6247 = vrot.slane %v5824, %v6246
    %v6248 = vlaneseq
    %v6249 = vshrl.u32 %v6248, 7
    %v6250 = vsub.s32 %v6171, %v6249
    %v6251 = vrot.slane %v5826, %v6250
    %v6252 = vlaneseq
    %v6253 = vshrl.u32 %v6252, 7
    %v6254 = vsub.s32 %v6171, %v6253
    %v6255 = vrot.slane %v5828, %v6254
    %v6256 = vlaneseq
    %v6257 = vshrl.u32 %v6256, 7
    %v6258 = vsub.s32 %v6171, %v6257
    %v6259 = vrot.slane %v5830, %v6258
    %v6260 = vlaneseq
    %v6261 = vshrl.u32 %v6260, 7
    %v6262 = vsub.s32 %v6171, %v6261
    %v6263 = vrot.slane %v5832, %v6262
    %v6264 = vlaneseq
    %v6265 = vshrl.u32 %v6264, 7
    %v6266 = vsub.s32 %v6171, %v6265
    %v6267 = vrot.slane %v5834, %v6266
    %v6268 = vlaneseq
    %v6269 = vshrl.u32 %v6268, 7
    %v6270 = vsub.s32 %v6171, %v6269
    %v6271 = vrot.slane %v5836, %v6270
    %v6272 = vlaneseq
    %v6273 = vshrl.u32 %v6272, 7
    %v6274 = vsub.s32 %v6171, %v6273
    %v6275 = vrot.slane %v5838, %v6274
    %v6276 = vlaneseq
    %v6277 = vshrl.u32 %v6276, 7
    %v6278 = vsub.s32 %v6171, %v6277
    %v6279 = vrot.slane %v5840, %v6278
    %v6280 = vlaneseq
    %v6281 = vshrl.u32 %v6280, 7
    %v6282 = vsub.s32 %v6171, %v6281
    %v6283 = vrot.slane %v5842, %v6282
    %v6284 = vlaneseq
    %v6285 = vshrl.u32 %v6284, 7
    %v6286 = vsub.s32 %v6171, %v6285
    %v6287 = vrot.slane %v5844, %v6286
    %v6288 = vlaneseq
    %v6289 = vshrl.u32 %v6288, 7
    %v6290 = vsub.s32 %v6171, %v6289
    %v6291 = vrot.slane %v5846, %v6290
    %v6292 = vlaneseq
    %v6293 = vshrl.u32 %v6292, 7
    %v6294 = vsub.s32 %v6171, %v6293
    %v6295 = vrot.slane %v5848, %v6294
    %v6296 = vlaneseq
    %v6297 = vshrl.u32 %v6296, 7
    %v6298 = vsub.s32 %v6171, %v6297
    %v6299 = vrot.slane %v5850, %v6298
    %v6300 = vlaneseq
    %v6301 = vshrl.u32 %v6300, 7
    %v6302 = vsub.s32 %v6171, %v6301
    %v6303 = vrot.slane %v5852, %v6302
    %v6304 = vlaneseq
    %v6305 = vshrl.u32 %v6304, 7
    %v6306 = vsub.s32 %v6171, %v6305
    %v6307 = vrot.slane %v5854, %v6306
    %v6308 = vlaneseq
    %v6309 = vshrl.u32 %v6308, 7
    %v6310 = vsub.s32 %v6171, %v6309
    %v6311 = vrot.slane %v5856, %v6310
    %v6312 = vlaneseq
    %v6313 = vshrl.u32 %v6312, 7
    %v6314 = vsub.s32 %v6171, %v6313
    %v6315 = vrot.slane %v5858, %v6314
    %v6316 = vlaneseq
    %v6317 = vshrl.u32 %v6316, 7
    %v6318 = vsub.s32 %v6171, %v6317
    %v6319 = vrot.slane %v5860, %v6318
    %v6320 = vlaneseq
    %v6321 = vshrl.u32 %v6320, 7
    %v6322 = vsub.s32 %v6171, %v6321
    %v6323 = vrot.slane %v5862, %v6322
    %v6324 = vlaneseq
    %v6325 = vshrl.u32 %v6324, 7
    %v6326 = vsub.s32 %v6171, %v6325
    %v6327 = vrot.slane %v5864, %v6326
    %v6328 = vlaneseq
    %v6329 = vshrl.u32 %v6328, 7
    %v6330 = vsub.s32 %v6171, %v6329
    %v6331 = vrot.slane %v5866, %v6330
    %v6332 = vlaneseq
    %v6333 = vshrl.u32 %v6332, 7
    %v6334 = vsub.s32 %v6171, %v6333
    %v6335 = vrot.slane %v5868, %v6334
    %v6336 = vlaneseq
    %v6337 = vshrl.u32 %v6336, 7
    %v6338 = vsub.s32 %v6171, %v6337
    %v6339 = vrot.slane %v5870, %v6338
    %v6340 = vlaneseq
    %v6341 = vshrl.u32 %v6340, 7
    %v6342 = vsub.s32 %v6171, %v6341
    %v6343 = vrot.slane %v5872, %v6342
    %v6344 = vlaneseq
    %v6345 = vshrl.u32 %v6344, 7
    %v6346 = vsub.s32 %v6171, %v6345
    %v6347 = vrot.slane %v5874, %v6346
    %v6348 = vlaneseq
    %v6349 = vshrl.u32 %v6348, 7
    %v6350 = vsub.s32 %v6171, %v6349
    %v6351 = vrot.slane %v5876, %v6350
    %v6352 = vlaneseq
    %v6353 = vshrl.u32 %v6352, 7
    %v6354 = vsub.s32 %v6171, %v6353
    %v6355 = vrot.slane %v5878, %v6354
    %v6356 = vlaneseq
    %v6357 = vshrl.u32 %v6356, 7
    %v6358 = vsub.s32 %v6171, %v6357
    %v6359 = vrot.slane %v5880, %v6358
    %v6360 = vlaneseq
    %v6361 = vshrl.u32 %v6360, 7
    %v6362 = vsub.s32 %v6171, %v6361
    %v6363 = vrot.slane %v5882, %v6362
    %v6364 = vlaneseq
    %v6365 = vshrl.u32 %v6364, 7
    %v6366 = vsub.s32 %v6171, %v6365
    %v6367 = vrot.slane %v5884, %v6366
    %v6368 = vlaneseq
    %v6369 = vshrl.u32 %v6368, 7
    %v6370 = vsub.s32 %v6171, %v6369
    %v6371 = vrot.slane %v5886, %v6370
    %v6372 = vlaneseq
    %v6373 = vshrl.u32 %v6372, 7
    %v6374 = vsub.s32 %v6171, %v6373
    %v6375 = vrot.slane %v5888, %v6374
    %v6376 = vlaneseq
    %v6377 = vshrl.u32 %v6376, 7
    %v6378 = vsub.s32 %v6171, %v6377
    %v6379 = vrot.slane %v5890, %v6378
    %v6380 = vlaneseq
    %v6381 = vshrl.u32 %v6380, 7
    %v6382 = vsub.s32 %v6171, %v6381
    %v6383 = vrot.slane %v5892, %v6382
    %v6384 = vlaneseq
    %v6385 = vshrl.u32 %v6384, 7
    %v6386 = vsub.s32 %v6171, %v6385
    %v6387 = vrot.slane %v5894, %v6386
    %v6388 = vlaneseq
    %v6389 = vshrl.u32 %v6388, 7
    %v6390 = vsub.s32 %v6171, %v6389
    %v6391 = vrot.slane %v5896, %v6390
    %v6392 = vlaneseq
    %v6393 = vshrl.u32 %v6392, 7
    %v6394 = vsub.s32 %v6171, %v6393
    %v6395 = vrot.slane %v5898, %v6394
    %v6396 = vlaneseq
    %v6397 = vshrl.u32 %v6396, 7
    %v6398 = vsub.s32 %v6171, %v6397
    %v6399 = vrot.slane %v5900, %v6398
    %v6400 = vlaneseq
    %v6401 = vshrl.u32 %v6400, 7
    %v6402 = vsub.s32 %v6171, %v6401
    %v6403 = vrot.slane %v5902, %v6402
    %v6404 = vlaneseq
    %v6405 = vshrl.u32 %v6404, 7
    %v6406 = vsub.s32 %v6171, %v6405
    %v6407 = vrot.slane %v5904, %v6406
    %v6408 = vlaneseq
    %v6409 = vshrl.u32 %v6408, 7
    %v6410 = vsub.s32 %v6171, %v6409
    %v6411 = vrot.slane %v5906, %v6410
    %v6412 = vlaneseq
    %v6413 = vshrl.u32 %v6412, 7
    %v6414 = vsub.s32 %v6171, %v6413
    %v6415 = vrot.slane %v5908, %v6414
    %v6416 = vlaneseq
    %v6417 = vshrl.u32 %v6416, 7
    %v6418 = vsub.s32 %v6171, %v6417
    %v6419 = vrot.slane %v5910, %v6418
    %v6420 = vlaneseq
    %v6421 = vshrl.u32 %v6420, 7
    %v6422 = vsub.s32 %v6171, %v6421
    %v6423 = vrot.slane %v5912, %v6422
    %v6424 = vlaneseq
    %v6425 = vshrl.u32 %v6424, 7
    %v6426 = vsub.s32 %v6171, %v6425
    %v6427 = vrot.slane %v5914, %v6426
    %v6428 = vlaneseq
    %v6429 = vshrl.u32 %v6428, 7
    %v6430 = vsub.s32 %v6171, %v6429
    %v6431 = vrot.slane %v5916, %v6430
    %v6432 = vlaneseq
    %v6433 = vshrl.u32 %v6432, 7
    %v6434 = vsub.s32 %v6171, %v6433
    %v6435 = vrot.slane %v5918, %v6434
    %v6436 = vlaneseq
    %v6437 = vshrl.u32 %v6436, 7
    %v6438 = vsub.s32 %v6171, %v6437
    %v6439 = vrot.slane %v5920, %v6438
    %v6440 = vlaneseq
    %v6441 = vshrl.u32 %v6440, 7
    %v6442 = vsub.s32 %v6171, %v6441
    %v6443 = vrot.slane %v5922, %v6442
    %v6444 = vlaneseq
    %v6445 = vshrl.u32 %v6444, 7
    %v6446 = vsub.s32 %v6171, %v6445
    %v6447 = vrot.slane %v5924, %v6446
    %v6448 = vlaneseq
    %v6449 = vshrl.u32 %v6448, 7
    %v6450 = vsub.s32 %v6171, %v6449
    %v6451 = vrot.slane %v5926, %v6450
    %v6452 = vlaneseq
    %v6453 = vshrl.u32 %v6452, 7
    %v6454 = vsub.s32 %v6171, %v6453
    %v6455 = vrot.slane %v5928, %v6454
    %v6456 = vlaneseq
    %v6457 = vshrl.u32 %v6456, 7
    %v6458 = vsub.s32 %v6171, %v6457
    %v6459 = vrot.slane %v5930, %v6458
    %v6460 = vlaneseq
    %v6461 = vshrl.u32 %v6460, 7
    %v6462 = vsub.s32 %v6171, %v6461
    %v6463 = vrot.slane %v5932, %v6462
    %v6464 = vlaneseq
    %v6465 = vshrl.u32 %v6464, 7
    %v6466 = vsub.s32 %v6171, %v6465
    %v6467 = vrot.slane %v5934, %v6466
    %v6468 = vlaneseq
    %v6469 = vshrl.u32 %v6468, 7
    %v6470 = vsub.s32 %v6171, %v6469
    %v6471 = vrot.slane %v5936, %v6470
    %v6472 = vlaneseq
    %v6473 = vshrl.u32 %v6472, 7
    %v6474 = vsub.s32 %v6171, %v6473
    %v6475 = vrot.slane %v5938, %v6474
    %v6476 = vlaneseq
    %v6477 = vshrl.u32 %v6476, 7
    %v6478 = vsub.s32 %v6171, %v6477
    %v6479 = vrot.slane %v5940, %v6478
    %v6480 = vlaneseq
    %v6481 = vshrl.u32 %v6480, 7
    %v6482 = vsub.s32 %v6171, %v6481
    %v6483 = vrot.slane %v5942, %v6482
    %v6484 = vlaneseq
    %v6485 = vshrl.u32 %v6484, 7
    %v6486 = vsub.s32 %v6171, %v6485
    %v6487 = vrot.slane %v5944, %v6486
    %v6488 = vlaneseq
    %v6489 = vshrl.u32 %v6488, 7
    %v6490 = vsub.s32 %v6171, %v6489
    %v6491 = vrot.slane %v5946, %v6490
    %v6492 = vlaneseq
    %v6493 = vshrl.u32 %v6492, 7
    %v6494 = vsub.s32 %v6171, %v6493
    %v6495 = vrot.slane %v5948, %v6494
    %v6496 = vlaneseq
    %v6497 = vshrl.u32 %v6496, 7
    %v6498 = vsub.s32 %v6171, %v6497
    %v6499 = vrot.slane %v5950, %v6498
    %v6500 = vlaneseq
    %v6501 = vshrl.u32 %v6500, 7
    %v6502 = vsub.s32 %v6171, %v6501
    %v6503 = vrot.slane %v5952, %v6502
    %v6504 = vlaneseq
    %v6505 = vshrl.u32 %v6504, 7
    %v6506 = vsub.s32 %v6171, %v6505
    %v6507 = vrot.slane %v5954, %v6506
    %v6508 = vlaneseq
    %v6509 = vshrl.u32 %v6508, 7
    %v6510 = vsub.s32 %v6171, %v6509
    %v6511 = vrot.slane %v5956, %v6510
    %v6512 = vlaneseq
    %v6513 = vshrl.u32 %v6512, 7
    %v6514 = vsub.s32 %v6171, %v6513
    %v6515 = vrot.slane %v5958, %v6514
    %v6516 = vlaneseq
    %v6517 = vshrl.u32 %v6516, 7
    %v6518 = vsub.s32 %v6171, %v6517
    %v6519 = vrot.slane %v5960, %v6518
    %v6520 = vlaneseq
    %v6521 = vshrl.u32 %v6520, 7
    %v6522 = vsub.s32 %v6171, %v6521
    %v6523 = vrot.slane %v5962, %v6522
    %v6524 = vlaneseq
    %v6525 = vshrl.u32 %v6524, 7
    %v6526 = vsub.s32 %v6171, %v6525
    %v6527 = vrot.slane %v5964, %v6526
    %v6528 = vlaneseq
    %v6529 = vshrl.u32 %v6528, 7
    %v6530 = vsub.s32 %v6171, %v6529
    %v6531 = vrot.slane %v5966, %v6530
    %v6532 = vlaneseq
    %v6533 = vshrl.u32 %v6532, 7
    %v6534 = vsub.s32 %v6171, %v6533
    %v6535 = vrot.slane %v5968, %v6534
    %v6536 = vlaneseq
    %v6537 = vshrl.u32 %v6536, 7
    %v6538 = vsub.s32 %v6171, %v6537
    %v6539 = vrot.slane %v5970, %v6538
    %v6540 = vlaneseq
    %v6541 = vshrl.u32 %v6540, 7
    %v6542 = vsub.s32 %v6171, %v6541
    %v6543 = vrot.slane %v5972, %v6542
    %v6544 = vlaneseq
    %v6545 = vshrl.u32 %v6544, 7
    %v6546 = vsub.s32 %v6171, %v6545
    %v6547 = vrot.slane %v5974, %v6546
    %v6548 = vlaneseq
    %v6549 = vshrl.u32 %v6548, 7
    %v6550 = vsub.s32 %v6171, %v6549
    %v6551 = vrot.slane %v5976, %v6550
    %v6552 = vlaneseq
    %v6553 = vshrl.u32 %v6552, 7
    %v6554 = vsub.s32 %v6171, %v6553
    %v6555 = vrot.slane %v5978, %v6554
    %v6556 = vlaneseq
    %v6557 = vshrl.u32 %v6556, 7
    %v6558 = vsub.s32 %v6171, %v6557
    %v6559 = vrot.slane %v5980, %v6558
    %v6560 = vlaneseq
    %v6561 = vshrl.u32 %v6560, 7
    %v6562 = vsub.s32 %v6171, %v6561
    %v6563 = vrot.slane %v5982, %v6562
    %v6564 = vlaneseq
    %v6565 = vshrl.u32 %v6564, 7
    %v6566 = vsub.s32 %v6171, %v6565
    %v6567 = vrot.slane %v5984, %v6566
    %v6568 = vlaneseq
    %v6569 = vshrl.u32 %v6568, 7
    %v6570 = vsub.s32 %v6171, %v6569
    %v6571 = vrot.slane %v5986, %v6570
    %v6572 = vlaneseq
    %v6573 = vshrl.u32 %v6572, 7
    %v6574 = vsub.s32 %v6171, %v6573
    %v6575 = vrot.slane %v5988, %v6574
    %v6576 = vlaneseq
    %v6577 = vshrl.u32 %v6576, 7
    %v6578 = vsub.s32 %v6171, %v6577
    %v6579 = vrot.slane %v5990, %v6578
    %v6580 = vlaneseq
    %v6581 = vshrl.u32 %v6580, 7
    %v6582 = vsub.s32 %v6171, %v6581
    %v6583 = vrot.slane %v5992, %v6582
    %v6584 = vlaneseq
    %v6585 = vshrl.u32 %v6584, 7
    %v6586 = vsub.s32 %v6171, %v6585
    %v6587 = vrot.slane %v5994, %v6586
    %v6588 = vlaneseq
    %v6589 = vshrl.u32 %v6588, 7
    %v6590 = vsub.s32 %v6171, %v6589
    %v6591 = vrot.slane %v5996, %v6590
    %v6592 = vlaneseq
    %v6593 = vshrl.u32 %v6592, 7
    %v6594 = vsub.s32 %v6171, %v6593
    %v6595 = vrot.slane %v5998, %v6594
    %v6596 = vlaneseq
    %v6597 = vshrl.u32 %v6596, 7
    %v6598 = vsub.s32 %v6171, %v6597
    %v6599 = vrot.slane %v6000, %v6598
    %v6600 = vlaneseq
    %v6601 = vshrl.u32 %v6600, 7
    %v6602 = vsub.s32 %v6171, %v6601
    %v6603 = vrot.slane %v6002, %v6602
    %v6604 = vlaneseq
    %v6605 = vshrl.u32 %v6604, 7
    %v6606 = vsub.s32 %v6171, %v6605
    %v6607 = vrot.slane %v6004, %v6606
    %v6608 = vlaneseq
    %v6609 = vshrl.u32 %v6608, 7
    %v6610 = vsub.s32 %v6171, %v6609
    %v6611 = vrot.slane %v6006, %v6610
    %v6612 = vlaneseq
    %v6613 = vshrl.u32 %v6612, 7
    %v6614 = vsub.s32 %v6171, %v6613
    %v6615 = vrot.slane %v6008, %v6614
    %v6616 = vlaneseq
    %v6617 = vshrl.u32 %v6616, 7
    %v6618 = vsub.s32 %v6171, %v6617
    %v6619 = vrot.slane %v6010, %v6618
    %v6620 = vlaneseq
    %v6621 = vshrl.u32 %v6620, 7
    %v6622 = vsub.s32 %v6171, %v6621
    %v6623 = vrot.slane %v6012, %v6622
    %v6624 = vlaneseq
    %v6625 = vshrl.u32 %v6624, 7
    %v6626 = vsub.s32 %v6171, %v6625
    %v6627 = vrot.slane %v6014, %v6626
    %v6628 = vlaneseq
    %v6629 = vshrl.u32 %v6628, 7
    %v6630 = vsub.s32 %v6171, %v6629
    %v6631 = vrot.slane %v6016, %v6630
    %v6632 = vlaneseq
    %v6633 = vshrl.u32 %v6632, 7
    %v6634 = vsub.s32 %v6171, %v6633
    %v6635 = vrot.slane %v6018, %v6634
    %v6636 = vlaneseq
    %v6637 = vshrl.u32 %v6636, 7
    %v6638 = vsub.s32 %v6171, %v6637
    %v6639 = vrot.slane %v6020, %v6638
    %v6640 = vlaneseq
    %v6641 = vshrl.u32 %v6640, 7
    %v6642 = vsub.s32 %v6171, %v6641
    %v6643 = vrot.slane %v6022, %v6642
    %v6644 = vlaneseq
    %v6645 = vshrl.u32 %v6644, 7
    %v6646 = vsub.s32 %v6171, %v6645
    %v6647 = vrot.slane %v6024, %v6646
    %v6648 = vlaneseq
    %v6649 = vshrl.u32 %v6648, 7
    %v6650 = vsub.s32 %v6171, %v6649
    %v6651 = vrot.slane %v6026, %v6650
    %v6652 = vlaneseq
    %v6653 = vshrl.u32 %v6652, 7
    %v6654 = vsub.s32 %v6171, %v6653
    %v6655 = vrot.slane %v6028, %v6654
    %v6656 = vlaneseq
    %v6657 = vshrl.u32 %v6656, 7
    %v6658 = vsub.s32 %v6171, %v6657
    %v6659 = vrot.slane %v6030, %v6658
    %v6660 = vlaneseq
    %v6661 = vshrl.u32 %v6660, 7
    %v6662 = vsub.s32 %v6171, %v6661
    %v6663 = vrot.slane %v6032, %v6662
    %v6664 = vlaneseq
    %v6665 = vshrl.u32 %v6664, 7
    %v6666 = vsub.s32 %v6171, %v6665
    %v6667 = vrot.slane %v6034, %v6666
    %v6668 = vlaneseq
    %v6669 = vshrl.u32 %v6668, 7
    %v6670 = vsub.s32 %v6171, %v6669
    %v6671 = vrot.slane %v6036, %v6670
    %v6672 = vlaneseq
    %v6673 = vshrl.u32 %v6672, 7
    %v6674 = vsub.s32 %v6171, %v6673
    %v6675 = vrot.slane %v6038, %v6674
    %v6676 = vlaneseq
    %v6677 = vshrl.u32 %v6676, 7
    %v6678 = vsub.s32 %v6171, %v6677
    %v6679 = vrot.slane %v6040, %v6678
    %v6680 = vlaneseq
    %v6681 = vshrl.u32 %v6680, 7
    %v6682 = vsub.s32 %v6171, %v6681
    %v6683 = vrot.slane %v6042, %v6682
    %v6684 = vsel %vm3167, %v6179, %v6175
    %v6685 = vsel %vm3169, %v6183, %v6684
    %v6686 = vsel %vm3171, %v6187, %v6685
    %v6687 = vsel %vm3173, %v6191, %v6686
    %v6688 = vsel %vm3175, %v6195, %v6687
    %v6689 = vsel %vm3177, %v6199, %v6688
    %v6690 = vsel %vm3179, %v6203, %v6689
    %v6691 = vsel %vm3167, %v6211, %v6207
    %v6692 = vsel %vm3169, %v6215, %v6691
    %v6693 = vsel %vm3171, %v6219, %v6692
    %v6694 = vsel %vm3173, %v6223, %v6693
    %v6695 = vsel %vm3175, %v6227, %v6694
    %v6696 = vsel %vm3177, %v6231, %v6695
    %v6697 = vsel %vm3179, %v6235, %v6696
    %v6698 = vsel %vm3167, %v6243, %v6239
    %v6699 = vsel %vm3169, %v6247, %v6698
    %v6700 = vsel %vm3171, %v6251, %v6699
    %v6701 = vsel %vm3173, %v6255, %v6700
    %v6702 = vsel %vm3175, %v6259, %v6701
    %v6703 = vsel %vm3177, %v6263, %v6702
    %v6704 = vsel %vm3179, %v6267, %v6703
    %v6705 = vsel %vm3167, %v6275, %v6271
    %v6706 = vsel %vm3169, %v6279, %v6705
    %v6707 = vsel %vm3171, %v6283, %v6706
    %v6708 = vsel %vm3173, %v6287, %v6707
    %v6709 = vsel %vm3175, %v6291, %v6708
    %v6710 = vsel %vm3177, %v6295, %v6709
    %v6711 = vsel %vm3179, %v6299, %v6710
    %v6712 = vsel %vm3167, %v6307, %v6303
    %v6713 = vsel %vm3169, %v6311, %v6712
    %v6714 = vsel %vm3171, %v6315, %v6713
    %v6715 = vsel %vm3173, %v6319, %v6714
    %v6716 = vsel %vm3175, %v6323, %v6715
    %v6717 = vsel %vm3177, %v6327, %v6716
    %v6718 = vsel %vm3179, %v6331, %v6717
    %v6719 = vsel %vm3167, %v6339, %v6335
    %v6720 = vsel %vm3169, %v6343, %v6719
    %v6721 = vsel %vm3171, %v6347, %v6720
    %v6722 = vsel %vm3173, %v6351, %v6721
    %v6723 = vsel %vm3175, %v6355, %v6722
    %v6724 = vsel %vm3177, %v6359, %v6723
    %v6725 = vsel %vm3179, %v6363, %v6724
    %v6726 = vsel %vm3167, %v6371, %v6367
    %v6727 = vsel %vm3169, %v6375, %v6726
    %v6728 = vsel %vm3171, %v6379, %v6727
    %v6729 = vsel %vm3173, %v6383, %v6728
    %v6730 = vsel %vm3175, %v6387, %v6729
    %v6731 = vsel %vm3177, %v6391, %v6730
    %v6732 = vsel %vm3179, %v6395, %v6731
    %v6733 = vsel %vm3167, %v6403, %v6399
    %v6734 = vsel %vm3169, %v6407, %v6733
    %v6735 = vsel %vm3171, %v6411, %v6734
    %v6736 = vsel %vm3173, %v6415, %v6735
    %v6737 = vsel %vm3175, %v6419, %v6736
    %v6738 = vsel %vm3177, %v6423, %v6737
    %v6739 = vsel %vm3179, %v6427, %v6738
    %v6740 = vsel %vm3167, %v6435, %v6431
    %v6741 = vsel %vm3169, %v6439, %v6740
    %v6742 = vsel %vm3171, %v6443, %v6741
    %v6743 = vsel %vm3173, %v6447, %v6742
    %v6744 = vsel %vm3175, %v6451, %v6743
    %v6745 = vsel %vm3177, %v6455, %v6744
    %v6746 = vsel %vm3179, %v6459, %v6745
    %v6747 = vsel %vm3167, %v6467, %v6463
    %v6748 = vsel %vm3169, %v6471, %v6747
    %v6749 = vsel %vm3171, %v6475, %v6748
    %v6750 = vsel %vm3173, %v6479, %v6749
    %v6751 = vsel %vm3175, %v6483, %v6750
    %v6752 = vsel %vm3177, %v6487, %v6751
    %v6753 = vsel %vm3179, %v6491, %v6752
    %v6754 = vsel %vm3167, %v6499, %v6495
    %v6755 = vsel %vm3169, %v6503, %v6754
    %v6756 = vsel %vm3171, %v6507, %v6755
    %v6757 = vsel %vm3173, %v6511, %v6756
    %v6758 = vsel %vm3175, %v6515, %v6757
    %v6759 = vsel %vm3177, %v6519, %v6758
    %v6760 = vsel %vm3179, %v6523, %v6759
    %v6761 = vsel %vm3167, %v6531, %v6527
    %v6762 = vsel %vm3169, %v6535, %v6761
    %v6763 = vsel %vm3171, %v6539, %v6762
    %v6764 = vsel %vm3173, %v6543, %v6763
    %v6765 = vsel %vm3175, %v6547, %v6764
    %v6766 = vsel %vm3177, %v6551, %v6765
    %v6767 = vsel %vm3179, %v6555, %v6766
    %v6768 = vsel %vm3167, %v6563, %v6559
    %v6769 = vsel %vm3169, %v6567, %v6768
    %v6770 = vsel %vm3171, %v6571, %v6769
    %v6771 = vsel %vm3173, %v6575, %v6770
    %v6772 = vsel %vm3175, %v6579, %v6771
    %v6773 = vsel %vm3177, %v6583, %v6772
    %v6774 = vsel %vm3179, %v6587, %v6773
    %v6775 = vsel %vm3167, %v6595, %v6591
    %v6776 = vsel %vm3169, %v6599, %v6775
    %v6777 = vsel %vm3171, %v6603, %v6776
    %v6778 = vsel %vm3173, %v6607, %v6777
    %v6779 = vsel %vm3175, %v6611, %v6778
    %v6780 = vsel %vm3177, %v6615, %v6779
    %v6781 = vsel %vm3179, %v6619, %v6780
    %v6782 = vsel %vm3167, %v6627, %v6623
    %v6783 = vsel %vm3169, %v6631, %v6782
    %v6784 = vsel %vm3171, %v6635, %v6783
    %v6785 = vsel %vm3173, %v6639, %v6784
    %v6786 = vsel %vm3175, %v6643, %v6785
    %v6787 = vsel %vm3177, %v6647, %v6786
    %v6788 = vsel %vm3179, %v6651, %v6787
    %v6789 = vsel %vm3167, %v6659, %v6655
    %v6790 = vsel %vm3169, %v6663, %v6789
    %v6791 = vsel %vm3171, %v6667, %v6790
    %v6792 = vsel %vm3173, %v6671, %v6791
    %v6793 = vsel %vm3175, %v6675, %v6792
    %v6794 = vsel %vm3177, %v6679, %v6793
    %v6795 = vsel %vm3179, %v6683, %v6794
    %vm6812 = vcmask 261312
    %6813 = vst.msk [vmem:[#allocation2] sm:$0xff] %vm6812, %v6690
    %6814 = vst.msk [vmem:[#allocation2 + $0x8] sm:$0xff] %vm6812, %v6697
    %6815 = vst.msk [vmem:[#allocation2 + $0x10] sm:$0xff] %vm6812, %v6704
    %6816 = vst.msk [vmem:[#allocation2 + $0x18] sm:$0xff] %vm6812, %v6711
    %6817 = vst.msk [vmem:[#allocation2 + $0x20] sm:$0xff] %vm6812, %v6718
    %6818 = vst.msk [vmem:[#allocation2 + $0x28] sm:$0xff] %vm6812, %v6725
    %6819 = vst.msk [vmem:[#allocation2 + $0x30] sm:$0xff] %vm6812, %v6732
    %6820 = vst.msk [vmem:[#allocation2 + $0x38] sm:$0xff] %vm6812, %v6739
    %6821 = vst.msk [vmem:[#allocation2 + $0x40] sm:$0xff] %vm6812, %v6746
    %6822 = vst.msk [vmem:[#allocation2 + $0x48] sm:$0xff] %vm6812, %v6753
    %6823 = vst.msk [vmem:[#allocation2 + $0x50] sm:$0xff] %vm6812, %v6760
    %6824 = vst.msk [vmem:[#allocation2 + $0x58] sm:$0xff] %vm6812, %v6767
    %6825 = vst.msk [vmem:[#allocation2 + $0x60] sm:$0xff] %vm6812, %v6774
    %6826 = vst.msk [vmem:[#allocation2 + $0x68] sm:$0xff] %vm6812, %v6781
    %6827 = vst.msk [vmem:[#allocation2 + $0x70] sm:$0xff] %vm6812, %v6788
    %6828 = vst.msk [vmem:[#allocation2 + $0x78] sm:$0xff] %vm6812, %v6795
    %s6829 = scalar_lea.vmem %s9, %s390
    %v6830 = vld [vmem:[%s6829] sm:$0xff]
    %v6831 = vld [vmem:[%s6829 + $0x8] sm:$0xff]
    %v6832 = vld [vmem:[%s6829 + $0x10] sm:$0xff]
    %v6833 = vld [vmem:[%s6829 + $0x18] sm:$0xff]
    %v6834 = vld [vmem:[%s6829 + $0x20] sm:$0xff]
    %v6835 = vld [vmem:[%s6829 + $0x28] sm:$0xff]
    %v6836 = vld [vmem:[%s6829 + $0x30] sm:$0xff]
    %v6837 = vld [vmem:[%s6829 + $0x38] sm:$0xff]
    %v6838 = vld [vmem:[%s6829 + $0x40] sm:$0xff]
    %v6839 = vld [vmem:[%s6829 + $0x48] sm:$0xff]
    %v6840 = vld [vmem:[%s6829 + $0x50] sm:$0xff]
    %v6841 = vld [vmem:[%s6829 + $0x58] sm:$0xff]
    %v6842 = vld [vmem:[%s6829 + $0x60] sm:$0xff]
    %v6843 = vld [vmem:[%s6829 + $0x68] sm:$0xff]
    %v6844 = vld [vmem:[%s6829 + $0x70] sm:$0xff]
    %v6845 = vld [vmem:[%s6829 + $0x78] sm:$0xff]
    %v6846 = vld [vmem:[#allocation2] sm:$0xff]
    %v6847 = vld [vmem:[#allocation2 + $0x8] sm:$0xff]
    %v6848 = vld [vmem:[#allocation2 + $0x10] sm:$0xff]
    %v6849 = vld [vmem:[#allocation2 + $0x18] sm:$0xff]
    %v6850 = vld [vmem:[#allocation2 + $0x20] sm:$0xff]
    %v6851 = vld [vmem:[#allocation2 + $0x28] sm:$0xff]
    %v6852 = vld [vmem:[#allocation2 + $0x30] sm:$0xff]
    %v6853 = vld [vmem:[#allocation2 + $0x38] sm:$0xff]
    %v6854 = vld [vmem:[#allocation2 + $0x40] sm:$0xff]
    %v6855 = vld [vmem:[#allocation2 + $0x48] sm:$0xff]
    %v6856 = vld [vmem:[#allocation2 + $0x50] sm:$0xff]
    %v6857 = vld [vmem:[#allocation2 + $0x58] sm:$0xff]
    %v6858 = vld [vmem:[#allocation2 + $0x60] sm:$0xff]
    %v6859 = vld [vmem:[#allocation2 + $0x68] sm:$0xff]
    %v6860 = vld [vmem:[#allocation2 + $0x70] sm:$0xff]
    %v6861 = vld [vmem:[#allocation2 + $0x78] sm:$0xff]
    %v6862 = vmax.f32 %v6830, %v6846
    %v6863 = vmax.f32 %v6831, %v6847
    %v6864 = vmax.f32 %v6832, %v6848
    %v6865 = vmax.f32 %v6833, %v6849
    %v6866 = vmax.f32 %v6834, %v6850
    %v6867 = vmax.f32 %v6835, %v6851
    %v6868 = vmax.f32 %v6836, %v6852
    %v6869 = vmax.f32 %v6837, %v6853
    %v6870 = vmax.f32 %v6838, %v6854
    %v6871 = vmax.f32 %v6839, %v6855
    %v6872 = vmax.f32 %v6840, %v6856
    %v6873 = vmax.f32 %v6841, %v6857
    %v6874 = vmax.f32 %v6842, %v6858
    %v6875 = vmax.f32 %v6843, %v6859
    %v6876 = vmax.f32 %v6844, %v6860
    %v6877 = vmax.f32 %v6845, %v6861
    %vm6878 = vcmask 261120
    %6879 = vst.msk [vmem:[%s6829] sm:$0xff] %vm6878, %v6862
    %6880 = vst.msk [vmem:[%s6829 + $0x8] sm:$0xff] %vm6878, %v6863
    %6881 = vst.msk [vmem:[%s6829 + $0x10] sm:$0xff] %vm6878, %v6864
    %6882 = vst.msk [vmem:[%s6829 + $0x18] sm:$0xff] %vm6878, %v6865
    %6883 = vst.msk [vmem:[%s6829 + $0x20] sm:$0xff] %vm6878, %v6866
    %6884 = vst.msk [vmem:[%s6829 + $0x28] sm:$0xff] %vm6878, %v6867
    %6885 = vst.msk [vmem:[%s6829 + $0x30] sm:$0xff] %vm6878, %v6868
    %6886 = vst.msk [vmem:[%s6829 + $0x38] sm:$0xff] %vm6878, %v6869
    %6887 = vst.msk [vmem:[%s6829 + $0x40] sm:$0xff] %vm6878, %v6870
    %6888 = vst.msk [vmem:[%s6829 + $0x48] sm:$0xff] %vm6878, %v6871
    %6889 = vst.msk [vmem:[%s6829 + $0x50] sm:$0xff] %vm6878, %v6872
    %6890 = vst.msk [vmem:[%s6829 + $0x58] sm:$0xff] %vm6878, %v6873
    %6891 = vst.msk [vmem:[%s6829 + $0x60] sm:$0xff] %vm6878, %v6874
    %6892 = vst.msk [vmem:[%s6829 + $0x68] sm:$0xff] %vm6878, %v6875
    %6893 = vst.msk [vmem:[%s6829 + $0x70] sm:$0xff] %vm6878, %v6876
    %6894 = vst.msk [vmem:[%s6829 + $0x78] sm:$0xff] %vm6878, %v6877
  $region38: #{self_adaptive_voxelization_forward.7} parent=0 // loop_footer
    %s387 = sadd.s32 %s385, 1
  $region39: #{self_adaptive_voxelization_forward.7} parent=0 // loop_footer_branch
    %384 = sbr.rel target = $region35
  $region40: #{self_adaptive_voxelization_forward.7} parent=0 // loop_exit
    _
  // Predicated region
  $region41: #{self_adaptive_voxelization_forward.7} parent=0 // pred_check
    _
  $region42: #{self_adaptive_voxelization_forward.7} parent=0 // pred_check_branch
    %6896 = sbr.rel (0) target = $region44
  $region43: #{self_adaptive_voxelization_forward.7} parent=0 // pred_region
    _
  $region44: #{self_adaptive_voxelization_forward.7} parent=0 // pred_fallthru
    _
  // Predicated region
  $region45: #{self_adaptive_voxelization_forward.7} parent=0 // pred_check
    _
  $region46: #{self_adaptive_voxelization_forward.7} parent=0 // pred_check_branch
    %6898 = sbr.rel (0) target = $region48
  $region47: #{self_adaptive_voxelization_forward.7} parent=0 // pred_region
    _
  $region48: #{self_adaptive_voxelization_forward.7} parent=0 // pred_fallthru
    _

</llo_original>
